<compile_context>
chip_gen: v7x
topology: tpu7x:2x2x1
jax: 0.10.0
libtpu: 0.0.40
codegen_flags: <defaults>
</compile_context>

<pallas_src>
from functools import partial

import jax
import jax.numpy as jnp
from jax.experimental import pallas as pl
from jax.experimental.pallas import tpu as pltpu

# Layer sizes of the MLP.
_DIMS = [8, 16, 30, 15, 13, 10, 1]
_BN_EPS = 1e-5
_F32 = jnp.float32
_HIGH = jax.lax.Precision.HIGHEST

# 8-aligned (sublane-aligned) row offset of each layer's block inside the packs.
_ROW_OFF = [0, 16, 48, 64, 80, 96]
_PACK_ROWS = 104          # 96 + 8: room for the final 1-row block, 8-aligned
_PACK_COLS = 32           # max fan-in (30) rounded up


def _mlp_kernel(x_ref, w_ref, p_ref, out_ref):
    """Whole forward pass in one kernel; batch-on-lanes (F, N) activations."""
    n = x_ref.shape[1]
    inv_n = 1.0 / n
    # Ones column so the BN batch reductions run on the (mostly idle) MXU
    # instead of VPU reduce-adds:  (F, N) @ (N, 1) -> (F, 1).
    ones_col = jnp.ones((n, 1), _F32)

    def layer(h, r0, fin, fout):
        # Linear (bias elided: exactly cancelled by the batch-mean subtraction
        # of the training-mode BatchNorm that follows).
        w = w_ref[pl.ds(r0, fout), pl.ds(0, fin)]                        # (fout, fin)
        z = jnp.dot(w, h, precision=_HIGH,
                    preferred_element_type=_F32)                         # (fout, N)
        # BatchNorm1d (training mode): batch mean / biased variance; both
        # reductions on the MXU, f32-exact via HIGHEST precision.
        s1 = jnp.dot(z, ones_col, precision=_HIGH,
                     preferred_element_type=_F32)                        # (fout, 1)
        s2 = jnp.dot(z * z, ones_col, precision=_HIGH,
                     preferred_element_type=_F32)                        # (fout, 1)
        mean = s1 * inv_n
        var = jnp.maximum(s2 * inv_n - mean * mean, 0.0)                 # clamp >= 0
        gamma = p_ref[pl.ds(r0, fout), pl.ds(0, 1)]                      # (fout, 1)
        beta = p_ref[pl.ds(r0, fout), pl.ds(1, 1)]                       # (fout, 1)
        scale = gamma * jax.lax.rsqrt(var + _BN_EPS)
        shift = beta - mean * scale
        return jnp.maximum(z * scale + shift, 0.0)                       # fused BN+ReLU

    h = x_ref[...]                                                       # (8, N)
    for i in range(5):
        h = layer(h, _ROW_OFF[i], _DIMS[i], _DIMS[i + 1])
    # Final Linear(10 -> 1): lane-dense (1, N) output; its bias survives.
    w6 = w_ref[pl.ds(_ROW_OFF[5], 1), pl.ds(0, _DIMS[5])]                # (1, 10)
    b6 = p_ref[pl.ds(_ROW_OFF[5], 1), pl.ds(0, 1)]                       # (1, 1)
    out_ref[...] = jnp.dot(w6, h, precision=_HIGH,
                           preferred_element_type=_F32) + b6


def _vmem_limit_bytes(n):
    """Derive the VMEM budget from the batch size, capped by chip capacity."""
    need = 8 * 32 * n * 4 + (2 << 20)      # ~a handful of (<=32, N) f32 slabs
    try:
        cap = pltpu.get_tpu_info().vmem_capacity_bytes   # 64 MiB v7x, 128 MiB v5e/v6e
    except Exception:                                     # pragma: no cover
        cap = 64 << 20                                    # v7x-safe fallback
    return int(min(max(need, 32 << 20), cap - (8 << 20)))


@partial(jax.jit, static_argnames=("vmem_limit",))
def _forward_jit(x_fm, w_pack, p_pack, *, vmem_limit):
    n = x_fm.shape[1]
    vmem = pl.BlockSpec(memory_space=pltpu.MemorySpace.VMEM)
    out = pl.pallas_call(
        _mlp_kernel,
        out_shape=jax.ShapeDtypeStruct((1, n), _F32),
        in_specs=[vmem, vmem, vmem],
        out_specs=vmem,
        compiler_params=pltpu.CompilerParams(vmem_limit_bytes=vmem_limit),
    )(x_fm, w_pack, p_pack)
    return out[0, :]                       # squeeze(dim=1) -> (N,)


def target_prediction_forward(x_fm, w_pack, p_pack):
    """Forward pass.

    x_fm must be FEATURE-MAJOR (8, N) float32 (batch on the lane axis).
    Callers holding (N, 8) data should produce / cache it feature-major
    upstream rather than transposing per call (avoids an extra HBM pass).
    """
    assert x_fm.shape[0] == _DIMS[0], "expected feature-major (8, N) input"
    return _forward_jit(x_fm.astype(_F32), w_pack, p_pack,
                        vmem_limit=_vmem_limit_bytes(x_fm.shape[1]))


def init_params(key):
    """PyTorch-faithful params: per layer w (F_out, F_in), b (F_out,), and for
    BN layers gamma/beta (F_out,)."""
    layers = []
    keys = jax.random.split(key, 2 * (len(_DIMS) - 1))
    for i in range(len(_DIMS) - 1):
        fin, fout = _DIMS[i], _DIMS[i + 1]
        bound = 1.0 / (fin ** 0.5)
        w = jax.random.uniform(keys[2 * i], (fout, fin),
                               minval=-bound, maxval=bound, dtype=_F32)
        b = jax.random.uniform(keys[2 * i + 1], (fout,),
                               minval=-bound, maxval=bound, dtype=_F32)
        layer = {"w": w, "b": b}
        if i < len(_DIMS) - 2:             # BN after every layer but the last
            layer["gamma"] = jnp.ones((fout,), _F32)
            layer["beta"] = jnp.zeros((fout,), _F32)
        layers.append(layer)
    return layers


def pack_params(layers):
    """Pack all 16 tiny parameter tensors into two pre-padded arrays.

    w_pack (104, 32): layer i's weight at rows [_ROW_OFF[i], +F_out), cols [0, F_in).
    p_pack (104, 2):  gamma in col 0 / beta in col 1 at the same row offsets;
                      the final layer's bias sits at (row _ROW_OFF[5], col 0).
    Pre-BN Linear biases are intentionally dropped (exactly cancelled by the
    training-mode batch-mean subtraction).
    """
    w_pack = jnp.zeros((_PACK_ROWS, _PACK_COLS), _F32)
    p_pack = jnp.zeros((_PACK_ROWS, 2), _F32)
    for i, layer in enumerate(layers):
        r0 = _ROW_OFF[i]
        fout, fin = layer["w"].shape
        w_pack = w_pack.at[r0:r0 + fout, 0:fin].set(layer["w"])
        if "gamma" in layer:
            p_pack = p_pack.at[r0:r0 + fout, 0].set(layer["gamma"])
            p_pack = p_pack.at[r0:r0 + fout, 1].set(layer["beta"])
        else:
            p_pack = p_pack.at[r0:r0 + fout, 0].set(layer["b"])
    return w_pack, p_pack


def _reference_forward(x_nf, layers):
    """Pure-JAX reference faithful to the PyTorch module (f32, biases included,
    centered-variance training-mode BN).  x_nf: (N, 8)."""
    h = x_nf.astype(_F32)
    for layer in layers:
        h = jnp.dot(h, layer["w"].T, precision=_HIGH) + layer["b"]
        if "gamma" in layer:
            mean = jnp.mean(h, axis=0, keepdims=True)
            var = jnp.mean((h - mean) ** 2, axis=0, keepdims=True)
            h = (h - mean) * jax.lax.rsqrt(var + _BN_EPS)
            h = h * layer["gamma"] + layer["beta"]
            h = jnp.maximum(h, 0.0)
    return h[:, 0]


if __name__ == "__main__":
    key = jax.random.PRNGKey(0)
    k_x, k_p = jax.random.split(key)

    N = 16                                         # batch size (>1 needed for BN)
    # Input is produced feature-major (8, N) upstream — no wrapper-side transpose.
    x_fm = jax.random.normal(k_x, (_DIMS[0], N), dtype=jnp.float32)

    layers = init_params(k_p)
    w_pack, p_pack = pack_params(layers)

    out = target_prediction_forward(x_fm, w_pack, p_pack)
    out = jax.block_until_ready(out)

    ref = _reference_forward(x_fm.T, layers)
    assert out.shape == (N,)
    assert jnp.allclose(out, ref, atol=1e-4, rtol=1e-4), "mismatch vs reference"

    print("KERNEL_OK")
</pallas_src>

<mosaic_0001>
module attributes {stable_mosaic.version = 11 : i64} {
  func.func @_mlp_kernel(%arg0: memref<8x16xf32, #tpu.memory_space<vmem>>, %arg1: memref<104x32xf32, #tpu.memory_space<vmem>>, %arg2: memref<104x2xf32, #tpu.memory_space<vmem>>, %arg3: memref<1x16xf32, #tpu.memory_space<vmem>>) attributes {dimension_semantics = [], scalar_prefetch = 0 : i64, scratch_operands = 0 : i64, tpu.core_type = #tpu.core_type<tc>} {
    %cst = arith.constant 1.000000e+00 : f32
    %0 = vector.broadcast %cst : f32 to vector<16x1xf32>
    %c0 = arith.constant 0 : index
    %c0_0 = arith.constant 0 : index
    %1 = vector.load %arg0[%c0, %c0_0] : memref<8x16xf32, #tpu.memory_space<vmem>>, vector<8x16xf32>
    %c0_1 = arith.constant 0 : index
    %c0_2 = arith.constant 0 : index
    %2 = vector.load %arg1[%c0_1, %c0_2] : memref<104x32xf32, #tpu.memory_space<vmem>>, vector<16x8xf32>
    %cst_3 = arith.constant dense<0.000000e+00> : vector<16x16xf32>
    %3 = tpu.matmul %2, %1, %cst_3 {dimension_numbers = #tpu.dot_dimension_numbers<[1], [0], [0], [1], [0, 0, 1, 1], [], []>, precision = #tpu.contract_precision<fp32>} : vector<16x8xf32>, vector<8x16xf32>, vector<16x16xf32> -> vector<16x16xf32>
    %cst_4 = arith.constant dense<0.000000e+00> : vector<16x1xf32>
    %4 = tpu.matmul %3, %0, %cst_4 {dimension_numbers = #tpu.dot_dimension_numbers<[1], [0], [0], [1], [0, 0, 1, 1], [], []>, precision = #tpu.contract_precision<fp32>} : vector<16x16xf32>, vector<16x1xf32>, vector<16x1xf32> -> vector<16x1xf32>
    %5 = arith.mulf %3, %3 : vector<16x16xf32>
    %cst_5 = arith.constant dense<0.000000e+00> : vector<16x1xf32>
    %6 = tpu.matmul %5, %0, %cst_5 {dimension_numbers = #tpu.dot_dimension_numbers<[1], [0], [0], [1], [0, 0, 1, 1], [], []>, precision = #tpu.contract_precision<fp32>} : vector<16x16xf32>, vector<16x1xf32>, vector<16x1xf32> -> vector<16x1xf32>
    %cst_6 = arith.constant 6.250000e-02 : f32
    %7 = vector.broadcast %cst_6 : f32 to vector<16x1xf32>
    %8 = arith.mulf %4, %7 : vector<16x1xf32>
    %cst_7 = arith.constant 6.250000e-02 : f32
    %9 = vector.broadcast %cst_7 : f32 to vector<16x1xf32>
    %10 = arith.mulf %6, %9 : vector<16x1xf32>
    %11 = arith.mulf %8, %8 : vector<16x1xf32>
    %12 = arith.subf %10, %11 : vector<16x1xf32>
    %cst_8 = arith.constant 0.000000e+00 : f32
    %13 = vector.broadcast %cst_8 : f32 to vector<16x1xf32>
    %14 = arith.maximumf %12, %13 : vector<16x1xf32>
    %c0_9 = arith.constant 0 : index
    %c0_10 = arith.constant 0 : index
    %15 = vector.load %arg2[%c0_9, %c0_10] : memref<104x2xf32, #tpu.memory_space<vmem>>, vector<16x1xf32>
    %c0_11 = arith.constant 0 : index
    %c1 = arith.constant 1 : index
    %16 = vector.load %arg2[%c0_11, %c1] : memref<104x2xf32, #tpu.memory_space<vmem>>, vector<16x1xf32>
    %cst_12 = arith.constant 9.99999974E-6 : f32
    %17 = vector.broadcast %cst_12 : f32 to vector<16x1xf32>
    %18 = arith.addf %14, %17 : vector<16x1xf32>
    %19 = math.rsqrt %18 : vector<16x1xf32>
    %20 = arith.mulf %15, %19 : vector<16x1xf32>
    %21 = arith.mulf %8, %20 : vector<16x1xf32>
    %22 = arith.subf %16, %21 : vector<16x1xf32>
    %23 = vector.broadcast %20 : vector<16x1xf32> to vector<16x16xf32>
    %24 = arith.mulf %3, %23 : vector<16x16xf32>
    %25 = vector.broadcast %22 : vector<16x1xf32> to vector<16x16xf32>
    %26 = arith.addf %24, %25 : vector<16x16xf32>
    %cst_13 = arith.constant 0.000000e+00 : f32
    %27 = vector.broadcast %cst_13 : f32 to vector<16x16xf32>
    %28 = arith.maximumf %26, %27 : vector<16x16xf32>
    %c16 = arith.constant 16 : index
    %c0_14 = arith.constant 0 : index
    %29 = vector.load %arg1[%c16, %c0_14] : memref<104x32xf32, #tpu.memory_space<vmem>>, vector<30x16xf32>
    %cst_15 = arith.constant dense<0.000000e+00> : vector<30x16xf32>
    %30 = tpu.matmul %29, %28, %cst_15 {dimension_numbers = #tpu.dot_dimension_numbers<[1], [0], [0], [1], [0, 0, 1, 1], [], []>, precision = #tpu.contract_precision<fp32>} : vector<30x16xf32>, vector<16x16xf32>, vector<30x16xf32> -> vector<30x16xf32>
    %cst_16 = arith.constant dense<0.000000e+00> : vector<30x1xf32>
    %31 = tpu.matmul %30, %0, %cst_16 {dimension_numbers = #tpu.dot_dimension_numbers<[1], [0], [0], [1], [0, 0, 1, 1], [], []>, precision = #tpu.contract_precision<fp32>} : vector<30x16xf32>, vector<16x1xf32>, vector<30x1xf32> -> vector<30x1xf32>
    %32 = arith.mulf %30, %30 : vector<30x16xf32>
    %cst_17 = arith.constant dense<0.000000e+00> : vector<30x1xf32>
    %33 = tpu.matmul %32, %0, %cst_17 {dimension_numbers = #tpu.dot_dimension_numbers<[1], [0], [0], [1], [0, 0, 1, 1], [], []>, precision = #tpu.contract_precision<fp32>} : vector<30x16xf32>, vector<16x1xf32>, vector<30x1xf32> -> vector<30x1xf32>
    %cst_18 = arith.constant 6.250000e-02 : f32
    %34 = vector.broadcast %cst_18 : f32 to vector<30x1xf32>
    %35 = arith.mulf %31, %34 : vector<30x1xf32>
    %cst_19 = arith.constant 6.250000e-02 : f32
    %36 = vector.broadcast %cst_19 : f32 to vector<30x1xf32>
    %37 = arith.mulf %33, %36 : vector<30x1xf32>
    %38 = arith.mulf %35, %35 : vector<30x1xf32>
    %39 = arith.subf %37, %38 : vector<30x1xf32>
    %cst_20 = arith.constant 0.000000e+00 : f32
    %40 = vector.broadcast %cst_20 : f32 to vector<30x1xf32>
    %41 = arith.maximumf %39, %40 : vector<30x1xf32>
    %c16_21 = arith.constant 16 : index
    %c0_22 = arith.constant 0 : index
    %42 = vector.load %arg2[%c16_21, %c0_22] : memref<104x2xf32, #tpu.memory_space<vmem>>, vector<30x1xf32>
    %c16_23 = arith.constant 16 : index
    %c1_24 = arith.constant 1 : index
    %43 = vector.load %arg2[%c16_23, %c1_24] : memref<104x2xf32, #tpu.memory_space<vmem>>, vector<30x1xf32>
    %cst_25 = arith.constant 9.99999974E-6 : f32
    %44 = vector.broadcast %cst_25 : f32 to vector<30x1xf32>
    %45 = arith.addf %41, %44 : vector<30x1xf32>
    %46 = math.rsqrt %45 : vector<30x1xf32>
    %47 = arith.mulf %42, %46 : vector<30x1xf32>
    %48 = arith.mulf %35, %47 : vector<30x1xf32>
    %49 = arith.subf %43, %48 : vector<30x1xf32>
    %50 = vector.broadcast %47 : vector<30x1xf32> to vector<30x16xf32>
    %51 = arith.mulf %30, %50 : vector<30x16xf32>
    %52 = vector.broadcast %49 : vector<30x1xf32> to vector<30x16xf32>
    %53 = arith.addf %51, %52 : vector<30x16xf32>
    %cst_26 = arith.constant 0.000000e+00 : f32
    %54 = vector.broadcast %cst_26 : f32 to vector<30x16xf32>
    %55 = arith.maximumf %53, %54 : vector<30x16xf32>
    %c48 = arith.constant 48 : index
    %c0_27 = arith.constant 0 : index
    %56 = vector.load %arg1[%c48, %c0_27] : memref<104x32xf32, #tpu.memory_space<vmem>>, vector<15x30xf32>
    %cst_28 = arith.constant dense<0.000000e+00> : vector<15x16xf32>
    %57 = tpu.matmul %56, %55, %cst_28 {dimension_numbers = #tpu.dot_dimension_numbers<[1], [0], [0], [1], [0, 0, 1, 1], [], []>, precision = #tpu.contract_precision<fp32>} : vector<15x30xf32>, vector<30x16xf32>, vector<15x16xf32> -> vector<15x16xf32>
    %cst_29 = arith.constant dense<0.000000e+00> : vector<15x1xf32>
    %58 = tpu.matmul %57, %0, %cst_29 {dimension_numbers = #tpu.dot_dimension_numbers<[1], [0], [0], [1], [0, 0, 1, 1], [], []>, precision = #tpu.contract_precision<fp32>} : vector<15x16xf32>, vector<16x1xf32>, vector<15x1xf32> -> vector<15x1xf32>
    %59 = arith.mulf %57, %57 : vector<15x16xf32>
    %cst_30 = arith.constant dense<0.000000e+00> : vector<15x1xf32>
    %60 = tpu.matmul %59, %0, %cst_30 {dimension_numbers = #tpu.dot_dimension_numbers<[1], [0], [0], [1], [0, 0, 1, 1], [], []>, precision = #tpu.contract_precision<fp32>} : vector<15x16xf32>, vector<16x1xf32>, vector<15x1xf32> -> vector<15x1xf32>
    %cst_31 = arith.constant 6.250000e-02 : f32
    %61 = vector.broadcast %cst_31 : f32 to vector<15x1xf32>
    %62 = arith.mulf %58, %61 : vector<15x1xf32>
    %cst_32 = arith.constant 6.250000e-02 : f32
    %63 = vector.broadcast %cst_32 : f32 to vector<15x1xf32>
    %64 = arith.mulf %60, %63 : vector<15x1xf32>
    %65 = arith.mulf %62, %62 : vector<15x1xf32>
    %66 = arith.subf %64, %65 : vector<15x1xf32>
    %cst_33 = arith.constant 0.000000e+00 : f32
    %67 = vector.broadcast %cst_33 : f32 to vector<15x1xf32>
    %68 = arith.maximumf %66, %67 : vector<15x1xf32>
    %c48_34 = arith.constant 48 : index
    %c0_35 = arith.constant 0 : index
    %69 = vector.load %arg2[%c48_34, %c0_35] : memref<104x2xf32, #tpu.memory_space<vmem>>, vector<15x1xf32>
    %c48_36 = arith.constant 48 : index
    %c1_37 = arith.constant 1 : index
    %70 = vector.load %arg2[%c48_36, %c1_37] : memref<104x2xf32, #tpu.memory_space<vmem>>, vector<15x1xf32>
    %cst_38 = arith.constant 9.99999974E-6 : f32
    %71 = vector.broadcast %cst_38 : f32 to vector<15x1xf32>
    %72 = arith.addf %68, %71 : vector<15x1xf32>
    %73 = math.rsqrt %72 : vector<15x1xf32>
    %74 = arith.mulf %69, %73 : vector<15x1xf32>
    %75 = arith.mulf %62, %74 : vector<15x1xf32>
    %76 = arith.subf %70, %75 : vector<15x1xf32>
    %77 = vector.broadcast %74 : vector<15x1xf32> to vector<15x16xf32>
    %78 = arith.mulf %57, %77 : vector<15x16xf32>
    %79 = vector.broadcast %76 : vector<15x1xf32> to vector<15x16xf32>
    %80 = arith.addf %78, %79 : vector<15x16xf32>
    %cst_39 = arith.constant 0.000000e+00 : f32
    %81 = vector.broadcast %cst_39 : f32 to vector<15x16xf32>
    %82 = arith.maximumf %80, %81 : vector<15x16xf32>
    %c64 = arith.constant 64 : index
    %c0_40 = arith.constant 0 : index
    %83 = vector.load %arg1[%c64, %c0_40] : memref<104x32xf32, #tpu.memory_space<vmem>>, vector<13x15xf32>
    %cst_41 = arith.constant dense<0.000000e+00> : vector<13x16xf32>
    %84 = tpu.matmul %83, %82, %cst_41 {dimension_numbers = #tpu.dot_dimension_numbers<[1], [0], [0], [1], [0, 0, 1, 1], [], []>, precision = #tpu.contract_precision<fp32>} : vector<13x15xf32>, vector<15x16xf32>, vector<13x16xf32> -> vector<13x16xf32>
    %cst_42 = arith.constant dense<0.000000e+00> : vector<13x1xf32>
    %85 = tpu.matmul %84, %0, %cst_42 {dimension_numbers = #tpu.dot_dimension_numbers<[1], [0], [0], [1], [0, 0, 1, 1], [], []>, precision = #tpu.contract_precision<fp32>} : vector<13x16xf32>, vector<16x1xf32>, vector<13x1xf32> -> vector<13x1xf32>
    %86 = arith.mulf %84, %84 : vector<13x16xf32>
    %cst_43 = arith.constant dense<0.000000e+00> : vector<13x1xf32>
    %87 = tpu.matmul %86, %0, %cst_43 {dimension_numbers = #tpu.dot_dimension_numbers<[1], [0], [0], [1], [0, 0, 1, 1], [], []>, precision = #tpu.contract_precision<fp32>} : vector<13x16xf32>, vector<16x1xf32>, vector<13x1xf32> -> vector<13x1xf32>
    %cst_44 = arith.constant 6.250000e-02 : f32
    %88 = vector.broadcast %cst_44 : f32 to vector<13x1xf32>
    %89 = arith.mulf %85, %88 : vector<13x1xf32>
    %cst_45 = arith.constant 6.250000e-02 : f32
    %90 = vector.broadcast %cst_45 : f32 to vector<13x1xf32>
    %91 = arith.mulf %87, %90 : vector<13x1xf32>
    %92 = arith.mulf %89, %89 : vector<13x1xf32>
    %93 = arith.subf %91, %92 : vector<13x1xf32>
    %cst_46 = arith.constant 0.000000e+00 : f32
    %94 = vector.broadcast %cst_46 : f32 to vector<13x1xf32>
    %95 = arith.maximumf %93, %94 : vector<13x1xf32>
    %c64_47 = arith.constant 64 : index
    %c0_48 = arith.constant 0 : index
    %96 = vector.load %arg2[%c64_47, %c0_48] : memref<104x2xf32, #tpu.memory_space<vmem>>, vector<13x1xf32>
    %c64_49 = arith.constant 64 : index
    %c1_50 = arith.constant 1 : index
    %97 = vector.load %arg2[%c64_49, %c1_50] : memref<104x2xf32, #tpu.memory_space<vmem>>, vector<13x1xf32>
    %cst_51 = arith.constant 9.99999974E-6 : f32
    %98 = vector.broadcast %cst_51 : f32 to vector<13x1xf32>
    %99 = arith.addf %95, %98 : vector<13x1xf32>
    %100 = math.rsqrt %99 : vector<13x1xf32>
    %101 = arith.mulf %96, %100 : vector<13x1xf32>
    %102 = arith.mulf %89, %101 : vector<13x1xf32>
    %103 = arith.subf %97, %102 : vector<13x1xf32>
    %104 = vector.broadcast %101 : vector<13x1xf32> to vector<13x16xf32>
    %105 = arith.mulf %84, %104 : vector<13x16xf32>
    %106 = vector.broadcast %103 : vector<13x1xf32> to vector<13x16xf32>
    %107 = arith.addf %105, %106 : vector<13x16xf32>
    %cst_52 = arith.constant 0.000000e+00 : f32
    %108 = vector.broadcast %cst_52 : f32 to vector<13x16xf32>
    %109 = arith.maximumf %107, %108 : vector<13x16xf32>
    %c80 = arith.constant 80 : index
    %c0_53 = arith.constant 0 : index
    %110 = vector.load %arg1[%c80, %c0_53] : memref<104x32xf32, #tpu.memory_space<vmem>>, vector<10x13xf32>
    %cst_54 = arith.constant dense<0.000000e+00> : vector<10x16xf32>
    %111 = tpu.matmul %110, %109, %cst_54 {dimension_numbers = #tpu.dot_dimension_numbers<[1], [0], [0], [1], [0, 0, 1, 1], [], []>, precision = #tpu.contract_precision<fp32>} : vector<10x13xf32>, vector<13x16xf32>, vector<10x16xf32> -> vector<10x16xf32>
    %cst_55 = arith.constant dense<0.000000e+00> : vector<10x1xf32>
    %112 = tpu.matmul %111, %0, %cst_55 {dimension_numbers = #tpu.dot_dimension_numbers<[1], [0], [0], [1], [0, 0, 1, 1], [], []>, precision = #tpu.contract_precision<fp32>} : vector<10x16xf32>, vector<16x1xf32>, vector<10x1xf32> -> vector<10x1xf32>
    %113 = arith.mulf %111, %111 : vector<10x16xf32>
    %cst_56 = arith.constant dense<0.000000e+00> : vector<10x1xf32>
    %114 = tpu.matmul %113, %0, %cst_56 {dimension_numbers = #tpu.dot_dimension_numbers<[1], [0], [0], [1], [0, 0, 1, 1], [], []>, precision = #tpu.contract_precision<fp32>} : vector<10x16xf32>, vector<16x1xf32>, vector<10x1xf32> -> vector<10x1xf32>
    %cst_57 = arith.constant 6.250000e-02 : f32
    %115 = vector.broadcast %cst_57 : f32 to vector<10x1xf32>
    %116 = arith.mulf %112, %115 : vector<10x1xf32>
    %cst_58 = arith.constant 6.250000e-02 : f32
    %117 = vector.broadcast %cst_58 : f32 to vector<10x1xf32>
    %118 = arith.mulf %114, %117 : vector<10x1xf32>
    %119 = arith.mulf %116, %116 : vector<10x1xf32>
    %120 = arith.subf %118, %119 : vector<10x1xf32>
    %cst_59 = arith.constant 0.000000e+00 : f32
    %121 = vector.broadcast %cst_59 : f32 to vector<10x1xf32>
    %122 = arith.maximumf %120, %121 : vector<10x1xf32>
    %c80_60 = arith.constant 80 : index
    %c0_61 = arith.constant 0 : index
    %123 = vector.load %arg2[%c80_60, %c0_61] : memref<104x2xf32, #tpu.memory_space<vmem>>, vector<10x1xf32>
    %c80_62 = arith.constant 80 : index
    %c1_63 = arith.constant 1 : index
    %124 = vector.load %arg2[%c80_62, %c1_63] : memref<104x2xf32, #tpu.memory_space<vmem>>, vector<10x1xf32>
    %cst_64 = arith.constant 9.99999974E-6 : f32
    %125 = vector.broadcast %cst_64 : f32 to vector<10x1xf32>
    %126 = arith.addf %122, %125 : vector<10x1xf32>
    %127 = math.rsqrt %126 : vector<10x1xf32>
    %128 = arith.mulf %123, %127 : vector<10x1xf32>
    %129 = arith.mulf %116, %128 : vector<10x1xf32>
    %130 = arith.subf %124, %129 : vector<10x1xf32>
    %131 = vector.broadcast %128 : vector<10x1xf32> to vector<10x16xf32>
    %132 = arith.mulf %111, %131 : vector<10x16xf32>
    %133 = vector.broadcast %130 : vector<10x1xf32> to vector<10x16xf32>
    %134 = arith.addf %132, %133 : vector<10x16xf32>
    %cst_65 = arith.constant 0.000000e+00 : f32
    %135 = vector.broadcast %cst_65 : f32 to vector<10x16xf32>
    %136 = arith.maximumf %134, %135 : vector<10x16xf32>
    %c96 = arith.constant 96 : index
    %c0_66 = arith.constant 0 : index
    %137 = vector.load %arg1[%c96, %c0_66] : memref<104x32xf32, #tpu.memory_space<vmem>>, vector<1x10xf32>
    %c96_67 = arith.constant 96 : index
    %c0_68 = arith.constant 0 : index
    %138 = vector.load %arg2[%c96_67, %c0_68] : memref<104x2xf32, #tpu.memory_space<vmem>>, vector<1x1xf32>
    %cst_69 = arith.constant dense<0.000000e+00> : vector<1x16xf32>
    %139 = tpu.matmul %137, %136, %cst_69 {dimension_numbers = #tpu.dot_dimension_numbers<[1], [0], [0], [1], [0, 0, 1, 1], [], []>, precision = #tpu.contract_precision<fp32>} : vector<1x10xf32>, vector<10x16xf32>, vector<1x16xf32> -> vector<1x16xf32>
    %140 = vector.broadcast %138 : vector<1x1xf32> to vector<1x16xf32>
    %141 = arith.addf %139, %140 : vector<1x16xf32>
    %c0_70 = arith.constant 0 : index
    %c0_71 = arith.constant 0 : index
    %142 = vector.load %arg3[%c0_70, %c0_71] : memref<1x16xf32, #tpu.memory_space<vmem>>, vector<1x16xf32>
    tpu.vector_store %arg3[%c0_70, %c0_71], %141 {strides = array<i32>} : memref<1x16xf32, #tpu.memory_space<vmem>>, vector<1x16xf32>,
    return
  }
}

</mosaic_0001>

<llo_original>
// kernel: _forward_jit.1
$region0: #{_forward_jit.1}
  #allocation0 [shape = 'u32[]', space=smem, size = 0x4, offset = 0x4, fixed_abs, tag = 'smem constant byte address 0x4 - core index']
  #allocation1 [shape = 'u32[144,128]{1,0:T(1,128)}', space=vmem, size = 0x12000, scoped, tag = 'internal scratch']
  %s0 = inlined_call_operand.vmem [shape: f32[8,16], index: 0, kind: input, shape index: {}]
  %s1 = inlined_call_operand.vmem [shape: f32[104,32], index: 1, kind: input, shape index: {}]
  %s2 = inlined_call_operand.vmem [shape: f32[104,2], index: 2, kind: input, shape index: {}]
  %s3 = inlined_call_operand.hbm [shape: f32[1,16], index: 3, kind: output, shape index: {}]
  %s4 = sld [smem:[#allocation0]]
  $region22: #{_forward_jit.1} parent=0
    _
  %s6 = ssub.s32 1, %s4
  %s7 = scalar_select 0, %s6, %s4
  $region1: #{_forward_jit.1} parent=0
    #allocation2 [shape = 'u8[512]{0}', space=vmem, size = 0x400, scoped, tag = 'output window, operand 0, single buffered']
    #allocation3 [shape = 's32[1]{0}', space=sflag, size = 0x4, scoped, tag = 'scoped memory for _forward_jit.1']
    %8 = vsyncpa [#allocation3], 0
    // Predicated region
    $region2: #{_forward_jit.1} parent=1 // pred_check
      _
    $region3: #{_forward_jit.1} parent=1 // pred_check_branch
      %10 = sbr.rel (0) target = $region5
    $region4: #{_forward_jit.1} parent=1 // pred_region
      _
    $region5: #{_forward_jit.1} parent=1 // pred_fallthru
      _
    // Predicated region
    $region6: #{_forward_jit.1} parent=1 // pred_check
      _
    $region7: #{_forward_jit.1} parent=1 // pred_check_branch
      %12 = sbr.rel (0) target = $region9
    $region8: #{_forward_jit.1} parent=1 // pred_region
      _
    $region9: #{_forward_jit.1} parent=1 // pred_fallthru
      _
    // Predicated region
    $region10: #{_forward_jit.1} parent=1 // pred_check
      _
    $region11: #{_forward_jit.1} parent=1 // pred_check_branch
      %14 = sbr.rel (0) target = $region13
    $region12: #{_forward_jit.1} parent=1 // pred_region
      _
    $region13: #{_forward_jit.1} parent=1 // pred_fallthru
      _
    %v15 = vld [vmem:[%s0] sm:$0xff]
    %v16 = vld [vmem:[%s1] sm:$0xff]
    %v17 = vld [vmem:[%s1 + $0x8] sm:$0xff]
    %vm18 = vcmask 64512
    %v20 = vsel %vm18, %v16, 0
    %v23 = vsel %vm18, %v17, 0
    %25 = vmatprep.subr.mxu0 0.0
    %v26 = vand.u32 %v15, 4294901760
    %27 = vmatpush1.msra.mxu0 %v26
    %28 = vmatprep.subr.mxu0 0.0
    %29 = vmatpush1.msra.mxu0 0.0
    %30 = vmatprep.subr.mxu0 0.0
    %31 = vmatpush1.msra.mxu0 0.0
    %32 = vmatprep.subr.mxu0 0.0
    %33 = vmatpush1.msra.mxu0 0.0
    %34 = vmatprep.subr.mxu0 0.0
    %35 = vmatpush1.msra.mxu0 0.0
    %36 = vmatprep.subr.mxu0 0.0
    %37 = vmatpush1.msra.mxu0 0.0
    %38 = vmatprep.subr.mxu0 0.0
    %39 = vmatpush1.msra.mxu0 0.0
    %40 = vmatprep.subr.mxu0 0.0
    %41 = vmatpush1.msra.mxu0 0.0
    %42 = vmatprep.subr.mxu0 0.0
    %43 = vmatpush1.msra.mxu0 0.0
    %44 = vmatprep.subr.mxu0 0.0
    %45 = vmatpush1.msra.mxu0 0.0
    %46 = vmatprep.subr.mxu0 0.0
    %47 = vmatpush1.msra.mxu0 0.0
    %48 = vmatprep.subr.mxu0 0.0
    %49 = vmatpush1.msra.mxu0 0.0
    %50 = vmatprep.subr.mxu0 0.0
    %51 = vmatpush1.msra.mxu0 0.0
    %52 = vmatprep.subr.mxu0 0.0
    %53 = vmatpush1.msra.mxu0 0.0
    %54 = vmatprep.subr.mxu0 0.0
    %55 = vmatpush1.msra.mxu0 0.0
    %56 = vmatprep.subr.mxu0 0.0
    %57 = vmatpush1.msra.mxu0 0.0
    %58 = vmatprep.subr.mxu0 0.0
    %59 = vmatpush1.msra.mxu0 0.0
    %60 = vmatprep.subr.mxu0 0.0
    %61 = vmatpush1.msra.mxu0 0.0
    %62 = vmatprep.subr.mxu0 0.0
    %63 = vmatpush1.msra.mxu0 0.0
    %64 = vmatprep.subr.mxu0 0.0
    %65 = vmatpush1.msra.mxu0 0.0
    %66 = vmatprep.subr.mxu0 0.0
    %67 = vmatpush1.msra.mxu0 0.0
    %68 = vmatprep.subr.mxu0 0.0
    %69 = vmatpush1.msra.mxu0 0.0
    %70 = vmatprep.subr.mxu0 0.0
    %71 = vmatpush1.msra.mxu0 0.0
    %72 = vmatprep.subr.mxu0 0.0
    %73 = vmatpush1.msra.mxu0 0.0
    %74 = vmatprep.subr.mxu0 0.0
    %75 = vmatpush1.msra.mxu0 0.0
    %76 = vmatprep.subr.mxu0 0.0
    %77 = vmatpush1.msra.mxu0 0.0
    %78 = vmatprep.subr.mxu0 0.0
    %79 = vmatpush1.msra.mxu0 0.0
    %80 = vmatprep.subr.mxu0 0.0
    %81 = vmatpush1.msra.mxu0 0.0
    %82 = vmatprep.subr.mxu0 0.0
    %83 = vmatpush1.msra.mxu0 0.0
    %84 = vmatprep.subr.mxu0 0.0
    %85 = vmatpush1.msra.mxu0 0.0
    %86 = vmatprep.subr.mxu0 0.0
    %87 = vmatpush1.msra.mxu0 0.0
    %88 = vmatprep.subr.mxu0 0.0
    %89 = vmatpush1.msra.mxu0 0.0
    %90 = vmatprep.mubr.f32.mxu0 0.0
    %v91 = vand.u32 %v20, 4294901760
    %v92 = vsub.f32 %v20, %v91
    %v93 = vand.u32 %v92, 4294901760
    %v94 = vsub.f32 %v92, %v93
    %v95 = vand.u32 %v94, 4294901760
    %96 = vmatmul.mubr.f32.gmra.mrb[0].mxu0 %v95
    %v97 = vpop.f32.mrb[0].mxu0
    %v98 = vadd.f32 0.0, %v97
    %v99 = vpop.f32.mrb[0].mxu0
    %100 = vmatprep.mubr.f32.mxu0 0.0
    %v101 = vand.u32 %v23, 4294901760
    %v102 = vsub.f32 %v23, %v101
    %v103 = vand.u32 %v102, 4294901760
    %v104 = vsub.f32 %v102, %v103
    %v105 = vand.u32 %v104, 4294901760
    %106 = vmatmul.mubr.f32.gmra.mrb[0].mxu0 %v105
    %v107 = vpop.f32.mrb[0].mxu0
    %v108 = vadd.f32 0.0, %v107
    %v109 = vpop.f32.mrb[0].mxu0
    %110 = vdwg.mxu0
    %111 = vmatprep.subr.mxu0 0.0
    %v112 = vand.u32 %v15, 4294901760
    %v113 = vsub.f32 %v15, %v112
    %v114 = vand.u32 %v113, 4294901760
    %v115 = vsub.f32 %v113, %v114
    %v116 = vand.u32 %v115, 4294901760
    %117 = vmatpush1.msra.mxu0 %v116
    %118 = vmatprep.subr.mxu0 0.0
    %119 = vmatpush1.msra.mxu0 0.0
    %120 = vmatprep.subr.mxu0 0.0
    %121 = vmatpush1.msra.mxu0 0.0
    %122 = vmatprep.subr.mxu0 0.0
    %123 = vmatpush1.msra.mxu0 0.0
    %124 = vmatprep.subr.mxu0 0.0
    %125 = vmatpush1.msra.mxu0 0.0
    %126 = vmatprep.subr.mxu0 0.0
    %127 = vmatpush1.msra.mxu0 0.0
    %128 = vmatprep.subr.mxu0 0.0
    %129 = vmatpush1.msra.mxu0 0.0
    %130 = vmatprep.subr.mxu0 0.0
    %131 = vmatpush1.msra.mxu0 0.0
    %132 = vmatprep.subr.mxu0 0.0
    %133 = vmatpush1.msra.mxu0 0.0
    %134 = vmatprep.subr.mxu0 0.0
    %135 = vmatpush1.msra.mxu0 0.0
    %136 = vmatprep.subr.mxu0 0.0
    %137 = vmatpush1.msra.mxu0 0.0
    %138 = vmatprep.subr.mxu0 0.0
    %139 = vmatpush1.msra.mxu0 0.0
    %140 = vmatprep.subr.mxu0 0.0
    %141 = vmatpush1.msra.mxu0 0.0
    %142 = vmatprep.subr.mxu0 0.0
    %143 = vmatpush1.msra.mxu0 0.0
    %144 = vmatprep.subr.mxu0 0.0
    %145 = vmatpush1.msra.mxu0 0.0
    %146 = vmatprep.subr.mxu0 0.0
    %147 = vmatpush1.msra.mxu0 0.0
    %148 = vmatprep.subr.mxu0 0.0
    %149 = vmatpush1.msra.mxu0 0.0
    %150 = vmatprep.subr.mxu0 0.0
    %151 = vmatpush1.msra.mxu0 0.0
    %152 = vmatprep.subr.mxu0 0.0
    %153 = vmatpush1.msra.mxu0 0.0
    %154 = vmatprep.subr.mxu0 0.0
    %155 = vmatpush1.msra.mxu0 0.0
    %156 = vmatprep.subr.mxu0 0.0
    %157 = vmatpush1.msra.mxu0 0.0
    %158 = vmatprep.subr.mxu0 0.0
    %159 = vmatpush1.msra.mxu0 0.0
    %160 = vmatprep.subr.mxu0 0.0
    %161 = vmatpush1.msra.mxu0 0.0
    %162 = vmatprep.subr.mxu0 0.0
    %163 = vmatpush1.msra.mxu0 0.0
    %164 = vmatprep.subr.mxu0 0.0
    %165 = vmatpush1.msra.mxu0 0.0
    %166 = vmatprep.subr.mxu0 0.0
    %167 = vmatpush1.msra.mxu0 0.0
    %168 = vmatprep.subr.mxu0 0.0
    %169 = vmatpush1.msra.mxu0 0.0
    %170 = vmatprep.subr.mxu0 0.0
    %171 = vmatpush1.msra.mxu0 0.0
    %172 = vmatprep.subr.mxu0 0.0
    %173 = vmatpush1.msra.mxu0 0.0
    %174 = vmatprep.subr.mxu0 0.0
    %175 = vmatpush1.msra.mxu0 0.0
    %176 = vmatprep.subr.mxu0 0.0
    %177 = vmatpush1.msra.mxu0 0.0
    %178 = vmatprep.subr.mxu0 0.0
    %179 = vmatpush1.msra.mxu0 0.0
    %180 = vmatprep.mubr.f32.mxu0 0.0
    %v181 = vand.u32 %v20, 4294901760
    %182 = vmatmul.mubr.f32.gmra.mrb[0].mxu0 %v181
    %v183 = vpop.f32.mrb[0].mxu0
    %v184 = vadd.f32 %v98, %v183
    %v185 = vpop.f32.mrb[0].mxu0
    %186 = vmatprep.mubr.f32.mxu0 0.0
    %v187 = vand.u32 %v23, 4294901760
    %188 = vmatmul.mubr.f32.gmra.mrb[0].mxu0 %v187
    %v189 = vpop.f32.mrb[0].mxu0
    %v190 = vadd.f32 %v108, %v189
    %v191 = vpop.f32.mrb[0].mxu0
    %192 = vdwg.mxu0
    %193 = vmatprep.subr.mxu0 0.0
    %v194 = vand.u32 %v15, 4294901760
    %v195 = vsub.f32 %v15, %v194
    %196 = vmatpush1.msra.mxu0 %v195
    %197 = vmatprep.subr.mxu0 0.0
    %198 = vmatpush1.msra.mxu0 0.0
    %199 = vmatprep.subr.mxu0 0.0
    %200 = vmatpush1.msra.mxu0 0.0
    %201 = vmatprep.subr.mxu0 0.0
    %202 = vmatpush1.msra.mxu0 0.0
    %203 = vmatprep.subr.mxu0 0.0
    %204 = vmatpush1.msra.mxu0 0.0
    %205 = vmatprep.subr.mxu0 0.0
    %206 = vmatpush1.msra.mxu0 0.0
    %207 = vmatprep.subr.mxu0 0.0
    %208 = vmatpush1.msra.mxu0 0.0
    %209 = vmatprep.subr.mxu0 0.0
    %210 = vmatpush1.msra.mxu0 0.0
    %211 = vmatprep.subr.mxu0 0.0
    %212 = vmatpush1.msra.mxu0 0.0
    %213 = vmatprep.subr.mxu0 0.0
    %214 = vmatpush1.msra.mxu0 0.0
    %215 = vmatprep.subr.mxu0 0.0
    %216 = vmatpush1.msra.mxu0 0.0
    %217 = vmatprep.subr.mxu0 0.0
    %218 = vmatpush1.msra.mxu0 0.0
    %219 = vmatprep.subr.mxu0 0.0
    %220 = vmatpush1.msra.mxu0 0.0
    %221 = vmatprep.subr.mxu0 0.0
    %222 = vmatpush1.msra.mxu0 0.0
    %223 = vmatprep.subr.mxu0 0.0
    %224 = vmatpush1.msra.mxu0 0.0
    %225 = vmatprep.subr.mxu0 0.0
    %226 = vmatpush1.msra.mxu0 0.0
    %227 = vmatprep.subr.mxu0 0.0
    %228 = vmatpush1.msra.mxu0 0.0
    %229 = vmatprep.subr.mxu0 0.0
    %230 = vmatpush1.msra.mxu0 0.0
    %231 = vmatprep.subr.mxu0 0.0
    %232 = vmatpush1.msra.mxu0 0.0
    %233 = vmatprep.subr.mxu0 0.0
    %234 = vmatpush1.msra.mxu0 0.0
    %235 = vmatprep.subr.mxu0 0.0
    %236 = vmatpush1.msra.mxu0 0.0
    %237 = vmatprep.subr.mxu0 0.0
    %238 = vmatpush1.msra.mxu0 0.0
    %239 = vmatprep.subr.mxu0 0.0
    %240 = vmatpush1.msra.mxu0 0.0
    %241 = vmatprep.subr.mxu0 0.0
    %242 = vmatpush1.msra.mxu0 0.0
    %243 = vmatprep.subr.mxu0 0.0
    %244 = vmatpush1.msra.mxu0 0.0
    %245 = vmatprep.subr.mxu0 0.0
    %246 = vmatpush1.msra.mxu0 0.0
    %247 = vmatprep.subr.mxu0 0.0
    %248 = vmatpush1.msra.mxu0 0.0
    %249 = vmatprep.subr.mxu0 0.0
    %250 = vmatpush1.msra.mxu0 0.0
    %251 = vmatprep.subr.mxu0 0.0
    %252 = vmatpush1.msra.mxu0 0.0
    %253 = vmatprep.subr.mxu0 0.0
    %254 = vmatpush1.msra.mxu0 0.0
    %255 = vmatprep.subr.mxu0 0.0
    %256 = vmatpush1.msra.mxu0 0.0
    %257 = vmatprep.subr.mxu0 0.0
    %258 = vmatpush1.msra.mxu0 0.0
    %259 = vmatprep.mubr.f32.mxu0 0.0
    %v260 = vand.u32 %v20, 4294901760
    %v261 = vsub.f32 %v20, %v260
    %262 = vmatmul.mubr.f32.gmra.mrb[0].mxu0 %v261
    %v263 = vpop.f32.mrb[0].mxu0
    %v264 = vadd.f32 %v184, %v263
    %v265 = vpop.f32.mrb[0].mxu0
    %266 = vmatprep.mubr.f32.mxu0 0.0
    %v267 = vand.u32 %v23, 4294901760
    %v268 = vsub.f32 %v23, %v267
    %269 = vmatmul.mubr.f32.gmra.mrb[0].mxu0 %v268
    %v270 = vpop.f32.mrb[0].mxu0
    %v271 = vadd.f32 %v190, %v270
    %v272 = vpop.f32.mrb[0].mxu0
    %273 = vdwg.mxu0
    %274 = vmatprep.subr.mxu0 0.0
    %v275 = vand.u32 %v15, 4294901760
    %276 = vmatpush1.msra.mxu0 %v275
    %277 = vmatprep.subr.mxu0 0.0
    %278 = vmatpush1.msra.mxu0 0.0
    %279 = vmatprep.subr.mxu0 0.0
    %280 = vmatpush1.msra.mxu0 0.0
    %281 = vmatprep.subr.mxu0 0.0
    %282 = vmatpush1.msra.mxu0 0.0
    %283 = vmatprep.subr.mxu0 0.0
    %284 = vmatpush1.msra.mxu0 0.0
    %285 = vmatprep.subr.mxu0 0.0
    %286 = vmatpush1.msra.mxu0 0.0
    %287 = vmatprep.subr.mxu0 0.0
    %288 = vmatpush1.msra.mxu0 0.0
    %289 = vmatprep.subr.mxu0 0.0
    %290 = vmatpush1.msra.mxu0 0.0
    %291 = vmatprep.subr.mxu0 0.0
    %292 = vmatpush1.msra.mxu0 0.0
    %293 = vmatprep.subr.mxu0 0.0
    %294 = vmatpush1.msra.mxu0 0.0
    %295 = vmatprep.subr.mxu0 0.0
    %296 = vmatpush1.msra.mxu0 0.0
    %297 = vmatprep.subr.mxu0 0.0
    %298 = vmatpush1.msra.mxu0 0.0
    %299 = vmatprep.subr.mxu0 0.0
    %300 = vmatpush1.msra.mxu0 0.0
    %301 = vmatprep.subr.mxu0 0.0
    %302 = vmatpush1.msra.mxu0 0.0
    %303 = vmatprep.subr.mxu0 0.0
    %304 = vmatpush1.msra.mxu0 0.0
    %305 = vmatprep.subr.mxu0 0.0
    %306 = vmatpush1.msra.mxu0 0.0
    %307 = vmatprep.subr.mxu0 0.0
    %308 = vmatpush1.msra.mxu0 0.0
    %309 = vmatprep.subr.mxu0 0.0
    %310 = vmatpush1.msra.mxu0 0.0
    %311 = vmatprep.subr.mxu0 0.0
    %312 = vmatpush1.msra.mxu0 0.0
    %313 = vmatprep.subr.mxu0 0.0
    %314 = vmatpush1.msra.mxu0 0.0
    %315 = vmatprep.subr.mxu0 0.0
    %316 = vmatpush1.msra.mxu0 0.0
    %317 = vmatprep.subr.mxu0 0.0
    %318 = vmatpush1.msra.mxu0 0.0
    %319 = vmatprep.subr.mxu0 0.0
    %320 = vmatpush1.msra.mxu0 0.0
    %321 = vmatprep.subr.mxu0 0.0
    %322 = vmatpush1.msra.mxu0 0.0
    %323 = vmatprep.subr.mxu0 0.0
    %324 = vmatpush1.msra.mxu0 0.0
    %325 = vmatprep.subr.mxu0 0.0
    %326 = vmatpush1.msra.mxu0 0.0
    %327 = vmatprep.subr.mxu0 0.0
    %328 = vmatpush1.msra.mxu0 0.0
    %329 = vmatprep.subr.mxu0 0.0
    %330 = vmatpush1.msra.mxu0 0.0
    %331 = vmatprep.subr.mxu0 0.0
    %332 = vmatpush1.msra.mxu0 0.0
    %333 = vmatprep.subr.mxu0 0.0
    %334 = vmatpush1.msra.mxu0 0.0
    %335 = vmatprep.subr.mxu0 0.0
    %336 = vmatpush1.msra.mxu0 0.0
    %337 = vmatprep.subr.mxu0 0.0
    %338 = vmatpush1.msra.mxu0 0.0
    %339 = vmatprep.mubr.f32.mxu0 0.0
    %v340 = vand.u32 %v20, 4294901760
    %v341 = vsub.f32 %v20, %v340
    %v342 = vand.u32 %v341, 4294901760
    %343 = vmatmul.mubr.f32.gmra.mrb[0].mxu0 %v342
    %v344 = vpop.f32.mrb[0].mxu0
    %v345 = vadd.f32 %v264, %v344
    %v346 = vpop.f32.mrb[0].mxu0
    %347 = vmatprep.mubr.f32.mxu0 0.0
    %v348 = vand.u32 %v23, 4294901760
    %v349 = vsub.f32 %v23, %v348
    %v350 = vand.u32 %v349, 4294901760
    %351 = vmatmul.mubr.f32.gmra.mrb[0].mxu0 %v350
    %v352 = vpop.f32.mrb[0].mxu0
    %v353 = vadd.f32 %v271, %v352
    %v354 = vpop.f32.mrb[0].mxu0
    %355 = vdwg.mxu0
    %356 = vmatprep.subr.mxu0 0.0
    %v357 = vand.u32 %v15, 4294901760
    %v358 = vsub.f32 %v15, %v357
    %v359 = vand.u32 %v358, 4294901760
    %360 = vmatpush1.msra.mxu0 %v359
    %361 = vmatprep.subr.mxu0 0.0
    %362 = vmatpush1.msra.mxu0 0.0
    %363 = vmatprep.subr.mxu0 0.0
    %364 = vmatpush1.msra.mxu0 0.0
    %365 = vmatprep.subr.mxu0 0.0
    %366 = vmatpush1.msra.mxu0 0.0
    %367 = vmatprep.subr.mxu0 0.0
    %368 = vmatpush1.msra.mxu0 0.0
    %369 = vmatprep.subr.mxu0 0.0
    %370 = vmatpush1.msra.mxu0 0.0
    %371 = vmatprep.subr.mxu0 0.0
    %372 = vmatpush1.msra.mxu0 0.0
    %373 = vmatprep.subr.mxu0 0.0
    %374 = vmatpush1.msra.mxu0 0.0
    %375 = vmatprep.subr.mxu0 0.0
    %376 = vmatpush1.msra.mxu0 0.0
    %377 = vmatprep.subr.mxu0 0.0
    %378 = vmatpush1.msra.mxu0 0.0
    %379 = vmatprep.subr.mxu0 0.0
    %380 = vmatpush1.msra.mxu0 0.0
    %381 = vmatprep.subr.mxu0 0.0
    %382 = vmatpush1.msra.mxu0 0.0
    %383 = vmatprep.subr.mxu0 0.0
    %384 = vmatpush1.msra.mxu0 0.0
    %385 = vmatprep.subr.mxu0 0.0
    %386 = vmatpush1.msra.mxu0 0.0
    %387 = vmatprep.subr.mxu0 0.0
    %388 = vmatpush1.msra.mxu0 0.0
    %389 = vmatprep.subr.mxu0 0.0
    %390 = vmatpush1.msra.mxu0 0.0
    %391 = vmatprep.subr.mxu0 0.0
    %392 = vmatpush1.msra.mxu0 0.0
    %393 = vmatprep.subr.mxu0 0.0
    %394 = vmatpush1.msra.mxu0 0.0
    %395 = vmatprep.subr.mxu0 0.0
    %396 = vmatpush1.msra.mxu0 0.0
    %397 = vmatprep.subr.mxu0 0.0
    %398 = vmatpush1.msra.mxu0 0.0
    %399 = vmatprep.subr.mxu0 0.0
    %400 = vmatpush1.msra.mxu0 0.0
    %401 = vmatprep.subr.mxu0 0.0
    %402 = vmatpush1.msra.mxu0 0.0
    %403 = vmatprep.subr.mxu0 0.0
    %404 = vmatpush1.msra.mxu0 0.0
    %405 = vmatprep.subr.mxu0 0.0
    %406 = vmatpush1.msra.mxu0 0.0
    %407 = vmatprep.subr.mxu0 0.0
    %408 = vmatpush1.msra.mxu0 0.0
    %409 = vmatprep.subr.mxu0 0.0
    %410 = vmatpush1.msra.mxu0 0.0
    %411 = vmatprep.subr.mxu0 0.0
    %412 = vmatpush1.msra.mxu0 0.0
    %413 = vmatprep.subr.mxu0 0.0
    %414 = vmatpush1.msra.mxu0 0.0
    %415 = vmatprep.subr.mxu0 0.0
    %416 = vmatpush1.msra.mxu0 0.0
    %417 = vmatprep.subr.mxu0 0.0
    %418 = vmatpush1.msra.mxu0 0.0
    %419 = vmatprep.subr.mxu0 0.0
    %420 = vmatpush1.msra.mxu0 0.0
    %421 = vmatprep.subr.mxu0 0.0
    %422 = vmatpush1.msra.mxu0 0.0
    %423 = vmatprep.mubr.f32.mxu0 0.0
    %v424 = vand.u32 %v20, 4294901760
    %425 = vmatmul.mubr.f32.gmra.mrb[0].mxu0 %v424
    %v426 = vpop.f32.mrb[0].mxu0
    %v427 = vadd.f32 %v345, %v426
    %v428 = vpop.f32.mrb[0].mxu0
    %429 = vmatprep.mubr.f32.mxu0 0.0
    %v430 = vand.u32 %v23, 4294901760
    %431 = vmatmul.mubr.f32.gmra.mrb[0].mxu0 %v430
    %v432 = vpop.f32.mrb[0].mxu0
    %v433 = vadd.f32 %v353, %v432
    %v434 = vpop.f32.mrb[0].mxu0
    %435 = vdwg.mxu0
    %436 = vmatprep.subr.mxu0 0.0
    %v437 = vand.u32 %v15, 4294901760
    %438 = vmatpush1.msra.mxu0 %v437
    %439 = vmatprep.subr.mxu0 0.0
    %440 = vmatpush1.msra.mxu0 0.0
    %441 = vmatprep.subr.mxu0 0.0
    %442 = vmatpush1.msra.mxu0 0.0
    %443 = vmatprep.subr.mxu0 0.0
    %444 = vmatpush1.msra.mxu0 0.0
    %445 = vmatprep.subr.mxu0 0.0
    %446 = vmatpush1.msra.mxu0 0.0
    %447 = vmatprep.subr.mxu0 0.0
    %448 = vmatpush1.msra.mxu0 0.0
    %449 = vmatprep.subr.mxu0 0.0
    %450 = vmatpush1.msra.mxu0 0.0
    %451 = vmatprep.subr.mxu0 0.0
    %452 = vmatpush1.msra.mxu0 0.0
    %453 = vmatprep.subr.mxu0 0.0
    %454 = vmatpush1.msra.mxu0 0.0
    %455 = vmatprep.subr.mxu0 0.0
    %456 = vmatpush1.msra.mxu0 0.0
    %457 = vmatprep.subr.mxu0 0.0
    %458 = vmatpush1.msra.mxu0 0.0
    %459 = vmatprep.subr.mxu0 0.0
    %460 = vmatpush1.msra.mxu0 0.0
    %461 = vmatprep.subr.mxu0 0.0
    %462 = vmatpush1.msra.mxu0 0.0
    %463 = vmatprep.subr.mxu0 0.0
    %464 = vmatpush1.msra.mxu0 0.0
    %465 = vmatprep.subr.mxu0 0.0
    %466 = vmatpush1.msra.mxu0 0.0
    %467 = vmatprep.subr.mxu0 0.0
    %468 = vmatpush1.msra.mxu0 0.0
    %469 = vmatprep.subr.mxu0 0.0
    %470 = vmatpush1.msra.mxu0 0.0
    %471 = vmatprep.subr.mxu0 0.0
    %472 = vmatpush1.msra.mxu0 0.0
    %473 = vmatprep.subr.mxu0 0.0
    %474 = vmatpush1.msra.mxu0 0.0
    %475 = vmatprep.subr.mxu0 0.0
    %476 = vmatpush1.msra.mxu0 0.0
    %477 = vmatprep.subr.mxu0 0.0
    %478 = vmatpush1.msra.mxu0 0.0
    %479 = vmatprep.subr.mxu0 0.0
    %480 = vmatpush1.msra.mxu0 0.0
    %481 = vmatprep.subr.mxu0 0.0
    %482 = vmatpush1.msra.mxu0 0.0
    %483 = vmatprep.subr.mxu0 0.0
    %484 = vmatpush1.msra.mxu0 0.0
    %485 = vmatprep.subr.mxu0 0.0
    %486 = vmatpush1.msra.mxu0 0.0
    %487 = vmatprep.subr.mxu0 0.0
    %488 = vmatpush1.msra.mxu0 0.0
    %489 = vmatprep.subr.mxu0 0.0
    %490 = vmatpush1.msra.mxu0 0.0
    %491 = vmatprep.subr.mxu0 0.0
    %492 = vmatpush1.msra.mxu0 0.0
    %493 = vmatprep.subr.mxu0 0.0
    %494 = vmatpush1.msra.mxu0 0.0
    %495 = vmatprep.subr.mxu0 0.0
    %496 = vmatpush1.msra.mxu0 0.0
    %497 = vmatprep.subr.mxu0 0.0
    %498 = vmatpush1.msra.mxu0 0.0
    %499 = vmatprep.subr.mxu0 0.0
    %500 = vmatpush1.msra.mxu0 0.0
    %501 = vmatprep.mubr.f32.mxu0 0.0
    %v502 = vand.u32 %v20, 4294901760
    %503 = vmatmul.mubr.f32.gmra.mrb[0].mxu0 %v502
    %v504 = vpop.f32.mrb[0].mxu0
    %v505 = vadd.f32 %v427, %v504
    %v506 = vpop.f32.mrb[0].mxu0
    %507 = vmatprep.mubr.f32.mxu0 0.0
    %v508 = vand.u32 %v23, 4294901760
    %509 = vmatmul.mubr.f32.gmra.mrb[0].mxu0 %v508
    %v510 = vpop.f32.mrb[0].mxu0
    %v511 = vadd.f32 %v433, %v510
    %v512 = vpop.f32.mrb[0].mxu0
    %513 = vdwg.mxu0
    %vm514 = vcmask 130048
    %v516 = vsel %vm514, %v505, 0
    %v519 = vsel %vm514, %v511, 0
    %521 = vmatprep.subr.mxu0 0.0
    %522 = vmatpush1.msra.mxu0 1.0
    %523 = vmatprep.subr.mxu0 0.0
    %524 = vmatpush1.msra.mxu0 1.0
    %525 = vmatprep.subr.mxu0 0.0
    %526 = vmatpush1.msra.mxu0 0.0
    %527 = vmatprep.subr.mxu0 0.0
    %528 = vmatpush1.msra.mxu0 0.0
    %529 = vmatprep.subr.mxu0 0.0
    %530 = vmatpush1.msra.mxu0 0.0
    %531 = vmatprep.subr.mxu0 0.0
    %532 = vmatpush1.msra.mxu0 0.0
    %533 = vmatprep.subr.mxu0 0.0
    %534 = vmatpush1.msra.mxu0 0.0
    %535 = vmatprep.subr.mxu0 0.0
    %536 = vmatpush1.msra.mxu0 0.0
    %537 = vmatprep.subr.mxu0 0.0
    %538 = vmatpush1.msra.mxu0 0.0
    %539 = vmatprep.subr.mxu0 0.0
    %540 = vmatpush1.msra.mxu0 0.0
    %541 = vmatprep.subr.mxu0 0.0
    %542 = vmatpush1.msra.mxu0 0.0
    %543 = vmatprep.subr.mxu0 0.0
    %544 = vmatpush1.msra.mxu0 0.0
    %545 = vmatprep.subr.mxu0 0.0
    %546 = vmatpush1.msra.mxu0 0.0
    %547 = vmatprep.subr.mxu0 0.0
    %548 = vmatpush1.msra.mxu0 0.0
    %549 = vmatprep.subr.mxu0 0.0
    %550 = vmatpush1.msra.mxu0 0.0
    %551 = vmatprep.subr.mxu0 0.0
    %552 = vmatpush1.msra.mxu0 0.0
    %553 = vmatprep.subr.mxu0 0.0
    %554 = vmatpush1.msra.mxu0 0.0
    %555 = vmatprep.subr.mxu0 0.0
    %556 = vmatpush1.msra.mxu0 0.0
    %557 = vmatprep.subr.mxu0 0.0
    %558 = vmatpush1.msra.mxu0 0.0
    %559 = vmatprep.subr.mxu0 0.0
    %560 = vmatpush1.msra.mxu0 0.0
    %561 = vmatprep.subr.mxu0 0.0
    %562 = vmatpush1.msra.mxu0 0.0
    %563 = vmatprep.subr.mxu0 0.0
    %564 = vmatpush1.msra.mxu0 0.0
    %565 = vmatprep.subr.mxu0 0.0
    %566 = vmatpush1.msra.mxu0 0.0
    %567 = vmatprep.subr.mxu0 0.0
    %568 = vmatpush1.msra.mxu0 0.0
    %569 = vmatprep.subr.mxu0 0.0
    %570 = vmatpush1.msra.mxu0 0.0
    %571 = vmatprep.subr.mxu0 0.0
    %572 = vmatpush1.msra.mxu0 0.0
    %573 = vmatprep.subr.mxu0 0.0
    %574 = vmatpush1.msra.mxu0 0.0
    %575 = vmatprep.subr.mxu0 0.0
    %576 = vmatpush1.msra.mxu0 0.0
    %577 = vmatprep.subr.mxu0 0.0
    %578 = vmatpush1.msra.mxu0 0.0
    %579 = vmatprep.subr.mxu0 0.0
    %580 = vmatpush1.msra.mxu0 0.0
    %581 = vmatprep.subr.mxu0 0.0
    %582 = vmatpush1.msra.mxu0 0.0
    %583 = vmatprep.subr.mxu0 0.0
    %584 = vmatpush1.msra.mxu0 0.0
    %585 = vmatprep.mubr.f32.mxu0 0.0
    %v586 = vand.u32 %v516, 4294901760
    %v587 = vsub.f32 %v516, %v586
    %v588 = vand.u32 %v587, 4294901760
    %v589 = vsub.f32 %v587, %v588
    %v590 = vand.u32 %v589, 4294901760
    %591 = vmatmul.mubr.f32.gmra.mrb[0].mxu0 %v590
    %v592 = vpop.f32.mrb[0].mxu0
    %v593 = vadd.f32 0.0, %v592
    %v594 = vpop.f32.mrb[0].mxu0
    %595 = vmatprep.mubr.f32.mxu0 0.0
    %v596 = vand.u32 %v519, 4294901760
    %v597 = vsub.f32 %v519, %v596
    %v598 = vand.u32 %v597, 4294901760
    %v599 = vsub.f32 %v597, %v598
    %v600 = vand.u32 %v599, 4294901760
    %601 = vmatmul.mubr.f32.gmra.mrb[0].mxu0 %v600
    %v602 = vpop.f32.mrb[0].mxu0
    %v603 = vadd.f32 0.0, %v602
    %v604 = vpop.f32.mrb[0].mxu0
    %605 = vdwg.mxu0
    %606 = vmatprep.subr.mxu0 0.0
    %607 = vmatpush1.msra.mxu0 0.0
    %608 = vmatprep.subr.mxu0 0.0
    %609 = vmatpush1.msra.mxu0 0.0
    %610 = vmatprep.subr.mxu0 0.0
    %611 = vmatpush1.msra.mxu0 0.0
    %612 = vmatprep.subr.mxu0 0.0
    %613 = vmatpush1.msra.mxu0 0.0
    %614 = vmatprep.subr.mxu0 0.0
    %615 = vmatpush1.msra.mxu0 0.0
    %616 = vmatprep.subr.mxu0 0.0
    %617 = vmatpush1.msra.mxu0 0.0
    %618 = vmatprep.subr.mxu0 0.0
    %619 = vmatpush1.msra.mxu0 0.0
    %620 = vmatprep.subr.mxu0 0.0
    %621 = vmatpush1.msra.mxu0 0.0
    %622 = vmatprep.subr.mxu0 0.0
    %623 = vmatpush1.msra.mxu0 0.0
    %624 = vmatprep.subr.mxu0 0.0
    %625 = vmatpush1.msra.mxu0 0.0
    %626 = vmatprep.subr.mxu0 0.0
    %627 = vmatpush1.msra.mxu0 0.0
    %628 = vmatprep.subr.mxu0 0.0
    %629 = vmatpush1.msra.mxu0 0.0
    %630 = vmatprep.subr.mxu0 0.0
    %631 = vmatpush1.msra.mxu0 0.0
    %632 = vmatprep.subr.mxu0 0.0
    %633 = vmatpush1.msra.mxu0 0.0
    %634 = vmatprep.subr.mxu0 0.0
    %635 = vmatpush1.msra.mxu0 0.0
    %636 = vmatprep.subr.mxu0 0.0
    %637 = vmatpush1.msra.mxu0 0.0
    %638 = vmatprep.subr.mxu0 0.0
    %639 = vmatpush1.msra.mxu0 0.0
    %640 = vmatprep.subr.mxu0 0.0
    %641 = vmatpush1.msra.mxu0 0.0
    %642 = vmatprep.subr.mxu0 0.0
    %643 = vmatpush1.msra.mxu0 0.0
    %644 = vmatprep.subr.mxu0 0.0
    %645 = vmatpush1.msra.mxu0 0.0
    %646 = vmatprep.subr.mxu0 0.0
    %647 = vmatpush1.msra.mxu0 0.0
    %648 = vmatprep.subr.mxu0 0.0
    %649 = vmatpush1.msra.mxu0 0.0
    %650 = vmatprep.subr.mxu0 0.0
    %651 = vmatpush1.msra.mxu0 0.0
    %652 = vmatprep.subr.mxu0 0.0
    %653 = vmatpush1.msra.mxu0 0.0
    %654 = vmatprep.subr.mxu0 0.0
    %655 = vmatpush1.msra.mxu0 0.0
    %656 = vmatprep.subr.mxu0 0.0
    %657 = vmatpush1.msra.mxu0 0.0
    %658 = vmatprep.subr.mxu0 0.0
    %659 = vmatpush1.msra.mxu0 0.0
    %660 = vmatprep.subr.mxu0 0.0
    %661 = vmatpush1.msra.mxu0 0.0
    %662 = vmatprep.subr.mxu0 0.0
    %663 = vmatpush1.msra.mxu0 0.0
    %664 = vmatprep.subr.mxu0 0.0
    %665 = vmatpush1.msra.mxu0 0.0
    %666 = vmatprep.subr.mxu0 0.0
    %667 = vmatpush1.msra.mxu0 0.0
    %668 = vmatprep.subr.mxu0 0.0
    %669 = vmatpush1.msra.mxu0 0.0
    %670 = vmatprep.mubr.f32.mxu0 0.0
    %v671 = vand.u32 %v516, 4294901760
    %672 = vmatmul.mubr.f32.gmra.mrb[0].mxu0 %v671
    %v673 = vpop.f32.mrb[0].mxu0
    %v674 = vadd.f32 %v593, %v673
    %v675 = vpop.f32.mrb[0].mxu0
    %676 = vmatprep.mubr.f32.mxu0 0.0
    %v677 = vand.u32 %v519, 4294901760
    %678 = vmatmul.mubr.f32.gmra.mrb[0].mxu0 %v677
    %v679 = vpop.f32.mrb[0].mxu0
    %v680 = vadd.f32 %v603, %v679
    %v681 = vpop.f32.mrb[0].mxu0
    %682 = vdwg.mxu0
    %683 = vmatprep.subr.mxu0 0.0
    %684 = vmatpush1.msra.mxu0 0.0
    %685 = vmatprep.subr.mxu0 0.0
    %686 = vmatpush1.msra.mxu0 0.0
    %687 = vmatprep.subr.mxu0 0.0
    %688 = vmatpush1.msra.mxu0 0.0
    %689 = vmatprep.subr.mxu0 0.0
    %690 = vmatpush1.msra.mxu0 0.0
    %691 = vmatprep.subr.mxu0 0.0
    %692 = vmatpush1.msra.mxu0 0.0
    %693 = vmatprep.subr.mxu0 0.0
    %694 = vmatpush1.msra.mxu0 0.0
    %695 = vmatprep.subr.mxu0 0.0
    %696 = vmatpush1.msra.mxu0 0.0
    %697 = vmatprep.subr.mxu0 0.0
    %698 = vmatpush1.msra.mxu0 0.0
    %699 = vmatprep.subr.mxu0 0.0
    %700 = vmatpush1.msra.mxu0 0.0
    %701 = vmatprep.subr.mxu0 0.0
    %702 = vmatpush1.msra.mxu0 0.0
    %703 = vmatprep.subr.mxu0 0.0
    %704 = vmatpush1.msra.mxu0 0.0
    %705 = vmatprep.subr.mxu0 0.0
    %706 = vmatpush1.msra.mxu0 0.0
    %707 = vmatprep.subr.mxu0 0.0
    %708 = vmatpush1.msra.mxu0 0.0
    %709 = vmatprep.subr.mxu0 0.0
    %710 = vmatpush1.msra.mxu0 0.0
    %711 = vmatprep.subr.mxu0 0.0
    %712 = vmatpush1.msra.mxu0 0.0
    %713 = vmatprep.subr.mxu0 0.0
    %714 = vmatpush1.msra.mxu0 0.0
    %715 = vmatprep.subr.mxu0 0.0
    %716 = vmatpush1.msra.mxu0 0.0
    %717 = vmatprep.subr.mxu0 0.0
    %718 = vmatpush1.msra.mxu0 0.0
    %719 = vmatprep.subr.mxu0 0.0
    %720 = vmatpush1.msra.mxu0 0.0
    %721 = vmatprep.subr.mxu0 0.0
    %722 = vmatpush1.msra.mxu0 0.0
    %723 = vmatprep.subr.mxu0 0.0
    %724 = vmatpush1.msra.mxu0 0.0
    %725 = vmatprep.subr.mxu0 0.0
    %726 = vmatpush1.msra.mxu0 0.0
    %727 = vmatprep.subr.mxu0 0.0
    %728 = vmatpush1.msra.mxu0 0.0
    %729 = vmatprep.subr.mxu0 0.0
    %730 = vmatpush1.msra.mxu0 0.0
    %731 = vmatprep.subr.mxu0 0.0
    %732 = vmatpush1.msra.mxu0 0.0
    %733 = vmatprep.subr.mxu0 0.0
    %734 = vmatpush1.msra.mxu0 0.0
    %735 = vmatprep.subr.mxu0 0.0
    %736 = vmatpush1.msra.mxu0 0.0
    %737 = vmatprep.subr.mxu0 0.0
    %738 = vmatpush1.msra.mxu0 0.0
    %739 = vmatprep.subr.mxu0 0.0
    %740 = vmatpush1.msra.mxu0 0.0
    %741 = vmatprep.subr.mxu0 0.0
    %742 = vmatpush1.msra.mxu0 0.0
    %743 = vmatprep.subr.mxu0 0.0
    %744 = vmatpush1.msra.mxu0 0.0
    %745 = vmatprep.subr.mxu0 0.0
    %746 = vmatpush1.msra.mxu0 0.0
    %747 = vmatprep.mubr.f32.mxu0 0.0
    %v748 = vand.u32 %v516, 4294901760
    %v749 = vsub.f32 %v516, %v748
    %750 = vmatmul.mubr.f32.gmra.mrb[0].mxu0 %v749
    %v751 = vpop.f32.mrb[0].mxu0
    %v752 = vadd.f32 %v674, %v751
    %v753 = vpop.f32.mrb[0].mxu0
    %754 = vmatprep.mubr.f32.mxu0 0.0
    %v755 = vand.u32 %v519, 4294901760
    %v756 = vsub.f32 %v519, %v755
    %757 = vmatmul.mubr.f32.gmra.mrb[0].mxu0 %v756
    %v758 = vpop.f32.mrb[0].mxu0
    %v759 = vadd.f32 %v680, %v758
    %v760 = vpop.f32.mrb[0].mxu0
    %761 = vdwg.mxu0
    %762 = vmatprep.subr.mxu0 0.0
    %763 = vmatpush1.msra.mxu0 1.0
    %764 = vmatprep.subr.mxu0 0.0
    %765 = vmatpush1.msra.mxu0 1.0
    %766 = vmatprep.subr.mxu0 0.0
    %767 = vmatpush1.msra.mxu0 0.0
    %768 = vmatprep.subr.mxu0 0.0
    %769 = vmatpush1.msra.mxu0 0.0
    %770 = vmatprep.subr.mxu0 0.0
    %771 = vmatpush1.msra.mxu0 0.0
    %772 = vmatprep.subr.mxu0 0.0
    %773 = vmatpush1.msra.mxu0 0.0
    %774 = vmatprep.subr.mxu0 0.0
    %775 = vmatpush1.msra.mxu0 0.0
    %776 = vmatprep.subr.mxu0 0.0
    %777 = vmatpush1.msra.mxu0 0.0
    %778 = vmatprep.subr.mxu0 0.0
    %779 = vmatpush1.msra.mxu0 0.0
    %780 = vmatprep.subr.mxu0 0.0
    %781 = vmatpush1.msra.mxu0 0.0
    %782 = vmatprep.subr.mxu0 0.0
    %783 = vmatpush1.msra.mxu0 0.0
    %784 = vmatprep.subr.mxu0 0.0
    %785 = vmatpush1.msra.mxu0 0.0
    %786 = vmatprep.subr.mxu0 0.0
    %787 = vmatpush1.msra.mxu0 0.0
    %788 = vmatprep.subr.mxu0 0.0
    %789 = vmatpush1.msra.mxu0 0.0
    %790 = vmatprep.subr.mxu0 0.0
    %791 = vmatpush1.msra.mxu0 0.0
    %792 = vmatprep.subr.mxu0 0.0
    %793 = vmatpush1.msra.mxu0 0.0
    %794 = vmatprep.subr.mxu0 0.0
    %795 = vmatpush1.msra.mxu0 0.0
    %796 = vmatprep.subr.mxu0 0.0
    %797 = vmatpush1.msra.mxu0 0.0
    %798 = vmatprep.subr.mxu0 0.0
    %799 = vmatpush1.msra.mxu0 0.0
    %800 = vmatprep.subr.mxu0 0.0
    %801 = vmatpush1.msra.mxu0 0.0
    %802 = vmatprep.subr.mxu0 0.0
    %803 = vmatpush1.msra.mxu0 0.0
    %804 = vmatprep.subr.mxu0 0.0
    %805 = vmatpush1.msra.mxu0 0.0
    %806 = vmatprep.subr.mxu0 0.0
    %807 = vmatpush1.msra.mxu0 0.0
    %808 = vmatprep.subr.mxu0 0.0
    %809 = vmatpush1.msra.mxu0 0.0
    %810 = vmatprep.subr.mxu0 0.0
    %811 = vmatpush1.msra.mxu0 0.0
    %812 = vmatprep.subr.mxu0 0.0
    %813 = vmatpush1.msra.mxu0 0.0
    %814 = vmatprep.subr.mxu0 0.0
    %815 = vmatpush1.msra.mxu0 0.0
    %816 = vmatprep.subr.mxu0 0.0
    %817 = vmatpush1.msra.mxu0 0.0
    %818 = vmatprep.subr.mxu0 0.0
    %819 = vmatpush1.msra.mxu0 0.0
    %820 = vmatprep.subr.mxu0 0.0
    %821 = vmatpush1.msra.mxu0 0.0
    %822 = vmatprep.subr.mxu0 0.0
    %823 = vmatpush1.msra.mxu0 0.0
    %824 = vmatprep.subr.mxu0 0.0
    %825 = vmatpush1.msra.mxu0 0.0
    %826 = vmatprep.mubr.f32.mxu0 0.0
    %v827 = vand.u32 %v516, 4294901760
    %v828 = vsub.f32 %v516, %v827
    %v829 = vand.u32 %v828, 4294901760
    %830 = vmatmul.mubr.f32.gmra.mrb[0].mxu0 %v829
    %v831 = vpop.f32.mrb[0].mxu0
    %v832 = vadd.f32 %v752, %v831
    %v833 = vpop.f32.mrb[0].mxu0
    %834 = vmatprep.mubr.f32.mxu0 0.0
    %v835 = vand.u32 %v519, 4294901760
    %v836 = vsub.f32 %v519, %v835
    %v837 = vand.u32 %v836, 4294901760
    %838 = vmatmul.mubr.f32.gmra.mrb[0].mxu0 %v837
    %v839 = vpop.f32.mrb[0].mxu0
    %v840 = vadd.f32 %v759, %v839
    %v841 = vpop.f32.mrb[0].mxu0
    %842 = vdwg.mxu0
    %843 = vmatprep.subr.mxu0 0.0
    %844 = vmatpush1.msra.mxu0 0.0
    %845 = vmatprep.subr.mxu0 0.0
    %846 = vmatpush1.msra.mxu0 0.0
    %847 = vmatprep.subr.mxu0 0.0
    %848 = vmatpush1.msra.mxu0 0.0
    %849 = vmatprep.subr.mxu0 0.0
    %850 = vmatpush1.msra.mxu0 0.0
    %851 = vmatprep.subr.mxu0 0.0
    %852 = vmatpush1.msra.mxu0 0.0
    %853 = vmatprep.subr.mxu0 0.0
    %854 = vmatpush1.msra.mxu0 0.0
    %855 = vmatprep.subr.mxu0 0.0
    %856 = vmatpush1.msra.mxu0 0.0
    %857 = vmatprep.subr.mxu0 0.0
    %858 = vmatpush1.msra.mxu0 0.0
    %859 = vmatprep.subr.mxu0 0.0
    %860 = vmatpush1.msra.mxu0 0.0
    %861 = vmatprep.subr.mxu0 0.0
    %862 = vmatpush1.msra.mxu0 0.0
    %863 = vmatprep.subr.mxu0 0.0
    %864 = vmatpush1.msra.mxu0 0.0
    %865 = vmatprep.subr.mxu0 0.0
    %866 = vmatpush1.msra.mxu0 0.0
    %867 = vmatprep.subr.mxu0 0.0
    %868 = vmatpush1.msra.mxu0 0.0
    %869 = vmatprep.subr.mxu0 0.0
    %870 = vmatpush1.msra.mxu0 0.0
    %871 = vmatprep.subr.mxu0 0.0
    %872 = vmatpush1.msra.mxu0 0.0
    %873 = vmatprep.subr.mxu0 0.0
    %874 = vmatpush1.msra.mxu0 0.0
    %875 = vmatprep.subr.mxu0 0.0
    %876 = vmatpush1.msra.mxu0 0.0
    %877 = vmatprep.subr.mxu0 0.0
    %878 = vmatpush1.msra.mxu0 0.0
    %879 = vmatprep.subr.mxu0 0.0
    %880 = vmatpush1.msra.mxu0 0.0
    %881 = vmatprep.subr.mxu0 0.0
    %882 = vmatpush1.msra.mxu0 0.0
    %883 = vmatprep.subr.mxu0 0.0
    %884 = vmatpush1.msra.mxu0 0.0
    %885 = vmatprep.subr.mxu0 0.0
    %886 = vmatpush1.msra.mxu0 0.0
    %887 = vmatprep.subr.mxu0 0.0
    %888 = vmatpush1.msra.mxu0 0.0
    %889 = vmatprep.subr.mxu0 0.0
    %890 = vmatpush1.msra.mxu0 0.0
    %891 = vmatprep.subr.mxu0 0.0
    %892 = vmatpush1.msra.mxu0 0.0
    %893 = vmatprep.subr.mxu0 0.0
    %894 = vmatpush1.msra.mxu0 0.0
    %895 = vmatprep.subr.mxu0 0.0
    %896 = vmatpush1.msra.mxu0 0.0
    %897 = vmatprep.subr.mxu0 0.0
    %898 = vmatpush1.msra.mxu0 0.0
    %899 = vmatprep.subr.mxu0 0.0
    %900 = vmatpush1.msra.mxu0 0.0
    %901 = vmatprep.subr.mxu0 0.0
    %902 = vmatpush1.msra.mxu0 0.0
    %903 = vmatprep.subr.mxu0 0.0
    %904 = vmatpush1.msra.mxu0 0.0
    %905 = vmatprep.subr.mxu0 0.0
    %906 = vmatpush1.msra.mxu0 0.0
    %907 = vmatprep.mubr.f32.mxu0 0.0
    %v908 = vand.u32 %v516, 4294901760
    %909 = vmatmul.mubr.f32.gmra.mrb[0].mxu0 %v908
    %v910 = vpop.f32.mrb[0].mxu0
    %v911 = vadd.f32 %v832, %v910
    %v912 = vpop.f32.mrb[0].mxu0
    %913 = vmatprep.mubr.f32.mxu0 0.0
    %v914 = vand.u32 %v519, 4294901760
    %915 = vmatmul.mubr.f32.gmra.mrb[0].mxu0 %v914
    %v916 = vpop.f32.mrb[0].mxu0
    %v917 = vadd.f32 %v840, %v916
    %v918 = vpop.f32.mrb[0].mxu0
    %919 = vdwg.mxu0
    %920 = vmatprep.subr.mxu0 0.0
    %921 = vmatpush1.msra.mxu0 1.0
    %922 = vmatprep.subr.mxu0 0.0
    %923 = vmatpush1.msra.mxu0 1.0
    %924 = vmatprep.subr.mxu0 0.0
    %925 = vmatpush1.msra.mxu0 0.0
    %926 = vmatprep.subr.mxu0 0.0
    %927 = vmatpush1.msra.mxu0 0.0
    %928 = vmatprep.subr.mxu0 0.0
    %929 = vmatpush1.msra.mxu0 0.0
    %930 = vmatprep.subr.mxu0 0.0
    %931 = vmatpush1.msra.mxu0 0.0
    %932 = vmatprep.subr.mxu0 0.0
    %933 = vmatpush1.msra.mxu0 0.0
    %934 = vmatprep.subr.mxu0 0.0
    %935 = vmatpush1.msra.mxu0 0.0
    %936 = vmatprep.subr.mxu0 0.0
    %937 = vmatpush1.msra.mxu0 0.0
    %938 = vmatprep.subr.mxu0 0.0
    %939 = vmatpush1.msra.mxu0 0.0
    %940 = vmatprep.subr.mxu0 0.0
    %941 = vmatpush1.msra.mxu0 0.0
    %942 = vmatprep.subr.mxu0 0.0
    %943 = vmatpush1.msra.mxu0 0.0
    %944 = vmatprep.subr.mxu0 0.0
    %945 = vmatpush1.msra.mxu0 0.0
    %946 = vmatprep.subr.mxu0 0.0
    %947 = vmatpush1.msra.mxu0 0.0
    %948 = vmatprep.subr.mxu0 0.0
    %949 = vmatpush1.msra.mxu0 0.0
    %950 = vmatprep.subr.mxu0 0.0
    %951 = vmatpush1.msra.mxu0 0.0
    %952 = vmatprep.subr.mxu0 0.0
    %953 = vmatpush1.msra.mxu0 0.0
    %954 = vmatprep.subr.mxu0 0.0
    %955 = vmatpush1.msra.mxu0 0.0
    %956 = vmatprep.subr.mxu0 0.0
    %957 = vmatpush1.msra.mxu0 0.0
    %958 = vmatprep.subr.mxu0 0.0
    %959 = vmatpush1.msra.mxu0 0.0
    %960 = vmatprep.subr.mxu0 0.0
    %961 = vmatpush1.msra.mxu0 0.0
    %962 = vmatprep.subr.mxu0 0.0
    %963 = vmatpush1.msra.mxu0 0.0
    %964 = vmatprep.subr.mxu0 0.0
    %965 = vmatpush1.msra.mxu0 0.0
    %966 = vmatprep.subr.mxu0 0.0
    %967 = vmatpush1.msra.mxu0 0.0
    %968 = vmatprep.subr.mxu0 0.0
    %969 = vmatpush1.msra.mxu0 0.0
    %970 = vmatprep.subr.mxu0 0.0
    %971 = vmatpush1.msra.mxu0 0.0
    %972 = vmatprep.subr.mxu0 0.0
    %973 = vmatpush1.msra.mxu0 0.0
    %974 = vmatprep.subr.mxu0 0.0
    %975 = vmatpush1.msra.mxu0 0.0
    %976 = vmatprep.subr.mxu0 0.0
    %977 = vmatpush1.msra.mxu0 0.0
    %978 = vmatprep.subr.mxu0 0.0
    %979 = vmatpush1.msra.mxu0 0.0
    %980 = vmatprep.subr.mxu0 0.0
    %981 = vmatpush1.msra.mxu0 0.0
    %982 = vmatprep.subr.mxu0 0.0
    %983 = vmatpush1.msra.mxu0 0.0
    %984 = vmatprep.mubr.f32.mxu0 0.0
    %v985 = vand.u32 %v516, 4294901760
    %986 = vmatmul.mubr.f32.gmra.mrb[0].mxu0 %v985
    %v987 = vpop.f32.mrb[0].mxu0
    %v988 = vadd.f32 %v911, %v987
    %v989 = vpop.f32.mrb[0].mxu0
    %990 = vmatprep.mubr.f32.mxu0 0.0
    %v991 = vand.u32 %v519, 4294901760
    %992 = vmatmul.mubr.f32.gmra.mrb[0].mxu0 %v991
    %v993 = vpop.f32.mrb[0].mxu0
    %v994 = vadd.f32 %v917, %v993
    %v995 = vpop.f32.mrb[0].mxu0
    %996 = vdwg.mxu0
    %v997 = vmul.f32 %v505, %v505
    %v998 = vmul.f32 %v511, %v511
    %v1000 = vsel %vm514, %v997, 0
    %v1003 = vsel %vm514, %v998, 0
    %1005 = vmatprep.subr.mxu0 0.0
    %1006 = vmatpush1.msra.mxu0 1.0
    %1007 = vmatprep.subr.mxu0 0.0
    %1008 = vmatpush1.msra.mxu0 1.0
    %1009 = vmatprep.subr.mxu0 0.0
    %1010 = vmatpush1.msra.mxu0 0.0
    %1011 = vmatprep.subr.mxu0 0.0
    %1012 = vmatpush1.msra.mxu0 0.0
    %1013 = vmatprep.subr.mxu0 0.0
    %1014 = vmatpush1.msra.mxu0 0.0
    %1015 = vmatprep.subr.mxu0 0.0
    %1016 = vmatpush1.msra.mxu0 0.0
    %1017 = vmatprep.subr.mxu0 0.0
    %1018 = vmatpush1.msra.mxu0 0.0
    %1019 = vmatprep.subr.mxu0 0.0
    %1020 = vmatpush1.msra.mxu0 0.0
    %1021 = vmatprep.subr.mxu0 0.0
    %1022 = vmatpush1.msra.mxu0 0.0
    %1023 = vmatprep.subr.mxu0 0.0
    %1024 = vmatpush1.msra.mxu0 0.0
    %1025 = vmatprep.subr.mxu0 0.0
    %1026 = vmatpush1.msra.mxu0 0.0
    %1027 = vmatprep.subr.mxu0 0.0
    %1028 = vmatpush1.msra.mxu0 0.0
    %1029 = vmatprep.subr.mxu0 0.0
    %1030 = vmatpush1.msra.mxu0 0.0
    %1031 = vmatprep.subr.mxu0 0.0
    %1032 = vmatpush1.msra.mxu0 0.0
    %1033 = vmatprep.subr.mxu0 0.0
    %1034 = vmatpush1.msra.mxu0 0.0
    %1035 = vmatprep.subr.mxu0 0.0
    %1036 = vmatpush1.msra.mxu0 0.0
    %1037 = vmatprep.subr.mxu0 0.0
    %1038 = vmatpush1.msra.mxu0 0.0
    %1039 = vmatprep.subr.mxu0 0.0
    %1040 = vmatpush1.msra.mxu0 0.0
    %1041 = vmatprep.subr.mxu0 0.0
    %1042 = vmatpush1.msra.mxu0 0.0
    %1043 = vmatprep.subr.mxu0 0.0
    %1044 = vmatpush1.msra.mxu0 0.0
    %1045 = vmatprep.subr.mxu0 0.0
    %1046 = vmatpush1.msra.mxu0 0.0
    %1047 = vmatprep.subr.mxu0 0.0
    %1048 = vmatpush1.msra.mxu0 0.0
    %1049 = vmatprep.subr.mxu0 0.0
    %1050 = vmatpush1.msra.mxu0 0.0
    %1051 = vmatprep.subr.mxu0 0.0
    %1052 = vmatpush1.msra.mxu0 0.0
    %1053 = vmatprep.subr.mxu0 0.0
    %1054 = vmatpush1.msra.mxu0 0.0
    %1055 = vmatprep.subr.mxu0 0.0
    %1056 = vmatpush1.msra.mxu0 0.0
    %1057 = vmatprep.subr.mxu0 0.0
    %1058 = vmatpush1.msra.mxu0 0.0
    %1059 = vmatprep.subr.mxu0 0.0
    %1060 = vmatpush1.msra.mxu0 0.0
    %1061 = vmatprep.subr.mxu0 0.0
    %1062 = vmatpush1.msra.mxu0 0.0
    %1063 = vmatprep.subr.mxu0 0.0
    %1064 = vmatpush1.msra.mxu0 0.0
    %1065 = vmatprep.subr.mxu0 0.0
    %1066 = vmatpush1.msra.mxu0 0.0
    %1067 = vmatprep.subr.mxu0 0.0
    %1068 = vmatpush1.msra.mxu0 0.0
    %1069 = vmatprep.mubr.f32.mxu0 0.0
    %v1070 = vand.u32 %v1000, 4294901760
    %v1071 = vsub.f32 %v1000, %v1070
    %v1072 = vand.u32 %v1071, 4294901760
    %v1073 = vsub.f32 %v1071, %v1072
    %v1074 = vand.u32 %v1073, 4294901760
    %1075 = vmatmul.mubr.f32.gmra.mrb[0].mxu0 %v1074
    %v1076 = vpop.f32.mrb[0].mxu0
    %v1077 = vadd.f32 0.0, %v1076
    %v1078 = vpop.f32.mrb[0].mxu0
    %1079 = vmatprep.mubr.f32.mxu0 0.0
    %v1080 = vand.u32 %v1003, 4294901760
    %v1081 = vsub.f32 %v1003, %v1080
    %v1082 = vand.u32 %v1081, 4294901760
    %v1083 = vsub.f32 %v1081, %v1082
    %v1084 = vand.u32 %v1083, 4294901760
    %1085 = vmatmul.mubr.f32.gmra.mrb[0].mxu0 %v1084
    %v1086 = vpop.f32.mrb[0].mxu0
    %v1087 = vadd.f32 0.0, %v1086
    %v1088 = vpop.f32.mrb[0].mxu0
    %1089 = vdwg.mxu0
    %1090 = vmatprep.subr.mxu0 0.0
    %1091 = vmatpush1.msra.mxu0 0.0
    %1092 = vmatprep.subr.mxu0 0.0
    %1093 = vmatpush1.msra.mxu0 0.0
    %1094 = vmatprep.subr.mxu0 0.0
    %1095 = vmatpush1.msra.mxu0 0.0
    %1096 = vmatprep.subr.mxu0 0.0
    %1097 = vmatpush1.msra.mxu0 0.0
    %1098 = vmatprep.subr.mxu0 0.0
    %1099 = vmatpush1.msra.mxu0 0.0
    %1100 = vmatprep.subr.mxu0 0.0
    %1101 = vmatpush1.msra.mxu0 0.0
    %1102 = vmatprep.subr.mxu0 0.0
    %1103 = vmatpush1.msra.mxu0 0.0
    %1104 = vmatprep.subr.mxu0 0.0
    %1105 = vmatpush1.msra.mxu0 0.0
    %1106 = vmatprep.subr.mxu0 0.0
    %1107 = vmatpush1.msra.mxu0 0.0
    %1108 = vmatprep.subr.mxu0 0.0
    %1109 = vmatpush1.msra.mxu0 0.0
    %1110 = vmatprep.subr.mxu0 0.0
    %1111 = vmatpush1.msra.mxu0 0.0
    %1112 = vmatprep.subr.mxu0 0.0
    %1113 = vmatpush1.msra.mxu0 0.0
    %1114 = vmatprep.subr.mxu0 0.0
    %1115 = vmatpush1.msra.mxu0 0.0
    %1116 = vmatprep.subr.mxu0 0.0
    %1117 = vmatpush1.msra.mxu0 0.0
    %1118 = vmatprep.subr.mxu0 0.0
    %1119 = vmatpush1.msra.mxu0 0.0
    %1120 = vmatprep.subr.mxu0 0.0
    %1121 = vmatpush1.msra.mxu0 0.0
    %1122 = vmatprep.subr.mxu0 0.0
    %1123 = vmatpush1.msra.mxu0 0.0
    %1124 = vmatprep.subr.mxu0 0.0
    %1125 = vmatpush1.msra.mxu0 0.0
    %1126 = vmatprep.subr.mxu0 0.0
    %1127 = vmatpush1.msra.mxu0 0.0
    %1128 = vmatprep.subr.mxu0 0.0
    %1129 = vmatpush1.msra.mxu0 0.0
    %1130 = vmatprep.subr.mxu0 0.0
    %1131 = vmatpush1.msra.mxu0 0.0
    %1132 = vmatprep.subr.mxu0 0.0
    %1133 = vmatpush1.msra.mxu0 0.0
    %1134 = vmatprep.subr.mxu0 0.0
    %1135 = vmatpush1.msra.mxu0 0.0
    %1136 = vmatprep.subr.mxu0 0.0
    %1137 = vmatpush1.msra.mxu0 0.0
    %1138 = vmatprep.subr.mxu0 0.0
    %1139 = vmatpush1.msra.mxu0 0.0
    %1140 = vmatprep.subr.mxu0 0.0
    %1141 = vmatpush1.msra.mxu0 0.0
    %1142 = vmatprep.subr.mxu0 0.0
    %1143 = vmatpush1.msra.mxu0 0.0
    %1144 = vmatprep.subr.mxu0 0.0
    %1145 = vmatpush1.msra.mxu0 0.0
    %1146 = vmatprep.subr.mxu0 0.0
    %1147 = vmatpush1.msra.mxu0 0.0
    %1148 = vmatprep.subr.mxu0 0.0
    %1149 = vmatpush1.msra.mxu0 0.0
    %1150 = vmatprep.subr.mxu0 0.0
    %1151 = vmatpush1.msra.mxu0 0.0
    %1152 = vmatprep.subr.mxu0 0.0
    %1153 = vmatpush1.msra.mxu0 0.0
    %1154 = vmatprep.mubr.f32.mxu0 0.0
    %v1155 = vand.u32 %v1000, 4294901760
    %1156 = vmatmul.mubr.f32.gmra.mrb[0].mxu0 %v1155
    %v1157 = vpop.f32.mrb[0].mxu0
    %v1158 = vadd.f32 %v1077, %v1157
    %v1159 = vpop.f32.mrb[0].mxu0
    %1160 = vmatprep.mubr.f32.mxu0 0.0
    %v1161 = vand.u32 %v1003, 4294901760
    %1162 = vmatmul.mubr.f32.gmra.mrb[0].mxu0 %v1161
    %v1163 = vpop.f32.mrb[0].mxu0
    %v1164 = vadd.f32 %v1087, %v1163
    %v1165 = vpop.f32.mrb[0].mxu0
    %1166 = vdwg.mxu0
    %1167 = vmatprep.subr.mxu0 0.0
    %1168 = vmatpush1.msra.mxu0 0.0
    %1169 = vmatprep.subr.mxu0 0.0
    %1170 = vmatpush1.msra.mxu0 0.0
    %1171 = vmatprep.subr.mxu0 0.0
    %1172 = vmatpush1.msra.mxu0 0.0
    %1173 = vmatprep.subr.mxu0 0.0
    %1174 = vmatpush1.msra.mxu0 0.0
    %1175 = vmatprep.subr.mxu0 0.0
    %1176 = vmatpush1.msra.mxu0 0.0
    %1177 = vmatprep.subr.mxu0 0.0
    %1178 = vmatpush1.msra.mxu0 0.0
    %1179 = vmatprep.subr.mxu0 0.0
    %1180 = vmatpush1.msra.mxu0 0.0
    %1181 = vmatprep.subr.mxu0 0.0
    %1182 = vmatpush1.msra.mxu0 0.0
    %1183 = vmatprep.subr.mxu0 0.0
    %1184 = vmatpush1.msra.mxu0 0.0
    %1185 = vmatprep.subr.mxu0 0.0
    %1186 = vmatpush1.msra.mxu0 0.0
    %1187 = vmatprep.subr.mxu0 0.0
    %1188 = vmatpush1.msra.mxu0 0.0
    %1189 = vmatprep.subr.mxu0 0.0
    %1190 = vmatpush1.msra.mxu0 0.0
    %1191 = vmatprep.subr.mxu0 0.0
    %1192 = vmatpush1.msra.mxu0 0.0
    %1193 = vmatprep.subr.mxu0 0.0
    %1194 = vmatpush1.msra.mxu0 0.0
    %1195 = vmatprep.subr.mxu0 0.0
    %1196 = vmatpush1.msra.mxu0 0.0
    %1197 = vmatprep.subr.mxu0 0.0
    %1198 = vmatpush1.msra.mxu0 0.0
    %1199 = vmatprep.subr.mxu0 0.0
    %1200 = vmatpush1.msra.mxu0 0.0
    %1201 = vmatprep.subr.mxu0 0.0
    %1202 = vmatpush1.msra.mxu0 0.0
    %1203 = vmatprep.subr.mxu0 0.0
    %1204 = vmatpush1.msra.mxu0 0.0
    %1205 = vmatprep.subr.mxu0 0.0
    %1206 = vmatpush1.msra.mxu0 0.0
    %1207 = vmatprep.subr.mxu0 0.0
    %1208 = vmatpush1.msra.mxu0 0.0
    %1209 = vmatprep.subr.mxu0 0.0
    %1210 = vmatpush1.msra.mxu0 0.0
    %1211 = vmatprep.subr.mxu0 0.0
    %1212 = vmatpush1.msra.mxu0 0.0
    %1213 = vmatprep.subr.mxu0 0.0
    %1214 = vmatpush1.msra.mxu0 0.0
    %1215 = vmatprep.subr.mxu0 0.0
    %1216 = vmatpush1.msra.mxu0 0.0
    %1217 = vmatprep.subr.mxu0 0.0
    %1218 = vmatpush1.msra.mxu0 0.0
    %1219 = vmatprep.subr.mxu0 0.0
    %1220 = vmatpush1.msra.mxu0 0.0
    %1221 = vmatprep.subr.mxu0 0.0
    %1222 = vmatpush1.msra.mxu0 0.0
    %1223 = vmatprep.subr.mxu0 0.0
    %1224 = vmatpush1.msra.mxu0 0.0
    %1225 = vmatprep.subr.mxu0 0.0
    %1226 = vmatpush1.msra.mxu0 0.0
    %1227 = vmatprep.subr.mxu0 0.0
    %1228 = vmatpush1.msra.mxu0 0.0
    %1229 = vmatprep.subr.mxu0 0.0
    %1230 = vmatpush1.msra.mxu0 0.0
    %1231 = vmatprep.mubr.f32.mxu0 0.0
    %v1232 = vand.u32 %v1000, 4294901760
    %v1233 = vsub.f32 %v1000, %v1232
    %1234 = vmatmul.mubr.f32.gmra.mrb[0].mxu0 %v1233
    %v1235 = vpop.f32.mrb[0].mxu0
    %v1236 = vadd.f32 %v1158, %v1235
    %v1237 = vpop.f32.mrb[0].mxu0
    %1238 = vmatprep.mubr.f32.mxu0 0.0
    %v1239 = vand.u32 %v1003, 4294901760
    %v1240 = vsub.f32 %v1003, %v1239
    %1241 = vmatmul.mubr.f32.gmra.mrb[0].mxu0 %v1240
    %v1242 = vpop.f32.mrb[0].mxu0
    %v1243 = vadd.f32 %v1164, %v1242
    %v1244 = vpop.f32.mrb[0].mxu0
    %1245 = vdwg.mxu0
    %1246 = vmatprep.subr.mxu0 0.0
    %1247 = vmatpush1.msra.mxu0 1.0
    %1248 = vmatprep.subr.mxu0 0.0
    %1249 = vmatpush1.msra.mxu0 1.0
    %1250 = vmatprep.subr.mxu0 0.0
    %1251 = vmatpush1.msra.mxu0 0.0
    %1252 = vmatprep.subr.mxu0 0.0
    %1253 = vmatpush1.msra.mxu0 0.0
    %1254 = vmatprep.subr.mxu0 0.0
    %1255 = vmatpush1.msra.mxu0 0.0
    %1256 = vmatprep.subr.mxu0 0.0
    %1257 = vmatpush1.msra.mxu0 0.0
    %1258 = vmatprep.subr.mxu0 0.0
    %1259 = vmatpush1.msra.mxu0 0.0
    %1260 = vmatprep.subr.mxu0 0.0
    %1261 = vmatpush1.msra.mxu0 0.0
    %1262 = vmatprep.subr.mxu0 0.0
    %1263 = vmatpush1.msra.mxu0 0.0
    %1264 = vmatprep.subr.mxu0 0.0
    %1265 = vmatpush1.msra.mxu0 0.0
    %1266 = vmatprep.subr.mxu0 0.0
    %1267 = vmatpush1.msra.mxu0 0.0
    %1268 = vmatprep.subr.mxu0 0.0
    %1269 = vmatpush1.msra.mxu0 0.0
    %1270 = vmatprep.subr.mxu0 0.0
    %1271 = vmatpush1.msra.mxu0 0.0
    %1272 = vmatprep.subr.mxu0 0.0
    %1273 = vmatpush1.msra.mxu0 0.0
    %1274 = vmatprep.subr.mxu0 0.0
    %1275 = vmatpush1.msra.mxu0 0.0
    %1276 = vmatprep.subr.mxu0 0.0
    %1277 = vmatpush1.msra.mxu0 0.0
    %1278 = vmatprep.subr.mxu0 0.0
    %1279 = vmatpush1.msra.mxu0 0.0
    %1280 = vmatprep.subr.mxu0 0.0
    %1281 = vmatpush1.msra.mxu0 0.0
    %1282 = vmatprep.subr.mxu0 0.0
    %1283 = vmatpush1.msra.mxu0 0.0
    %1284 = vmatprep.subr.mxu0 0.0
    %1285 = vmatpush1.msra.mxu0 0.0
    %1286 = vmatprep.subr.mxu0 0.0
    %1287 = vmatpush1.msra.mxu0 0.0
    %1288 = vmatprep.subr.mxu0 0.0
    %1289 = vmatpush1.msra.mxu0 0.0
    %1290 = vmatprep.subr.mxu0 0.0
    %1291 = vmatpush1.msra.mxu0 0.0
    %1292 = vmatprep.subr.mxu0 0.0
    %1293 = vmatpush1.msra.mxu0 0.0
    %1294 = vmatprep.subr.mxu0 0.0
    %1295 = vmatpush1.msra.mxu0 0.0
    %1296 = vmatprep.subr.mxu0 0.0
    %1297 = vmatpush1.msra.mxu0 0.0
    %1298 = vmatprep.subr.mxu0 0.0
    %1299 = vmatpush1.msra.mxu0 0.0
    %1300 = vmatprep.subr.mxu0 0.0
    %1301 = vmatpush1.msra.mxu0 0.0
    %1302 = vmatprep.subr.mxu0 0.0
    %1303 = vmatpush1.msra.mxu0 0.0
    %1304 = vmatprep.subr.mxu0 0.0
    %1305 = vmatpush1.msra.mxu0 0.0
    %1306 = vmatprep.subr.mxu0 0.0
    %1307 = vmatpush1.msra.mxu0 0.0
    %1308 = vmatprep.subr.mxu0 0.0
    %1309 = vmatpush1.msra.mxu0 0.0
    %1310 = vmatprep.mubr.f32.mxu0 0.0
    %v1311 = vand.u32 %v1000, 4294901760
    %v1312 = vsub.f32 %v1000, %v1311
    %v1313 = vand.u32 %v1312, 4294901760
    %1314 = vmatmul.mubr.f32.gmra.mrb[0].mxu0 %v1313
    %v1315 = vpop.f32.mrb[0].mxu0
    %v1316 = vadd.f32 %v1236, %v1315
    %v1317 = vpop.f32.mrb[0].mxu0
    %1318 = vmatprep.mubr.f32.mxu0 0.0
    %v1319 = vand.u32 %v1003, 4294901760
    %v1320 = vsub.f32 %v1003, %v1319
    %v1321 = vand.u32 %v1320, 4294901760
    %1322 = vmatmul.mubr.f32.gmra.mrb[0].mxu0 %v1321
    %v1323 = vpop.f32.mrb[0].mxu0
    %v1324 = vadd.f32 %v1243, %v1323
    %v1325 = vpop.f32.mrb[0].mxu0
    %1326 = vdwg.mxu0
    %1327 = vmatprep.subr.mxu0 0.0
    %1328 = vmatpush1.msra.mxu0 0.0
    %1329 = vmatprep.subr.mxu0 0.0
    %1330 = vmatpush1.msra.mxu0 0.0
    %1331 = vmatprep.subr.mxu0 0.0
    %1332 = vmatpush1.msra.mxu0 0.0
    %1333 = vmatprep.subr.mxu0 0.0
    %1334 = vmatpush1.msra.mxu0 0.0
    %1335 = vmatprep.subr.mxu0 0.0
    %1336 = vmatpush1.msra.mxu0 0.0
    %1337 = vmatprep.subr.mxu0 0.0
    %1338 = vmatpush1.msra.mxu0 0.0
    %1339 = vmatprep.subr.mxu0 0.0
    %1340 = vmatpush1.msra.mxu0 0.0
    %1341 = vmatprep.subr.mxu0 0.0
    %1342 = vmatpush1.msra.mxu0 0.0
    %1343 = vmatprep.subr.mxu0 0.0
    %1344 = vmatpush1.msra.mxu0 0.0
    %1345 = vmatprep.subr.mxu0 0.0
    %1346 = vmatpush1.msra.mxu0 0.0
    %1347 = vmatprep.subr.mxu0 0.0
    %1348 = vmatpush1.msra.mxu0 0.0
    %1349 = vmatprep.subr.mxu0 0.0
    %1350 = vmatpush1.msra.mxu0 0.0
    %1351 = vmatprep.subr.mxu0 0.0
    %1352 = vmatpush1.msra.mxu0 0.0
    %1353 = vmatprep.subr.mxu0 0.0
    %1354 = vmatpush1.msra.mxu0 0.0
    %1355 = vmatprep.subr.mxu0 0.0
    %1356 = vmatpush1.msra.mxu0 0.0
    %1357 = vmatprep.subr.mxu0 0.0
    %1358 = vmatpush1.msra.mxu0 0.0
    %1359 = vmatprep.subr.mxu0 0.0
    %1360 = vmatpush1.msra.mxu0 0.0
    %1361 = vmatprep.subr.mxu0 0.0
    %1362 = vmatpush1.msra.mxu0 0.0
    %1363 = vmatprep.subr.mxu0 0.0
    %1364 = vmatpush1.msra.mxu0 0.0
    %1365 = vmatprep.subr.mxu0 0.0
    %1366 = vmatpush1.msra.mxu0 0.0
    %1367 = vmatprep.subr.mxu0 0.0
    %1368 = vmatpush1.msra.mxu0 0.0
    %1369 = vmatprep.subr.mxu0 0.0
    %1370 = vmatpush1.msra.mxu0 0.0
    %1371 = vmatprep.subr.mxu0 0.0
    %1372 = vmatpush1.msra.mxu0 0.0
    %1373 = vmatprep.subr.mxu0 0.0
    %1374 = vmatpush1.msra.mxu0 0.0
    %1375 = vmatprep.subr.mxu0 0.0
    %1376 = vmatpush1.msra.mxu0 0.0
    %1377 = vmatprep.subr.mxu0 0.0
    %1378 = vmatpush1.msra.mxu0 0.0
    %1379 = vmatprep.subr.mxu0 0.0
    %1380 = vmatpush1.msra.mxu0 0.0
    %1381 = vmatprep.subr.mxu0 0.0
    %1382 = vmatpush1.msra.mxu0 0.0
    %1383 = vmatprep.subr.mxu0 0.0
    %1384 = vmatpush1.msra.mxu0 0.0
    %1385 = vmatprep.subr.mxu0 0.0
    %1386 = vmatpush1.msra.mxu0 0.0
    %1387 = vmatprep.subr.mxu0 0.0
    %1388 = vmatpush1.msra.mxu0 0.0
    %1389 = vmatprep.subr.mxu0 0.0
    %1390 = vmatpush1.msra.mxu0 0.0
    %1391 = vmatprep.mubr.f32.mxu0 0.0
    %v1392 = vand.u32 %v1000, 4294901760
    %1393 = vmatmul.mubr.f32.gmra.mrb[0].mxu0 %v1392
    %v1394 = vpop.f32.mrb[0].mxu0
    %v1395 = vadd.f32 %v1316, %v1394
    %v1396 = vpop.f32.mrb[0].mxu0
    %1397 = vmatprep.mubr.f32.mxu0 0.0
    %v1398 = vand.u32 %v1003, 4294901760
    %1399 = vmatmul.mubr.f32.gmra.mrb[0].mxu0 %v1398
    %v1400 = vpop.f32.mrb[0].mxu0
    %v1401 = vadd.f32 %v1324, %v1400
    %v1402 = vpop.f32.mrb[0].mxu0
    %1403 = vdwg.mxu0
    %1404 = vmatprep.subr.mxu0 0.0
    %1405 = vmatpush1.msra.mxu0 1.0
    %1406 = vmatprep.subr.mxu0 0.0
    %1407 = vmatpush1.msra.mxu0 1.0
    %1408 = vmatprep.subr.mxu0 0.0
    %1409 = vmatpush1.msra.mxu0 0.0
    %1410 = vmatprep.subr.mxu0 0.0
    %1411 = vmatpush1.msra.mxu0 0.0
    %1412 = vmatprep.subr.mxu0 0.0
    %1413 = vmatpush1.msra.mxu0 0.0
    %1414 = vmatprep.subr.mxu0 0.0
    %1415 = vmatpush1.msra.mxu0 0.0
    %1416 = vmatprep.subr.mxu0 0.0
    %1417 = vmatpush1.msra.mxu0 0.0
    %1418 = vmatprep.subr.mxu0 0.0
    %1419 = vmatpush1.msra.mxu0 0.0
    %1420 = vmatprep.subr.mxu0 0.0
    %1421 = vmatpush1.msra.mxu0 0.0
    %1422 = vmatprep.subr.mxu0 0.0
    %1423 = vmatpush1.msra.mxu0 0.0
    %1424 = vmatprep.subr.mxu0 0.0
    %1425 = vmatpush1.msra.mxu0 0.0
    %1426 = vmatprep.subr.mxu0 0.0
    %1427 = vmatpush1.msra.mxu0 0.0
    %1428 = vmatprep.subr.mxu0 0.0
    %1429 = vmatpush1.msra.mxu0 0.0
    %1430 = vmatprep.subr.mxu0 0.0
    %1431 = vmatpush1.msra.mxu0 0.0
    %1432 = vmatprep.subr.mxu0 0.0
    %1433 = vmatpush1.msra.mxu0 0.0
    %1434 = vmatprep.subr.mxu0 0.0
    %1435 = vmatpush1.msra.mxu0 0.0
    %1436 = vmatprep.subr.mxu0 0.0
    %1437 = vmatpush1.msra.mxu0 0.0
    %1438 = vmatprep.subr.mxu0 0.0
    %1439 = vmatpush1.msra.mxu0 0.0
    %1440 = vmatprep.subr.mxu0 0.0
    %1441 = vmatpush1.msra.mxu0 0.0
    %1442 = vmatprep.subr.mxu0 0.0
    %1443 = vmatpush1.msra.mxu0 0.0
    %1444 = vmatprep.subr.mxu0 0.0
    %1445 = vmatpush1.msra.mxu0 0.0
    %1446 = vmatprep.subr.mxu0 0.0
    %1447 = vmatpush1.msra.mxu0 0.0
    %1448 = vmatprep.subr.mxu0 0.0
    %1449 = vmatpush1.msra.mxu0 0.0
    %1450 = vmatprep.subr.mxu0 0.0
    %1451 = vmatpush1.msra.mxu0 0.0
    %1452 = vmatprep.subr.mxu0 0.0
    %1453 = vmatpush1.msra.mxu0 0.0
    %1454 = vmatprep.subr.mxu0 0.0
    %1455 = vmatpush1.msra.mxu0 0.0
    %1456 = vmatprep.subr.mxu0 0.0
    %1457 = vmatpush1.msra.mxu0 0.0
    %1458 = vmatprep.subr.mxu0 0.0
    %1459 = vmatpush1.msra.mxu0 0.0
    %1460 = vmatprep.subr.mxu0 0.0
    %1461 = vmatpush1.msra.mxu0 0.0
    %1462 = vmatprep.subr.mxu0 0.0
    %1463 = vmatpush1.msra.mxu0 0.0
    %1464 = vmatprep.subr.mxu0 0.0
    %1465 = vmatpush1.msra.mxu0 0.0
    %1466 = vmatprep.subr.mxu0 0.0
    %1467 = vmatpush1.msra.mxu0 0.0
    %1468 = vmatprep.mubr.f32.mxu0 0.0
    %v1469 = vand.u32 %v1000, 4294901760
    %1470 = vmatmul.mubr.f32.gmra.mrb[0].mxu0 %v1469
    %v1471 = vpop.f32.mrb[0].mxu0
    %v1472 = vadd.f32 %v1395, %v1471
    %v1473 = vpop.f32.mrb[0].mxu0
    %1474 = vmatprep.mubr.f32.mxu0 0.0
    %v1475 = vand.u32 %v1003, 4294901760
    %1476 = vmatmul.mubr.f32.gmra.mrb[0].mxu0 %v1475
    %v1477 = vpop.f32.mrb[0].mxu0
    %v1478 = vadd.f32 %v1401, %v1477
    %v1479 = vpop.f32.mrb[0].mxu0
    %1480 = vdwg.mxu0
    %v1481 = vmul.f32 %v988, 0.0625
    %v1482 = vmul.f32 %v994, 0.0625
    %v1483 = vmul.f32 %v1472, 0.0625
    %v1484 = vmul.f32 %v1478, 0.0625
    %v1485 = vmul.f32 %v1481, %v1481
    %v1486 = vmul.f32 %v1482, %v1482
    %v1487 = vsub.f32 %v1483, %v1485
    %v1488 = vsub.f32 %v1484, %v1486
    %v1489 = vmax.f32 %v1487, 0.0
    %v1490 = vmax.f32 %v1488, 0.0
    %v1491 = vld [vmem:[%s2] sm:$0xff]
    %v1492 = vld [vmem:[%s2 + $0x8] sm:$0xff]
    %v1493 = vadd.f32 %v1489, 1e-05
    %v1494 = vadd.f32 %v1490, 1e-05
    %v1495 = vrsqrt.pop %v1493
    %v1496 = vrsqrt.pop %v1494
    %v1497 = vmul.f32 %v1491, %v1495
    %v1498 = vmul.f32 %v1492, %v1496
    %v1499 = vmul.f32 %v1481, %v1497
    %v1500 = vmul.f32 %v1482, %v1498
    %1503 = vrot.lane.b32.xlu0 %v1499, 1
    %v1504 = vpop.permute.xlu0 %1503
    %1505 = vrot.lane.b32.xlu0 %v1500, 1
    %v1506 = vpop.permute.xlu0 %1505
    %v1509 = vsub.f32 %v1491, %v1504
    %v1510 = vsub.f32 %v1492, %v1506
    %1512 = vset.pattern.permute.xlu0 0
    %1513 = vperm.xlu0 %1512, %v1497
    %v1514 = vpop.permute.xlu0 %1513
    %1517 = vset.pattern.permute.xlu0 0
    %1518 = vperm.xlu0 %1517, %v1498
    %v1519 = vpop.permute.xlu0 %1518
    %v1521 = vmul.f32 %v505, %v1514
    %v1522 = vmul.f32 %v511, %v1519
    %1524 = vset.pattern.permute.xlu0 1
    %1525 = vperm.xlu0 %1524, %v1509
    %v1526 = vpop.permute.xlu0 %1525
    %1529 = vset.pattern.permute.xlu0 1
    %1530 = vperm.xlu0 %1529, %v1510
    %v1531 = vpop.permute.xlu0 %1530
    %v1533 = vadd.f32 %v1521, %v1526
    %v1534 = vadd.f32 %v1522, %v1531
    %v1535 = vmax.f32 %v1533, 0.0
    %v1536 = vmax.f32 %v1534, 0.0
    %v1537 = vld [vmem:[%s1 + $0x10] sm:$0xff]
    %v1538 = vld [vmem:[%s1 + $0x18] sm:$0xff]
    %v1539 = vld [vmem:[%s1 + $0x20] sm:$0xff]
    %v1540 = vld [vmem:[%s1 + $0x28] sm:$0x3f]
    %v1542 = vsel %vm514, %v1537, 0
    %v1545 = vsel %vm514, %v1538, 0
    %v1548 = vsel %vm514, %v1539, 0
    %v1551 = vsel %vm514, %v1540, 0
    %1553 = vmatprep.subr.mxu0 0.0
    %v1554 = vand.u32 %v1535, 4294901760
    %1555 = vmatpush1.msra.mxu0 %v1554
    %1556 = vmatprep.subr.mxu0 0.0
    %v1557 = vand.u32 %v1536, 4294901760
    %1558 = vmatpush1.msra.mxu0 %v1557
    %1559 = vmatprep.subr.mxu0 0.0
    %1560 = vmatpush1.msra.mxu0 0.0
    %1561 = vmatprep.subr.mxu0 0.0
    %1562 = vmatpush1.msra.mxu0 0.0
    %1563 = vmatprep.subr.mxu0 0.0
    %1564 = vmatpush1.msra.mxu0 0.0
    %1565 = vmatprep.subr.mxu0 0.0
    %1566 = vmatpush1.msra.mxu0 0.0
    %1567 = vmatprep.subr.mxu0 0.0
    %1568 = vmatpush1.msra.mxu0 0.0
    %1569 = vmatprep.subr.mxu0 0.0
    %1570 = vmatpush1.msra.mxu0 0.0
    %1571 = vmatprep.subr.mxu0 0.0
    %1572 = vmatpush1.msra.mxu0 0.0
    %1573 = vmatprep.subr.mxu0 0.0
    %1574 = vmatpush1.msra.mxu0 0.0
    %1575 = vmatprep.subr.mxu0 0.0
    %1576 = vmatpush1.msra.mxu0 0.0
    %1577 = vmatprep.subr.mxu0 0.0
    %1578 = vmatpush1.msra.mxu0 0.0
    %1579 = vmatprep.subr.mxu0 0.0
    %1580 = vmatpush1.msra.mxu0 0.0
    %1581 = vmatprep.subr.mxu0 0.0
    %1582 = vmatpush1.msra.mxu0 0.0
    %1583 = vmatprep.subr.mxu0 0.0
    %1584 = vmatpush1.msra.mxu0 0.0
    %1585 = vmatprep.subr.mxu0 0.0
    %1586 = vmatpush1.msra.mxu0 0.0
    %1587 = vmatprep.subr.mxu0 0.0
    %1588 = vmatpush1.msra.mxu0 0.0
    %1589 = vmatprep.subr.mxu0 0.0
    %1590 = vmatpush1.msra.mxu0 0.0
    %1591 = vmatprep.subr.mxu0 0.0
    %1592 = vmatpush1.msra.mxu0 0.0
    %1593 = vmatprep.subr.mxu0 0.0
    %1594 = vmatpush1.msra.mxu0 0.0
    %1595 = vmatprep.subr.mxu0 0.0
    %1596 = vmatpush1.msra.mxu0 0.0
    %1597 = vmatprep.subr.mxu0 0.0
    %1598 = vmatpush1.msra.mxu0 0.0
    %1599 = vmatprep.subr.mxu0 0.0
    %1600 = vmatpush1.msra.mxu0 0.0
    %1601 = vmatprep.subr.mxu0 0.0
    %1602 = vmatpush1.msra.mxu0 0.0
    %1603 = vmatprep.subr.mxu0 0.0
    %1604 = vmatpush1.msra.mxu0 0.0
    %1605 = vmatprep.subr.mxu0 0.0
    %1606 = vmatpush1.msra.mxu0 0.0
    %1607 = vmatprep.subr.mxu0 0.0
    %1608 = vmatpush1.msra.mxu0 0.0
    %1609 = vmatprep.subr.mxu0 0.0
    %1610 = vmatpush1.msra.mxu0 0.0
    %1611 = vmatprep.subr.mxu0 0.0
    %1612 = vmatpush1.msra.mxu0 0.0
    %1613 = vmatprep.subr.mxu0 0.0
    %1614 = vmatpush1.msra.mxu0 0.0
    %1615 = vmatprep.subr.mxu0 0.0
    %1616 = vmatpush1.msra.mxu0 0.0
    %1617 = vmatprep.subr.mxu0 0.0
    %1618 = vmatpush1.msra.mxu0 0.0
    %1619 = vmatprep.mubr.f32.mxu0 0.0
    %v1620 = vand.u32 %v1542, 4294901760
    %v1621 = vsub.f32 %v1542, %v1620
    %v1622 = vand.u32 %v1621, 4294901760
    %v1623 = vsub.f32 %v1621, %v1622
    %v1624 = vand.u32 %v1623, 4294901760
    %1625 = vmatmul.mubr.f32.gmra.mrb[0].mxu0 %v1624
    %v1626 = vpop.f32.mrb[0].mxu0
    %v1627 = vadd.f32 0.0, %v1626
    %v1628 = vpop.f32.mrb[0].mxu0
    %1629 = vmatprep.mubr.f32.mxu0 0.0
    %v1630 = vand.u32 %v1545, 4294901760
    %v1631 = vsub.f32 %v1545, %v1630
    %v1632 = vand.u32 %v1631, 4294901760
    %v1633 = vsub.f32 %v1631, %v1632
    %v1634 = vand.u32 %v1633, 4294901760
    %1635 = vmatmul.mubr.f32.gmra.mrb[0].mxu0 %v1634
    %v1636 = vpop.f32.mrb[0].mxu0
    %v1637 = vadd.f32 0.0, %v1636
    %v1638 = vpop.f32.mrb[0].mxu0
    %1639 = vmatprep.mubr.f32.mxu0 0.0
    %v1640 = vand.u32 %v1548, 4294901760
    %v1641 = vsub.f32 %v1548, %v1640
    %v1642 = vand.u32 %v1641, 4294901760
    %v1643 = vsub.f32 %v1641, %v1642
    %v1644 = vand.u32 %v1643, 4294901760
    %1645 = vmatmul.mubr.f32.gmra.mrb[0].mxu0 %v1644
    %v1646 = vpop.f32.mrb[0].mxu0
    %v1647 = vadd.f32 0.0, %v1646
    %v1648 = vpop.f32.mrb[0].mxu0
    %1649 = vmatprep.mubr.f32.mxu0 0.0
    %v1650 = vand.u32 %v1551, 4294901760
    %v1651 = vsub.f32 %v1551, %v1650
    %v1652 = vand.u32 %v1651, 4294901760
    %v1653 = vsub.f32 %v1651, %v1652
    %v1654 = vand.u32 %v1653, 4294901760
    %1655 = vmatmul.mubr.f32.gmra.mrb[0].mxu0 %v1654
    %v1656 = vpop.f32.mrb[0].mxu0
    %v1657 = vadd.f32 0.0, %v1656
    %v1658 = vpop.f32.mrb[0].mxu0
    %1659 = vdwg.mxu0
    %1660 = vmatprep.subr.mxu0 0.0
    %v1661 = vand.u32 %v1535, 4294901760
    %v1662 = vsub.f32 %v1535, %v1661
    %v1663 = vand.u32 %v1662, 4294901760
    %v1664 = vsub.f32 %v1662, %v1663
    %v1665 = vand.u32 %v1664, 4294901760
    %1666 = vmatpush1.msra.mxu0 %v1665
    %1667 = vmatprep.subr.mxu0 0.0
    %v1668 = vand.u32 %v1536, 4294901760
    %v1669 = vsub.f32 %v1536, %v1668
    %v1670 = vand.u32 %v1669, 4294901760
    %v1671 = vsub.f32 %v1669, %v1670
    %v1672 = vand.u32 %v1671, 4294901760
    %1673 = vmatpush1.msra.mxu0 %v1672
    %1674 = vmatprep.subr.mxu0 0.0
    %1675 = vmatpush1.msra.mxu0 0.0
    %1676 = vmatprep.subr.mxu0 0.0
    %1677 = vmatpush1.msra.mxu0 0.0
    %1678 = vmatprep.subr.mxu0 0.0
    %1679 = vmatpush1.msra.mxu0 0.0
    %1680 = vmatprep.subr.mxu0 0.0
    %1681 = vmatpush1.msra.mxu0 0.0
    %1682 = vmatprep.subr.mxu0 0.0
    %1683 = vmatpush1.msra.mxu0 0.0
    %1684 = vmatprep.subr.mxu0 0.0
    %1685 = vmatpush1.msra.mxu0 0.0
    %1686 = vmatprep.subr.mxu0 0.0
    %1687 = vmatpush1.msra.mxu0 0.0
    %1688 = vmatprep.subr.mxu0 0.0
    %1689 = vmatpush1.msra.mxu0 0.0
    %1690 = vmatprep.subr.mxu0 0.0
    %1691 = vmatpush1.msra.mxu0 0.0
    %1692 = vmatprep.subr.mxu0 0.0
    %1693 = vmatpush1.msra.mxu0 0.0
    %1694 = vmatprep.subr.mxu0 0.0
    %1695 = vmatpush1.msra.mxu0 0.0
    %1696 = vmatprep.subr.mxu0 0.0
    %1697 = vmatpush1.msra.mxu0 0.0
    %1698 = vmatprep.subr.mxu0 0.0
    %1699 = vmatpush1.msra.mxu0 0.0
    %1700 = vmatprep.subr.mxu0 0.0
    %1701 = vmatpush1.msra.mxu0 0.0
    %1702 = vmatprep.subr.mxu0 0.0
    %1703 = vmatpush1.msra.mxu0 0.0
    %1704 = vmatprep.subr.mxu0 0.0
    %1705 = vmatpush1.msra.mxu0 0.0
    %1706 = vmatprep.subr.mxu0 0.0
    %1707 = vmatpush1.msra.mxu0 0.0
    %1708 = vmatprep.subr.mxu0 0.0
    %1709 = vmatpush1.msra.mxu0 0.0
    %1710 = vmatprep.subr.mxu0 0.0
    %1711 = vmatpush1.msra.mxu0 0.0
    %1712 = vmatprep.subr.mxu0 0.0
    %1713 = vmatpush1.msra.mxu0 0.0
    %1714 = vmatprep.subr.mxu0 0.0
    %1715 = vmatpush1.msra.mxu0 0.0
    %1716 = vmatprep.subr.mxu0 0.0
    %1717 = vmatpush1.msra.mxu0 0.0
    %1718 = vmatprep.subr.mxu0 0.0
    %1719 = vmatpush1.msra.mxu0 0.0
    %1720 = vmatprep.subr.mxu0 0.0
    %1721 = vmatpush1.msra.mxu0 0.0
    %1722 = vmatprep.subr.mxu0 0.0
    %1723 = vmatpush1.msra.mxu0 0.0
    %1724 = vmatprep.subr.mxu0 0.0
    %1725 = vmatpush1.msra.mxu0 0.0
    %1726 = vmatprep.subr.mxu0 0.0
    %1727 = vmatpush1.msra.mxu0 0.0
    %1728 = vmatprep.subr.mxu0 0.0
    %1729 = vmatpush1.msra.mxu0 0.0
    %1730 = vmatprep.subr.mxu0 0.0
    %1731 = vmatpush1.msra.mxu0 0.0
    %1732 = vmatprep.subr.mxu0 0.0
    %1733 = vmatpush1.msra.mxu0 0.0
    %1734 = vmatprep.mubr.f32.mxu0 0.0
    %v1735 = vand.u32 %v1542, 4294901760
    %1736 = vmatmul.mubr.f32.gmra.mrb[0].mxu0 %v1735
    %v1737 = vpop.f32.mrb[0].mxu0
    %v1738 = vadd.f32 %v1627, %v1737
    %v1739 = vpop.f32.mrb[0].mxu0
    %1740 = vmatprep.mubr.f32.mxu0 0.0
    %v1741 = vand.u32 %v1545, 4294901760
    %1742 = vmatmul.mubr.f32.gmra.mrb[0].mxu0 %v1741
    %v1743 = vpop.f32.mrb[0].mxu0
    %v1744 = vadd.f32 %v1637, %v1743
    %v1745 = vpop.f32.mrb[0].mxu0
    %1746 = vmatprep.mubr.f32.mxu0 0.0
    %v1747 = vand.u32 %v1548, 4294901760
    %1748 = vmatmul.mubr.f32.gmra.mrb[0].mxu0 %v1747
    %v1749 = vpop.f32.mrb[0].mxu0
    %v1750 = vadd.f32 %v1647, %v1749
    %v1751 = vpop.f32.mrb[0].mxu0
    %1752 = vmatprep.mubr.f32.mxu0 0.0
    %v1753 = vand.u32 %v1551, 4294901760
    %1754 = vmatmul.mubr.f32.gmra.mrb[0].mxu0 %v1753
    %v1755 = vpop.f32.mrb[0].mxu0
    %v1756 = vadd.f32 %v1657, %v1755
    %v1757 = vpop.f32.mrb[0].mxu0
    %1758 = vdwg.mxu0
    %1759 = vmatprep.subr.mxu0 0.0
    %v1760 = vand.u32 %v1535, 4294901760
    %v1761 = vsub.f32 %v1535, %v1760
    %1762 = vmatpush1.msra.mxu0 %v1761
    %1763 = vmatprep.subr.mxu0 0.0
    %v1764 = vand.u32 %v1536, 4294901760
    %v1765 = vsub.f32 %v1536, %v1764
    %1766 = vmatpush1.msra.mxu0 %v1765
    %1767 = vmatprep.subr.mxu0 0.0
    %1768 = vmatpush1.msra.mxu0 0.0
    %1769 = vmatprep.subr.mxu0 0.0
    %1770 = vmatpush1.msra.mxu0 0.0
    %1771 = vmatprep.subr.mxu0 0.0
    %1772 = vmatpush1.msra.mxu0 0.0
    %1773 = vmatprep.subr.mxu0 0.0
    %1774 = vmatpush1.msra.mxu0 0.0
    %1775 = vmatprep.subr.mxu0 0.0
    %1776 = vmatpush1.msra.mxu0 0.0
    %1777 = vmatprep.subr.mxu0 0.0
    %1778 = vmatpush1.msra.mxu0 0.0
    %1779 = vmatprep.subr.mxu0 0.0
    %1780 = vmatpush1.msra.mxu0 0.0
    %1781 = vmatprep.subr.mxu0 0.0
    %1782 = vmatpush1.msra.mxu0 0.0
    %1783 = vmatprep.subr.mxu0 0.0
    %1784 = vmatpush1.msra.mxu0 0.0
    %1785 = vmatprep.subr.mxu0 0.0
    %1786 = vmatpush1.msra.mxu0 0.0
    %1787 = vmatprep.subr.mxu0 0.0
    %1788 = vmatpush1.msra.mxu0 0.0
    %1789 = vmatprep.subr.mxu0 0.0
    %1790 = vmatpush1.msra.mxu0 0.0
    %1791 = vmatprep.subr.mxu0 0.0
    %1792 = vmatpush1.msra.mxu0 0.0
    %1793 = vmatprep.subr.mxu0 0.0
    %1794 = vmatpush1.msra.mxu0 0.0
    %1795 = vmatprep.subr.mxu0 0.0
    %1796 = vmatpush1.msra.mxu0 0.0
    %1797 = vmatprep.subr.mxu0 0.0
    %1798 = vmatpush1.msra.mxu0 0.0
    %1799 = vmatprep.subr.mxu0 0.0
    %1800 = vmatpush1.msra.mxu0 0.0
    %1801 = vmatprep.subr.mxu0 0.0
    %1802 = vmatpush1.msra.mxu0 0.0
    %1803 = vmatprep.subr.mxu0 0.0
    %1804 = vmatpush1.msra.mxu0 0.0
    %1805 = vmatprep.subr.mxu0 0.0
    %1806 = vmatpush1.msra.mxu0 0.0
    %1807 = vmatprep.subr.mxu0 0.0
    %1808 = vmatpush1.msra.mxu0 0.0
    %1809 = vmatprep.subr.mxu0 0.0
    %1810 = vmatpush1.msra.mxu0 0.0
    %1811 = vmatprep.subr.mxu0 0.0
    %1812 = vmatpush1.msra.mxu0 0.0
    %1813 = vmatprep.subr.mxu0 0.0
    %1814 = vmatpush1.msra.mxu0 0.0
    %1815 = vmatprep.subr.mxu0 0.0
    %1816 = vmatpush1.msra.mxu0 0.0
    %1817 = vmatprep.subr.mxu0 0.0
    %1818 = vmatpush1.msra.mxu0 0.0
    %1819 = vmatprep.subr.mxu0 0.0
    %1820 = vmatpush1.msra.mxu0 0.0
    %1821 = vmatprep.subr.mxu0 0.0
    %1822 = vmatpush1.msra.mxu0 0.0
    %1823 = vmatprep.subr.mxu0 0.0
    %1824 = vmatpush1.msra.mxu0 0.0
    %1825 = vmatprep.subr.mxu0 0.0
    %1826 = vmatpush1.msra.mxu0 0.0
    %1827 = vmatprep.mubr.f32.mxu0 0.0
    %v1828 = vand.u32 %v1542, 4294901760
    %v1829 = vsub.f32 %v1542, %v1828
    %1830 = vmatmul.mubr.f32.gmra.mrb[0].mxu0 %v1829
    %v1831 = vpop.f32.mrb[0].mxu0
    %v1832 = vadd.f32 %v1738, %v1831
    %v1833 = vpop.f32.mrb[0].mxu0
    %1834 = vmatprep.mubr.f32.mxu0 0.0
    %v1835 = vand.u32 %v1545, 4294901760
    %v1836 = vsub.f32 %v1545, %v1835
    %1837 = vmatmul.mubr.f32.gmra.mrb[0].mxu0 %v1836
    %v1838 = vpop.f32.mrb[0].mxu0
    %v1839 = vadd.f32 %v1744, %v1838
    %v1840 = vpop.f32.mrb[0].mxu0
    %1841 = vmatprep.mubr.f32.mxu0 0.0
    %v1842 = vand.u32 %v1548, 4294901760
    %v1843 = vsub.f32 %v1548, %v1842
    %1844 = vmatmul.mubr.f32.gmra.mrb[0].mxu0 %v1843
    %v1845 = vpop.f32.mrb[0].mxu0
    %v1846 = vadd.f32 %v1750, %v1845
    %v1847 = vpop.f32.mrb[0].mxu0
    %1848 = vmatprep.mubr.f32.mxu0 0.0
    %v1849 = vand.u32 %v1551, 4294901760
    %v1850 = vsub.f32 %v1551, %v1849
    %1851 = vmatmul.mubr.f32.gmra.mrb[0].mxu0 %v1850
    %v1852 = vpop.f32.mrb[0].mxu0
    %v1853 = vadd.f32 %v1756, %v1852
    %v1854 = vpop.f32.mrb[0].mxu0
    %1855 = vdwg.mxu0
    %1856 = vmatprep.subr.mxu0 0.0
    %v1857 = vand.u32 %v1535, 4294901760
    %1858 = vmatpush1.msra.mxu0 %v1857
    %1859 = vmatprep.subr.mxu0 0.0
    %v1860 = vand.u32 %v1536, 4294901760
    %1861 = vmatpush1.msra.mxu0 %v1860
    %1862 = vmatprep.subr.mxu0 0.0
    %1863 = vmatpush1.msra.mxu0 0.0
    %1864 = vmatprep.subr.mxu0 0.0
    %1865 = vmatpush1.msra.mxu0 0.0
    %1866 = vmatprep.subr.mxu0 0.0
    %1867 = vmatpush1.msra.mxu0 0.0
    %1868 = vmatprep.subr.mxu0 0.0
    %1869 = vmatpush1.msra.mxu0 0.0
    %1870 = vmatprep.subr.mxu0 0.0
    %1871 = vmatpush1.msra.mxu0 0.0
    %1872 = vmatprep.subr.mxu0 0.0
    %1873 = vmatpush1.msra.mxu0 0.0
    %1874 = vmatprep.subr.mxu0 0.0
    %1875 = vmatpush1.msra.mxu0 0.0
    %1876 = vmatprep.subr.mxu0 0.0
    %1877 = vmatpush1.msra.mxu0 0.0
    %1878 = vmatprep.subr.mxu0 0.0
    %1879 = vmatpush1.msra.mxu0 0.0
    %1880 = vmatprep.subr.mxu0 0.0
    %1881 = vmatpush1.msra.mxu0 0.0
    %1882 = vmatprep.subr.mxu0 0.0
    %1883 = vmatpush1.msra.mxu0 0.0
    %1884 = vmatprep.subr.mxu0 0.0
    %1885 = vmatpush1.msra.mxu0 0.0
    %1886 = vmatprep.subr.mxu0 0.0
    %1887 = vmatpush1.msra.mxu0 0.0
    %1888 = vmatprep.subr.mxu0 0.0
    %1889 = vmatpush1.msra.mxu0 0.0
    %1890 = vmatprep.subr.mxu0 0.0
    %1891 = vmatpush1.msra.mxu0 0.0
    %1892 = vmatprep.subr.mxu0 0.0
    %1893 = vmatpush1.msra.mxu0 0.0
    %1894 = vmatprep.subr.mxu0 0.0
    %1895 = vmatpush1.msra.mxu0 0.0
    %1896 = vmatprep.subr.mxu0 0.0
    %1897 = vmatpush1.msra.mxu0 0.0
    %1898 = vmatprep.subr.mxu0 0.0
    %1899 = vmatpush1.msra.mxu0 0.0
    %1900 = vmatprep.subr.mxu0 0.0
    %1901 = vmatpush1.msra.mxu0 0.0
    %1902 = vmatprep.subr.mxu0 0.0
    %1903 = vmatpush1.msra.mxu0 0.0
    %1904 = vmatprep.subr.mxu0 0.0
    %1905 = vmatpush1.msra.mxu0 0.0
    %1906 = vmatprep.subr.mxu0 0.0
    %1907 = vmatpush1.msra.mxu0 0.0
    %1908 = vmatprep.subr.mxu0 0.0
    %1909 = vmatpush1.msra.mxu0 0.0
    %1910 = vmatprep.subr.mxu0 0.0
    %1911 = vmatpush1.msra.mxu0 0.0
    %1912 = vmatprep.subr.mxu0 0.0
    %1913 = vmatpush1.msra.mxu0 0.0
    %1914 = vmatprep.subr.mxu0 0.0
    %1915 = vmatpush1.msra.mxu0 0.0
    %1916 = vmatprep.subr.mxu0 0.0
    %1917 = vmatpush1.msra.mxu0 0.0
    %1918 = vmatprep.subr.mxu0 0.0
    %1919 = vmatpush1.msra.mxu0 0.0
    %1920 = vmatprep.subr.mxu0 0.0
    %1921 = vmatpush1.msra.mxu0 0.0
    %1922 = vmatprep.mubr.f32.mxu0 0.0
    %v1923 = vand.u32 %v1542, 4294901760
    %v1924 = vsub.f32 %v1542, %v1923
    %v1925 = vand.u32 %v1924, 4294901760
    %1926 = vmatmul.mubr.f32.gmra.mrb[0].mxu0 %v1925
    %v1927 = vpop.f32.mrb[0].mxu0
    %v1928 = vadd.f32 %v1832, %v1927
    %v1929 = vpop.f32.mrb[0].mxu0
    %1930 = vmatprep.mubr.f32.mxu0 0.0
    %v1931 = vand.u32 %v1545, 4294901760
    %v1932 = vsub.f32 %v1545, %v1931
    %v1933 = vand.u32 %v1932, 4294901760
    %1934 = vmatmul.mubr.f32.gmra.mrb[0].mxu0 %v1933
    %v1935 = vpop.f32.mrb[0].mxu0
    %v1936 = vadd.f32 %v1839, %v1935
    %v1937 = vpop.f32.mrb[0].mxu0
    %1938 = vmatprep.mubr.f32.mxu0 0.0
    %v1939 = vand.u32 %v1548, 4294901760
    %v1940 = vsub.f32 %v1548, %v1939
    %v1941 = vand.u32 %v1940, 4294901760
    %1942 = vmatmul.mubr.f32.gmra.mrb[0].mxu0 %v1941
    %v1943 = vpop.f32.mrb[0].mxu0
    %v1944 = vadd.f32 %v1846, %v1943
    %v1945 = vpop.f32.mrb[0].mxu0
    %1946 = vmatprep.mubr.f32.mxu0 0.0
    %v1947 = vand.u32 %v1551, 4294901760
    %v1948 = vsub.f32 %v1551, %v1947
    %v1949 = vand.u32 %v1948, 4294901760
    %1950 = vmatmul.mubr.f32.gmra.mrb[0].mxu0 %v1949
    %v1951 = vpop.f32.mrb[0].mxu0
    %v1952 = vadd.f32 %v1853, %v1951
    %v1953 = vpop.f32.mrb[0].mxu0
    %1954 = vdwg.mxu0
    %1955 = vmatprep.subr.mxu0 0.0
    %v1956 = vand.u32 %v1535, 4294901760
    %v1957 = vsub.f32 %v1535, %v1956
    %v1958 = vand.u32 %v1957, 4294901760
    %1959 = vmatpush1.msra.mxu0 %v1958
    %1960 = vmatprep.subr.mxu0 0.0
    %v1961 = vand.u32 %v1536, 4294901760
    %v1962 = vsub.f32 %v1536, %v1961
    %v1963 = vand.u32 %v1962, 4294901760
    %1964 = vmatpush1.msra.mxu0 %v1963
    %1965 = vmatprep.subr.mxu0 0.0
    %1966 = vmatpush1.msra.mxu0 0.0
    %1967 = vmatprep.subr.mxu0 0.0
    %1968 = vmatpush1.msra.mxu0 0.0
    %1969 = vmatprep.subr.mxu0 0.0
    %1970 = vmatpush1.msra.mxu0 0.0
    %1971 = vmatprep.subr.mxu0 0.0
    %1972 = vmatpush1.msra.mxu0 0.0
    %1973 = vmatprep.subr.mxu0 0.0
    %1974 = vmatpush1.msra.mxu0 0.0
    %1975 = vmatprep.subr.mxu0 0.0
    %1976 = vmatpush1.msra.mxu0 0.0
    %1977 = vmatprep.subr.mxu0 0.0
    %1978 = vmatpush1.msra.mxu0 0.0
    %1979 = vmatprep.subr.mxu0 0.0
    %1980 = vmatpush1.msra.mxu0 0.0
    %1981 = vmatprep.subr.mxu0 0.0
    %1982 = vmatpush1.msra.mxu0 0.0
    %1983 = vmatprep.subr.mxu0 0.0
    %1984 = vmatpush1.msra.mxu0 0.0
    %1985 = vmatprep.subr.mxu0 0.0
    %1986 = vmatpush1.msra.mxu0 0.0
    %1987 = vmatprep.subr.mxu0 0.0
    %1988 = vmatpush1.msra.mxu0 0.0
    %1989 = vmatprep.subr.mxu0 0.0
    %1990 = vmatpush1.msra.mxu0 0.0
    %1991 = vmatprep.subr.mxu0 0.0
    %1992 = vmatpush1.msra.mxu0 0.0
    %1993 = vmatprep.subr.mxu0 0.0
    %1994 = vmatpush1.msra.mxu0 0.0
    %1995 = vmatprep.subr.mxu0 0.0
    %1996 = vmatpush1.msra.mxu0 0.0
    %1997 = vmatprep.subr.mxu0 0.0
    %1998 = vmatpush1.msra.mxu0 0.0
    %1999 = vmatprep.subr.mxu0 0.0
    %2000 = vmatpush1.msra.mxu0 0.0
    %2001 = vmatprep.subr.mxu0 0.0
    %2002 = vmatpush1.msra.mxu0 0.0
    %2003 = vmatprep.subr.mxu0 0.0
    %2004 = vmatpush1.msra.mxu0 0.0
    %2005 = vmatprep.subr.mxu0 0.0
    %2006 = vmatpush1.msra.mxu0 0.0
    %2007 = vmatprep.subr.mxu0 0.0
    %2008 = vmatpush1.msra.mxu0 0.0
    %2009 = vmatprep.subr.mxu0 0.0
    %2010 = vmatpush1.msra.mxu0 0.0
    %2011 = vmatprep.subr.mxu0 0.0
    %2012 = vmatpush1.msra.mxu0 0.0
    %2013 = vmatprep.subr.mxu0 0.0
    %2014 = vmatpush1.msra.mxu0 0.0
    %2015 = vmatprep.subr.mxu0 0.0
    %2016 = vmatpush1.msra.mxu0 0.0
    %2017 = vmatprep.subr.mxu0 0.0
    %2018 = vmatpush1.msra.mxu0 0.0
    %2019 = vmatprep.subr.mxu0 0.0
    %2020 = vmatpush1.msra.mxu0 0.0
    %2021 = vmatprep.subr.mxu0 0.0
    %2022 = vmatpush1.msra.mxu0 0.0
    %2023 = vmatprep.subr.mxu0 0.0
    %2024 = vmatpush1.msra.mxu0 0.0
    %2025 = vmatprep.mubr.f32.mxu0 0.0
    %v2026 = vand.u32 %v1542, 4294901760
    %2027 = vmatmul.mubr.f32.gmra.mrb[0].mxu0 %v2026
    %v2028 = vpop.f32.mrb[0].mxu0
    %v2029 = vadd.f32 %v1928, %v2028
    %v2030 = vpop.f32.mrb[0].mxu0
    %2031 = vmatprep.mubr.f32.mxu0 0.0
    %v2032 = vand.u32 %v1545, 4294901760
    %2033 = vmatmul.mubr.f32.gmra.mrb[0].mxu0 %v2032
    %v2034 = vpop.f32.mrb[0].mxu0
    %v2035 = vadd.f32 %v1936, %v2034
    %v2036 = vpop.f32.mrb[0].mxu0
    %2037 = vmatprep.mubr.f32.mxu0 0.0
    %v2038 = vand.u32 %v1548, 4294901760
    %2039 = vmatmul.mubr.f32.gmra.mrb[0].mxu0 %v2038
    %v2040 = vpop.f32.mrb[0].mxu0
    %v2041 = vadd.f32 %v1944, %v2040
    %v2042 = vpop.f32.mrb[0].mxu0
    %2043 = vmatprep.mubr.f32.mxu0 0.0
    %v2044 = vand.u32 %v1551, 4294901760
    %2045 = vmatmul.mubr.f32.gmra.mrb[0].mxu0 %v2044
    %v2046 = vpop.f32.mrb[0].mxu0
    %v2047 = vadd.f32 %v1952, %v2046
    %v2048 = vpop.f32.mrb[0].mxu0
    %2049 = vdwg.mxu0
    %2050 = vmatprep.subr.mxu0 0.0
    %v2051 = vand.u32 %v1535, 4294901760
    %2052 = vmatpush1.msra.mxu0 %v2051
    %2053 = vmatprep.subr.mxu0 0.0
    %v2054 = vand.u32 %v1536, 4294901760
    %2055 = vmatpush1.msra.mxu0 %v2054
    %2056 = vmatprep.subr.mxu0 0.0
    %2057 = vmatpush1.msra.mxu0 0.0
    %2058 = vmatprep.subr.mxu0 0.0
    %2059 = vmatpush1.msra.mxu0 0.0
    %2060 = vmatprep.subr.mxu0 0.0
    %2061 = vmatpush1.msra.mxu0 0.0
    %2062 = vmatprep.subr.mxu0 0.0
    %2063 = vmatpush1.msra.mxu0 0.0
    %2064 = vmatprep.subr.mxu0 0.0
    %2065 = vmatpush1.msra.mxu0 0.0
    %2066 = vmatprep.subr.mxu0 0.0
    %2067 = vmatpush1.msra.mxu0 0.0
    %2068 = vmatprep.subr.mxu0 0.0
    %2069 = vmatpush1.msra.mxu0 0.0
    %2070 = vmatprep.subr.mxu0 0.0
    %2071 = vmatpush1.msra.mxu0 0.0
    %2072 = vmatprep.subr.mxu0 0.0
    %2073 = vmatpush1.msra.mxu0 0.0
    %2074 = vmatprep.subr.mxu0 0.0
    %2075 = vmatpush1.msra.mxu0 0.0
    %2076 = vmatprep.subr.mxu0 0.0
    %2077 = vmatpush1.msra.mxu0 0.0
    %2078 = vmatprep.subr.mxu0 0.0
    %2079 = vmatpush1.msra.mxu0 0.0
    %2080 = vmatprep.subr.mxu0 0.0
    %2081 = vmatpush1.msra.mxu0 0.0
    %2082 = vmatprep.subr.mxu0 0.0
    %2083 = vmatpush1.msra.mxu0 0.0
    %2084 = vmatprep.subr.mxu0 0.0
    %2085 = vmatpush1.msra.mxu0 0.0
    %2086 = vmatprep.subr.mxu0 0.0
    %2087 = vmatpush1.msra.mxu0 0.0
    %2088 = vmatprep.subr.mxu0 0.0
    %2089 = vmatpush1.msra.mxu0 0.0
    %2090 = vmatprep.subr.mxu0 0.0
    %2091 = vmatpush1.msra.mxu0 0.0
    %2092 = vmatprep.subr.mxu0 0.0
    %2093 = vmatpush1.msra.mxu0 0.0
    %2094 = vmatprep.subr.mxu0 0.0
    %2095 = vmatpush1.msra.mxu0 0.0
    %2096 = vmatprep.subr.mxu0 0.0
    %2097 = vmatpush1.msra.mxu0 0.0
    %2098 = vmatprep.subr.mxu0 0.0
    %2099 = vmatpush1.msra.mxu0 0.0
    %2100 = vmatprep.subr.mxu0 0.0
    %2101 = vmatpush1.msra.mxu0 0.0
    %2102 = vmatprep.subr.mxu0 0.0
    %2103 = vmatpush1.msra.mxu0 0.0
    %2104 = vmatprep.subr.mxu0 0.0
    %2105 = vmatpush1.msra.mxu0 0.0
    %2106 = vmatprep.subr.mxu0 0.0
    %2107 = vmatpush1.msra.mxu0 0.0
    %2108 = vmatprep.subr.mxu0 0.0
    %2109 = vmatpush1.msra.mxu0 0.0
    %2110 = vmatprep.subr.mxu0 0.0
    %2111 = vmatpush1.msra.mxu0 0.0
    %2112 = vmatprep.subr.mxu0 0.0
    %2113 = vmatpush1.msra.mxu0 0.0
    %2114 = vmatprep.subr.mxu0 0.0
    %2115 = vmatpush1.msra.mxu0 0.0
    %2116 = vmatprep.mubr.f32.mxu0 0.0
    %v2117 = vand.u32 %v1542, 4294901760
    %2118 = vmatmul.mubr.f32.gmra.mrb[0].mxu0 %v2117
    %v2119 = vpop.f32.mrb[0].mxu0
    %v2120 = vadd.f32 %v2029, %v2119
    %v2121 = vpop.f32.mrb[0].mxu0
    %2122 = vmatprep.mubr.f32.mxu0 0.0
    %v2123 = vand.u32 %v1545, 4294901760
    %2124 = vmatmul.mubr.f32.gmra.mrb[0].mxu0 %v2123
    %v2125 = vpop.f32.mrb[0].mxu0
    %v2126 = vadd.f32 %v2035, %v2125
    %v2127 = vpop.f32.mrb[0].mxu0
    %2128 = vmatprep.mubr.f32.mxu0 0.0
    %v2129 = vand.u32 %v1548, 4294901760
    %2130 = vmatmul.mubr.f32.gmra.mrb[0].mxu0 %v2129
    %v2131 = vpop.f32.mrb[0].mxu0
    %v2132 = vadd.f32 %v2041, %v2131
    %v2133 = vpop.f32.mrb[0].mxu0
    %2134 = vmatprep.mubr.f32.mxu0 0.0
    %v2135 = vand.u32 %v1551, 4294901760
    %2136 = vmatmul.mubr.f32.gmra.mrb[0].mxu0 %v2135
    %v2137 = vpop.f32.mrb[0].mxu0
    %v2138 = vadd.f32 %v2047, %v2137
    %v2139 = vpop.f32.mrb[0].mxu0
    %2140 = vdwg.mxu0
    %v2142 = vsel %vm514, %v2120, 0
    %v2145 = vsel %vm514, %v2126, 0
    %v2148 = vsel %vm514, %v2132, 0
    %v2151 = vsel %vm514, %v2138, 0
    %2153 = vmatprep.subr.mxu0 0.0
    %2154 = vmatpush1.msra.mxu0 1.0
    %2155 = vmatprep.subr.mxu0 0.0
    %2156 = vmatpush1.msra.mxu0 1.0
    %2157 = vmatprep.subr.mxu0 0.0
    %2158 = vmatpush1.msra.mxu0 0.0
    %2159 = vmatprep.subr.mxu0 0.0
    %2160 = vmatpush1.msra.mxu0 0.0
    %2161 = vmatprep.subr.mxu0 0.0
    %2162 = vmatpush1.msra.mxu0 0.0
    %2163 = vmatprep.subr.mxu0 0.0
    %2164 = vmatpush1.msra.mxu0 0.0
    %2165 = vmatprep.subr.mxu0 0.0
    %2166 = vmatpush1.msra.mxu0 0.0
    %2167 = vmatprep.subr.mxu0 0.0
    %2168 = vmatpush1.msra.mxu0 0.0
    %2169 = vmatprep.subr.mxu0 0.0
    %2170 = vmatpush1.msra.mxu0 0.0
    %2171 = vmatprep.subr.mxu0 0.0
    %2172 = vmatpush1.msra.mxu0 0.0
    %2173 = vmatprep.subr.mxu0 0.0
    %2174 = vmatpush1.msra.mxu0 0.0
    %2175 = vmatprep.subr.mxu0 0.0
    %2176 = vmatpush1.msra.mxu0 0.0
    %2177 = vmatprep.subr.mxu0 0.0
    %2178 = vmatpush1.msra.mxu0 0.0
    %2179 = vmatprep.subr.mxu0 0.0
    %2180 = vmatpush1.msra.mxu0 0.0
    %2181 = vmatprep.subr.mxu0 0.0
    %2182 = vmatpush1.msra.mxu0 0.0
    %2183 = vmatprep.subr.mxu0 0.0
    %2184 = vmatpush1.msra.mxu0 0.0
    %2185 = vmatprep.subr.mxu0 0.0
    %2186 = vmatpush1.msra.mxu0 0.0
    %2187 = vmatprep.subr.mxu0 0.0
    %2188 = vmatpush1.msra.mxu0 0.0
    %2189 = vmatprep.subr.mxu0 0.0
    %2190 = vmatpush1.msra.mxu0 0.0
    %2191 = vmatprep.subr.mxu0 0.0
    %2192 = vmatpush1.msra.mxu0 0.0
    %2193 = vmatprep.subr.mxu0 0.0
    %2194 = vmatpush1.msra.mxu0 0.0
    %2195 = vmatprep.subr.mxu0 0.0
    %2196 = vmatpush1.msra.mxu0 0.0
    %2197 = vmatprep.subr.mxu0 0.0
    %2198 = vmatpush1.msra.mxu0 0.0
    %2199 = vmatprep.subr.mxu0 0.0
    %2200 = vmatpush1.msra.mxu0 0.0
    %2201 = vmatprep.subr.mxu0 0.0
    %2202 = vmatpush1.msra.mxu0 0.0
    %2203 = vmatprep.subr.mxu0 0.0
    %2204 = vmatpush1.msra.mxu0 0.0
    %2205 = vmatprep.subr.mxu0 0.0
    %2206 = vmatpush1.msra.mxu0 0.0
    %2207 = vmatprep.subr.mxu0 0.0
    %2208 = vmatpush1.msra.mxu0 0.0
    %2209 = vmatprep.subr.mxu0 0.0
    %2210 = vmatpush1.msra.mxu0 0.0
    %2211 = vmatprep.subr.mxu0 0.0
    %2212 = vmatpush1.msra.mxu0 0.0
    %2213 = vmatprep.subr.mxu0 0.0
    %2214 = vmatpush1.msra.mxu0 0.0
    %2215 = vmatprep.subr.mxu0 0.0
    %2216 = vmatpush1.msra.mxu0 0.0
    %2217 = vmatprep.mubr.f32.mxu0 0.0
    %v2218 = vand.u32 %v2142, 4294901760
    %v2219 = vsub.f32 %v2142, %v2218
    %v2220 = vand.u32 %v2219, 4294901760
    %v2221 = vsub.f32 %v2219, %v2220
    %v2222 = vand.u32 %v2221, 4294901760
    %2223 = vmatmul.mubr.f32.gmra.mrb[0].mxu0 %v2222
    %v2224 = vpop.f32.mrb[0].mxu0
    %v2225 = vadd.f32 0.0, %v2224
    %v2226 = vpop.f32.mrb[0].mxu0
    %2227 = vmatprep.mubr.f32.mxu0 0.0
    %v2228 = vand.u32 %v2145, 4294901760
    %v2229 = vsub.f32 %v2145, %v2228
    %v2230 = vand.u32 %v2229, 4294901760
    %v2231 = vsub.f32 %v2229, %v2230
    %v2232 = vand.u32 %v2231, 4294901760
    %2233 = vmatmul.mubr.f32.gmra.mrb[0].mxu0 %v2232
    %v2234 = vpop.f32.mrb[0].mxu0
    %v2235 = vadd.f32 0.0, %v2234
    %v2236 = vpop.f32.mrb[0].mxu0
    %2237 = vmatprep.mubr.f32.mxu0 0.0
    %v2238 = vand.u32 %v2148, 4294901760
    %v2239 = vsub.f32 %v2148, %v2238
    %v2240 = vand.u32 %v2239, 4294901760
    %v2241 = vsub.f32 %v2239, %v2240
    %v2242 = vand.u32 %v2241, 4294901760
    %2243 = vmatmul.mubr.f32.gmra.mrb[0].mxu0 %v2242
    %v2244 = vpop.f32.mrb[0].mxu0
    %v2245 = vadd.f32 0.0, %v2244
    %v2246 = vpop.f32.mrb[0].mxu0
    %2247 = vmatprep.mubr.f32.mxu0 0.0
    %v2248 = vand.u32 %v2151, 4294901760
    %v2249 = vsub.f32 %v2151, %v2248
    %v2250 = vand.u32 %v2249, 4294901760
    %v2251 = vsub.f32 %v2249, %v2250
    %v2252 = vand.u32 %v2251, 4294901760
    %2253 = vmatmul.mubr.f32.gmra.mrb[0].mxu0 %v2252
    %v2254 = vpop.f32.mrb[0].mxu0
    %v2255 = vadd.f32 0.0, %v2254
    %v2256 = vpop.f32.mrb[0].mxu0
    %2257 = vdwg.mxu0
    %2258 = vmatprep.subr.mxu0 0.0
    %2259 = vmatpush1.msra.mxu0 0.0
    %2260 = vmatprep.subr.mxu0 0.0
    %2261 = vmatpush1.msra.mxu0 0.0
    %2262 = vmatprep.subr.mxu0 0.0
    %2263 = vmatpush1.msra.mxu0 0.0
    %2264 = vmatprep.subr.mxu0 0.0
    %2265 = vmatpush1.msra.mxu0 0.0
    %2266 = vmatprep.subr.mxu0 0.0
    %2267 = vmatpush1.msra.mxu0 0.0
    %2268 = vmatprep.subr.mxu0 0.0
    %2269 = vmatpush1.msra.mxu0 0.0
    %2270 = vmatprep.subr.mxu0 0.0
    %2271 = vmatpush1.msra.mxu0 0.0
    %2272 = vmatprep.subr.mxu0 0.0
    %2273 = vmatpush1.msra.mxu0 0.0
    %2274 = vmatprep.subr.mxu0 0.0
    %2275 = vmatpush1.msra.mxu0 0.0
    %2276 = vmatprep.subr.mxu0 0.0
    %2277 = vmatpush1.msra.mxu0 0.0
    %2278 = vmatprep.subr.mxu0 0.0
    %2279 = vmatpush1.msra.mxu0 0.0
    %2280 = vmatprep.subr.mxu0 0.0
    %2281 = vmatpush1.msra.mxu0 0.0
    %2282 = vmatprep.subr.mxu0 0.0
    %2283 = vmatpush1.msra.mxu0 0.0
    %2284 = vmatprep.subr.mxu0 0.0
    %2285 = vmatpush1.msra.mxu0 0.0
    %2286 = vmatprep.subr.mxu0 0.0
    %2287 = vmatpush1.msra.mxu0 0.0
    %2288 = vmatprep.subr.mxu0 0.0
    %2289 = vmatpush1.msra.mxu0 0.0
    %2290 = vmatprep.subr.mxu0 0.0
    %2291 = vmatpush1.msra.mxu0 0.0
    %2292 = vmatprep.subr.mxu0 0.0
    %2293 = vmatpush1.msra.mxu0 0.0
    %2294 = vmatprep.subr.mxu0 0.0
    %2295 = vmatpush1.msra.mxu0 0.0
    %2296 = vmatprep.subr.mxu0 0.0
    %2297 = vmatpush1.msra.mxu0 0.0
    %2298 = vmatprep.subr.mxu0 0.0
    %2299 = vmatpush1.msra.mxu0 0.0
    %2300 = vmatprep.subr.mxu0 0.0
    %2301 = vmatpush1.msra.mxu0 0.0
    %2302 = vmatprep.subr.mxu0 0.0
    %2303 = vmatpush1.msra.mxu0 0.0
    %2304 = vmatprep.subr.mxu0 0.0
    %2305 = vmatpush1.msra.mxu0 0.0
    %2306 = vmatprep.subr.mxu0 0.0
    %2307 = vmatpush1.msra.mxu0 0.0
    %2308 = vmatprep.subr.mxu0 0.0
    %2309 = vmatpush1.msra.mxu0 0.0
    %2310 = vmatprep.subr.mxu0 0.0
    %2311 = vmatpush1.msra.mxu0 0.0
    %2312 = vmatprep.subr.mxu0 0.0
    %2313 = vmatpush1.msra.mxu0 0.0
    %2314 = vmatprep.subr.mxu0 0.0
    %2315 = vmatpush1.msra.mxu0 0.0
    %2316 = vmatprep.subr.mxu0 0.0
    %2317 = vmatpush1.msra.mxu0 0.0
    %2318 = vmatprep.subr.mxu0 0.0
    %2319 = vmatpush1.msra.mxu0 0.0
    %2320 = vmatprep.subr.mxu0 0.0
    %2321 = vmatpush1.msra.mxu0 0.0
    %2322 = vmatprep.mubr.f32.mxu0 0.0
    %v2323 = vand.u32 %v2142, 4294901760
    %2324 = vmatmul.mubr.f32.gmra.mrb[0].mxu0 %v2323
    %v2325 = vpop.f32.mrb[0].mxu0
    %v2326 = vadd.f32 %v2225, %v2325
    %v2327 = vpop.f32.mrb[0].mxu0
    %2328 = vmatprep.mubr.f32.mxu0 0.0
    %v2329 = vand.u32 %v2145, 4294901760
    %2330 = vmatmul.mubr.f32.gmra.mrb[0].mxu0 %v2329
    %v2331 = vpop.f32.mrb[0].mxu0
    %v2332 = vadd.f32 %v2235, %v2331
    %v2333 = vpop.f32.mrb[0].mxu0
    %2334 = vmatprep.mubr.f32.mxu0 0.0
    %v2335 = vand.u32 %v2148, 4294901760
    %2336 = vmatmul.mubr.f32.gmra.mrb[0].mxu0 %v2335
    %v2337 = vpop.f32.mrb[0].mxu0
    %v2338 = vadd.f32 %v2245, %v2337
    %v2339 = vpop.f32.mrb[0].mxu0
    %2340 = vmatprep.mubr.f32.mxu0 0.0
    %v2341 = vand.u32 %v2151, 4294901760
    %2342 = vmatmul.mubr.f32.gmra.mrb[0].mxu0 %v2341
    %v2343 = vpop.f32.mrb[0].mxu0
    %v2344 = vadd.f32 %v2255, %v2343
    %v2345 = vpop.f32.mrb[0].mxu0
    %2346 = vdwg.mxu0
    %2347 = vmatprep.subr.mxu0 0.0
    %2348 = vmatpush1.msra.mxu0 0.0
    %2349 = vmatprep.subr.mxu0 0.0
    %2350 = vmatpush1.msra.mxu0 0.0
    %2351 = vmatprep.subr.mxu0 0.0
    %2352 = vmatpush1.msra.mxu0 0.0
    %2353 = vmatprep.subr.mxu0 0.0
    %2354 = vmatpush1.msra.mxu0 0.0
    %2355 = vmatprep.subr.mxu0 0.0
    %2356 = vmatpush1.msra.mxu0 0.0
    %2357 = vmatprep.subr.mxu0 0.0
    %2358 = vmatpush1.msra.mxu0 0.0
    %2359 = vmatprep.subr.mxu0 0.0
    %2360 = vmatpush1.msra.mxu0 0.0
    %2361 = vmatprep.subr.mxu0 0.0
    %2362 = vmatpush1.msra.mxu0 0.0
    %2363 = vmatprep.subr.mxu0 0.0
    %2364 = vmatpush1.msra.mxu0 0.0
    %2365 = vmatprep.subr.mxu0 0.0
    %2366 = vmatpush1.msra.mxu0 0.0
    %2367 = vmatprep.subr.mxu0 0.0
    %2368 = vmatpush1.msra.mxu0 0.0
    %2369 = vmatprep.subr.mxu0 0.0
    %2370 = vmatpush1.msra.mxu0 0.0
    %2371 = vmatprep.subr.mxu0 0.0
    %2372 = vmatpush1.msra.mxu0 0.0
    %2373 = vmatprep.subr.mxu0 0.0
    %2374 = vmatpush1.msra.mxu0 0.0
    %2375 = vmatprep.subr.mxu0 0.0
    %2376 = vmatpush1.msra.mxu0 0.0
    %2377 = vmatprep.subr.mxu0 0.0
    %2378 = vmatpush1.msra.mxu0 0.0
    %2379 = vmatprep.subr.mxu0 0.0
    %2380 = vmatpush1.msra.mxu0 0.0
    %2381 = vmatprep.subr.mxu0 0.0
    %2382 = vmatpush1.msra.mxu0 0.0
    %2383 = vmatprep.subr.mxu0 0.0
    %2384 = vmatpush1.msra.mxu0 0.0
    %2385 = vmatprep.subr.mxu0 0.0
    %2386 = vmatpush1.msra.mxu0 0.0
    %2387 = vmatprep.subr.mxu0 0.0
    %2388 = vmatpush1.msra.mxu0 0.0
    %2389 = vmatprep.subr.mxu0 0.0
    %2390 = vmatpush1.msra.mxu0 0.0
    %2391 = vmatprep.subr.mxu0 0.0
    %2392 = vmatpush1.msra.mxu0 0.0
    %2393 = vmatprep.subr.mxu0 0.0
    %2394 = vmatpush1.msra.mxu0 0.0
    %2395 = vmatprep.subr.mxu0 0.0
    %2396 = vmatpush1.msra.mxu0 0.0
    %2397 = vmatprep.subr.mxu0 0.0
    %2398 = vmatpush1.msra.mxu0 0.0
    %2399 = vmatprep.subr.mxu0 0.0
    %2400 = vmatpush1.msra.mxu0 0.0
    %2401 = vmatprep.subr.mxu0 0.0
    %2402 = vmatpush1.msra.mxu0 0.0
    %2403 = vmatprep.subr.mxu0 0.0
    %2404 = vmatpush1.msra.mxu0 0.0
    %2405 = vmatprep.subr.mxu0 0.0
    %2406 = vmatpush1.msra.mxu0 0.0
    %2407 = vmatprep.subr.mxu0 0.0
    %2408 = vmatpush1.msra.mxu0 0.0
    %2409 = vmatprep.subr.mxu0 0.0
    %2410 = vmatpush1.msra.mxu0 0.0
    %2411 = vmatprep.mubr.f32.mxu0 0.0
    %v2412 = vand.u32 %v2142, 4294901760
    %v2413 = vsub.f32 %v2142, %v2412
    %2414 = vmatmul.mubr.f32.gmra.mrb[0].mxu0 %v2413
    %v2415 = vpop.f32.mrb[0].mxu0
    %v2416 = vadd.f32 %v2326, %v2415
    %v2417 = vpop.f32.mrb[0].mxu0
    %2418 = vmatprep.mubr.f32.mxu0 0.0
    %v2419 = vand.u32 %v2145, 4294901760
    %v2420 = vsub.f32 %v2145, %v2419
    %2421 = vmatmul.mubr.f32.gmra.mrb[0].mxu0 %v2420
    %v2422 = vpop.f32.mrb[0].mxu0
    %v2423 = vadd.f32 %v2332, %v2422
    %v2424 = vpop.f32.mrb[0].mxu0
    %2425 = vmatprep.mubr.f32.mxu0 0.0
    %v2426 = vand.u32 %v2148, 4294901760
    %v2427 = vsub.f32 %v2148, %v2426
    %2428 = vmatmul.mubr.f32.gmra.mrb[0].mxu0 %v2427
    %v2429 = vpop.f32.mrb[0].mxu0
    %v2430 = vadd.f32 %v2338, %v2429
    %v2431 = vpop.f32.mrb[0].mxu0
    %2432 = vmatprep.mubr.f32.mxu0 0.0
    %v2433 = vand.u32 %v2151, 4294901760
    %v2434 = vsub.f32 %v2151, %v2433
    %2435 = vmatmul.mubr.f32.gmra.mrb[0].mxu0 %v2434
    %v2436 = vpop.f32.mrb[0].mxu0
    %v2437 = vadd.f32 %v2344, %v2436
    %v2438 = vpop.f32.mrb[0].mxu0
    %2439 = vdwg.mxu0
    %2440 = vmatprep.subr.mxu0 0.0
    %2441 = vmatpush1.msra.mxu0 1.0
    %2442 = vmatprep.subr.mxu0 0.0
    %2443 = vmatpush1.msra.mxu0 1.0
    %2444 = vmatprep.subr.mxu0 0.0
    %2445 = vmatpush1.msra.mxu0 0.0
    %2446 = vmatprep.subr.mxu0 0.0
    %2447 = vmatpush1.msra.mxu0 0.0
    %2448 = vmatprep.subr.mxu0 0.0
    %2449 = vmatpush1.msra.mxu0 0.0
    %2450 = vmatprep.subr.mxu0 0.0
    %2451 = vmatpush1.msra.mxu0 0.0
    %2452 = vmatprep.subr.mxu0 0.0
    %2453 = vmatpush1.msra.mxu0 0.0
    %2454 = vmatprep.subr.mxu0 0.0
    %2455 = vmatpush1.msra.mxu0 0.0
    %2456 = vmatprep.subr.mxu0 0.0
    %2457 = vmatpush1.msra.mxu0 0.0
    %2458 = vmatprep.subr.mxu0 0.0
    %2459 = vmatpush1.msra.mxu0 0.0
    %2460 = vmatprep.subr.mxu0 0.0
    %2461 = vmatpush1.msra.mxu0 0.0
    %2462 = vmatprep.subr.mxu0 0.0
    %2463 = vmatpush1.msra.mxu0 0.0
    %2464 = vmatprep.subr.mxu0 0.0
    %2465 = vmatpush1.msra.mxu0 0.0
    %2466 = vmatprep.subr.mxu0 0.0
    %2467 = vmatpush1.msra.mxu0 0.0
    %2468 = vmatprep.subr.mxu0 0.0
    %2469 = vmatpush1.msra.mxu0 0.0
    %2470 = vmatprep.subr.mxu0 0.0
    %2471 = vmatpush1.msra.mxu0 0.0
    %2472 = vmatprep.subr.mxu0 0.0
    %2473 = vmatpush1.msra.mxu0 0.0
    %2474 = vmatprep.subr.mxu0 0.0
    %2475 = vmatpush1.msra.mxu0 0.0
    %2476 = vmatprep.subr.mxu0 0.0
    %2477 = vmatpush1.msra.mxu0 0.0
    %2478 = vmatprep.subr.mxu0 0.0
    %2479 = vmatpush1.msra.mxu0 0.0
    %2480 = vmatprep.subr.mxu0 0.0
    %2481 = vmatpush1.msra.mxu0 0.0
    %2482 = vmatprep.subr.mxu0 0.0
    %2483 = vmatpush1.msra.mxu0 0.0
    %2484 = vmatprep.subr.mxu0 0.0
    %2485 = vmatpush1.msra.mxu0 0.0
    %2486 = vmatprep.subr.mxu0 0.0
    %2487 = vmatpush1.msra.mxu0 0.0
    %2488 = vmatprep.subr.mxu0 0.0
    %2489 = vmatpush1.msra.mxu0 0.0
    %2490 = vmatprep.subr.mxu0 0.0
    %2491 = vmatpush1.msra.mxu0 0.0
    %2492 = vmatprep.subr.mxu0 0.0
    %2493 = vmatpush1.msra.mxu0 0.0
    %2494 = vmatprep.subr.mxu0 0.0
    %2495 = vmatpush1.msra.mxu0 0.0
    %2496 = vmatprep.subr.mxu0 0.0
    %2497 = vmatpush1.msra.mxu0 0.0
    %2498 = vmatprep.subr.mxu0 0.0
    %2499 = vmatpush1.msra.mxu0 0.0
    %2500 = vmatprep.subr.mxu0 0.0
    %2501 = vmatpush1.msra.mxu0 0.0
    %2502 = vmatprep.subr.mxu0 0.0
    %2503 = vmatpush1.msra.mxu0 0.0
    %2504 = vmatprep.mubr.f32.mxu0 0.0
    %v2505 = vand.u32 %v2142, 4294901760
    %v2506 = vsub.f32 %v2142, %v2505
    %v2507 = vand.u32 %v2506, 4294901760
    %2508 = vmatmul.mubr.f32.gmra.mrb[0].mxu0 %v2507
    %v2509 = vpop.f32.mrb[0].mxu0
    %v2510 = vadd.f32 %v2416, %v2509
    %v2511 = vpop.f32.mrb[0].mxu0
    %2512 = vmatprep.mubr.f32.mxu0 0.0
    %v2513 = vand.u32 %v2145, 4294901760
    %v2514 = vsub.f32 %v2145, %v2513
    %v2515 = vand.u32 %v2514, 4294901760
    %2516 = vmatmul.mubr.f32.gmra.mrb[0].mxu0 %v2515
    %v2517 = vpop.f32.mrb[0].mxu0
    %v2518 = vadd.f32 %v2423, %v2517
    %v2519 = vpop.f32.mrb[0].mxu0
    %2520 = vmatprep.mubr.f32.mxu0 0.0
    %v2521 = vand.u32 %v2148, 4294901760
    %v2522 = vsub.f32 %v2148, %v2521
    %v2523 = vand.u32 %v2522, 4294901760
    %2524 = vmatmul.mubr.f32.gmra.mrb[0].mxu0 %v2523
    %v2525 = vpop.f32.mrb[0].mxu0
    %v2526 = vadd.f32 %v2430, %v2525
    %v2527 = vpop.f32.mrb[0].mxu0
    %2528 = vmatprep.mubr.f32.mxu0 0.0
    %v2529 = vand.u32 %v2151, 4294901760
    %v2530 = vsub.f32 %v2151, %v2529
    %v2531 = vand.u32 %v2530, 4294901760
    %2532 = vmatmul.mubr.f32.gmra.mrb[0].mxu0 %v2531
    %v2533 = vpop.f32.mrb[0].mxu0
    %v2534 = vadd.f32 %v2437, %v2533
    %v2535 = vpop.f32.mrb[0].mxu0
    %2536 = vdwg.mxu0
    %2537 = vmatprep.subr.mxu0 0.0
    %2538 = vmatpush1.msra.mxu0 0.0
    %2539 = vmatprep.subr.mxu0 0.0
    %2540 = vmatpush1.msra.mxu0 0.0
    %2541 = vmatprep.subr.mxu0 0.0
    %2542 = vmatpush1.msra.mxu0 0.0
    %2543 = vmatprep.subr.mxu0 0.0
    %2544 = vmatpush1.msra.mxu0 0.0
    %2545 = vmatprep.subr.mxu0 0.0
    %2546 = vmatpush1.msra.mxu0 0.0
    %2547 = vmatprep.subr.mxu0 0.0
    %2548 = vmatpush1.msra.mxu0 0.0
    %2549 = vmatprep.subr.mxu0 0.0
    %2550 = vmatpush1.msra.mxu0 0.0
    %2551 = vmatprep.subr.mxu0 0.0
    %2552 = vmatpush1.msra.mxu0 0.0
    %2553 = vmatprep.subr.mxu0 0.0
    %2554 = vmatpush1.msra.mxu0 0.0
    %2555 = vmatprep.subr.mxu0 0.0
    %2556 = vmatpush1.msra.mxu0 0.0
    %2557 = vmatprep.subr.mxu0 0.0
    %2558 = vmatpush1.msra.mxu0 0.0
    %2559 = vmatprep.subr.mxu0 0.0
    %2560 = vmatpush1.msra.mxu0 0.0
    %2561 = vmatprep.subr.mxu0 0.0
    %2562 = vmatpush1.msra.mxu0 0.0
    %2563 = vmatprep.subr.mxu0 0.0
    %2564 = vmatpush1.msra.mxu0 0.0
    %2565 = vmatprep.subr.mxu0 0.0
    %2566 = vmatpush1.msra.mxu0 0.0
    %2567 = vmatprep.subr.mxu0 0.0
    %2568 = vmatpush1.msra.mxu0 0.0
    %2569 = vmatprep.subr.mxu0 0.0
    %2570 = vmatpush1.msra.mxu0 0.0
    %2571 = vmatprep.subr.mxu0 0.0
    %2572 = vmatpush1.msra.mxu0 0.0
    %2573 = vmatprep.subr.mxu0 0.0
    %2574 = vmatpush1.msra.mxu0 0.0
    %2575 = vmatprep.subr.mxu0 0.0
    %2576 = vmatpush1.msra.mxu0 0.0
    %2577 = vmatprep.subr.mxu0 0.0
    %2578 = vmatpush1.msra.mxu0 0.0
    %2579 = vmatprep.subr.mxu0 0.0
    %2580 = vmatpush1.msra.mxu0 0.0
    %2581 = vmatprep.subr.mxu0 0.0
    %2582 = vmatpush1.msra.mxu0 0.0
    %2583 = vmatprep.subr.mxu0 0.0
    %2584 = vmatpush1.msra.mxu0 0.0
    %2585 = vmatprep.subr.mxu0 0.0
    %2586 = vmatpush1.msra.mxu0 0.0
    %2587 = vmatprep.subr.mxu0 0.0
    %2588 = vmatpush1.msra.mxu0 0.0
    %2589 = vmatprep.subr.mxu0 0.0
    %2590 = vmatpush1.msra.mxu0 0.0
    %2591 = vmatprep.subr.mxu0 0.0
    %2592 = vmatpush1.msra.mxu0 0.0
    %2593 = vmatprep.subr.mxu0 0.0
    %2594 = vmatpush1.msra.mxu0 0.0
    %2595 = vmatprep.subr.mxu0 0.0
    %2596 = vmatpush1.msra.mxu0 0.0
    %2597 = vmatprep.subr.mxu0 0.0
    %2598 = vmatpush1.msra.mxu0 0.0
    %2599 = vmatprep.subr.mxu0 0.0
    %2600 = vmatpush1.msra.mxu0 0.0
    %2601 = vmatprep.mubr.f32.mxu0 0.0
    %v2602 = vand.u32 %v2142, 4294901760
    %2603 = vmatmul.mubr.f32.gmra.mrb[0].mxu0 %v2602
    %v2604 = vpop.f32.mrb[0].mxu0
    %v2605 = vadd.f32 %v2510, %v2604
    %v2606 = vpop.f32.mrb[0].mxu0
    %2607 = vmatprep.mubr.f32.mxu0 0.0
    %v2608 = vand.u32 %v2145, 4294901760
    %2609 = vmatmul.mubr.f32.gmra.mrb[0].mxu0 %v2608
    %v2610 = vpop.f32.mrb[0].mxu0
    %v2611 = vadd.f32 %v2518, %v2610
    %v2612 = vpop.f32.mrb[0].mxu0
    %2613 = vmatprep.mubr.f32.mxu0 0.0
    %v2614 = vand.u32 %v2148, 4294901760
    %2615 = vmatmul.mubr.f32.gmra.mrb[0].mxu0 %v2614
    %v2616 = vpop.f32.mrb[0].mxu0
    %v2617 = vadd.f32 %v2526, %v2616
    %v2618 = vpop.f32.mrb[0].mxu0
    %2619 = vmatprep.mubr.f32.mxu0 0.0
    %v2620 = vand.u32 %v2151, 4294901760
    %2621 = vmatmul.mubr.f32.gmra.mrb[0].mxu0 %v2620
    %v2622 = vpop.f32.mrb[0].mxu0
    %v2623 = vadd.f32 %v2534, %v2622
    %v2624 = vpop.f32.mrb[0].mxu0
    %2625 = vdwg.mxu0
    %2626 = vmatprep.subr.mxu0 0.0
    %2627 = vmatpush1.msra.mxu0 1.0
    %2628 = vmatprep.subr.mxu0 0.0
    %2629 = vmatpush1.msra.mxu0 1.0
    %2630 = vmatprep.subr.mxu0 0.0
    %2631 = vmatpush1.msra.mxu0 0.0
    %2632 = vmatprep.subr.mxu0 0.0
    %2633 = vmatpush1.msra.mxu0 0.0
    %2634 = vmatprep.subr.mxu0 0.0
    %2635 = vmatpush1.msra.mxu0 0.0
    %2636 = vmatprep.subr.mxu0 0.0
    %2637 = vmatpush1.msra.mxu0 0.0
    %2638 = vmatprep.subr.mxu0 0.0
    %2639 = vmatpush1.msra.mxu0 0.0
    %2640 = vmatprep.subr.mxu0 0.0
    %2641 = vmatpush1.msra.mxu0 0.0
    %2642 = vmatprep.subr.mxu0 0.0
    %2643 = vmatpush1.msra.mxu0 0.0
    %2644 = vmatprep.subr.mxu0 0.0
    %2645 = vmatpush1.msra.mxu0 0.0
    %2646 = vmatprep.subr.mxu0 0.0
    %2647 = vmatpush1.msra.mxu0 0.0
    %2648 = vmatprep.subr.mxu0 0.0
    %2649 = vmatpush1.msra.mxu0 0.0
    %2650 = vmatprep.subr.mxu0 0.0
    %2651 = vmatpush1.msra.mxu0 0.0
    %2652 = vmatprep.subr.mxu0 0.0
    %2653 = vmatpush1.msra.mxu0 0.0
    %2654 = vmatprep.subr.mxu0 0.0
    %2655 = vmatpush1.msra.mxu0 0.0
    %2656 = vmatprep.subr.mxu0 0.0
    %2657 = vmatpush1.msra.mxu0 0.0
    %2658 = vmatprep.subr.mxu0 0.0
    %2659 = vmatpush1.msra.mxu0 0.0
    %2660 = vmatprep.subr.mxu0 0.0
    %2661 = vmatpush1.msra.mxu0 0.0
    %2662 = vmatprep.subr.mxu0 0.0
    %2663 = vmatpush1.msra.mxu0 0.0
    %2664 = vmatprep.subr.mxu0 0.0
    %2665 = vmatpush1.msra.mxu0 0.0
    %2666 = vmatprep.subr.mxu0 0.0
    %2667 = vmatpush1.msra.mxu0 0.0
    %2668 = vmatprep.subr.mxu0 0.0
    %2669 = vmatpush1.msra.mxu0 0.0
    %2670 = vmatprep.subr.mxu0 0.0
    %2671 = vmatpush1.msra.mxu0 0.0
    %2672 = vmatprep.subr.mxu0 0.0
    %2673 = vmatpush1.msra.mxu0 0.0
    %2674 = vmatprep.subr.mxu0 0.0
    %2675 = vmatpush1.msra.mxu0 0.0
    %2676 = vmatprep.subr.mxu0 0.0
    %2677 = vmatpush1.msra.mxu0 0.0
    %2678 = vmatprep.subr.mxu0 0.0
    %2679 = vmatpush1.msra.mxu0 0.0
    %2680 = vmatprep.subr.mxu0 0.0
    %2681 = vmatpush1.msra.mxu0 0.0
    %2682 = vmatprep.subr.mxu0 0.0
    %2683 = vmatpush1.msra.mxu0 0.0
    %2684 = vmatprep.subr.mxu0 0.0
    %2685 = vmatpush1.msra.mxu0 0.0
    %2686 = vmatprep.subr.mxu0 0.0
    %2687 = vmatpush1.msra.mxu0 0.0
    %2688 = vmatprep.subr.mxu0 0.0
    %2689 = vmatpush1.msra.mxu0 0.0
    %2690 = vmatprep.mubr.f32.mxu0 0.0
    %v2691 = vand.u32 %v2142, 4294901760
    %2692 = vmatmul.mubr.f32.gmra.mrb[0].mxu0 %v2691
    %v2693 = vpop.f32.mrb[0].mxu0
    %v2694 = vadd.f32 %v2605, %v2693
    %v2695 = vpop.f32.mrb[0].mxu0
    %2696 = vmatprep.mubr.f32.mxu0 0.0
    %v2697 = vand.u32 %v2145, 4294901760
    %2698 = vmatmul.mubr.f32.gmra.mrb[0].mxu0 %v2697
    %v2699 = vpop.f32.mrb[0].mxu0
    %v2700 = vadd.f32 %v2611, %v2699
    %v2701 = vpop.f32.mrb[0].mxu0
    %2702 = vmatprep.mubr.f32.mxu0 0.0
    %v2703 = vand.u32 %v2148, 4294901760
    %2704 = vmatmul.mubr.f32.gmra.mrb[0].mxu0 %v2703
    %v2705 = vpop.f32.mrb[0].mxu0
    %v2706 = vadd.f32 %v2617, %v2705
    %v2707 = vpop.f32.mrb[0].mxu0
    %2708 = vmatprep.mubr.f32.mxu0 0.0
    %v2709 = vand.u32 %v2151, 4294901760
    %2710 = vmatmul.mubr.f32.gmra.mrb[0].mxu0 %v2709
    %v2711 = vpop.f32.mrb[0].mxu0
    %v2712 = vadd.f32 %v2623, %v2711
    %v2713 = vpop.f32.mrb[0].mxu0
    %2714 = vdwg.mxu0
    %v2715 = vmul.f32 %v2120, %v2120
    %v2716 = vmul.f32 %v2126, %v2126
    %v2717 = vmul.f32 %v2132, %v2132
    %v2718 = vmul.f32 %v2138, %v2138
    %v2720 = vsel %vm514, %v2715, 0
    %v2723 = vsel %vm514, %v2716, 0
    %v2726 = vsel %vm514, %v2717, 0
    %v2729 = vsel %vm514, %v2718, 0
    %2731 = vmatprep.subr.mxu0 0.0
    %2732 = vmatpush1.msra.mxu0 1.0
    %2733 = vmatprep.subr.mxu0 0.0
    %2734 = vmatpush1.msra.mxu0 1.0
    %2735 = vmatprep.subr.mxu0 0.0
    %2736 = vmatpush1.msra.mxu0 0.0
    %2737 = vmatprep.subr.mxu0 0.0
    %2738 = vmatpush1.msra.mxu0 0.0
    %2739 = vmatprep.subr.mxu0 0.0
    %2740 = vmatpush1.msra.mxu0 0.0
    %2741 = vmatprep.subr.mxu0 0.0
    %2742 = vmatpush1.msra.mxu0 0.0
    %2743 = vmatprep.subr.mxu0 0.0
    %2744 = vmatpush1.msra.mxu0 0.0
    %2745 = vmatprep.subr.mxu0 0.0
    %2746 = vmatpush1.msra.mxu0 0.0
    %2747 = vmatprep.subr.mxu0 0.0
    %2748 = vmatpush1.msra.mxu0 0.0
    %2749 = vmatprep.subr.mxu0 0.0
    %2750 = vmatpush1.msra.mxu0 0.0
    %2751 = vmatprep.subr.mxu0 0.0
    %2752 = vmatpush1.msra.mxu0 0.0
    %2753 = vmatprep.subr.mxu0 0.0
    %2754 = vmatpush1.msra.mxu0 0.0
    %2755 = vmatprep.subr.mxu0 0.0
    %2756 = vmatpush1.msra.mxu0 0.0
    %2757 = vmatprep.subr.mxu0 0.0
    %2758 = vmatpush1.msra.mxu0 0.0
    %2759 = vmatprep.subr.mxu0 0.0
    %2760 = vmatpush1.msra.mxu0 0.0
    %2761 = vmatprep.subr.mxu0 0.0
    %2762 = vmatpush1.msra.mxu0 0.0
    %2763 = vmatprep.subr.mxu0 0.0
    %2764 = vmatpush1.msra.mxu0 0.0
    %2765 = vmatprep.subr.mxu0 0.0
    %2766 = vmatpush1.msra.mxu0 0.0
    %2767 = vmatprep.subr.mxu0 0.0
    %2768 = vmatpush1.msra.mxu0 0.0
    %2769 = vmatprep.subr.mxu0 0.0
    %2770 = vmatpush1.msra.mxu0 0.0
    %2771 = vmatprep.subr.mxu0 0.0
    %2772 = vmatpush1.msra.mxu0 0.0
    %2773 = vmatprep.subr.mxu0 0.0
    %2774 = vmatpush1.msra.mxu0 0.0
    %2775 = vmatprep.subr.mxu0 0.0
    %2776 = vmatpush1.msra.mxu0 0.0
    %2777 = vmatprep.subr.mxu0 0.0
    %2778 = vmatpush1.msra.mxu0 0.0
    %2779 = vmatprep.subr.mxu0 0.0
    %2780 = vmatpush1.msra.mxu0 0.0
    %2781 = vmatprep.subr.mxu0 0.0
    %2782 = vmatpush1.msra.mxu0 0.0
    %2783 = vmatprep.subr.mxu0 0.0
    %2784 = vmatpush1.msra.mxu0 0.0
    %2785 = vmatprep.subr.mxu0 0.0
    %2786 = vmatpush1.msra.mxu0 0.0
    %2787 = vmatprep.subr.mxu0 0.0
    %2788 = vmatpush1.msra.mxu0 0.0
    %2789 = vmatprep.subr.mxu0 0.0
    %2790 = vmatpush1.msra.mxu0 0.0
    %2791 = vmatprep.subr.mxu0 0.0
    %2792 = vmatpush1.msra.mxu0 0.0
    %2793 = vmatprep.subr.mxu0 0.0
    %2794 = vmatpush1.msra.mxu0 0.0
    %2795 = vmatprep.mubr.f32.mxu0 0.0
    %v2796 = vand.u32 %v2720, 4294901760
    %v2797 = vsub.f32 %v2720, %v2796
    %v2798 = vand.u32 %v2797, 4294901760
    %v2799 = vsub.f32 %v2797, %v2798
    %v2800 = vand.u32 %v2799, 4294901760
    %2801 = vmatmul.mubr.f32.gmra.mrb[0].mxu0 %v2800
    %v2802 = vpop.f32.mrb[0].mxu0
    %v2803 = vadd.f32 0.0, %v2802
    %v2804 = vpop.f32.mrb[0].mxu0
    %2805 = vmatprep.mubr.f32.mxu0 0.0
    %v2806 = vand.u32 %v2723, 4294901760
    %v2807 = vsub.f32 %v2723, %v2806
    %v2808 = vand.u32 %v2807, 4294901760
    %v2809 = vsub.f32 %v2807, %v2808
    %v2810 = vand.u32 %v2809, 4294901760
    %2811 = vmatmul.mubr.f32.gmra.mrb[0].mxu0 %v2810
    %v2812 = vpop.f32.mrb[0].mxu0
    %v2813 = vadd.f32 0.0, %v2812
    %v2814 = vpop.f32.mrb[0].mxu0
    %2815 = vmatprep.mubr.f32.mxu0 0.0
    %v2816 = vand.u32 %v2726, 4294901760
    %v2817 = vsub.f32 %v2726, %v2816
    %v2818 = vand.u32 %v2817, 4294901760
    %v2819 = vsub.f32 %v2817, %v2818
    %v2820 = vand.u32 %v2819, 4294901760
    %2821 = vmatmul.mubr.f32.gmra.mrb[0].mxu0 %v2820
    %v2822 = vpop.f32.mrb[0].mxu0
    %v2823 = vadd.f32 0.0, %v2822
    %v2824 = vpop.f32.mrb[0].mxu0
    %2825 = vmatprep.mubr.f32.mxu0 0.0
    %v2826 = vand.u32 %v2729, 4294901760
    %v2827 = vsub.f32 %v2729, %v2826
    %v2828 = vand.u32 %v2827, 4294901760
    %v2829 = vsub.f32 %v2827, %v2828
    %v2830 = vand.u32 %v2829, 4294901760
    %2831 = vmatmul.mubr.f32.gmra.mrb[0].mxu0 %v2830
    %v2832 = vpop.f32.mrb[0].mxu0
    %v2833 = vadd.f32 0.0, %v2832
    %v2834 = vpop.f32.mrb[0].mxu0
    %2835 = vdwg.mxu0
    %2836 = vmatprep.subr.mxu0 0.0
    %2837 = vmatpush1.msra.mxu0 0.0
    %2838 = vmatprep.subr.mxu0 0.0
    %2839 = vmatpush1.msra.mxu0 0.0
    %2840 = vmatprep.subr.mxu0 0.0
    %2841 = vmatpush1.msra.mxu0 0.0
    %2842 = vmatprep.subr.mxu0 0.0
    %2843 = vmatpush1.msra.mxu0 0.0
    %2844 = vmatprep.subr.mxu0 0.0
    %2845 = vmatpush1.msra.mxu0 0.0
    %2846 = vmatprep.subr.mxu0 0.0
    %2847 = vmatpush1.msra.mxu0 0.0
    %2848 = vmatprep.subr.mxu0 0.0
    %2849 = vmatpush1.msra.mxu0 0.0
    %2850 = vmatprep.subr.mxu0 0.0
    %2851 = vmatpush1.msra.mxu0 0.0
    %2852 = vmatprep.subr.mxu0 0.0
    %2853 = vmatpush1.msra.mxu0 0.0
    %2854 = vmatprep.subr.mxu0 0.0
    %2855 = vmatpush1.msra.mxu0 0.0
    %2856 = vmatprep.subr.mxu0 0.0
    %2857 = vmatpush1.msra.mxu0 0.0
    %2858 = vmatprep.subr.mxu0 0.0
    %2859 = vmatpush1.msra.mxu0 0.0
    %2860 = vmatprep.subr.mxu0 0.0
    %2861 = vmatpush1.msra.mxu0 0.0
    %2862 = vmatprep.subr.mxu0 0.0
    %2863 = vmatpush1.msra.mxu0 0.0
    %2864 = vmatprep.subr.mxu0 0.0
    %2865 = vmatpush1.msra.mxu0 0.0
    %2866 = vmatprep.subr.mxu0 0.0
    %2867 = vmatpush1.msra.mxu0 0.0
    %2868 = vmatprep.subr.mxu0 0.0
    %2869 = vmatpush1.msra.mxu0 0.0
    %2870 = vmatprep.subr.mxu0 0.0
    %2871 = vmatpush1.msra.mxu0 0.0
    %2872 = vmatprep.subr.mxu0 0.0
    %2873 = vmatpush1.msra.mxu0 0.0
    %2874 = vmatprep.subr.mxu0 0.0
    %2875 = vmatpush1.msra.mxu0 0.0
    %2876 = vmatprep.subr.mxu0 0.0
    %2877 = vmatpush1.msra.mxu0 0.0
    %2878 = vmatprep.subr.mxu0 0.0
    %2879 = vmatpush1.msra.mxu0 0.0
    %2880 = vmatprep.subr.mxu0 0.0
    %2881 = vmatpush1.msra.mxu0 0.0
    %2882 = vmatprep.subr.mxu0 0.0
    %2883 = vmatpush1.msra.mxu0 0.0
    %2884 = vmatprep.subr.mxu0 0.0
    %2885 = vmatpush1.msra.mxu0 0.0
    %2886 = vmatprep.subr.mxu0 0.0
    %2887 = vmatpush1.msra.mxu0 0.0
    %2888 = vmatprep.subr.mxu0 0.0
    %2889 = vmatpush1.msra.mxu0 0.0
    %2890 = vmatprep.subr.mxu0 0.0
    %2891 = vmatpush1.msra.mxu0 0.0
    %2892 = vmatprep.subr.mxu0 0.0
    %2893 = vmatpush1.msra.mxu0 0.0
    %2894 = vmatprep.subr.mxu0 0.0
    %2895 = vmatpush1.msra.mxu0 0.0
    %2896 = vmatprep.subr.mxu0 0.0
    %2897 = vmatpush1.msra.mxu0 0.0
    %2898 = vmatprep.subr.mxu0 0.0
    %2899 = vmatpush1.msra.mxu0 0.0
    %2900 = vmatprep.mubr.f32.mxu0 0.0
    %v2901 = vand.u32 %v2720, 4294901760
    %2902 = vmatmul.mubr.f32.gmra.mrb[0].mxu0 %v2901
    %v2903 = vpop.f32.mrb[0].mxu0
    %v2904 = vadd.f32 %v2803, %v2903
    %v2905 = vpop.f32.mrb[0].mxu0
    %2906 = vmatprep.mubr.f32.mxu0 0.0
    %v2907 = vand.u32 %v2723, 4294901760
    %2908 = vmatmul.mubr.f32.gmra.mrb[0].mxu0 %v2907
    %v2909 = vpop.f32.mrb[0].mxu0
    %v2910 = vadd.f32 %v2813, %v2909
    %v2911 = vpop.f32.mrb[0].mxu0
    %2912 = vmatprep.mubr.f32.mxu0 0.0
    %v2913 = vand.u32 %v2726, 4294901760
    %2914 = vmatmul.mubr.f32.gmra.mrb[0].mxu0 %v2913
    %v2915 = vpop.f32.mrb[0].mxu0
    %v2916 = vadd.f32 %v2823, %v2915
    %v2917 = vpop.f32.mrb[0].mxu0
    %2918 = vmatprep.mubr.f32.mxu0 0.0
    %v2919 = vand.u32 %v2729, 4294901760
    %2920 = vmatmul.mubr.f32.gmra.mrb[0].mxu0 %v2919
    %v2921 = vpop.f32.mrb[0].mxu0
    %v2922 = vadd.f32 %v2833, %v2921
    %v2923 = vpop.f32.mrb[0].mxu0
    %2924 = vdwg.mxu0
    %2925 = vmatprep.subr.mxu0 0.0
    %2926 = vmatpush1.msra.mxu0 0.0
    %2927 = vmatprep.subr.mxu0 0.0
    %2928 = vmatpush1.msra.mxu0 0.0
    %2929 = vmatprep.subr.mxu0 0.0
    %2930 = vmatpush1.msra.mxu0 0.0
    %2931 = vmatprep.subr.mxu0 0.0
    %2932 = vmatpush1.msra.mxu0 0.0
    %2933 = vmatprep.subr.mxu0 0.0
    %2934 = vmatpush1.msra.mxu0 0.0
    %2935 = vmatprep.subr.mxu0 0.0
    %2936 = vmatpush1.msra.mxu0 0.0
    %2937 = vmatprep.subr.mxu0 0.0
    %2938 = vmatpush1.msra.mxu0 0.0
    %2939 = vmatprep.subr.mxu0 0.0
    %2940 = vmatpush1.msra.mxu0 0.0
    %2941 = vmatprep.subr.mxu0 0.0
    %2942 = vmatpush1.msra.mxu0 0.0
    %2943 = vmatprep.subr.mxu0 0.0
    %2944 = vmatpush1.msra.mxu0 0.0
    %2945 = vmatprep.subr.mxu0 0.0
    %2946 = vmatpush1.msra.mxu0 0.0
    %2947 = vmatprep.subr.mxu0 0.0
    %2948 = vmatpush1.msra.mxu0 0.0
    %2949 = vmatprep.subr.mxu0 0.0
    %2950 = vmatpush1.msra.mxu0 0.0
    %2951 = vmatprep.subr.mxu0 0.0
    %2952 = vmatpush1.msra.mxu0 0.0
    %2953 = vmatprep.subr.mxu0 0.0
    %2954 = vmatpush1.msra.mxu0 0.0
    %2955 = vmatprep.subr.mxu0 0.0
    %2956 = vmatpush1.msra.mxu0 0.0
    %2957 = vmatprep.subr.mxu0 0.0
    %2958 = vmatpush1.msra.mxu0 0.0
    %2959 = vmatprep.subr.mxu0 0.0
    %2960 = vmatpush1.msra.mxu0 0.0
    %2961 = vmatprep.subr.mxu0 0.0
    %2962 = vmatpush1.msra.mxu0 0.0
    %2963 = vmatprep.subr.mxu0 0.0
    %2964 = vmatpush1.msra.mxu0 0.0
    %2965 = vmatprep.subr.mxu0 0.0
    %2966 = vmatpush1.msra.mxu0 0.0
    %2967 = vmatprep.subr.mxu0 0.0
    %2968 = vmatpush1.msra.mxu0 0.0
    %2969 = vmatprep.subr.mxu0 0.0
    %2970 = vmatpush1.msra.mxu0 0.0
    %2971 = vmatprep.subr.mxu0 0.0
    %2972 = vmatpush1.msra.mxu0 0.0
    %2973 = vmatprep.subr.mxu0 0.0
    %2974 = vmatpush1.msra.mxu0 0.0
    %2975 = vmatprep.subr.mxu0 0.0
    %2976 = vmatpush1.msra.mxu0 0.0
    %2977 = vmatprep.subr.mxu0 0.0
    %2978 = vmatpush1.msra.mxu0 0.0
    %2979 = vmatprep.subr.mxu0 0.0
    %2980 = vmatpush1.msra.mxu0 0.0
    %2981 = vmatprep.subr.mxu0 0.0
    %2982 = vmatpush1.msra.mxu0 0.0
    %2983 = vmatprep.subr.mxu0 0.0
    %2984 = vmatpush1.msra.mxu0 0.0
    %2985 = vmatprep.subr.mxu0 0.0
    %2986 = vmatpush1.msra.mxu0 0.0
    %2987 = vmatprep.subr.mxu0 0.0
    %2988 = vmatpush1.msra.mxu0 0.0
    %2989 = vmatprep.mubr.f32.mxu0 0.0
    %v2990 = vand.u32 %v2720, 4294901760
    %v2991 = vsub.f32 %v2720, %v2990
    %2992 = vmatmul.mubr.f32.gmra.mrb[0].mxu0 %v2991
    %v2993 = vpop.f32.mrb[0].mxu0
    %v2994 = vadd.f32 %v2904, %v2993
    %v2995 = vpop.f32.mrb[0].mxu0
    %2996 = vmatprep.mubr.f32.mxu0 0.0
    %v2997 = vand.u32 %v2723, 4294901760
    %v2998 = vsub.f32 %v2723, %v2997
    %2999 = vmatmul.mubr.f32.gmra.mrb[0].mxu0 %v2998
    %v3000 = vpop.f32.mrb[0].mxu0
    %v3001 = vadd.f32 %v2910, %v3000
    %v3002 = vpop.f32.mrb[0].mxu0
    %3003 = vmatprep.mubr.f32.mxu0 0.0
    %v3004 = vand.u32 %v2726, 4294901760
    %v3005 = vsub.f32 %v2726, %v3004
    %3006 = vmatmul.mubr.f32.gmra.mrb[0].mxu0 %v3005
    %v3007 = vpop.f32.mrb[0].mxu0
    %v3008 = vadd.f32 %v2916, %v3007
    %v3009 = vpop.f32.mrb[0].mxu0
    %3010 = vmatprep.mubr.f32.mxu0 0.0
    %v3011 = vand.u32 %v2729, 4294901760
    %v3012 = vsub.f32 %v2729, %v3011
    %3013 = vmatmul.mubr.f32.gmra.mrb[0].mxu0 %v3012
    %v3014 = vpop.f32.mrb[0].mxu0
    %v3015 = vadd.f32 %v2922, %v3014
    %v3016 = vpop.f32.mrb[0].mxu0
    %3017 = vdwg.mxu0
    %3018 = vmatprep.subr.mxu0 0.0
    %3019 = vmatpush1.msra.mxu0 1.0
    %3020 = vmatprep.subr.mxu0 0.0
    %3021 = vmatpush1.msra.mxu0 1.0
    %3022 = vmatprep.subr.mxu0 0.0
    %3023 = vmatpush1.msra.mxu0 0.0
    %3024 = vmatprep.subr.mxu0 0.0
    %3025 = vmatpush1.msra.mxu0 0.0
    %3026 = vmatprep.subr.mxu0 0.0
    %3027 = vmatpush1.msra.mxu0 0.0
    %3028 = vmatprep.subr.mxu0 0.0
    %3029 = vmatpush1.msra.mxu0 0.0
    %3030 = vmatprep.subr.mxu0 0.0
    %3031 = vmatpush1.msra.mxu0 0.0
    %3032 = vmatprep.subr.mxu0 0.0
    %3033 = vmatpush1.msra.mxu0 0.0
    %3034 = vmatprep.subr.mxu0 0.0
    %3035 = vmatpush1.msra.mxu0 0.0
    %3036 = vmatprep.subr.mxu0 0.0
    %3037 = vmatpush1.msra.mxu0 0.0
    %3038 = vmatprep.subr.mxu0 0.0
    %3039 = vmatpush1.msra.mxu0 0.0
    %3040 = vmatprep.subr.mxu0 0.0
    %3041 = vmatpush1.msra.mxu0 0.0
    %3042 = vmatprep.subr.mxu0 0.0
    %3043 = vmatpush1.msra.mxu0 0.0
    %3044 = vmatprep.subr.mxu0 0.0
    %3045 = vmatpush1.msra.mxu0 0.0
    %3046 = vmatprep.subr.mxu0 0.0
    %3047 = vmatpush1.msra.mxu0 0.0
    %3048 = vmatprep.subr.mxu0 0.0
    %3049 = vmatpush1.msra.mxu0 0.0
    %3050 = vmatprep.subr.mxu0 0.0
    %3051 = vmatpush1.msra.mxu0 0.0
    %3052 = vmatprep.subr.mxu0 0.0
    %3053 = vmatpush1.msra.mxu0 0.0
    %3054 = vmatprep.subr.mxu0 0.0
    %3055 = vmatpush1.msra.mxu0 0.0
    %3056 = vmatprep.subr.mxu0 0.0
    %3057 = vmatpush1.msra.mxu0 0.0
    %3058 = vmatprep.subr.mxu0 0.0
    %3059 = vmatpush1.msra.mxu0 0.0
    %3060 = vmatprep.subr.mxu0 0.0
    %3061 = vmatpush1.msra.mxu0 0.0
    %3062 = vmatprep.subr.mxu0 0.0
    %3063 = vmatpush1.msra.mxu0 0.0
    %3064 = vmatprep.subr.mxu0 0.0
    %3065 = vmatpush1.msra.mxu0 0.0
    %3066 = vmatprep.subr.mxu0 0.0
    %3067 = vmatpush1.msra.mxu0 0.0
    %3068 = vmatprep.subr.mxu0 0.0
    %3069 = vmatpush1.msra.mxu0 0.0
    %3070 = vmatprep.subr.mxu0 0.0
    %3071 = vmatpush1.msra.mxu0 0.0
    %3072 = vmatprep.subr.mxu0 0.0
    %3073 = vmatpush1.msra.mxu0 0.0
    %3074 = vmatprep.subr.mxu0 0.0
    %3075 = vmatpush1.msra.mxu0 0.0
    %3076 = vmatprep.subr.mxu0 0.0
    %3077 = vmatpush1.msra.mxu0 0.0
    %3078 = vmatprep.subr.mxu0 0.0
    %3079 = vmatpush1.msra.mxu0 0.0
    %3080 = vmatprep.subr.mxu0 0.0
    %3081 = vmatpush1.msra.mxu0 0.0
    %3082 = vmatprep.mubr.f32.mxu0 0.0
    %v3083 = vand.u32 %v2720, 4294901760
    %v3084 = vsub.f32 %v2720, %v3083
    %v3085 = vand.u32 %v3084, 4294901760
    %3086 = vmatmul.mubr.f32.gmra.mrb[0].mxu0 %v3085
    %v3087 = vpop.f32.mrb[0].mxu0
    %v3088 = vadd.f32 %v2994, %v3087
    %v3089 = vpop.f32.mrb[0].mxu0
    %3090 = vmatprep.mubr.f32.mxu0 0.0
    %v3091 = vand.u32 %v2723, 4294901760
    %v3092 = vsub.f32 %v2723, %v3091
    %v3093 = vand.u32 %v3092, 4294901760
    %3094 = vmatmul.mubr.f32.gmra.mrb[0].mxu0 %v3093
    %v3095 = vpop.f32.mrb[0].mxu0
    %v3096 = vadd.f32 %v3001, %v3095
    %v3097 = vpop.f32.mrb[0].mxu0
    %3098 = vmatprep.mubr.f32.mxu0 0.0
    %v3099 = vand.u32 %v2726, 4294901760
    %v3100 = vsub.f32 %v2726, %v3099
    %v3101 = vand.u32 %v3100, 4294901760
    %3102 = vmatmul.mubr.f32.gmra.mrb[0].mxu0 %v3101
    %v3103 = vpop.f32.mrb[0].mxu0
    %v3104 = vadd.f32 %v3008, %v3103
    %v3105 = vpop.f32.mrb[0].mxu0
    %3106 = vmatprep.mubr.f32.mxu0 0.0
    %v3107 = vand.u32 %v2729, 4294901760
    %v3108 = vsub.f32 %v2729, %v3107
    %v3109 = vand.u32 %v3108, 4294901760
    %3110 = vmatmul.mubr.f32.gmra.mrb[0].mxu0 %v3109
    %v3111 = vpop.f32.mrb[0].mxu0
    %v3112 = vadd.f32 %v3015, %v3111
    %v3113 = vpop.f32.mrb[0].mxu0
    %3114 = vdwg.mxu0
    %3115 = vmatprep.subr.mxu0 0.0
    %3116 = vmatpush1.msra.mxu0 0.0
    %3117 = vmatprep.subr.mxu0 0.0
    %3118 = vmatpush1.msra.mxu0 0.0
    %3119 = vmatprep.subr.mxu0 0.0
    %3120 = vmatpush1.msra.mxu0 0.0
    %3121 = vmatprep.subr.mxu0 0.0
    %3122 = vmatpush1.msra.mxu0 0.0
    %3123 = vmatprep.subr.mxu0 0.0
    %3124 = vmatpush1.msra.mxu0 0.0
    %3125 = vmatprep.subr.mxu0 0.0
    %3126 = vmatpush1.msra.mxu0 0.0
    %3127 = vmatprep.subr.mxu0 0.0
    %3128 = vmatpush1.msra.mxu0 0.0
    %3129 = vmatprep.subr.mxu0 0.0
    %3130 = vmatpush1.msra.mxu0 0.0
    %3131 = vmatprep.subr.mxu0 0.0
    %3132 = vmatpush1.msra.mxu0 0.0
    %3133 = vmatprep.subr.mxu0 0.0
    %3134 = vmatpush1.msra.mxu0 0.0
    %3135 = vmatprep.subr.mxu0 0.0
    %3136 = vmatpush1.msra.mxu0 0.0
    %3137 = vmatprep.subr.mxu0 0.0
    %3138 = vmatpush1.msra.mxu0 0.0
    %3139 = vmatprep.subr.mxu0 0.0
    %3140 = vmatpush1.msra.mxu0 0.0
    %3141 = vmatprep.subr.mxu0 0.0
    %3142 = vmatpush1.msra.mxu0 0.0
    %3143 = vmatprep.subr.mxu0 0.0
    %3144 = vmatpush1.msra.mxu0 0.0
    %3145 = vmatprep.subr.mxu0 0.0
    %3146 = vmatpush1.msra.mxu0 0.0
    %3147 = vmatprep.subr.mxu0 0.0
    %3148 = vmatpush1.msra.mxu0 0.0
    %3149 = vmatprep.subr.mxu0 0.0
    %3150 = vmatpush1.msra.mxu0 0.0
    %3151 = vmatprep.subr.mxu0 0.0
    %3152 = vmatpush1.msra.mxu0 0.0
    %3153 = vmatprep.subr.mxu0 0.0
    %3154 = vmatpush1.msra.mxu0 0.0
    %3155 = vmatprep.subr.mxu0 0.0
    %3156 = vmatpush1.msra.mxu0 0.0
    %3157 = vmatprep.subr.mxu0 0.0
    %3158 = vmatpush1.msra.mxu0 0.0
    %3159 = vmatprep.subr.mxu0 0.0
    %3160 = vmatpush1.msra.mxu0 0.0
    %3161 = vmatprep.subr.mxu0 0.0
    %3162 = vmatpush1.msra.mxu0 0.0
    %3163 = vmatprep.subr.mxu0 0.0
    %3164 = vmatpush1.msra.mxu0 0.0
    %3165 = vmatprep.subr.mxu0 0.0
    %3166 = vmatpush1.msra.mxu0 0.0
    %3167 = vmatprep.subr.mxu0 0.0
    %3168 = vmatpush1.msra.mxu0 0.0
    %3169 = vmatprep.subr.mxu0 0.0
    %3170 = vmatpush1.msra.mxu0 0.0
    %3171 = vmatprep.subr.mxu0 0.0
    %3172 = vmatpush1.msra.mxu0 0.0
    %3173 = vmatprep.subr.mxu0 0.0
    %3174 = vmatpush1.msra.mxu0 0.0
    %3175 = vmatprep.subr.mxu0 0.0
    %3176 = vmatpush1.msra.mxu0 0.0
    %3177 = vmatprep.subr.mxu0 0.0
    %3178 = vmatpush1.msra.mxu0 0.0
    %3179 = vmatprep.mubr.f32.mxu0 0.0
    %v3180 = vand.u32 %v2720, 4294901760
    %3181 = vmatmul.mubr.f32.gmra.mrb[0].mxu0 %v3180
    %v3182 = vpop.f32.mrb[0].mxu0
    %v3183 = vadd.f32 %v3088, %v3182
    %v3184 = vpop.f32.mrb[0].mxu0
    %3185 = vmatprep.mubr.f32.mxu0 0.0
    %v3186 = vand.u32 %v2723, 4294901760
    %3187 = vmatmul.mubr.f32.gmra.mrb[0].mxu0 %v3186
    %v3188 = vpop.f32.mrb[0].mxu0
    %v3189 = vadd.f32 %v3096, %v3188
    %v3190 = vpop.f32.mrb[0].mxu0
    %3191 = vmatprep.mubr.f32.mxu0 0.0
    %v3192 = vand.u32 %v2726, 4294901760
    %3193 = vmatmul.mubr.f32.gmra.mrb[0].mxu0 %v3192
    %v3194 = vpop.f32.mrb[0].mxu0
    %v3195 = vadd.f32 %v3104, %v3194
    %v3196 = vpop.f32.mrb[0].mxu0
    %3197 = vmatprep.mubr.f32.mxu0 0.0
    %v3198 = vand.u32 %v2729, 4294901760
    %3199 = vmatmul.mubr.f32.gmra.mrb[0].mxu0 %v3198
    %v3200 = vpop.f32.mrb[0].mxu0
    %v3201 = vadd.f32 %v3112, %v3200
    %v3202 = vpop.f32.mrb[0].mxu0
    %3203 = vdwg.mxu0
    %3204 = vmatprep.subr.mxu0 0.0
    %3205 = vmatpush1.msra.mxu0 1.0
    %3206 = vmatprep.subr.mxu0 0.0
    %3207 = vmatpush1.msra.mxu0 1.0
    %3208 = vmatprep.subr.mxu0 0.0
    %3209 = vmatpush1.msra.mxu0 0.0
    %3210 = vmatprep.subr.mxu0 0.0
    %3211 = vmatpush1.msra.mxu0 0.0
    %3212 = vmatprep.subr.mxu0 0.0
    %3213 = vmatpush1.msra.mxu0 0.0
    %3214 = vmatprep.subr.mxu0 0.0
    %3215 = vmatpush1.msra.mxu0 0.0
    %3216 = vmatprep.subr.mxu0 0.0
    %3217 = vmatpush1.msra.mxu0 0.0
    %3218 = vmatprep.subr.mxu0 0.0
    %3219 = vmatpush1.msra.mxu0 0.0
    %3220 = vmatprep.subr.mxu0 0.0
    %3221 = vmatpush1.msra.mxu0 0.0
    %3222 = vmatprep.subr.mxu0 0.0
    %3223 = vmatpush1.msra.mxu0 0.0
    %3224 = vmatprep.subr.mxu0 0.0
    %3225 = vmatpush1.msra.mxu0 0.0
    %3226 = vmatprep.subr.mxu0 0.0
    %3227 = vmatpush1.msra.mxu0 0.0
    %3228 = vmatprep.subr.mxu0 0.0
    %3229 = vmatpush1.msra.mxu0 0.0
    %3230 = vmatprep.subr.mxu0 0.0
    %3231 = vmatpush1.msra.mxu0 0.0
    %3232 = vmatprep.subr.mxu0 0.0
    %3233 = vmatpush1.msra.mxu0 0.0
    %3234 = vmatprep.subr.mxu0 0.0
    %3235 = vmatpush1.msra.mxu0 0.0
    %3236 = vmatprep.subr.mxu0 0.0
    %3237 = vmatpush1.msra.mxu0 0.0
    %3238 = vmatprep.subr.mxu0 0.0
    %3239 = vmatpush1.msra.mxu0 0.0
    %3240 = vmatprep.subr.mxu0 0.0
    %3241 = vmatpush1.msra.mxu0 0.0
    %3242 = vmatprep.subr.mxu0 0.0
    %3243 = vmatpush1.msra.mxu0 0.0
    %3244 = vmatprep.subr.mxu0 0.0
    %3245 = vmatpush1.msra.mxu0 0.0
    %3246 = vmatprep.subr.mxu0 0.0
    %3247 = vmatpush1.msra.mxu0 0.0
    %3248 = vmatprep.subr.mxu0 0.0
    %3249 = vmatpush1.msra.mxu0 0.0
    %3250 = vmatprep.subr.mxu0 0.0
    %3251 = vmatpush1.msra.mxu0 0.0
    %3252 = vmatprep.subr.mxu0 0.0
    %3253 = vmatpush1.msra.mxu0 0.0
    %3254 = vmatprep.subr.mxu0 0.0
    %3255 = vmatpush1.msra.mxu0 0.0
    %3256 = vmatprep.subr.mxu0 0.0
    %3257 = vmatpush1.msra.mxu0 0.0
    %3258 = vmatprep.subr.mxu0 0.0
    %3259 = vmatpush1.msra.mxu0 0.0
    %3260 = vmatprep.subr.mxu0 0.0
    %3261 = vmatpush1.msra.mxu0 0.0
    %3262 = vmatprep.subr.mxu0 0.0
    %3263 = vmatpush1.msra.mxu0 0.0
    %3264 = vmatprep.subr.mxu0 0.0
    %3265 = vmatpush1.msra.mxu0 0.0
    %3266 = vmatprep.subr.mxu0 0.0
    %3267 = vmatpush1.msra.mxu0 0.0
    %3268 = vmatprep.mubr.f32.mxu0 0.0
    %v3269 = vand.u32 %v2720, 4294901760
    %3270 = vmatmul.mubr.f32.gmra.mrb[0].mxu0 %v3269
    %v3271 = vpop.f32.mrb[0].mxu0
    %v3272 = vadd.f32 %v3183, %v3271
    %v3273 = vpop.f32.mrb[0].mxu0
    %3274 = vmatprep.mubr.f32.mxu0 0.0
    %v3275 = vand.u32 %v2723, 4294901760
    %3276 = vmatmul.mubr.f32.gmra.mrb[0].mxu0 %v3275
    %v3277 = vpop.f32.mrb[0].mxu0
    %v3278 = vadd.f32 %v3189, %v3277
    %v3279 = vpop.f32.mrb[0].mxu0
    %3280 = vmatprep.mubr.f32.mxu0 0.0
    %v3281 = vand.u32 %v2726, 4294901760
    %3282 = vmatmul.mubr.f32.gmra.mrb[0].mxu0 %v3281
    %v3283 = vpop.f32.mrb[0].mxu0
    %v3284 = vadd.f32 %v3195, %v3283
    %v3285 = vpop.f32.mrb[0].mxu0
    %3286 = vmatprep.mubr.f32.mxu0 0.0
    %v3287 = vand.u32 %v2729, 4294901760
    %3288 = vmatmul.mubr.f32.gmra.mrb[0].mxu0 %v3287
    %v3289 = vpop.f32.mrb[0].mxu0
    %v3290 = vadd.f32 %v3201, %v3289
    %v3291 = vpop.f32.mrb[0].mxu0
    %3292 = vdwg.mxu0
    %v3293 = vmul.f32 %v2694, 0.0625
    %v3294 = vmul.f32 %v2700, 0.0625
    %v3295 = vmul.f32 %v2706, 0.0625
    %v3296 = vmul.f32 %v2712, 0.0625
    %v3297 = vmul.f32 %v3272, 0.0625
    %v3298 = vmul.f32 %v3278, 0.0625
    %v3299 = vmul.f32 %v3284, 0.0625
    %v3300 = vmul.f32 %v3290, 0.0625
    %v3301 = vmul.f32 %v3293, %v3293
    %v3302 = vmul.f32 %v3294, %v3294
    %v3303 = vmul.f32 %v3295, %v3295
    %v3304 = vmul.f32 %v3296, %v3296
    %v3305 = vsub.f32 %v3297, %v3301
    %v3306 = vsub.f32 %v3298, %v3302
    %v3307 = vsub.f32 %v3299, %v3303
    %v3308 = vsub.f32 %v3300, %v3304
    %v3309 = vmax.f32 %v3305, 0.0
    %v3310 = vmax.f32 %v3306, 0.0
    %v3311 = vmax.f32 %v3307, 0.0
    %v3312 = vmax.f32 %v3308, 0.0
    %v3313 = vld [vmem:[%s2 + $0x10] sm:$0xff]
    %v3314 = vld [vmem:[%s2 + $0x18] sm:$0xff]
    %v3315 = vld [vmem:[%s2 + $0x20] sm:$0xff]
    %v3316 = vld [vmem:[%s2 + $0x28] sm:$0x3f]
    %v3317 = vadd.f32 %v3309, 1e-05
    %v3318 = vadd.f32 %v3310, 1e-05
    %v3319 = vadd.f32 %v3311, 1e-05
    %v3320 = vadd.f32 %v3312, 1e-05
    %v3321 = vrsqrt.pop %v3317
    %v3322 = vrsqrt.pop %v3318
    %v3323 = vrsqrt.pop %v3319
    %v3324 = vrsqrt.pop %v3320
    %v3325 = vmul.f32 %v3313, %v3321
    %v3326 = vmul.f32 %v3314, %v3322
    %v3327 = vmul.f32 %v3315, %v3323
    %v3328 = vmul.f32 %v3316, %v3324
    %v3329 = vmul.f32 %v3293, %v3325
    %v3330 = vmul.f32 %v3294, %v3326
    %v3331 = vmul.f32 %v3295, %v3327
    %v3332 = vmul.f32 %v3296, %v3328
    %3337 = vrot.lane.b32.xlu0 %v3329, 1
    %v3338 = vpop.permute.xlu0 %3337
    %3339 = vrot.lane.b32.xlu0 %v3330, 1
    %v3340 = vpop.permute.xlu0 %3339
    %3341 = vrot.lane.b32.xlu0 %v3331, 1
    %v3342 = vpop.permute.xlu0 %3341
    %3343 = vrot.lane.b32.xlu0 %v3332, 1
    %v3344 = vpop.permute.xlu0 %3343
    %v3349 = vsub.f32 %v3313, %v3338
    %v3350 = vsub.f32 %v3314, %v3340
    %v3351 = vsub.f32 %v3315, %v3342
    %v3352 = vsub.f32 %v3316, %v3344
    %3354 = vset.pattern.permute.xlu0 0
    %3355 = vperm.xlu0 %3354, %v3325
    %v3356 = vpop.permute.xlu0 %3355
    %3359 = vset.pattern.permute.xlu0 0
    %3360 = vperm.xlu0 %3359, %v3326
    %v3361 = vpop.permute.xlu0 %3360
    %3364 = vset.pattern.permute.xlu0 0
    %3365 = vperm.xlu0 %3364, %v3327
    %v3366 = vpop.permute.xlu0 %3365
    %3369 = vset.pattern.permute.xlu0 0
    %3370 = vperm.xlu0 %3369, %v3328
    %v3371 = vpop.permute.xlu0 %3370
    %v3373 = vmul.f32 %v2120, %v3356
    %v3374 = vmul.f32 %v2126, %v3361
    %v3375 = vmul.f32 %v2132, %v3366
    %v3376 = vmul.f32 %v2138, %v3371
    %3378 = vset.pattern.permute.xlu0 1
    %3379 = vperm.xlu0 %3378, %v3349
    %v3380 = vpop.permute.xlu0 %3379
    %3383 = vset.pattern.permute.xlu0 1
    %3384 = vperm.xlu0 %3383, %v3350
    %v3385 = vpop.permute.xlu0 %3384
    %3388 = vset.pattern.permute.xlu0 1
    %3389 = vperm.xlu0 %3388, %v3351
    %v3390 = vpop.permute.xlu0 %3389
    %3393 = vset.pattern.permute.xlu0 1
    %3394 = vperm.xlu0 %3393, %v3352
    %v3395 = vpop.permute.xlu0 %3394
    %v3397 = vadd.f32 %v3373, %v3380
    %v3398 = vadd.f32 %v3374, %v3385
    %v3399 = vadd.f32 %v3375, %v3390
    %v3400 = vadd.f32 %v3376, %v3395
    %v3401 = vmax.f32 %v3397, 0.0
    %v3402 = vmax.f32 %v3398, 0.0
    %v3403 = vmax.f32 %v3399, 0.0
    %v3404 = vmax.f32 %v3400, 0.0
    %v3405 = vld [vmem:[%s1 + $0x30] sm:$0xff]
    %v3406 = vld [vmem:[%s1 + $0x38] sm:$0x7f]
    %vm3407 = vcmask 244736
    %v3409 = vsel %vm3407, %v3405, 0
    %v3412 = vsel %vm3407, %v3406, 0
    %vm3414 = vcmask 1045504
    %v3416 = vsel %vm3414, %v3404, 0
    %3418 = vmatprep.subr.mxu0 0.0
    %v3419 = vand.u32 %v3401, 4294901760
    %3420 = vmatpush1.msra.mxu0 %v3419
    %3421 = vmatprep.subr.mxu0 0.0
    %v3422 = vand.u32 %v3402, 4294901760
    %3423 = vmatpush1.msra.mxu0 %v3422
    %3424 = vmatprep.subr.mxu0 0.0
    %v3425 = vand.u32 %v3403, 4294901760
    %3426 = vmatpush1.msra.mxu0 %v3425
    %3427 = vmatprep.subr.mxu0 0.0
    %v3428 = vand.u32 %v3416, 4294901760
    %3429 = vmatpush1.msra.mxu0 %v3428
    %3430 = vmatprep.subr.mxu0 0.0
    %3431 = vmatpush1.msra.mxu0 0.0
    %3432 = vmatprep.subr.mxu0 0.0
    %3433 = vmatpush1.msra.mxu0 0.0
    %3434 = vmatprep.subr.mxu0 0.0
    %3435 = vmatpush1.msra.mxu0 0.0
    %3436 = vmatprep.subr.mxu0 0.0
    %3437 = vmatpush1.msra.mxu0 0.0
    %3438 = vmatprep.subr.mxu0 0.0
    %3439 = vmatpush1.msra.mxu0 0.0
    %3440 = vmatprep.subr.mxu0 0.0
    %3441 = vmatpush1.msra.mxu0 0.0
    %3442 = vmatprep.subr.mxu0 0.0
    %3443 = vmatpush1.msra.mxu0 0.0
    %3444 = vmatprep.subr.mxu0 0.0
    %3445 = vmatpush1.msra.mxu0 0.0
    %3446 = vmatprep.subr.mxu0 0.0
    %3447 = vmatpush1.msra.mxu0 0.0
    %3448 = vmatprep.subr.mxu0 0.0
    %3449 = vmatpush1.msra.mxu0 0.0
    %3450 = vmatprep.subr.mxu0 0.0
    %3451 = vmatpush1.msra.mxu0 0.0
    %3452 = vmatprep.subr.mxu0 0.0
    %3453 = vmatpush1.msra.mxu0 0.0
    %3454 = vmatprep.subr.mxu0 0.0
    %3455 = vmatpush1.msra.mxu0 0.0
    %3456 = vmatprep.subr.mxu0 0.0
    %3457 = vmatpush1.msra.mxu0 0.0
    %3458 = vmatprep.subr.mxu0 0.0
    %3459 = vmatpush1.msra.mxu0 0.0
    %3460 = vmatprep.subr.mxu0 0.0
    %3461 = vmatpush1.msra.mxu0 0.0
    %3462 = vmatprep.subr.mxu0 0.0
    %3463 = vmatpush1.msra.mxu0 0.0
    %3464 = vmatprep.subr.mxu0 0.0
    %3465 = vmatpush1.msra.mxu0 0.0
    %3466 = vmatprep.subr.mxu0 0.0
    %3467 = vmatpush1.msra.mxu0 0.0
    %3468 = vmatprep.subr.mxu0 0.0
    %3469 = vmatpush1.msra.mxu0 0.0
    %3470 = vmatprep.subr.mxu0 0.0
    %3471 = vmatpush1.msra.mxu0 0.0
    %3472 = vmatprep.subr.mxu0 0.0
    %3473 = vmatpush1.msra.mxu0 0.0
    %3474 = vmatprep.subr.mxu0 0.0
    %3475 = vmatpush1.msra.mxu0 0.0
    %3476 = vmatprep.subr.mxu0 0.0
    %3477 = vmatpush1.msra.mxu0 0.0
    %3478 = vmatprep.subr.mxu0 0.0
    %3479 = vmatpush1.msra.mxu0 0.0
    %3480 = vmatprep.subr.mxu0 0.0
    %3481 = vmatpush1.msra.mxu0 0.0
    %3482 = vmatprep.subr.mxu0 0.0
    %3483 = vmatpush1.msra.mxu0 0.0
    %3484 = vmatprep.subr.mxu0 0.0
    %3485 = vmatpush1.msra.mxu0 0.0
    %3486 = vmatprep.mubr.f32.mxu0 0.0
    %v3487 = vand.u32 %v3409, 4294901760
    %v3488 = vsub.f32 %v3409, %v3487
    %v3489 = vand.u32 %v3488, 4294901760
    %v3490 = vsub.f32 %v3488, %v3489
    %v3491 = vand.u32 %v3490, 4294901760
    %3492 = vmatmul.mubr.f32.gmra.mrb[0].mxu0 %v3491
    %v3493 = vpop.f32.mrb[0].mxu0
    %v3494 = vadd.f32 0.0, %v3493
    %v3495 = vpop.f32.mrb[0].mxu0
    %3496 = vmatprep.mubr.f32.mxu0 0.0
    %v3497 = vand.u32 %v3412, 4294901760
    %v3498 = vsub.f32 %v3412, %v3497
    %v3499 = vand.u32 %v3498, 4294901760
    %v3500 = vsub.f32 %v3498, %v3499
    %v3501 = vand.u32 %v3500, 4294901760
    %3502 = vmatmul.mubr.f32.gmra.mrb[0].mxu0 %v3501
    %v3503 = vpop.f32.mrb[0].mxu0
    %v3504 = vadd.f32 0.0, %v3503
    %v3505 = vpop.f32.mrb[0].mxu0
    %3506 = vdwg.mxu0
    %3507 = vmatprep.subr.mxu0 0.0
    %v3508 = vand.u32 %v3401, 4294901760
    %v3509 = vsub.f32 %v3401, %v3508
    %v3510 = vand.u32 %v3509, 4294901760
    %v3511 = vsub.f32 %v3509, %v3510
    %v3512 = vand.u32 %v3511, 4294901760
    %3513 = vmatpush1.msra.mxu0 %v3512
    %3514 = vmatprep.subr.mxu0 0.0
    %v3515 = vand.u32 %v3402, 4294901760
    %v3516 = vsub.f32 %v3402, %v3515
    %v3517 = vand.u32 %v3516, 4294901760
    %v3518 = vsub.f32 %v3516, %v3517
    %v3519 = vand.u32 %v3518, 4294901760
    %3520 = vmatpush1.msra.mxu0 %v3519
    %3521 = vmatprep.subr.mxu0 0.0
    %v3522 = vand.u32 %v3403, 4294901760
    %v3523 = vsub.f32 %v3403, %v3522
    %v3524 = vand.u32 %v3523, 4294901760
    %v3525 = vsub.f32 %v3523, %v3524
    %v3526 = vand.u32 %v3525, 4294901760
    %3527 = vmatpush1.msra.mxu0 %v3526
    %3528 = vmatprep.subr.mxu0 0.0
    %v3529 = vand.u32 %v3416, 4294901760
    %v3530 = vsub.f32 %v3416, %v3529
    %v3531 = vand.u32 %v3530, 4294901760
    %v3532 = vsub.f32 %v3530, %v3531
    %v3533 = vand.u32 %v3532, 4294901760
    %3534 = vmatpush1.msra.mxu0 %v3533
    %3535 = vmatprep.subr.mxu0 0.0
    %3536 = vmatpush1.msra.mxu0 0.0
    %3537 = vmatprep.subr.mxu0 0.0
    %3538 = vmatpush1.msra.mxu0 0.0
    %3539 = vmatprep.subr.mxu0 0.0
    %3540 = vmatpush1.msra.mxu0 0.0
    %3541 = vmatprep.subr.mxu0 0.0
    %3542 = vmatpush1.msra.mxu0 0.0
    %3543 = vmatprep.subr.mxu0 0.0
    %3544 = vmatpush1.msra.mxu0 0.0
    %3545 = vmatprep.subr.mxu0 0.0
    %3546 = vmatpush1.msra.mxu0 0.0
    %3547 = vmatprep.subr.mxu0 0.0
    %3548 = vmatpush1.msra.mxu0 0.0
    %3549 = vmatprep.subr.mxu0 0.0
    %3550 = vmatpush1.msra.mxu0 0.0
    %3551 = vmatprep.subr.mxu0 0.0
    %3552 = vmatpush1.msra.mxu0 0.0
    %3553 = vmatprep.subr.mxu0 0.0
    %3554 = vmatpush1.msra.mxu0 0.0
    %3555 = vmatprep.subr.mxu0 0.0
    %3556 = vmatpush1.msra.mxu0 0.0
    %3557 = vmatprep.subr.mxu0 0.0
    %3558 = vmatpush1.msra.mxu0 0.0
    %3559 = vmatprep.subr.mxu0 0.0
    %3560 = vmatpush1.msra.mxu0 0.0
    %3561 = vmatprep.subr.mxu0 0.0
    %3562 = vmatpush1.msra.mxu0 0.0
    %3563 = vmatprep.subr.mxu0 0.0
    %3564 = vmatpush1.msra.mxu0 0.0
    %3565 = vmatprep.subr.mxu0 0.0
    %3566 = vmatpush1.msra.mxu0 0.0
    %3567 = vmatprep.subr.mxu0 0.0
    %3568 = vmatpush1.msra.mxu0 0.0
    %3569 = vmatprep.subr.mxu0 0.0
    %3570 = vmatpush1.msra.mxu0 0.0
    %3571 = vmatprep.subr.mxu0 0.0
    %3572 = vmatpush1.msra.mxu0 0.0
    %3573 = vmatprep.subr.mxu0 0.0
    %3574 = vmatpush1.msra.mxu0 0.0
    %3575 = vmatprep.subr.mxu0 0.0
    %3576 = vmatpush1.msra.mxu0 0.0
    %3577 = vmatprep.subr.mxu0 0.0
    %3578 = vmatpush1.msra.mxu0 0.0
    %3579 = vmatprep.subr.mxu0 0.0
    %3580 = vmatpush1.msra.mxu0 0.0
    %3581 = vmatprep.subr.mxu0 0.0
    %3582 = vmatpush1.msra.mxu0 0.0
    %3583 = vmatprep.subr.mxu0 0.0
    %3584 = vmatpush1.msra.mxu0 0.0
    %3585 = vmatprep.subr.mxu0 0.0
    %3586 = vmatpush1.msra.mxu0 0.0
    %3587 = vmatprep.subr.mxu0 0.0
    %3588 = vmatpush1.msra.mxu0 0.0
    %3589 = vmatprep.subr.mxu0 0.0
    %3590 = vmatpush1.msra.mxu0 0.0
    %3591 = vmatprep.mubr.f32.mxu0 0.0
    %v3592 = vand.u32 %v3409, 4294901760
    %3593 = vmatmul.mubr.f32.gmra.mrb[0].mxu0 %v3592
    %v3594 = vpop.f32.mrb[0].mxu0
    %v3595 = vadd.f32 %v3494, %v3594
    %v3596 = vpop.f32.mrb[0].mxu0
    %3597 = vmatprep.mubr.f32.mxu0 0.0
    %v3598 = vand.u32 %v3412, 4294901760
    %3599 = vmatmul.mubr.f32.gmra.mrb[0].mxu0 %v3598
    %v3600 = vpop.f32.mrb[0].mxu0
    %v3601 = vadd.f32 %v3504, %v3600
    %v3602 = vpop.f32.mrb[0].mxu0
    %3603 = vdwg.mxu0
    %3604 = vmatprep.subr.mxu0 0.0
    %v3605 = vand.u32 %v3401, 4294901760
    %v3606 = vsub.f32 %v3401, %v3605
    %3607 = vmatpush1.msra.mxu0 %v3606
    %3608 = vmatprep.subr.mxu0 0.0
    %v3609 = vand.u32 %v3402, 4294901760
    %v3610 = vsub.f32 %v3402, %v3609
    %3611 = vmatpush1.msra.mxu0 %v3610
    %3612 = vmatprep.subr.mxu0 0.0
    %v3613 = vand.u32 %v3403, 4294901760
    %v3614 = vsub.f32 %v3403, %v3613
    %3615 = vmatpush1.msra.mxu0 %v3614
    %3616 = vmatprep.subr.mxu0 0.0
    %v3617 = vand.u32 %v3416, 4294901760
    %v3618 = vsub.f32 %v3416, %v3617
    %3619 = vmatpush1.msra.mxu0 %v3618
    %3620 = vmatprep.subr.mxu0 0.0
    %3621 = vmatpush1.msra.mxu0 0.0
    %3622 = vmatprep.subr.mxu0 0.0
    %3623 = vmatpush1.msra.mxu0 0.0
    %3624 = vmatprep.subr.mxu0 0.0
    %3625 = vmatpush1.msra.mxu0 0.0
    %3626 = vmatprep.subr.mxu0 0.0
    %3627 = vmatpush1.msra.mxu0 0.0
    %3628 = vmatprep.subr.mxu0 0.0
    %3629 = vmatpush1.msra.mxu0 0.0
    %3630 = vmatprep.subr.mxu0 0.0
    %3631 = vmatpush1.msra.mxu0 0.0
    %3632 = vmatprep.subr.mxu0 0.0
    %3633 = vmatpush1.msra.mxu0 0.0
    %3634 = vmatprep.subr.mxu0 0.0
    %3635 = vmatpush1.msra.mxu0 0.0
    %3636 = vmatprep.subr.mxu0 0.0
    %3637 = vmatpush1.msra.mxu0 0.0
    %3638 = vmatprep.subr.mxu0 0.0
    %3639 = vmatpush1.msra.mxu0 0.0
    %3640 = vmatprep.subr.mxu0 0.0
    %3641 = vmatpush1.msra.mxu0 0.0
    %3642 = vmatprep.subr.mxu0 0.0
    %3643 = vmatpush1.msra.mxu0 0.0
    %3644 = vmatprep.subr.mxu0 0.0
    %3645 = vmatpush1.msra.mxu0 0.0
    %3646 = vmatprep.subr.mxu0 0.0
    %3647 = vmatpush1.msra.mxu0 0.0
    %3648 = vmatprep.subr.mxu0 0.0
    %3649 = vmatpush1.msra.mxu0 0.0
    %3650 = vmatprep.subr.mxu0 0.0
    %3651 = vmatpush1.msra.mxu0 0.0
    %3652 = vmatprep.subr.mxu0 0.0
    %3653 = vmatpush1.msra.mxu0 0.0
    %3654 = vmatprep.subr.mxu0 0.0
    %3655 = vmatpush1.msra.mxu0 0.0
    %3656 = vmatprep.subr.mxu0 0.0
    %3657 = vmatpush1.msra.mxu0 0.0
    %3658 = vmatprep.subr.mxu0 0.0
    %3659 = vmatpush1.msra.mxu0 0.0
    %3660 = vmatprep.subr.mxu0 0.0
    %3661 = vmatpush1.msra.mxu0 0.0
    %3662 = vmatprep.subr.mxu0 0.0
    %3663 = vmatpush1.msra.mxu0 0.0
    %3664 = vmatprep.subr.mxu0 0.0
    %3665 = vmatpush1.msra.mxu0 0.0
    %3666 = vmatprep.subr.mxu0 0.0
    %3667 = vmatpush1.msra.mxu0 0.0
    %3668 = vmatprep.subr.mxu0 0.0
    %3669 = vmatpush1.msra.mxu0 0.0
    %3670 = vmatprep.subr.mxu0 0.0
    %3671 = vmatpush1.msra.mxu0 0.0
    %3672 = vmatprep.subr.mxu0 0.0
    %3673 = vmatpush1.msra.mxu0 0.0
    %3674 = vmatprep.subr.mxu0 0.0
    %3675 = vmatpush1.msra.mxu0 0.0
    %3676 = vmatprep.mubr.f32.mxu0 0.0
    %v3677 = vand.u32 %v3409, 4294901760
    %v3678 = vsub.f32 %v3409, %v3677
    %3679 = vmatmul.mubr.f32.gmra.mrb[0].mxu0 %v3678
    %v3680 = vpop.f32.mrb[0].mxu0
    %v3681 = vadd.f32 %v3595, %v3680
    %v3682 = vpop.f32.mrb[0].mxu0
    %3683 = vmatprep.mubr.f32.mxu0 0.0
    %v3684 = vand.u32 %v3412, 4294901760
    %v3685 = vsub.f32 %v3412, %v3684
    %3686 = vmatmul.mubr.f32.gmra.mrb[0].mxu0 %v3685
    %v3687 = vpop.f32.mrb[0].mxu0
    %v3688 = vadd.f32 %v3601, %v3687
    %v3689 = vpop.f32.mrb[0].mxu0
    %3690 = vdwg.mxu0
    %3691 = vmatprep.subr.mxu0 0.0
    %v3692 = vand.u32 %v3401, 4294901760
    %3693 = vmatpush1.msra.mxu0 %v3692
    %3694 = vmatprep.subr.mxu0 0.0
    %v3695 = vand.u32 %v3402, 4294901760
    %3696 = vmatpush1.msra.mxu0 %v3695
    %3697 = vmatprep.subr.mxu0 0.0
    %v3698 = vand.u32 %v3403, 4294901760
    %3699 = vmatpush1.msra.mxu0 %v3698
    %3700 = vmatprep.subr.mxu0 0.0
    %v3701 = vand.u32 %v3416, 4294901760
    %3702 = vmatpush1.msra.mxu0 %v3701
    %3703 = vmatprep.subr.mxu0 0.0
    %3704 = vmatpush1.msra.mxu0 0.0
    %3705 = vmatprep.subr.mxu0 0.0
    %3706 = vmatpush1.msra.mxu0 0.0
    %3707 = vmatprep.subr.mxu0 0.0
    %3708 = vmatpush1.msra.mxu0 0.0
    %3709 = vmatprep.subr.mxu0 0.0
    %3710 = vmatpush1.msra.mxu0 0.0
    %3711 = vmatprep.subr.mxu0 0.0
    %3712 = vmatpush1.msra.mxu0 0.0
    %3713 = vmatprep.subr.mxu0 0.0
    %3714 = vmatpush1.msra.mxu0 0.0
    %3715 = vmatprep.subr.mxu0 0.0
    %3716 = vmatpush1.msra.mxu0 0.0
    %3717 = vmatprep.subr.mxu0 0.0
    %3718 = vmatpush1.msra.mxu0 0.0
    %3719 = vmatprep.subr.mxu0 0.0
    %3720 = vmatpush1.msra.mxu0 0.0
    %3721 = vmatprep.subr.mxu0 0.0
    %3722 = vmatpush1.msra.mxu0 0.0
    %3723 = vmatprep.subr.mxu0 0.0
    %3724 = vmatpush1.msra.mxu0 0.0
    %3725 = vmatprep.subr.mxu0 0.0
    %3726 = vmatpush1.msra.mxu0 0.0
    %3727 = vmatprep.subr.mxu0 0.0
    %3728 = vmatpush1.msra.mxu0 0.0
    %3729 = vmatprep.subr.mxu0 0.0
    %3730 = vmatpush1.msra.mxu0 0.0
    %3731 = vmatprep.subr.mxu0 0.0
    %3732 = vmatpush1.msra.mxu0 0.0
    %3733 = vmatprep.subr.mxu0 0.0
    %3734 = vmatpush1.msra.mxu0 0.0
    %3735 = vmatprep.subr.mxu0 0.0
    %3736 = vmatpush1.msra.mxu0 0.0
    %3737 = vmatprep.subr.mxu0 0.0
    %3738 = vmatpush1.msra.mxu0 0.0
    %3739 = vmatprep.subr.mxu0 0.0
    %3740 = vmatpush1.msra.mxu0 0.0
    %3741 = vmatprep.subr.mxu0 0.0
    %3742 = vmatpush1.msra.mxu0 0.0
    %3743 = vmatprep.subr.mxu0 0.0
    %3744 = vmatpush1.msra.mxu0 0.0
    %3745 = vmatprep.subr.mxu0 0.0
    %3746 = vmatpush1.msra.mxu0 0.0
    %3747 = vmatprep.subr.mxu0 0.0
    %3748 = vmatpush1.msra.mxu0 0.0
    %3749 = vmatprep.subr.mxu0 0.0
    %3750 = vmatpush1.msra.mxu0 0.0
    %3751 = vmatprep.subr.mxu0 0.0
    %3752 = vmatpush1.msra.mxu0 0.0
    %3753 = vmatprep.subr.mxu0 0.0
    %3754 = vmatpush1.msra.mxu0 0.0
    %3755 = vmatprep.subr.mxu0 0.0
    %3756 = vmatpush1.msra.mxu0 0.0
    %3757 = vmatprep.subr.mxu0 0.0
    %3758 = vmatpush1.msra.mxu0 0.0
    %3759 = vmatprep.mubr.f32.mxu0 0.0
    %v3760 = vand.u32 %v3409, 4294901760
    %v3761 = vsub.f32 %v3409, %v3760
    %v3762 = vand.u32 %v3761, 4294901760
    %3763 = vmatmul.mubr.f32.gmra.mrb[0].mxu0 %v3762
    %v3764 = vpop.f32.mrb[0].mxu0
    %v3765 = vadd.f32 %v3681, %v3764
    %v3766 = vpop.f32.mrb[0].mxu0
    %3767 = vmatprep.mubr.f32.mxu0 0.0
    %v3768 = vand.u32 %v3412, 4294901760
    %v3769 = vsub.f32 %v3412, %v3768
    %v3770 = vand.u32 %v3769, 4294901760
    %3771 = vmatmul.mubr.f32.gmra.mrb[0].mxu0 %v3770
    %v3772 = vpop.f32.mrb[0].mxu0
    %v3773 = vadd.f32 %v3688, %v3772
    %v3774 = vpop.f32.mrb[0].mxu0
    %3775 = vdwg.mxu0
    %3776 = vmatprep.subr.mxu0 0.0
    %v3777 = vand.u32 %v3401, 4294901760
    %v3778 = vsub.f32 %v3401, %v3777
    %v3779 = vand.u32 %v3778, 4294901760
    %3780 = vmatpush1.msra.mxu0 %v3779
    %3781 = vmatprep.subr.mxu0 0.0
    %v3782 = vand.u32 %v3402, 4294901760
    %v3783 = vsub.f32 %v3402, %v3782
    %v3784 = vand.u32 %v3783, 4294901760
    %3785 = vmatpush1.msra.mxu0 %v3784
    %3786 = vmatprep.subr.mxu0 0.0
    %v3787 = vand.u32 %v3403, 4294901760
    %v3788 = vsub.f32 %v3403, %v3787
    %v3789 = vand.u32 %v3788, 4294901760
    %3790 = vmatpush1.msra.mxu0 %v3789
    %3791 = vmatprep.subr.mxu0 0.0
    %v3792 = vand.u32 %v3416, 4294901760
    %v3793 = vsub.f32 %v3416, %v3792
    %v3794 = vand.u32 %v3793, 4294901760
    %3795 = vmatpush1.msra.mxu0 %v3794
    %3796 = vmatprep.subr.mxu0 0.0
    %3797 = vmatpush1.msra.mxu0 0.0
    %3798 = vmatprep.subr.mxu0 0.0
    %3799 = vmatpush1.msra.mxu0 0.0
    %3800 = vmatprep.subr.mxu0 0.0
    %3801 = vmatpush1.msra.mxu0 0.0
    %3802 = vmatprep.subr.mxu0 0.0
    %3803 = vmatpush1.msra.mxu0 0.0
    %3804 = vmatprep.subr.mxu0 0.0
    %3805 = vmatpush1.msra.mxu0 0.0
    %3806 = vmatprep.subr.mxu0 0.0
    %3807 = vmatpush1.msra.mxu0 0.0
    %3808 = vmatprep.subr.mxu0 0.0
    %3809 = vmatpush1.msra.mxu0 0.0
    %3810 = vmatprep.subr.mxu0 0.0
    %3811 = vmatpush1.msra.mxu0 0.0
    %3812 = vmatprep.subr.mxu0 0.0
    %3813 = vmatpush1.msra.mxu0 0.0
    %3814 = vmatprep.subr.mxu0 0.0
    %3815 = vmatpush1.msra.mxu0 0.0
    %3816 = vmatprep.subr.mxu0 0.0
    %3817 = vmatpush1.msra.mxu0 0.0
    %3818 = vmatprep.subr.mxu0 0.0
    %3819 = vmatpush1.msra.mxu0 0.0
    %3820 = vmatprep.subr.mxu0 0.0
    %3821 = vmatpush1.msra.mxu0 0.0
    %3822 = vmatprep.subr.mxu0 0.0
    %3823 = vmatpush1.msra.mxu0 0.0
    %3824 = vmatprep.subr.mxu0 0.0
    %3825 = vmatpush1.msra.mxu0 0.0
    %3826 = vmatprep.subr.mxu0 0.0
    %3827 = vmatpush1.msra.mxu0 0.0
    %3828 = vmatprep.subr.mxu0 0.0
    %3829 = vmatpush1.msra.mxu0 0.0
    %3830 = vmatprep.subr.mxu0 0.0
    %3831 = vmatpush1.msra.mxu0 0.0
    %3832 = vmatprep.subr.mxu0 0.0
    %3833 = vmatpush1.msra.mxu0 0.0
    %3834 = vmatprep.subr.mxu0 0.0
    %3835 = vmatpush1.msra.mxu0 0.0
    %3836 = vmatprep.subr.mxu0 0.0
    %3837 = vmatpush1.msra.mxu0 0.0
    %3838 = vmatprep.subr.mxu0 0.0
    %3839 = vmatpush1.msra.mxu0 0.0
    %3840 = vmatprep.subr.mxu0 0.0
    %3841 = vmatpush1.msra.mxu0 0.0
    %3842 = vmatprep.subr.mxu0 0.0
    %3843 = vmatpush1.msra.mxu0 0.0
    %3844 = vmatprep.subr.mxu0 0.0
    %3845 = vmatpush1.msra.mxu0 0.0
    %3846 = vmatprep.subr.mxu0 0.0
    %3847 = vmatpush1.msra.mxu0 0.0
    %3848 = vmatprep.subr.mxu0 0.0
    %3849 = vmatpush1.msra.mxu0 0.0
    %3850 = vmatprep.subr.mxu0 0.0
    %3851 = vmatpush1.msra.mxu0 0.0
    %3852 = vmatprep.mubr.f32.mxu0 0.0
    %v3853 = vand.u32 %v3409, 4294901760
    %3854 = vmatmul.mubr.f32.gmra.mrb[0].mxu0 %v3853
    %v3855 = vpop.f32.mrb[0].mxu0
    %v3856 = vadd.f32 %v3765, %v3855
    %v3857 = vpop.f32.mrb[0].mxu0
    %3858 = vmatprep.mubr.f32.mxu0 0.0
    %v3859 = vand.u32 %v3412, 4294901760
    %3860 = vmatmul.mubr.f32.gmra.mrb[0].mxu0 %v3859
    %v3861 = vpop.f32.mrb[0].mxu0
    %v3862 = vadd.f32 %v3773, %v3861
    %v3863 = vpop.f32.mrb[0].mxu0
    %3864 = vdwg.mxu0
    %3865 = vmatprep.subr.mxu0 0.0
    %v3866 = vand.u32 %v3401, 4294901760
    %3867 = vmatpush1.msra.mxu0 %v3866
    %3868 = vmatprep.subr.mxu0 0.0
    %v3869 = vand.u32 %v3402, 4294901760
    %3870 = vmatpush1.msra.mxu0 %v3869
    %3871 = vmatprep.subr.mxu0 0.0
    %v3872 = vand.u32 %v3403, 4294901760
    %3873 = vmatpush1.msra.mxu0 %v3872
    %3874 = vmatprep.subr.mxu0 0.0
    %v3875 = vand.u32 %v3416, 4294901760
    %3876 = vmatpush1.msra.mxu0 %v3875
    %3877 = vmatprep.subr.mxu0 0.0
    %3878 = vmatpush1.msra.mxu0 0.0
    %3879 = vmatprep.subr.mxu0 0.0
    %3880 = vmatpush1.msra.mxu0 0.0
    %3881 = vmatprep.subr.mxu0 0.0
    %3882 = vmatpush1.msra.mxu0 0.0
    %3883 = vmatprep.subr.mxu0 0.0
    %3884 = vmatpush1.msra.mxu0 0.0
    %3885 = vmatprep.subr.mxu0 0.0
    %3886 = vmatpush1.msra.mxu0 0.0
    %3887 = vmatprep.subr.mxu0 0.0
    %3888 = vmatpush1.msra.mxu0 0.0
    %3889 = vmatprep.subr.mxu0 0.0
    %3890 = vmatpush1.msra.mxu0 0.0
    %3891 = vmatprep.subr.mxu0 0.0
    %3892 = vmatpush1.msra.mxu0 0.0
    %3893 = vmatprep.subr.mxu0 0.0
    %3894 = vmatpush1.msra.mxu0 0.0
    %3895 = vmatprep.subr.mxu0 0.0
    %3896 = vmatpush1.msra.mxu0 0.0
    %3897 = vmatprep.subr.mxu0 0.0
    %3898 = vmatpush1.msra.mxu0 0.0
    %3899 = vmatprep.subr.mxu0 0.0
    %3900 = vmatpush1.msra.mxu0 0.0
    %3901 = vmatprep.subr.mxu0 0.0
    %3902 = vmatpush1.msra.mxu0 0.0
    %3903 = vmatprep.subr.mxu0 0.0
    %3904 = vmatpush1.msra.mxu0 0.0
    %3905 = vmatprep.subr.mxu0 0.0
    %3906 = vmatpush1.msra.mxu0 0.0
    %3907 = vmatprep.subr.mxu0 0.0
    %3908 = vmatpush1.msra.mxu0 0.0
    %3909 = vmatprep.subr.mxu0 0.0
    %3910 = vmatpush1.msra.mxu0 0.0
    %3911 = vmatprep.subr.mxu0 0.0
    %3912 = vmatpush1.msra.mxu0 0.0
    %3913 = vmatprep.subr.mxu0 0.0
    %3914 = vmatpush1.msra.mxu0 0.0
    %3915 = vmatprep.subr.mxu0 0.0
    %3916 = vmatpush1.msra.mxu0 0.0
    %3917 = vmatprep.subr.mxu0 0.0
    %3918 = vmatpush1.msra.mxu0 0.0
    %3919 = vmatprep.subr.mxu0 0.0
    %3920 = vmatpush1.msra.mxu0 0.0
    %3921 = vmatprep.subr.mxu0 0.0
    %3922 = vmatpush1.msra.mxu0 0.0
    %3923 = vmatprep.subr.mxu0 0.0
    %3924 = vmatpush1.msra.mxu0 0.0
    %3925 = vmatprep.subr.mxu0 0.0
    %3926 = vmatpush1.msra.mxu0 0.0
    %3927 = vmatprep.subr.mxu0 0.0
    %3928 = vmatpush1.msra.mxu0 0.0
    %3929 = vmatprep.subr.mxu0 0.0
    %3930 = vmatpush1.msra.mxu0 0.0
    %3931 = vmatprep.subr.mxu0 0.0
    %3932 = vmatpush1.msra.mxu0 0.0
    %3933 = vmatprep.mubr.f32.mxu0 0.0
    %v3934 = vand.u32 %v3409, 4294901760
    %3935 = vmatmul.mubr.f32.gmra.mrb[0].mxu0 %v3934
    %v3936 = vpop.f32.mrb[0].mxu0
    %v3937 = vadd.f32 %v3856, %v3936
    %v3938 = vpop.f32.mrb[0].mxu0
    %3939 = vmatprep.mubr.f32.mxu0 0.0
    %v3940 = vand.u32 %v3412, 4294901760
    %3941 = vmatmul.mubr.f32.gmra.mrb[0].mxu0 %v3940
    %v3942 = vpop.f32.mrb[0].mxu0
    %v3943 = vadd.f32 %v3862, %v3942
    %v3944 = vpop.f32.mrb[0].mxu0
    %3945 = vdwg.mxu0
    %v3947 = vsel %vm514, %v3937, 0
    %v3950 = vsel %vm514, %v3943, 0
    %3952 = vmatprep.subr.mxu0 0.0
    %3953 = vmatpush1.msra.mxu0 1.0
    %3954 = vmatprep.subr.mxu0 0.0
    %3955 = vmatpush1.msra.mxu0 1.0
    %3956 = vmatprep.subr.mxu0 0.0
    %3957 = vmatpush1.msra.mxu0 0.0
    %3958 = vmatprep.subr.mxu0 0.0
    %3959 = vmatpush1.msra.mxu0 0.0
    %3960 = vmatprep.subr.mxu0 0.0
    %3961 = vmatpush1.msra.mxu0 0.0
    %3962 = vmatprep.subr.mxu0 0.0
    %3963 = vmatpush1.msra.mxu0 0.0
    %3964 = vmatprep.subr.mxu0 0.0
    %3965 = vmatpush1.msra.mxu0 0.0
    %3966 = vmatprep.subr.mxu0 0.0
    %3967 = vmatpush1.msra.mxu0 0.0
    %3968 = vmatprep.subr.mxu0 0.0
    %3969 = vmatpush1.msra.mxu0 0.0
    %3970 = vmatprep.subr.mxu0 0.0
    %3971 = vmatpush1.msra.mxu0 0.0
    %3972 = vmatprep.subr.mxu0 0.0
    %3973 = vmatpush1.msra.mxu0 0.0
    %3974 = vmatprep.subr.mxu0 0.0
    %3975 = vmatpush1.msra.mxu0 0.0
    %3976 = vmatprep.subr.mxu0 0.0
    %3977 = vmatpush1.msra.mxu0 0.0
    %3978 = vmatprep.subr.mxu0 0.0
    %3979 = vmatpush1.msra.mxu0 0.0
    %3980 = vmatprep.subr.mxu0 0.0
    %3981 = vmatpush1.msra.mxu0 0.0
    %3982 = vmatprep.subr.mxu0 0.0
    %3983 = vmatpush1.msra.mxu0 0.0
    %3984 = vmatprep.subr.mxu0 0.0
    %3985 = vmatpush1.msra.mxu0 0.0
    %3986 = vmatprep.subr.mxu0 0.0
    %3987 = vmatpush1.msra.mxu0 0.0
    %3988 = vmatprep.subr.mxu0 0.0
    %3989 = vmatpush1.msra.mxu0 0.0
    %3990 = vmatprep.subr.mxu0 0.0
    %3991 = vmatpush1.msra.mxu0 0.0
    %3992 = vmatprep.subr.mxu0 0.0
    %3993 = vmatpush1.msra.mxu0 0.0
    %3994 = vmatprep.subr.mxu0 0.0
    %3995 = vmatpush1.msra.mxu0 0.0
    %3996 = vmatprep.subr.mxu0 0.0
    %3997 = vmatpush1.msra.mxu0 0.0
    %3998 = vmatprep.subr.mxu0 0.0
    %3999 = vmatpush1.msra.mxu0 0.0
    %4000 = vmatprep.subr.mxu0 0.0
    %4001 = vmatpush1.msra.mxu0 0.0
    %4002 = vmatprep.subr.mxu0 0.0
    %4003 = vmatpush1.msra.mxu0 0.0
    %4004 = vmatprep.subr.mxu0 0.0
    %4005 = vmatpush1.msra.mxu0 0.0
    %4006 = vmatprep.subr.mxu0 0.0
    %4007 = vmatpush1.msra.mxu0 0.0
    %4008 = vmatprep.subr.mxu0 0.0
    %4009 = vmatpush1.msra.mxu0 0.0
    %4010 = vmatprep.subr.mxu0 0.0
    %4011 = vmatpush1.msra.mxu0 0.0
    %4012 = vmatprep.subr.mxu0 0.0
    %4013 = vmatpush1.msra.mxu0 0.0
    %4014 = vmatprep.subr.mxu0 0.0
    %4015 = vmatpush1.msra.mxu0 0.0
    %4016 = vmatprep.mubr.f32.mxu0 0.0
    %v4017 = vand.u32 %v3947, 4294901760
    %v4018 = vsub.f32 %v3947, %v4017
    %v4019 = vand.u32 %v4018, 4294901760
    %v4020 = vsub.f32 %v4018, %v4019
    %v4021 = vand.u32 %v4020, 4294901760
    %4022 = vmatmul.mubr.f32.gmra.mrb[0].mxu0 %v4021
    %v4023 = vpop.f32.mrb[0].mxu0
    %v4024 = vadd.f32 0.0, %v4023
    %v4025 = vpop.f32.mrb[0].mxu0
    %4026 = vmatprep.mubr.f32.mxu0 0.0
    %v4027 = vand.u32 %v3950, 4294901760
    %v4028 = vsub.f32 %v3950, %v4027
    %v4029 = vand.u32 %v4028, 4294901760
    %v4030 = vsub.f32 %v4028, %v4029
    %v4031 = vand.u32 %v4030, 4294901760
    %4032 = vmatmul.mubr.f32.gmra.mrb[0].mxu0 %v4031
    %v4033 = vpop.f32.mrb[0].mxu0
    %v4034 = vadd.f32 0.0, %v4033
    %v4035 = vpop.f32.mrb[0].mxu0
    %4036 = vdwg.mxu0
    %4037 = vmatprep.subr.mxu0 0.0
    %4038 = vmatpush1.msra.mxu0 0.0
    %4039 = vmatprep.subr.mxu0 0.0
    %4040 = vmatpush1.msra.mxu0 0.0
    %4041 = vmatprep.subr.mxu0 0.0
    %4042 = vmatpush1.msra.mxu0 0.0
    %4043 = vmatprep.subr.mxu0 0.0
    %4044 = vmatpush1.msra.mxu0 0.0
    %4045 = vmatprep.subr.mxu0 0.0
    %4046 = vmatpush1.msra.mxu0 0.0
    %4047 = vmatprep.subr.mxu0 0.0
    %4048 = vmatpush1.msra.mxu0 0.0
    %4049 = vmatprep.subr.mxu0 0.0
    %4050 = vmatpush1.msra.mxu0 0.0
    %4051 = vmatprep.subr.mxu0 0.0
    %4052 = vmatpush1.msra.mxu0 0.0
    %4053 = vmatprep.subr.mxu0 0.0
    %4054 = vmatpush1.msra.mxu0 0.0
    %4055 = vmatprep.subr.mxu0 0.0
    %4056 = vmatpush1.msra.mxu0 0.0
    %4057 = vmatprep.subr.mxu0 0.0
    %4058 = vmatpush1.msra.mxu0 0.0
    %4059 = vmatprep.subr.mxu0 0.0
    %4060 = vmatpush1.msra.mxu0 0.0
    %4061 = vmatprep.subr.mxu0 0.0
    %4062 = vmatpush1.msra.mxu0 0.0
    %4063 = vmatprep.subr.mxu0 0.0
    %4064 = vmatpush1.msra.mxu0 0.0
    %4065 = vmatprep.subr.mxu0 0.0
    %4066 = vmatpush1.msra.mxu0 0.0
    %4067 = vmatprep.subr.mxu0 0.0
    %4068 = vmatpush1.msra.mxu0 0.0
    %4069 = vmatprep.subr.mxu0 0.0
    %4070 = vmatpush1.msra.mxu0 0.0
    %4071 = vmatprep.subr.mxu0 0.0
    %4072 = vmatpush1.msra.mxu0 0.0
    %4073 = vmatprep.subr.mxu0 0.0
    %4074 = vmatpush1.msra.mxu0 0.0
    %4075 = vmatprep.subr.mxu0 0.0
    %4076 = vmatpush1.msra.mxu0 0.0
    %4077 = vmatprep.subr.mxu0 0.0
    %4078 = vmatpush1.msra.mxu0 0.0
    %4079 = vmatprep.subr.mxu0 0.0
    %4080 = vmatpush1.msra.mxu0 0.0
    %4081 = vmatprep.subr.mxu0 0.0
    %4082 = vmatpush1.msra.mxu0 0.0
    %4083 = vmatprep.subr.mxu0 0.0
    %4084 = vmatpush1.msra.mxu0 0.0
    %4085 = vmatprep.subr.mxu0 0.0
    %4086 = vmatpush1.msra.mxu0 0.0
    %4087 = vmatprep.subr.mxu0 0.0
    %4088 = vmatpush1.msra.mxu0 0.0
    %4089 = vmatprep.subr.mxu0 0.0
    %4090 = vmatpush1.msra.mxu0 0.0
    %4091 = vmatprep.subr.mxu0 0.0
    %4092 = vmatpush1.msra.mxu0 0.0
    %4093 = vmatprep.subr.mxu0 0.0
    %4094 = vmatpush1.msra.mxu0 0.0
    %4095 = vmatprep.subr.mxu0 0.0
    %4096 = vmatpush1.msra.mxu0 0.0
    %4097 = vmatprep.subr.mxu0 0.0
    %4098 = vmatpush1.msra.mxu0 0.0
    %4099 = vmatprep.subr.mxu0 0.0
    %4100 = vmatpush1.msra.mxu0 0.0
    %4101 = vmatprep.mubr.f32.mxu0 0.0
    %v4102 = vand.u32 %v3947, 4294901760
    %4103 = vmatmul.mubr.f32.gmra.mrb[0].mxu0 %v4102
    %v4104 = vpop.f32.mrb[0].mxu0
    %v4105 = vadd.f32 %v4024, %v4104
    %v4106 = vpop.f32.mrb[0].mxu0
    %4107 = vmatprep.mubr.f32.mxu0 0.0
    %v4108 = vand.u32 %v3950, 4294901760
    %4109 = vmatmul.mubr.f32.gmra.mrb[0].mxu0 %v4108
    %v4110 = vpop.f32.mrb[0].mxu0
    %v4111 = vadd.f32 %v4034, %v4110
    %v4112 = vpop.f32.mrb[0].mxu0
    %4113 = vdwg.mxu0
    %4114 = vmatprep.subr.mxu0 0.0
    %4115 = vmatpush1.msra.mxu0 0.0
    %4116 = vmatprep.subr.mxu0 0.0
    %4117 = vmatpush1.msra.mxu0 0.0
    %4118 = vmatprep.subr.mxu0 0.0
    %4119 = vmatpush1.msra.mxu0 0.0
    %4120 = vmatprep.subr.mxu0 0.0
    %4121 = vmatpush1.msra.mxu0 0.0
    %4122 = vmatprep.subr.mxu0 0.0
    %4123 = vmatpush1.msra.mxu0 0.0
    %4124 = vmatprep.subr.mxu0 0.0
    %4125 = vmatpush1.msra.mxu0 0.0
    %4126 = vmatprep.subr.mxu0 0.0
    %4127 = vmatpush1.msra.mxu0 0.0
    %4128 = vmatprep.subr.mxu0 0.0
    %4129 = vmatpush1.msra.mxu0 0.0
    %4130 = vmatprep.subr.mxu0 0.0
    %4131 = vmatpush1.msra.mxu0 0.0
    %4132 = vmatprep.subr.mxu0 0.0
    %4133 = vmatpush1.msra.mxu0 0.0
    %4134 = vmatprep.subr.mxu0 0.0
    %4135 = vmatpush1.msra.mxu0 0.0
    %4136 = vmatprep.subr.mxu0 0.0
    %4137 = vmatpush1.msra.mxu0 0.0
    %4138 = vmatprep.subr.mxu0 0.0
    %4139 = vmatpush1.msra.mxu0 0.0
    %4140 = vmatprep.subr.mxu0 0.0
    %4141 = vmatpush1.msra.mxu0 0.0
    %4142 = vmatprep.subr.mxu0 0.0
    %4143 = vmatpush1.msra.mxu0 0.0
    %4144 = vmatprep.subr.mxu0 0.0
    %4145 = vmatpush1.msra.mxu0 0.0
    %4146 = vmatprep.subr.mxu0 0.0
    %4147 = vmatpush1.msra.mxu0 0.0
    %4148 = vmatprep.subr.mxu0 0.0
    %4149 = vmatpush1.msra.mxu0 0.0
    %4150 = vmatprep.subr.mxu0 0.0
    %4151 = vmatpush1.msra.mxu0 0.0
    %4152 = vmatprep.subr.mxu0 0.0
    %4153 = vmatpush1.msra.mxu0 0.0
    %4154 = vmatprep.subr.mxu0 0.0
    %4155 = vmatpush1.msra.mxu0 0.0
    %4156 = vmatprep.subr.mxu0 0.0
    %4157 = vmatpush1.msra.mxu0 0.0
    %4158 = vmatprep.subr.mxu0 0.0
    %4159 = vmatpush1.msra.mxu0 0.0
    %4160 = vmatprep.subr.mxu0 0.0
    %4161 = vmatpush1.msra.mxu0 0.0
    %4162 = vmatprep.subr.mxu0 0.0
    %4163 = vmatpush1.msra.mxu0 0.0
    %4164 = vmatprep.subr.mxu0 0.0
    %4165 = vmatpush1.msra.mxu0 0.0
    %4166 = vmatprep.subr.mxu0 0.0
    %4167 = vmatpush1.msra.mxu0 0.0
    %4168 = vmatprep.subr.mxu0 0.0
    %4169 = vmatpush1.msra.mxu0 0.0
    %4170 = vmatprep.subr.mxu0 0.0
    %4171 = vmatpush1.msra.mxu0 0.0
    %4172 = vmatprep.subr.mxu0 0.0
    %4173 = vmatpush1.msra.mxu0 0.0
    %4174 = vmatprep.subr.mxu0 0.0
    %4175 = vmatpush1.msra.mxu0 0.0
    %4176 = vmatprep.subr.mxu0 0.0
    %4177 = vmatpush1.msra.mxu0 0.0
    %4178 = vmatprep.mubr.f32.mxu0 0.0
    %v4179 = vand.u32 %v3947, 4294901760
    %v4180 = vsub.f32 %v3947, %v4179
    %4181 = vmatmul.mubr.f32.gmra.mrb[0].mxu0 %v4180
    %v4182 = vpop.f32.mrb[0].mxu0
    %v4183 = vadd.f32 %v4105, %v4182
    %v4184 = vpop.f32.mrb[0].mxu0
    %4185 = vmatprep.mubr.f32.mxu0 0.0
    %v4186 = vand.u32 %v3950, 4294901760
    %v4187 = vsub.f32 %v3950, %v4186
    %4188 = vmatmul.mubr.f32.gmra.mrb[0].mxu0 %v4187
    %v4189 = vpop.f32.mrb[0].mxu0
    %v4190 = vadd.f32 %v4111, %v4189
    %v4191 = vpop.f32.mrb[0].mxu0
    %4192 = vdwg.mxu0
    %4193 = vmatprep.subr.mxu0 0.0
    %4194 = vmatpush1.msra.mxu0 1.0
    %4195 = vmatprep.subr.mxu0 0.0
    %4196 = vmatpush1.msra.mxu0 1.0
    %4197 = vmatprep.subr.mxu0 0.0
    %4198 = vmatpush1.msra.mxu0 0.0
    %4199 = vmatprep.subr.mxu0 0.0
    %4200 = vmatpush1.msra.mxu0 0.0
    %4201 = vmatprep.subr.mxu0 0.0
    %4202 = vmatpush1.msra.mxu0 0.0
    %4203 = vmatprep.subr.mxu0 0.0
    %4204 = vmatpush1.msra.mxu0 0.0
    %4205 = vmatprep.subr.mxu0 0.0
    %4206 = vmatpush1.msra.mxu0 0.0
    %4207 = vmatprep.subr.mxu0 0.0
    %4208 = vmatpush1.msra.mxu0 0.0
    %4209 = vmatprep.subr.mxu0 0.0
    %4210 = vmatpush1.msra.mxu0 0.0
    %4211 = vmatprep.subr.mxu0 0.0
    %4212 = vmatpush1.msra.mxu0 0.0
    %4213 = vmatprep.subr.mxu0 0.0
    %4214 = vmatpush1.msra.mxu0 0.0
    %4215 = vmatprep.subr.mxu0 0.0
    %4216 = vmatpush1.msra.mxu0 0.0
    %4217 = vmatprep.subr.mxu0 0.0
    %4218 = vmatpush1.msra.mxu0 0.0
    %4219 = vmatprep.subr.mxu0 0.0
    %4220 = vmatpush1.msra.mxu0 0.0
    %4221 = vmatprep.subr.mxu0 0.0
    %4222 = vmatpush1.msra.mxu0 0.0
    %4223 = vmatprep.subr.mxu0 0.0
    %4224 = vmatpush1.msra.mxu0 0.0
    %4225 = vmatprep.subr.mxu0 0.0
    %4226 = vmatpush1.msra.mxu0 0.0
    %4227 = vmatprep.subr.mxu0 0.0
    %4228 = vmatpush1.msra.mxu0 0.0
    %4229 = vmatprep.subr.mxu0 0.0
    %4230 = vmatpush1.msra.mxu0 0.0
    %4231 = vmatprep.subr.mxu0 0.0
    %4232 = vmatpush1.msra.mxu0 0.0
    %4233 = vmatprep.subr.mxu0 0.0
    %4234 = vmatpush1.msra.mxu0 0.0
    %4235 = vmatprep.subr.mxu0 0.0
    %4236 = vmatpush1.msra.mxu0 0.0
    %4237 = vmatprep.subr.mxu0 0.0
    %4238 = vmatpush1.msra.mxu0 0.0
    %4239 = vmatprep.subr.mxu0 0.0
    %4240 = vmatpush1.msra.mxu0 0.0
    %4241 = vmatprep.subr.mxu0 0.0
    %4242 = vmatpush1.msra.mxu0 0.0
    %4243 = vmatprep.subr.mxu0 0.0
    %4244 = vmatpush1.msra.mxu0 0.0
    %4245 = vmatprep.subr.mxu0 0.0
    %4246 = vmatpush1.msra.mxu0 0.0
    %4247 = vmatprep.subr.mxu0 0.0
    %4248 = vmatpush1.msra.mxu0 0.0
    %4249 = vmatprep.subr.mxu0 0.0
    %4250 = vmatpush1.msra.mxu0 0.0
    %4251 = vmatprep.subr.mxu0 0.0
    %4252 = vmatpush1.msra.mxu0 0.0
    %4253 = vmatprep.subr.mxu0 0.0
    %4254 = vmatpush1.msra.mxu0 0.0
    %4255 = vmatprep.subr.mxu0 0.0
    %4256 = vmatpush1.msra.mxu0 0.0
    %4257 = vmatprep.mubr.f32.mxu0 0.0
    %v4258 = vand.u32 %v3947, 4294901760
    %v4259 = vsub.f32 %v3947, %v4258
    %v4260 = vand.u32 %v4259, 4294901760
    %4261 = vmatmul.mubr.f32.gmra.mrb[0].mxu0 %v4260
    %v4262 = vpop.f32.mrb[0].mxu0
    %v4263 = vadd.f32 %v4183, %v4262
    %v4264 = vpop.f32.mrb[0].mxu0
    %4265 = vmatprep.mubr.f32.mxu0 0.0
    %v4266 = vand.u32 %v3950, 4294901760
    %v4267 = vsub.f32 %v3950, %v4266
    %v4268 = vand.u32 %v4267, 4294901760
    %4269 = vmatmul.mubr.f32.gmra.mrb[0].mxu0 %v4268
    %v4270 = vpop.f32.mrb[0].mxu0
    %v4271 = vadd.f32 %v4190, %v4270
    %v4272 = vpop.f32.mrb[0].mxu0
    %4273 = vdwg.mxu0
    %4274 = vmatprep.subr.mxu0 0.0
    %4275 = vmatpush1.msra.mxu0 0.0
    %4276 = vmatprep.subr.mxu0 0.0
    %4277 = vmatpush1.msra.mxu0 0.0
    %4278 = vmatprep.subr.mxu0 0.0
    %4279 = vmatpush1.msra.mxu0 0.0
    %4280 = vmatprep.subr.mxu0 0.0
    %4281 = vmatpush1.msra.mxu0 0.0
    %4282 = vmatprep.subr.mxu0 0.0
    %4283 = vmatpush1.msra.mxu0 0.0
    %4284 = vmatprep.subr.mxu0 0.0
    %4285 = vmatpush1.msra.mxu0 0.0
    %4286 = vmatprep.subr.mxu0 0.0
    %4287 = vmatpush1.msra.mxu0 0.0
    %4288 = vmatprep.subr.mxu0 0.0
    %4289 = vmatpush1.msra.mxu0 0.0
    %4290 = vmatprep.subr.mxu0 0.0
    %4291 = vmatpush1.msra.mxu0 0.0
    %4292 = vmatprep.subr.mxu0 0.0
    %4293 = vmatpush1.msra.mxu0 0.0
    %4294 = vmatprep.subr.mxu0 0.0
    %4295 = vmatpush1.msra.mxu0 0.0
    %4296 = vmatprep.subr.mxu0 0.0
    %4297 = vmatpush1.msra.mxu0 0.0
    %4298 = vmatprep.subr.mxu0 0.0
    %4299 = vmatpush1.msra.mxu0 0.0
    %4300 = vmatprep.subr.mxu0 0.0
    %4301 = vmatpush1.msra.mxu0 0.0
    %4302 = vmatprep.subr.mxu0 0.0
    %4303 = vmatpush1.msra.mxu0 0.0
    %4304 = vmatprep.subr.mxu0 0.0
    %4305 = vmatpush1.msra.mxu0 0.0
    %4306 = vmatprep.subr.mxu0 0.0
    %4307 = vmatpush1.msra.mxu0 0.0
    %4308 = vmatprep.subr.mxu0 0.0
    %4309 = vmatpush1.msra.mxu0 0.0
    %4310 = vmatprep.subr.mxu0 0.0
    %4311 = vmatpush1.msra.mxu0 0.0
    %4312 = vmatprep.subr.mxu0 0.0
    %4313 = vmatpush1.msra.mxu0 0.0
    %4314 = vmatprep.subr.mxu0 0.0
    %4315 = vmatpush1.msra.mxu0 0.0
    %4316 = vmatprep.subr.mxu0 0.0
    %4317 = vmatpush1.msra.mxu0 0.0
    %4318 = vmatprep.subr.mxu0 0.0
    %4319 = vmatpush1.msra.mxu0 0.0
    %4320 = vmatprep.subr.mxu0 0.0
    %4321 = vmatpush1.msra.mxu0 0.0
    %4322 = vmatprep.subr.mxu0 0.0
    %4323 = vmatpush1.msra.mxu0 0.0
    %4324 = vmatprep.subr.mxu0 0.0
    %4325 = vmatpush1.msra.mxu0 0.0
    %4326 = vmatprep.subr.mxu0 0.0
    %4327 = vmatpush1.msra.mxu0 0.0
    %4328 = vmatprep.subr.mxu0 0.0
    %4329 = vmatpush1.msra.mxu0 0.0
    %4330 = vmatprep.subr.mxu0 0.0
    %4331 = vmatpush1.msra.mxu0 0.0
    %4332 = vmatprep.subr.mxu0 0.0
    %4333 = vmatpush1.msra.mxu0 0.0
    %4334 = vmatprep.subr.mxu0 0.0
    %4335 = vmatpush1.msra.mxu0 0.0
    %4336 = vmatprep.subr.mxu0 0.0
    %4337 = vmatpush1.msra.mxu0 0.0
    %4338 = vmatprep.mubr.f32.mxu0 0.0
    %v4339 = vand.u32 %v3947, 4294901760
    %4340 = vmatmul.mubr.f32.gmra.mrb[0].mxu0 %v4339
    %v4341 = vpop.f32.mrb[0].mxu0
    %v4342 = vadd.f32 %v4263, %v4341
    %v4343 = vpop.f32.mrb[0].mxu0
    %4344 = vmatprep.mubr.f32.mxu0 0.0
    %v4345 = vand.u32 %v3950, 4294901760
    %4346 = vmatmul.mubr.f32.gmra.mrb[0].mxu0 %v4345
    %v4347 = vpop.f32.mrb[0].mxu0
    %v4348 = vadd.f32 %v4271, %v4347
    %v4349 = vpop.f32.mrb[0].mxu0
    %4350 = vdwg.mxu0
    %4351 = vmatprep.subr.mxu0 0.0
    %4352 = vmatpush1.msra.mxu0 1.0
    %4353 = vmatprep.subr.mxu0 0.0
    %4354 = vmatpush1.msra.mxu0 1.0
    %4355 = vmatprep.subr.mxu0 0.0
    %4356 = vmatpush1.msra.mxu0 0.0
    %4357 = vmatprep.subr.mxu0 0.0
    %4358 = vmatpush1.msra.mxu0 0.0
    %4359 = vmatprep.subr.mxu0 0.0
    %4360 = vmatpush1.msra.mxu0 0.0
    %4361 = vmatprep.subr.mxu0 0.0
    %4362 = vmatpush1.msra.mxu0 0.0
    %4363 = vmatprep.subr.mxu0 0.0
    %4364 = vmatpush1.msra.mxu0 0.0
    %4365 = vmatprep.subr.mxu0 0.0
    %4366 = vmatpush1.msra.mxu0 0.0
    %4367 = vmatprep.subr.mxu0 0.0
    %4368 = vmatpush1.msra.mxu0 0.0
    %4369 = vmatprep.subr.mxu0 0.0
    %4370 = vmatpush1.msra.mxu0 0.0
    %4371 = vmatprep.subr.mxu0 0.0
    %4372 = vmatpush1.msra.mxu0 0.0
    %4373 = vmatprep.subr.mxu0 0.0
    %4374 = vmatpush1.msra.mxu0 0.0
    %4375 = vmatprep.subr.mxu0 0.0
    %4376 = vmatpush1.msra.mxu0 0.0
    %4377 = vmatprep.subr.mxu0 0.0
    %4378 = vmatpush1.msra.mxu0 0.0
    %4379 = vmatprep.subr.mxu0 0.0
    %4380 = vmatpush1.msra.mxu0 0.0
    %4381 = vmatprep.subr.mxu0 0.0
    %4382 = vmatpush1.msra.mxu0 0.0
    %4383 = vmatprep.subr.mxu0 0.0
    %4384 = vmatpush1.msra.mxu0 0.0
    %4385 = vmatprep.subr.mxu0 0.0
    %4386 = vmatpush1.msra.mxu0 0.0
    %4387 = vmatprep.subr.mxu0 0.0
    %4388 = vmatpush1.msra.mxu0 0.0
    %4389 = vmatprep.subr.mxu0 0.0
    %4390 = vmatpush1.msra.mxu0 0.0
    %4391 = vmatprep.subr.mxu0 0.0
    %4392 = vmatpush1.msra.mxu0 0.0
    %4393 = vmatprep.subr.mxu0 0.0
    %4394 = vmatpush1.msra.mxu0 0.0
    %4395 = vmatprep.subr.mxu0 0.0
    %4396 = vmatpush1.msra.mxu0 0.0
    %4397 = vmatprep.subr.mxu0 0.0
    %4398 = vmatpush1.msra.mxu0 0.0
    %4399 = vmatprep.subr.mxu0 0.0
    %4400 = vmatpush1.msra.mxu0 0.0
    %4401 = vmatprep.subr.mxu0 0.0
    %4402 = vmatpush1.msra.mxu0 0.0
    %4403 = vmatprep.subr.mxu0 0.0
    %4404 = vmatpush1.msra.mxu0 0.0
    %4405 = vmatprep.subr.mxu0 0.0
    %4406 = vmatpush1.msra.mxu0 0.0
    %4407 = vmatprep.subr.mxu0 0.0
    %4408 = vmatpush1.msra.mxu0 0.0
    %4409 = vmatprep.subr.mxu0 0.0
    %4410 = vmatpush1.msra.mxu0 0.0
    %4411 = vmatprep.subr.mxu0 0.0
    %4412 = vmatpush1.msra.mxu0 0.0
    %4413 = vmatprep.subr.mxu0 0.0
    %4414 = vmatpush1.msra.mxu0 0.0
    %4415 = vmatprep.mubr.f32.mxu0 0.0
    %v4416 = vand.u32 %v3947, 4294901760
    %4417 = vmatmul.mubr.f32.gmra.mrb[0].mxu0 %v4416
    %v4418 = vpop.f32.mrb[0].mxu0
    %v4419 = vadd.f32 %v4342, %v4418
    %v4420 = vpop.f32.mrb[0].mxu0
    %4421 = vmatprep.mubr.f32.mxu0 0.0
    %v4422 = vand.u32 %v3950, 4294901760
    %4423 = vmatmul.mubr.f32.gmra.mrb[0].mxu0 %v4422
    %v4424 = vpop.f32.mrb[0].mxu0
    %v4425 = vadd.f32 %v4348, %v4424
    %v4426 = vpop.f32.mrb[0].mxu0
    %4427 = vdwg.mxu0
    %v4428 = vmul.f32 %v3937, %v3937
    %v4429 = vmul.f32 %v3943, %v3943
    %v4431 = vsel %vm514, %v4428, 0
    %v4434 = vsel %vm514, %v4429, 0
    %4436 = vmatprep.subr.mxu0 0.0
    %4437 = vmatpush1.msra.mxu0 1.0
    %4438 = vmatprep.subr.mxu0 0.0
    %4439 = vmatpush1.msra.mxu0 1.0
    %4440 = vmatprep.subr.mxu0 0.0
    %4441 = vmatpush1.msra.mxu0 0.0
    %4442 = vmatprep.subr.mxu0 0.0
    %4443 = vmatpush1.msra.mxu0 0.0
    %4444 = vmatprep.subr.mxu0 0.0
    %4445 = vmatpush1.msra.mxu0 0.0
    %4446 = vmatprep.subr.mxu0 0.0
    %4447 = vmatpush1.msra.mxu0 0.0
    %4448 = vmatprep.subr.mxu0 0.0
    %4449 = vmatpush1.msra.mxu0 0.0
    %4450 = vmatprep.subr.mxu0 0.0
    %4451 = vmatpush1.msra.mxu0 0.0
    %4452 = vmatprep.subr.mxu0 0.0
    %4453 = vmatpush1.msra.mxu0 0.0
    %4454 = vmatprep.subr.mxu0 0.0
    %4455 = vmatpush1.msra.mxu0 0.0
    %4456 = vmatprep.subr.mxu0 0.0
    %4457 = vmatpush1.msra.mxu0 0.0
    %4458 = vmatprep.subr.mxu0 0.0
    %4459 = vmatpush1.msra.mxu0 0.0
    %4460 = vmatprep.subr.mxu0 0.0
    %4461 = vmatpush1.msra.mxu0 0.0
    %4462 = vmatprep.subr.mxu0 0.0
    %4463 = vmatpush1.msra.mxu0 0.0
    %4464 = vmatprep.subr.mxu0 0.0
    %4465 = vmatpush1.msra.mxu0 0.0
    %4466 = vmatprep.subr.mxu0 0.0
    %4467 = vmatpush1.msra.mxu0 0.0
    %4468 = vmatprep.subr.mxu0 0.0
    %4469 = vmatpush1.msra.mxu0 0.0
    %4470 = vmatprep.subr.mxu0 0.0
    %4471 = vmatpush1.msra.mxu0 0.0
    %4472 = vmatprep.subr.mxu0 0.0
    %4473 = vmatpush1.msra.mxu0 0.0
    %4474 = vmatprep.subr.mxu0 0.0
    %4475 = vmatpush1.msra.mxu0 0.0
    %4476 = vmatprep.subr.mxu0 0.0
    %4477 = vmatpush1.msra.mxu0 0.0
    %4478 = vmatprep.subr.mxu0 0.0
    %4479 = vmatpush1.msra.mxu0 0.0
    %4480 = vmatprep.subr.mxu0 0.0
    %4481 = vmatpush1.msra.mxu0 0.0
    %4482 = vmatprep.subr.mxu0 0.0
    %4483 = vmatpush1.msra.mxu0 0.0
    %4484 = vmatprep.subr.mxu0 0.0
    %4485 = vmatpush1.msra.mxu0 0.0
    %4486 = vmatprep.subr.mxu0 0.0
    %4487 = vmatpush1.msra.mxu0 0.0
    %4488 = vmatprep.subr.mxu0 0.0
    %4489 = vmatpush1.msra.mxu0 0.0
    %4490 = vmatprep.subr.mxu0 0.0
    %4491 = vmatpush1.msra.mxu0 0.0
    %4492 = vmatprep.subr.mxu0 0.0
    %4493 = vmatpush1.msra.mxu0 0.0
    %4494 = vmatprep.subr.mxu0 0.0
    %4495 = vmatpush1.msra.mxu0 0.0
    %4496 = vmatprep.subr.mxu0 0.0
    %4497 = vmatpush1.msra.mxu0 0.0
    %4498 = vmatprep.subr.mxu0 0.0
    %4499 = vmatpush1.msra.mxu0 0.0
    %4500 = vmatprep.mubr.f32.mxu0 0.0
    %v4501 = vand.u32 %v4431, 4294901760
    %v4502 = vsub.f32 %v4431, %v4501
    %v4503 = vand.u32 %v4502, 4294901760
    %v4504 = vsub.f32 %v4502, %v4503
    %v4505 = vand.u32 %v4504, 4294901760
    %4506 = vmatmul.mubr.f32.gmra.mrb[0].mxu0 %v4505
    %v4507 = vpop.f32.mrb[0].mxu0
    %v4508 = vadd.f32 0.0, %v4507
    %v4509 = vpop.f32.mrb[0].mxu0
    %4510 = vmatprep.mubr.f32.mxu0 0.0
    %v4511 = vand.u32 %v4434, 4294901760
    %v4512 = vsub.f32 %v4434, %v4511
    %v4513 = vand.u32 %v4512, 4294901760
    %v4514 = vsub.f32 %v4512, %v4513
    %v4515 = vand.u32 %v4514, 4294901760
    %4516 = vmatmul.mubr.f32.gmra.mrb[0].mxu0 %v4515
    %v4517 = vpop.f32.mrb[0].mxu0
    %v4518 = vadd.f32 0.0, %v4517
    %v4519 = vpop.f32.mrb[0].mxu0
    %4520 = vdwg.mxu0
    %4521 = vmatprep.subr.mxu0 0.0
    %4522 = vmatpush1.msra.mxu0 0.0
    %4523 = vmatprep.subr.mxu0 0.0
    %4524 = vmatpush1.msra.mxu0 0.0
    %4525 = vmatprep.subr.mxu0 0.0
    %4526 = vmatpush1.msra.mxu0 0.0
    %4527 = vmatprep.subr.mxu0 0.0
    %4528 = vmatpush1.msra.mxu0 0.0
    %4529 = vmatprep.subr.mxu0 0.0
    %4530 = vmatpush1.msra.mxu0 0.0
    %4531 = vmatprep.subr.mxu0 0.0
    %4532 = vmatpush1.msra.mxu0 0.0
    %4533 = vmatprep.subr.mxu0 0.0
    %4534 = vmatpush1.msra.mxu0 0.0
    %4535 = vmatprep.subr.mxu0 0.0
    %4536 = vmatpush1.msra.mxu0 0.0
    %4537 = vmatprep.subr.mxu0 0.0
    %4538 = vmatpush1.msra.mxu0 0.0
    %4539 = vmatprep.subr.mxu0 0.0
    %4540 = vmatpush1.msra.mxu0 0.0
    %4541 = vmatprep.subr.mxu0 0.0
    %4542 = vmatpush1.msra.mxu0 0.0
    %4543 = vmatprep.subr.mxu0 0.0
    %4544 = vmatpush1.msra.mxu0 0.0
    %4545 = vmatprep.subr.mxu0 0.0
    %4546 = vmatpush1.msra.mxu0 0.0
    %4547 = vmatprep.subr.mxu0 0.0
    %4548 = vmatpush1.msra.mxu0 0.0
    %4549 = vmatprep.subr.mxu0 0.0
    %4550 = vmatpush1.msra.mxu0 0.0
    %4551 = vmatprep.subr.mxu0 0.0
    %4552 = vmatpush1.msra.mxu0 0.0
    %4553 = vmatprep.subr.mxu0 0.0
    %4554 = vmatpush1.msra.mxu0 0.0
    %4555 = vmatprep.subr.mxu0 0.0
    %4556 = vmatpush1.msra.mxu0 0.0
    %4557 = vmatprep.subr.mxu0 0.0
    %4558 = vmatpush1.msra.mxu0 0.0
    %4559 = vmatprep.subr.mxu0 0.0
    %4560 = vmatpush1.msra.mxu0 0.0
    %4561 = vmatprep.subr.mxu0 0.0
    %4562 = vmatpush1.msra.mxu0 0.0
    %4563 = vmatprep.subr.mxu0 0.0
    %4564 = vmatpush1.msra.mxu0 0.0
    %4565 = vmatprep.subr.mxu0 0.0
    %4566 = vmatpush1.msra.mxu0 0.0
    %4567 = vmatprep.subr.mxu0 0.0
    %4568 = vmatpush1.msra.mxu0 0.0
    %4569 = vmatprep.subr.mxu0 0.0
    %4570 = vmatpush1.msra.mxu0 0.0
    %4571 = vmatprep.subr.mxu0 0.0
    %4572 = vmatpush1.msra.mxu0 0.0
    %4573 = vmatprep.subr.mxu0 0.0
    %4574 = vmatpush1.msra.mxu0 0.0
    %4575 = vmatprep.subr.mxu0 0.0
    %4576 = vmatpush1.msra.mxu0 0.0
    %4577 = vmatprep.subr.mxu0 0.0
    %4578 = vmatpush1.msra.mxu0 0.0
    %4579 = vmatprep.subr.mxu0 0.0
    %4580 = vmatpush1.msra.mxu0 0.0
    %4581 = vmatprep.subr.mxu0 0.0
    %4582 = vmatpush1.msra.mxu0 0.0
    %4583 = vmatprep.subr.mxu0 0.0
    %4584 = vmatpush1.msra.mxu0 0.0
    %4585 = vmatprep.mubr.f32.mxu0 0.0
    %v4586 = vand.u32 %v4431, 4294901760
    %4587 = vmatmul.mubr.f32.gmra.mrb[0].mxu0 %v4586
    %v4588 = vpop.f32.mrb[0].mxu0
    %v4589 = vadd.f32 %v4508, %v4588
    %v4590 = vpop.f32.mrb[0].mxu0
    %4591 = vmatprep.mubr.f32.mxu0 0.0
    %v4592 = vand.u32 %v4434, 4294901760
    %4593 = vmatmul.mubr.f32.gmra.mrb[0].mxu0 %v4592
    %v4594 = vpop.f32.mrb[0].mxu0
    %v4595 = vadd.f32 %v4518, %v4594
    %v4596 = vpop.f32.mrb[0].mxu0
    %4597 = vdwg.mxu0
    %4598 = vmatprep.subr.mxu0 0.0
    %4599 = vmatpush1.msra.mxu0 0.0
    %4600 = vmatprep.subr.mxu0 0.0
    %4601 = vmatpush1.msra.mxu0 0.0
    %4602 = vmatprep.subr.mxu0 0.0
    %4603 = vmatpush1.msra.mxu0 0.0
    %4604 = vmatprep.subr.mxu0 0.0
    %4605 = vmatpush1.msra.mxu0 0.0
    %4606 = vmatprep.subr.mxu0 0.0
    %4607 = vmatpush1.msra.mxu0 0.0
    %4608 = vmatprep.subr.mxu0 0.0
    %4609 = vmatpush1.msra.mxu0 0.0
    %4610 = vmatprep.subr.mxu0 0.0
    %4611 = vmatpush1.msra.mxu0 0.0
    %4612 = vmatprep.subr.mxu0 0.0
    %4613 = vmatpush1.msra.mxu0 0.0
    %4614 = vmatprep.subr.mxu0 0.0
    %4615 = vmatpush1.msra.mxu0 0.0
    %4616 = vmatprep.subr.mxu0 0.0
    %4617 = vmatpush1.msra.mxu0 0.0
    %4618 = vmatprep.subr.mxu0 0.0
    %4619 = vmatpush1.msra.mxu0 0.0
    %4620 = vmatprep.subr.mxu0 0.0
    %4621 = vmatpush1.msra.mxu0 0.0
    %4622 = vmatprep.subr.mxu0 0.0
    %4623 = vmatpush1.msra.mxu0 0.0
    %4624 = vmatprep.subr.mxu0 0.0
    %4625 = vmatpush1.msra.mxu0 0.0
    %4626 = vmatprep.subr.mxu0 0.0
    %4627 = vmatpush1.msra.mxu0 0.0
    %4628 = vmatprep.subr.mxu0 0.0
    %4629 = vmatpush1.msra.mxu0 0.0
    %4630 = vmatprep.subr.mxu0 0.0
    %4631 = vmatpush1.msra.mxu0 0.0
    %4632 = vmatprep.subr.mxu0 0.0
    %4633 = vmatpush1.msra.mxu0 0.0
    %4634 = vmatprep.subr.mxu0 0.0
    %4635 = vmatpush1.msra.mxu0 0.0
    %4636 = vmatprep.subr.mxu0 0.0
    %4637 = vmatpush1.msra.mxu0 0.0
    %4638 = vmatprep.subr.mxu0 0.0
    %4639 = vmatpush1.msra.mxu0 0.0
    %4640 = vmatprep.subr.mxu0 0.0
    %4641 = vmatpush1.msra.mxu0 0.0
    %4642 = vmatprep.subr.mxu0 0.0
    %4643 = vmatpush1.msra.mxu0 0.0
    %4644 = vmatprep.subr.mxu0 0.0
    %4645 = vmatpush1.msra.mxu0 0.0
    %4646 = vmatprep.subr.mxu0 0.0
    %4647 = vmatpush1.msra.mxu0 0.0
    %4648 = vmatprep.subr.mxu0 0.0
    %4649 = vmatpush1.msra.mxu0 0.0
    %4650 = vmatprep.subr.mxu0 0.0
    %4651 = vmatpush1.msra.mxu0 0.0
    %4652 = vmatprep.subr.mxu0 0.0
    %4653 = vmatpush1.msra.mxu0 0.0
    %4654 = vmatprep.subr.mxu0 0.0
    %4655 = vmatpush1.msra.mxu0 0.0
    %4656 = vmatprep.subr.mxu0 0.0
    %4657 = vmatpush1.msra.mxu0 0.0
    %4658 = vmatprep.subr.mxu0 0.0
    %4659 = vmatpush1.msra.mxu0 0.0
    %4660 = vmatprep.subr.mxu0 0.0
    %4661 = vmatpush1.msra.mxu0 0.0
    %4662 = vmatprep.mubr.f32.mxu0 0.0
    %v4663 = vand.u32 %v4431, 4294901760
    %v4664 = vsub.f32 %v4431, %v4663
    %4665 = vmatmul.mubr.f32.gmra.mrb[0].mxu0 %v4664
    %v4666 = vpop.f32.mrb[0].mxu0
    %v4667 = vadd.f32 %v4589, %v4666
    %v4668 = vpop.f32.mrb[0].mxu0
    %4669 = vmatprep.mubr.f32.mxu0 0.0
    %v4670 = vand.u32 %v4434, 4294901760
    %v4671 = vsub.f32 %v4434, %v4670
    %4672 = vmatmul.mubr.f32.gmra.mrb[0].mxu0 %v4671
    %v4673 = vpop.f32.mrb[0].mxu0
    %v4674 = vadd.f32 %v4595, %v4673
    %v4675 = vpop.f32.mrb[0].mxu0
    %4676 = vdwg.mxu0
    %4677 = vmatprep.subr.mxu0 0.0
    %4678 = vmatpush1.msra.mxu0 1.0
    %4679 = vmatprep.subr.mxu0 0.0
    %4680 = vmatpush1.msra.mxu0 1.0
    %4681 = vmatprep.subr.mxu0 0.0
    %4682 = vmatpush1.msra.mxu0 0.0
    %4683 = vmatprep.subr.mxu0 0.0
    %4684 = vmatpush1.msra.mxu0 0.0
    %4685 = vmatprep.subr.mxu0 0.0
    %4686 = vmatpush1.msra.mxu0 0.0
    %4687 = vmatprep.subr.mxu0 0.0
    %4688 = vmatpush1.msra.mxu0 0.0
    %4689 = vmatprep.subr.mxu0 0.0
    %4690 = vmatpush1.msra.mxu0 0.0
    %4691 = vmatprep.subr.mxu0 0.0
    %4692 = vmatpush1.msra.mxu0 0.0
    %4693 = vmatprep.subr.mxu0 0.0
    %4694 = vmatpush1.msra.mxu0 0.0
    %4695 = vmatprep.subr.mxu0 0.0
    %4696 = vmatpush1.msra.mxu0 0.0
    %4697 = vmatprep.subr.mxu0 0.0
    %4698 = vmatpush1.msra.mxu0 0.0
    %4699 = vmatprep.subr.mxu0 0.0
    %4700 = vmatpush1.msra.mxu0 0.0
    %4701 = vmatprep.subr.mxu0 0.0
    %4702 = vmatpush1.msra.mxu0 0.0
    %4703 = vmatprep.subr.mxu0 0.0
    %4704 = vmatpush1.msra.mxu0 0.0
    %4705 = vmatprep.subr.mxu0 0.0
    %4706 = vmatpush1.msra.mxu0 0.0
    %4707 = vmatprep.subr.mxu0 0.0
    %4708 = vmatpush1.msra.mxu0 0.0
    %4709 = vmatprep.subr.mxu0 0.0
    %4710 = vmatpush1.msra.mxu0 0.0
    %4711 = vmatprep.subr.mxu0 0.0
    %4712 = vmatpush1.msra.mxu0 0.0
    %4713 = vmatprep.subr.mxu0 0.0
    %4714 = vmatpush1.msra.mxu0 0.0
    %4715 = vmatprep.subr.mxu0 0.0
    %4716 = vmatpush1.msra.mxu0 0.0
    %4717 = vmatprep.subr.mxu0 0.0
    %4718 = vmatpush1.msra.mxu0 0.0
    %4719 = vmatprep.subr.mxu0 0.0
    %4720 = vmatpush1.msra.mxu0 0.0
    %4721 = vmatprep.subr.mxu0 0.0
    %4722 = vmatpush1.msra.mxu0 0.0
    %4723 = vmatprep.subr.mxu0 0.0
    %4724 = vmatpush1.msra.mxu0 0.0
    %4725 = vmatprep.subr.mxu0 0.0
    %4726 = vmatpush1.msra.mxu0 0.0
    %4727 = vmatprep.subr.mxu0 0.0
    %4728 = vmatpush1.msra.mxu0 0.0
    %4729 = vmatprep.subr.mxu0 0.0
    %4730 = vmatpush1.msra.mxu0 0.0
    %4731 = vmatprep.subr.mxu0 0.0
    %4732 = vmatpush1.msra.mxu0 0.0
    %4733 = vmatprep.subr.mxu0 0.0
    %4734 = vmatpush1.msra.mxu0 0.0
    %4735 = vmatprep.subr.mxu0 0.0
    %4736 = vmatpush1.msra.mxu0 0.0
    %4737 = vmatprep.subr.mxu0 0.0
    %4738 = vmatpush1.msra.mxu0 0.0
    %4739 = vmatprep.subr.mxu0 0.0
    %4740 = vmatpush1.msra.mxu0 0.0
    %4741 = vmatprep.mubr.f32.mxu0 0.0
    %v4742 = vand.u32 %v4431, 4294901760
    %v4743 = vsub.f32 %v4431, %v4742
    %v4744 = vand.u32 %v4743, 4294901760
    %4745 = vmatmul.mubr.f32.gmra.mrb[0].mxu0 %v4744
    %v4746 = vpop.f32.mrb[0].mxu0
    %v4747 = vadd.f32 %v4667, %v4746
    %v4748 = vpop.f32.mrb[0].mxu0
    %4749 = vmatprep.mubr.f32.mxu0 0.0
    %v4750 = vand.u32 %v4434, 4294901760
    %v4751 = vsub.f32 %v4434, %v4750
    %v4752 = vand.u32 %v4751, 4294901760
    %4753 = vmatmul.mubr.f32.gmra.mrb[0].mxu0 %v4752
    %v4754 = vpop.f32.mrb[0].mxu0
    %v4755 = vadd.f32 %v4674, %v4754
    %v4756 = vpop.f32.mrb[0].mxu0
    %4757 = vdwg.mxu0
    %4758 = vmatprep.subr.mxu0 0.0
    %4759 = vmatpush1.msra.mxu0 0.0
    %4760 = vmatprep.subr.mxu0 0.0
    %4761 = vmatpush1.msra.mxu0 0.0
    %4762 = vmatprep.subr.mxu0 0.0
    %4763 = vmatpush1.msra.mxu0 0.0
    %4764 = vmatprep.subr.mxu0 0.0
    %4765 = vmatpush1.msra.mxu0 0.0
    %4766 = vmatprep.subr.mxu0 0.0
    %4767 = vmatpush1.msra.mxu0 0.0
    %4768 = vmatprep.subr.mxu0 0.0
    %4769 = vmatpush1.msra.mxu0 0.0
    %4770 = vmatprep.subr.mxu0 0.0
    %4771 = vmatpush1.msra.mxu0 0.0
    %4772 = vmatprep.subr.mxu0 0.0
    %4773 = vmatpush1.msra.mxu0 0.0
    %4774 = vmatprep.subr.mxu0 0.0
    %4775 = vmatpush1.msra.mxu0 0.0
    %4776 = vmatprep.subr.mxu0 0.0
    %4777 = vmatpush1.msra.mxu0 0.0
    %4778 = vmatprep.subr.mxu0 0.0
    %4779 = vmatpush1.msra.mxu0 0.0
    %4780 = vmatprep.subr.mxu0 0.0
    %4781 = vmatpush1.msra.mxu0 0.0
    %4782 = vmatprep.subr.mxu0 0.0
    %4783 = vmatpush1.msra.mxu0 0.0
    %4784 = vmatprep.subr.mxu0 0.0
    %4785 = vmatpush1.msra.mxu0 0.0
    %4786 = vmatprep.subr.mxu0 0.0
    %4787 = vmatpush1.msra.mxu0 0.0
    %4788 = vmatprep.subr.mxu0 0.0
    %4789 = vmatpush1.msra.mxu0 0.0
    %4790 = vmatprep.subr.mxu0 0.0
    %4791 = vmatpush1.msra.mxu0 0.0
    %4792 = vmatprep.subr.mxu0 0.0
    %4793 = vmatpush1.msra.mxu0 0.0
    %4794 = vmatprep.subr.mxu0 0.0
    %4795 = vmatpush1.msra.mxu0 0.0
    %4796 = vmatprep.subr.mxu0 0.0
    %4797 = vmatpush1.msra.mxu0 0.0
    %4798 = vmatprep.subr.mxu0 0.0
    %4799 = vmatpush1.msra.mxu0 0.0
    %4800 = vmatprep.subr.mxu0 0.0
    %4801 = vmatpush1.msra.mxu0 0.0
    %4802 = vmatprep.subr.mxu0 0.0
    %4803 = vmatpush1.msra.mxu0 0.0
    %4804 = vmatprep.subr.mxu0 0.0
    %4805 = vmatpush1.msra.mxu0 0.0
    %4806 = vmatprep.subr.mxu0 0.0
    %4807 = vmatpush1.msra.mxu0 0.0
    %4808 = vmatprep.subr.mxu0 0.0
    %4809 = vmatpush1.msra.mxu0 0.0
    %4810 = vmatprep.subr.mxu0 0.0
    %4811 = vmatpush1.msra.mxu0 0.0
    %4812 = vmatprep.subr.mxu0 0.0
    %4813 = vmatpush1.msra.mxu0 0.0
    %4814 = vmatprep.subr.mxu0 0.0
    %4815 = vmatpush1.msra.mxu0 0.0
    %4816 = vmatprep.subr.mxu0 0.0
    %4817 = vmatpush1.msra.mxu0 0.0
    %4818 = vmatprep.subr.mxu0 0.0
    %4819 = vmatpush1.msra.mxu0 0.0
    %4820 = vmatprep.subr.mxu0 0.0
    %4821 = vmatpush1.msra.mxu0 0.0
    %4822 = vmatprep.mubr.f32.mxu0 0.0
    %v4823 = vand.u32 %v4431, 4294901760
    %4824 = vmatmul.mubr.f32.gmra.mrb[0].mxu0 %v4823
    %v4825 = vpop.f32.mrb[0].mxu0
    %v4826 = vadd.f32 %v4747, %v4825
    %v4827 = vpop.f32.mrb[0].mxu0
    %4828 = vmatprep.mubr.f32.mxu0 0.0
    %v4829 = vand.u32 %v4434, 4294901760
    %4830 = vmatmul.mubr.f32.gmra.mrb[0].mxu0 %v4829
    %v4831 = vpop.f32.mrb[0].mxu0
    %v4832 = vadd.f32 %v4755, %v4831
    %v4833 = vpop.f32.mrb[0].mxu0
    %4834 = vdwg.mxu0
    %4835 = vmatprep.subr.mxu0 0.0
    %4836 = vmatpush1.msra.mxu0 1.0
    %4837 = vmatprep.subr.mxu0 0.0
    %4838 = vmatpush1.msra.mxu0 1.0
    %4839 = vmatprep.subr.mxu0 0.0
    %4840 = vmatpush1.msra.mxu0 0.0
    %4841 = vmatprep.subr.mxu0 0.0
    %4842 = vmatpush1.msra.mxu0 0.0
    %4843 = vmatprep.subr.mxu0 0.0
    %4844 = vmatpush1.msra.mxu0 0.0
    %4845 = vmatprep.subr.mxu0 0.0
    %4846 = vmatpush1.msra.mxu0 0.0
    %4847 = vmatprep.subr.mxu0 0.0
    %4848 = vmatpush1.msra.mxu0 0.0
    %4849 = vmatprep.subr.mxu0 0.0
    %4850 = vmatpush1.msra.mxu0 0.0
    %4851 = vmatprep.subr.mxu0 0.0
    %4852 = vmatpush1.msra.mxu0 0.0
    %4853 = vmatprep.subr.mxu0 0.0
    %4854 = vmatpush1.msra.mxu0 0.0
    %4855 = vmatprep.subr.mxu0 0.0
    %4856 = vmatpush1.msra.mxu0 0.0
    %4857 = vmatprep.subr.mxu0 0.0
    %4858 = vmatpush1.msra.mxu0 0.0
    %4859 = vmatprep.subr.mxu0 0.0
    %4860 = vmatpush1.msra.mxu0 0.0
    %4861 = vmatprep.subr.mxu0 0.0
    %4862 = vmatpush1.msra.mxu0 0.0
    %4863 = vmatprep.subr.mxu0 0.0
    %4864 = vmatpush1.msra.mxu0 0.0
    %4865 = vmatprep.subr.mxu0 0.0
    %4866 = vmatpush1.msra.mxu0 0.0
    %4867 = vmatprep.subr.mxu0 0.0
    %4868 = vmatpush1.msra.mxu0 0.0
    %4869 = vmatprep.subr.mxu0 0.0
    %4870 = vmatpush1.msra.mxu0 0.0
    %4871 = vmatprep.subr.mxu0 0.0
    %4872 = vmatpush1.msra.mxu0 0.0
    %4873 = vmatprep.subr.mxu0 0.0
    %4874 = vmatpush1.msra.mxu0 0.0
    %4875 = vmatprep.subr.mxu0 0.0
    %4876 = vmatpush1.msra.mxu0 0.0
    %4877 = vmatprep.subr.mxu0 0.0
    %4878 = vmatpush1.msra.mxu0 0.0
    %4879 = vmatprep.subr.mxu0 0.0
    %4880 = vmatpush1.msra.mxu0 0.0
    %4881 = vmatprep.subr.mxu0 0.0
    %4882 = vmatpush1.msra.mxu0 0.0
    %4883 = vmatprep.subr.mxu0 0.0
    %4884 = vmatpush1.msra.mxu0 0.0
    %4885 = vmatprep.subr.mxu0 0.0
    %4886 = vmatpush1.msra.mxu0 0.0
    %4887 = vmatprep.subr.mxu0 0.0
    %4888 = vmatpush1.msra.mxu0 0.0
    %4889 = vmatprep.subr.mxu0 0.0
    %4890 = vmatpush1.msra.mxu0 0.0
    %4891 = vmatprep.subr.mxu0 0.0
    %4892 = vmatpush1.msra.mxu0 0.0
    %4893 = vmatprep.subr.mxu0 0.0
    %4894 = vmatpush1.msra.mxu0 0.0
    %4895 = vmatprep.subr.mxu0 0.0
    %4896 = vmatpush1.msra.mxu0 0.0
    %4897 = vmatprep.subr.mxu0 0.0
    %4898 = vmatpush1.msra.mxu0 0.0
    %4899 = vmatprep.mubr.f32.mxu0 0.0
    %v4900 = vand.u32 %v4431, 4294901760
    %4901 = vmatmul.mubr.f32.gmra.mrb[0].mxu0 %v4900
    %v4902 = vpop.f32.mrb[0].mxu0
    %v4903 = vadd.f32 %v4826, %v4902
    %v4904 = vpop.f32.mrb[0].mxu0
    %4905 = vmatprep.mubr.f32.mxu0 0.0
    %v4906 = vand.u32 %v4434, 4294901760
    %4907 = vmatmul.mubr.f32.gmra.mrb[0].mxu0 %v4906
    %v4908 = vpop.f32.mrb[0].mxu0
    %v4909 = vadd.f32 %v4832, %v4908
    %v4910 = vpop.f32.mrb[0].mxu0
    %4911 = vdwg.mxu0
    %v4912 = vmul.f32 %v4419, 0.0625
    %v4913 = vmul.f32 %v4425, 0.0625
    %v4914 = vmul.f32 %v4903, 0.0625
    %v4915 = vmul.f32 %v4909, 0.0625
    %v4916 = vmul.f32 %v4912, %v4912
    %v4917 = vmul.f32 %v4913, %v4913
    %v4918 = vsub.f32 %v4914, %v4916
    %v4919 = vsub.f32 %v4915, %v4917
    %v4920 = vmax.f32 %v4918, 0.0
    %v4921 = vmax.f32 %v4919, 0.0
    %v4922 = vld [vmem:[%s2 + $0x30] sm:$0xff]
    %v4923 = vld [vmem:[%s2 + $0x38] sm:$0x7f]
    %v4924 = vadd.f32 %v4920, 1e-05
    %v4925 = vadd.f32 %v4921, 1e-05
    %v4926 = vrsqrt.pop %v4924
    %v4927 = vrsqrt.pop %v4925
    %v4928 = vmul.f32 %v4922, %v4926
    %v4929 = vmul.f32 %v4923, %v4927
    %v4930 = vmul.f32 %v4912, %v4928
    %v4931 = vmul.f32 %v4913, %v4929
    %4934 = vrot.lane.b32.xlu0 %v4930, 1
    %v4935 = vpop.permute.xlu0 %4934
    %4936 = vrot.lane.b32.xlu0 %v4931, 1
    %v4937 = vpop.permute.xlu0 %4936
    %v4940 = vsub.f32 %v4922, %v4935
    %v4941 = vsub.f32 %v4923, %v4937
    %4943 = vset.pattern.permute.xlu0 0
    %4944 = vperm.xlu0 %4943, %v4928
    %v4945 = vpop.permute.xlu0 %4944
    %4948 = vset.pattern.permute.xlu0 0
    %4949 = vperm.xlu0 %4948, %v4929
    %v4950 = vpop.permute.xlu0 %4949
    %v4952 = vmul.f32 %v3937, %v4945
    %v4953 = vmul.f32 %v3943, %v4950
    %4955 = vset.pattern.permute.xlu0 1
    %4956 = vperm.xlu0 %4955, %v4940
    %v4957 = vpop.permute.xlu0 %4956
    %4960 = vset.pattern.permute.xlu0 1
    %4961 = vperm.xlu0 %4960, %v4941
    %v4962 = vpop.permute.xlu0 %4961
    %v4964 = vadd.f32 %v4952, %v4957
    %v4965 = vadd.f32 %v4953, %v4962
    %v4966 = vmax.f32 %v4964, 0.0
    %v4967 = vmax.f32 %v4965, 0.0
    %v4968 = vld [vmem:[%s1 + $0x40] sm:$0xff]
    %v4969 = vld [vmem:[%s1 + $0x48] sm:$0x1f]
    %vm4970 = vcmask 121856
    %v4972 = vsel %vm4970, %v4968, 0
    %v4975 = vsel %vm4970, %v4969, 0
    %vm4977 = vcmask 1046528
    %v4979 = vsel %vm4977, %v4967, 0
    %4981 = vmatprep.subr.mxu0 0.0
    %v4982 = vand.u32 %v4966, 4294901760
    %4983 = vmatpush1.msra.mxu0 %v4982
    %4984 = vmatprep.subr.mxu0 0.0
    %v4985 = vand.u32 %v4979, 4294901760
    %4986 = vmatpush1.msra.mxu0 %v4985
    %4987 = vmatprep.subr.mxu0 0.0
    %4988 = vmatpush1.msra.mxu0 0.0
    %4989 = vmatprep.subr.mxu0 0.0
    %4990 = vmatpush1.msra.mxu0 0.0
    %4991 = vmatprep.subr.mxu0 0.0
    %4992 = vmatpush1.msra.mxu0 0.0
    %4993 = vmatprep.subr.mxu0 0.0
    %4994 = vmatpush1.msra.mxu0 0.0
    %4995 = vmatprep.subr.mxu0 0.0
    %4996 = vmatpush1.msra.mxu0 0.0
    %4997 = vmatprep.subr.mxu0 0.0
    %4998 = vmatpush1.msra.mxu0 0.0
    %4999 = vmatprep.subr.mxu0 0.0
    %5000 = vmatpush1.msra.mxu0 0.0
    %5001 = vmatprep.subr.mxu0 0.0
    %5002 = vmatpush1.msra.mxu0 0.0
    %5003 = vmatprep.subr.mxu0 0.0
    %5004 = vmatpush1.msra.mxu0 0.0
    %5005 = vmatprep.subr.mxu0 0.0
    %5006 = vmatpush1.msra.mxu0 0.0
    %5007 = vmatprep.subr.mxu0 0.0
    %5008 = vmatpush1.msra.mxu0 0.0
    %5009 = vmatprep.subr.mxu0 0.0
    %5010 = vmatpush1.msra.mxu0 0.0
    %5011 = vmatprep.subr.mxu0 0.0
    %5012 = vmatpush1.msra.mxu0 0.0
    %5013 = vmatprep.subr.mxu0 0.0
    %5014 = vmatpush1.msra.mxu0 0.0
    %5015 = vmatprep.subr.mxu0 0.0
    %5016 = vmatpush1.msra.mxu0 0.0
    %5017 = vmatprep.subr.mxu0 0.0
    %5018 = vmatpush1.msra.mxu0 0.0
    %5019 = vmatprep.subr.mxu0 0.0
    %5020 = vmatpush1.msra.mxu0 0.0
    %5021 = vmatprep.subr.mxu0 0.0
    %5022 = vmatpush1.msra.mxu0 0.0
    %5023 = vmatprep.subr.mxu0 0.0
    %5024 = vmatpush1.msra.mxu0 0.0
    %5025 = vmatprep.subr.mxu0 0.0
    %5026 = vmatpush1.msra.mxu0 0.0
    %5027 = vmatprep.subr.mxu0 0.0
    %5028 = vmatpush1.msra.mxu0 0.0
    %5029 = vmatprep.subr.mxu0 0.0
    %5030 = vmatpush1.msra.mxu0 0.0
    %5031 = vmatprep.subr.mxu0 0.0
    %5032 = vmatpush1.msra.mxu0 0.0
    %5033 = vmatprep.subr.mxu0 0.0
    %5034 = vmatpush1.msra.mxu0 0.0
    %5035 = vmatprep.subr.mxu0 0.0
    %5036 = vmatpush1.msra.mxu0 0.0
    %5037 = vmatprep.subr.mxu0 0.0
    %5038 = vmatpush1.msra.mxu0 0.0
    %5039 = vmatprep.subr.mxu0 0.0
    %5040 = vmatpush1.msra.mxu0 0.0
    %5041 = vmatprep.subr.mxu0 0.0
    %5042 = vmatpush1.msra.mxu0 0.0
    %5043 = vmatprep.subr.mxu0 0.0
    %5044 = vmatpush1.msra.mxu0 0.0
    %5045 = vmatprep.subr.mxu0 0.0
    %5046 = vmatpush1.msra.mxu0 0.0
    %5047 = vmatprep.mubr.f32.mxu0 0.0
    %v5048 = vand.u32 %v4972, 4294901760
    %v5049 = vsub.f32 %v4972, %v5048
    %v5050 = vand.u32 %v5049, 4294901760
    %v5051 = vsub.f32 %v5049, %v5050
    %v5052 = vand.u32 %v5051, 4294901760
    %5053 = vmatmul.mubr.f32.gmra.mrb[0].mxu0 %v5052
    %v5054 = vpop.f32.mrb[0].mxu0
    %v5055 = vadd.f32 0.0, %v5054
    %v5056 = vpop.f32.mrb[0].mxu0
    %5057 = vmatprep.mubr.f32.mxu0 0.0
    %v5058 = vand.u32 %v4975, 4294901760
    %v5059 = vsub.f32 %v4975, %v5058
    %v5060 = vand.u32 %v5059, 4294901760
    %v5061 = vsub.f32 %v5059, %v5060
    %v5062 = vand.u32 %v5061, 4294901760
    %5063 = vmatmul.mubr.f32.gmra.mrb[0].mxu0 %v5062
    %v5064 = vpop.f32.mrb[0].mxu0
    %v5065 = vadd.f32 0.0, %v5064
    %v5066 = vpop.f32.mrb[0].mxu0
    %5067 = vdwg.mxu0
    %5068 = vmatprep.subr.mxu0 0.0
    %v5069 = vand.u32 %v4966, 4294901760
    %v5070 = vsub.f32 %v4966, %v5069
    %v5071 = vand.u32 %v5070, 4294901760
    %v5072 = vsub.f32 %v5070, %v5071
    %v5073 = vand.u32 %v5072, 4294901760
    %5074 = vmatpush1.msra.mxu0 %v5073
    %5075 = vmatprep.subr.mxu0 0.0
    %v5076 = vand.u32 %v4979, 4294901760
    %v5077 = vsub.f32 %v4979, %v5076
    %v5078 = vand.u32 %v5077, 4294901760
    %v5079 = vsub.f32 %v5077, %v5078
    %v5080 = vand.u32 %v5079, 4294901760
    %5081 = vmatpush1.msra.mxu0 %v5080
    %5082 = vmatprep.subr.mxu0 0.0
    %5083 = vmatpush1.msra.mxu0 0.0
    %5084 = vmatprep.subr.mxu0 0.0
    %5085 = vmatpush1.msra.mxu0 0.0
    %5086 = vmatprep.subr.mxu0 0.0
    %5087 = vmatpush1.msra.mxu0 0.0
    %5088 = vmatprep.subr.mxu0 0.0
    %5089 = vmatpush1.msra.mxu0 0.0
    %5090 = vmatprep.subr.mxu0 0.0
    %5091 = vmatpush1.msra.mxu0 0.0
    %5092 = vmatprep.subr.mxu0 0.0
    %5093 = vmatpush1.msra.mxu0 0.0
    %5094 = vmatprep.subr.mxu0 0.0
    %5095 = vmatpush1.msra.mxu0 0.0
    %5096 = vmatprep.subr.mxu0 0.0
    %5097 = vmatpush1.msra.mxu0 0.0
    %5098 = vmatprep.subr.mxu0 0.0
    %5099 = vmatpush1.msra.mxu0 0.0
    %5100 = vmatprep.subr.mxu0 0.0
    %5101 = vmatpush1.msra.mxu0 0.0
    %5102 = vmatprep.subr.mxu0 0.0
    %5103 = vmatpush1.msra.mxu0 0.0
    %5104 = vmatprep.subr.mxu0 0.0
    %5105 = vmatpush1.msra.mxu0 0.0
    %5106 = vmatprep.subr.mxu0 0.0
    %5107 = vmatpush1.msra.mxu0 0.0
    %5108 = vmatprep.subr.mxu0 0.0
    %5109 = vmatpush1.msra.mxu0 0.0
    %5110 = vmatprep.subr.mxu0 0.0
    %5111 = vmatpush1.msra.mxu0 0.0
    %5112 = vmatprep.subr.mxu0 0.0
    %5113 = vmatpush1.msra.mxu0 0.0
    %5114 = vmatprep.subr.mxu0 0.0
    %5115 = vmatpush1.msra.mxu0 0.0
    %5116 = vmatprep.subr.mxu0 0.0
    %5117 = vmatpush1.msra.mxu0 0.0
    %5118 = vmatprep.subr.mxu0 0.0
    %5119 = vmatpush1.msra.mxu0 0.0
    %5120 = vmatprep.subr.mxu0 0.0
    %5121 = vmatpush1.msra.mxu0 0.0
    %5122 = vmatprep.subr.mxu0 0.0
    %5123 = vmatpush1.msra.mxu0 0.0
    %5124 = vmatprep.subr.mxu0 0.0
    %5125 = vmatpush1.msra.mxu0 0.0
    %5126 = vmatprep.subr.mxu0 0.0
    %5127 = vmatpush1.msra.mxu0 0.0
    %5128 = vmatprep.subr.mxu0 0.0
    %5129 = vmatpush1.msra.mxu0 0.0
    %5130 = vmatprep.subr.mxu0 0.0
    %5131 = vmatpush1.msra.mxu0 0.0
    %5132 = vmatprep.subr.mxu0 0.0
    %5133 = vmatpush1.msra.mxu0 0.0
    %5134 = vmatprep.subr.mxu0 0.0
    %5135 = vmatpush1.msra.mxu0 0.0
    %5136 = vmatprep.subr.mxu0 0.0
    %5137 = vmatpush1.msra.mxu0 0.0
    %5138 = vmatprep.subr.mxu0 0.0
    %5139 = vmatpush1.msra.mxu0 0.0
    %5140 = vmatprep.subr.mxu0 0.0
    %5141 = vmatpush1.msra.mxu0 0.0
    %5142 = vmatprep.mubr.f32.mxu0 0.0
    %v5143 = vand.u32 %v4972, 4294901760
    %5144 = vmatmul.mubr.f32.gmra.mrb[0].mxu0 %v5143
    %v5145 = vpop.f32.mrb[0].mxu0
    %v5146 = vadd.f32 %v5055, %v5145
    %v5147 = vpop.f32.mrb[0].mxu0
    %5148 = vmatprep.mubr.f32.mxu0 0.0
    %v5149 = vand.u32 %v4975, 4294901760
    %5150 = vmatmul.mubr.f32.gmra.mrb[0].mxu0 %v5149
    %v5151 = vpop.f32.mrb[0].mxu0
    %v5152 = vadd.f32 %v5065, %v5151
    %v5153 = vpop.f32.mrb[0].mxu0
    %5154 = vdwg.mxu0
    %5155 = vmatprep.subr.mxu0 0.0
    %v5156 = vand.u32 %v4966, 4294901760
    %v5157 = vsub.f32 %v4966, %v5156
    %5158 = vmatpush1.msra.mxu0 %v5157
    %5159 = vmatprep.subr.mxu0 0.0
    %v5160 = vand.u32 %v4979, 4294901760
    %v5161 = vsub.f32 %v4979, %v5160
    %5162 = vmatpush1.msra.mxu0 %v5161
    %5163 = vmatprep.subr.mxu0 0.0
    %5164 = vmatpush1.msra.mxu0 0.0
    %5165 = vmatprep.subr.mxu0 0.0
    %5166 = vmatpush1.msra.mxu0 0.0
    %5167 = vmatprep.subr.mxu0 0.0
    %5168 = vmatpush1.msra.mxu0 0.0
    %5169 = vmatprep.subr.mxu0 0.0
    %5170 = vmatpush1.msra.mxu0 0.0
    %5171 = vmatprep.subr.mxu0 0.0
    %5172 = vmatpush1.msra.mxu0 0.0
    %5173 = vmatprep.subr.mxu0 0.0
    %5174 = vmatpush1.msra.mxu0 0.0
    %5175 = vmatprep.subr.mxu0 0.0
    %5176 = vmatpush1.msra.mxu0 0.0
    %5177 = vmatprep.subr.mxu0 0.0
    %5178 = vmatpush1.msra.mxu0 0.0
    %5179 = vmatprep.subr.mxu0 0.0
    %5180 = vmatpush1.msra.mxu0 0.0
    %5181 = vmatprep.subr.mxu0 0.0
    %5182 = vmatpush1.msra.mxu0 0.0
    %5183 = vmatprep.subr.mxu0 0.0
    %5184 = vmatpush1.msra.mxu0 0.0
    %5185 = vmatprep.subr.mxu0 0.0
    %5186 = vmatpush1.msra.mxu0 0.0
    %5187 = vmatprep.subr.mxu0 0.0
    %5188 = vmatpush1.msra.mxu0 0.0
    %5189 = vmatprep.subr.mxu0 0.0
    %5190 = vmatpush1.msra.mxu0 0.0
    %5191 = vmatprep.subr.mxu0 0.0
    %5192 = vmatpush1.msra.mxu0 0.0
    %5193 = vmatprep.subr.mxu0 0.0
    %5194 = vmatpush1.msra.mxu0 0.0
    %5195 = vmatprep.subr.mxu0 0.0
    %5196 = vmatpush1.msra.mxu0 0.0
    %5197 = vmatprep.subr.mxu0 0.0
    %5198 = vmatpush1.msra.mxu0 0.0
    %5199 = vmatprep.subr.mxu0 0.0
    %5200 = vmatpush1.msra.mxu0 0.0
    %5201 = vmatprep.subr.mxu0 0.0
    %5202 = vmatpush1.msra.mxu0 0.0
    %5203 = vmatprep.subr.mxu0 0.0
    %5204 = vmatpush1.msra.mxu0 0.0
    %5205 = vmatprep.subr.mxu0 0.0
    %5206 = vmatpush1.msra.mxu0 0.0
    %5207 = vmatprep.subr.mxu0 0.0
    %5208 = vmatpush1.msra.mxu0 0.0
    %5209 = vmatprep.subr.mxu0 0.0
    %5210 = vmatpush1.msra.mxu0 0.0
    %5211 = vmatprep.subr.mxu0 0.0
    %5212 = vmatpush1.msra.mxu0 0.0
    %5213 = vmatprep.subr.mxu0 0.0
    %5214 = vmatpush1.msra.mxu0 0.0
    %5215 = vmatprep.subr.mxu0 0.0
    %5216 = vmatpush1.msra.mxu0 0.0
    %5217 = vmatprep.subr.mxu0 0.0
    %5218 = vmatpush1.msra.mxu0 0.0
    %5219 = vmatprep.subr.mxu0 0.0
    %5220 = vmatpush1.msra.mxu0 0.0
    %5221 = vmatprep.subr.mxu0 0.0
    %5222 = vmatpush1.msra.mxu0 0.0
    %5223 = vmatprep.mubr.f32.mxu0 0.0
    %v5224 = vand.u32 %v4972, 4294901760
    %v5225 = vsub.f32 %v4972, %v5224
    %5226 = vmatmul.mubr.f32.gmra.mrb[0].mxu0 %v5225
    %v5227 = vpop.f32.mrb[0].mxu0
    %v5228 = vadd.f32 %v5146, %v5227
    %v5229 = vpop.f32.mrb[0].mxu0
    %5230 = vmatprep.mubr.f32.mxu0 0.0
    %v5231 = vand.u32 %v4975, 4294901760
    %v5232 = vsub.f32 %v4975, %v5231
    %5233 = vmatmul.mubr.f32.gmra.mrb[0].mxu0 %v5232
    %v5234 = vpop.f32.mrb[0].mxu0
    %v5235 = vadd.f32 %v5152, %v5234
    %v5236 = vpop.f32.mrb[0].mxu0
    %5237 = vdwg.mxu0
    %5238 = vmatprep.subr.mxu0 0.0
    %v5239 = vand.u32 %v4966, 4294901760
    %5240 = vmatpush1.msra.mxu0 %v5239
    %5241 = vmatprep.subr.mxu0 0.0
    %v5242 = vand.u32 %v4979, 4294901760
    %5243 = vmatpush1.msra.mxu0 %v5242
    %5244 = vmatprep.subr.mxu0 0.0
    %5245 = vmatpush1.msra.mxu0 0.0
    %5246 = vmatprep.subr.mxu0 0.0
    %5247 = vmatpush1.msra.mxu0 0.0
    %5248 = vmatprep.subr.mxu0 0.0
    %5249 = vmatpush1.msra.mxu0 0.0
    %5250 = vmatprep.subr.mxu0 0.0
    %5251 = vmatpush1.msra.mxu0 0.0
    %5252 = vmatprep.subr.mxu0 0.0
    %5253 = vmatpush1.msra.mxu0 0.0
    %5254 = vmatprep.subr.mxu0 0.0
    %5255 = vmatpush1.msra.mxu0 0.0
    %5256 = vmatprep.subr.mxu0 0.0
    %5257 = vmatpush1.msra.mxu0 0.0
    %5258 = vmatprep.subr.mxu0 0.0
    %5259 = vmatpush1.msra.mxu0 0.0
    %5260 = vmatprep.subr.mxu0 0.0
    %5261 = vmatpush1.msra.mxu0 0.0
    %5262 = vmatprep.subr.mxu0 0.0
    %5263 = vmatpush1.msra.mxu0 0.0
    %5264 = vmatprep.subr.mxu0 0.0
    %5265 = vmatpush1.msra.mxu0 0.0
    %5266 = vmatprep.subr.mxu0 0.0
    %5267 = vmatpush1.msra.mxu0 0.0
    %5268 = vmatprep.subr.mxu0 0.0
    %5269 = vmatpush1.msra.mxu0 0.0
    %5270 = vmatprep.subr.mxu0 0.0
    %5271 = vmatpush1.msra.mxu0 0.0
    %5272 = vmatprep.subr.mxu0 0.0
    %5273 = vmatpush1.msra.mxu0 0.0
    %5274 = vmatprep.subr.mxu0 0.0
    %5275 = vmatpush1.msra.mxu0 0.0
    %5276 = vmatprep.subr.mxu0 0.0
    %5277 = vmatpush1.msra.mxu0 0.0
    %5278 = vmatprep.subr.mxu0 0.0
    %5279 = vmatpush1.msra.mxu0 0.0
    %5280 = vmatprep.subr.mxu0 0.0
    %5281 = vmatpush1.msra.mxu0 0.0
    %5282 = vmatprep.subr.mxu0 0.0
    %5283 = vmatpush1.msra.mxu0 0.0
    %5284 = vmatprep.subr.mxu0 0.0
    %5285 = vmatpush1.msra.mxu0 0.0
    %5286 = vmatprep.subr.mxu0 0.0
    %5287 = vmatpush1.msra.mxu0 0.0
    %5288 = vmatprep.subr.mxu0 0.0
    %5289 = vmatpush1.msra.mxu0 0.0
    %5290 = vmatprep.subr.mxu0 0.0
    %5291 = vmatpush1.msra.mxu0 0.0
    %5292 = vmatprep.subr.mxu0 0.0
    %5293 = vmatpush1.msra.mxu0 0.0
    %5294 = vmatprep.subr.mxu0 0.0
    %5295 = vmatpush1.msra.mxu0 0.0
    %5296 = vmatprep.subr.mxu0 0.0
    %5297 = vmatpush1.msra.mxu0 0.0
    %5298 = vmatprep.subr.mxu0 0.0
    %5299 = vmatpush1.msra.mxu0 0.0
    %5300 = vmatprep.subr.mxu0 0.0
    %5301 = vmatpush1.msra.mxu0 0.0
    %5302 = vmatprep.subr.mxu0 0.0
    %5303 = vmatpush1.msra.mxu0 0.0
    %5304 = vmatprep.mubr.f32.mxu0 0.0
    %v5305 = vand.u32 %v4972, 4294901760
    %v5306 = vsub.f32 %v4972, %v5305
    %v5307 = vand.u32 %v5306, 4294901760
    %5308 = vmatmul.mubr.f32.gmra.mrb[0].mxu0 %v5307
    %v5309 = vpop.f32.mrb[0].mxu0
    %v5310 = vadd.f32 %v5228, %v5309
    %v5311 = vpop.f32.mrb[0].mxu0
    %5312 = vmatprep.mubr.f32.mxu0 0.0
    %v5313 = vand.u32 %v4975, 4294901760
    %v5314 = vsub.f32 %v4975, %v5313
    %v5315 = vand.u32 %v5314, 4294901760
    %5316 = vmatmul.mubr.f32.gmra.mrb[0].mxu0 %v5315
    %v5317 = vpop.f32.mrb[0].mxu0
    %v5318 = vadd.f32 %v5235, %v5317
    %v5319 = vpop.f32.mrb[0].mxu0
    %5320 = vdwg.mxu0
    %5321 = vmatprep.subr.mxu0 0.0
    %v5322 = vand.u32 %v4966, 4294901760
    %v5323 = vsub.f32 %v4966, %v5322
    %v5324 = vand.u32 %v5323, 4294901760
    %5325 = vmatpush1.msra.mxu0 %v5324
    %5326 = vmatprep.subr.mxu0 0.0
    %v5327 = vand.u32 %v4979, 4294901760
    %v5328 = vsub.f32 %v4979, %v5327
    %v5329 = vand.u32 %v5328, 4294901760
    %5330 = vmatpush1.msra.mxu0 %v5329
    %5331 = vmatprep.subr.mxu0 0.0
    %5332 = vmatpush1.msra.mxu0 0.0
    %5333 = vmatprep.subr.mxu0 0.0
    %5334 = vmatpush1.msra.mxu0 0.0
    %5335 = vmatprep.subr.mxu0 0.0
    %5336 = vmatpush1.msra.mxu0 0.0
    %5337 = vmatprep.subr.mxu0 0.0
    %5338 = vmatpush1.msra.mxu0 0.0
    %5339 = vmatprep.subr.mxu0 0.0
    %5340 = vmatpush1.msra.mxu0 0.0
    %5341 = vmatprep.subr.mxu0 0.0
    %5342 = vmatpush1.msra.mxu0 0.0
    %5343 = vmatprep.subr.mxu0 0.0
    %5344 = vmatpush1.msra.mxu0 0.0
    %5345 = vmatprep.subr.mxu0 0.0
    %5346 = vmatpush1.msra.mxu0 0.0
    %5347 = vmatprep.subr.mxu0 0.0
    %5348 = vmatpush1.msra.mxu0 0.0
    %5349 = vmatprep.subr.mxu0 0.0
    %5350 = vmatpush1.msra.mxu0 0.0
    %5351 = vmatprep.subr.mxu0 0.0
    %5352 = vmatpush1.msra.mxu0 0.0
    %5353 = vmatprep.subr.mxu0 0.0
    %5354 = vmatpush1.msra.mxu0 0.0
    %5355 = vmatprep.subr.mxu0 0.0
    %5356 = vmatpush1.msra.mxu0 0.0
    %5357 = vmatprep.subr.mxu0 0.0
    %5358 = vmatpush1.msra.mxu0 0.0
    %5359 = vmatprep.subr.mxu0 0.0
    %5360 = vmatpush1.msra.mxu0 0.0
    %5361 = vmatprep.subr.mxu0 0.0
    %5362 = vmatpush1.msra.mxu0 0.0
    %5363 = vmatprep.subr.mxu0 0.0
    %5364 = vmatpush1.msra.mxu0 0.0
    %5365 = vmatprep.subr.mxu0 0.0
    %5366 = vmatpush1.msra.mxu0 0.0
    %5367 = vmatprep.subr.mxu0 0.0
    %5368 = vmatpush1.msra.mxu0 0.0
    %5369 = vmatprep.subr.mxu0 0.0
    %5370 = vmatpush1.msra.mxu0 0.0
    %5371 = vmatprep.subr.mxu0 0.0
    %5372 = vmatpush1.msra.mxu0 0.0
    %5373 = vmatprep.subr.mxu0 0.0
    %5374 = vmatpush1.msra.mxu0 0.0
    %5375 = vmatprep.subr.mxu0 0.0
    %5376 = vmatpush1.msra.mxu0 0.0
    %5377 = vmatprep.subr.mxu0 0.0
    %5378 = vmatpush1.msra.mxu0 0.0
    %5379 = vmatprep.subr.mxu0 0.0
    %5380 = vmatpush1.msra.mxu0 0.0
    %5381 = vmatprep.subr.mxu0 0.0
    %5382 = vmatpush1.msra.mxu0 0.0
    %5383 = vmatprep.subr.mxu0 0.0
    %5384 = vmatpush1.msra.mxu0 0.0
    %5385 = vmatprep.subr.mxu0 0.0
    %5386 = vmatpush1.msra.mxu0 0.0
    %5387 = vmatprep.subr.mxu0 0.0
    %5388 = vmatpush1.msra.mxu0 0.0
    %5389 = vmatprep.subr.mxu0 0.0
    %5390 = vmatpush1.msra.mxu0 0.0
    %5391 = vmatprep.mubr.f32.mxu0 0.0
    %v5392 = vand.u32 %v4972, 4294901760
    %5393 = vmatmul.mubr.f32.gmra.mrb[0].mxu0 %v5392
    %v5394 = vpop.f32.mrb[0].mxu0
    %v5395 = vadd.f32 %v5310, %v5394
    %v5396 = vpop.f32.mrb[0].mxu0
    %5397 = vmatprep.mubr.f32.mxu0 0.0
    %v5398 = vand.u32 %v4975, 4294901760
    %5399 = vmatmul.mubr.f32.gmra.mrb[0].mxu0 %v5398
    %v5400 = vpop.f32.mrb[0].mxu0
    %v5401 = vadd.f32 %v5318, %v5400
    %v5402 = vpop.f32.mrb[0].mxu0
    %5403 = vdwg.mxu0
    %5404 = vmatprep.subr.mxu0 0.0
    %v5405 = vand.u32 %v4966, 4294901760
    %5406 = vmatpush1.msra.mxu0 %v5405
    %5407 = vmatprep.subr.mxu0 0.0
    %v5408 = vand.u32 %v4979, 4294901760
    %5409 = vmatpush1.msra.mxu0 %v5408
    %5410 = vmatprep.subr.mxu0 0.0
    %5411 = vmatpush1.msra.mxu0 0.0
    %5412 = vmatprep.subr.mxu0 0.0
    %5413 = vmatpush1.msra.mxu0 0.0
    %5414 = vmatprep.subr.mxu0 0.0
    %5415 = vmatpush1.msra.mxu0 0.0
    %5416 = vmatprep.subr.mxu0 0.0
    %5417 = vmatpush1.msra.mxu0 0.0
    %5418 = vmatprep.subr.mxu0 0.0
    %5419 = vmatpush1.msra.mxu0 0.0
    %5420 = vmatprep.subr.mxu0 0.0
    %5421 = vmatpush1.msra.mxu0 0.0
    %5422 = vmatprep.subr.mxu0 0.0
    %5423 = vmatpush1.msra.mxu0 0.0
    %5424 = vmatprep.subr.mxu0 0.0
    %5425 = vmatpush1.msra.mxu0 0.0
    %5426 = vmatprep.subr.mxu0 0.0
    %5427 = vmatpush1.msra.mxu0 0.0
    %5428 = vmatprep.subr.mxu0 0.0
    %5429 = vmatpush1.msra.mxu0 0.0
    %5430 = vmatprep.subr.mxu0 0.0
    %5431 = vmatpush1.msra.mxu0 0.0
    %5432 = vmatprep.subr.mxu0 0.0
    %5433 = vmatpush1.msra.mxu0 0.0
    %5434 = vmatprep.subr.mxu0 0.0
    %5435 = vmatpush1.msra.mxu0 0.0
    %5436 = vmatprep.subr.mxu0 0.0
    %5437 = vmatpush1.msra.mxu0 0.0
    %5438 = vmatprep.subr.mxu0 0.0
    %5439 = vmatpush1.msra.mxu0 0.0
    %5440 = vmatprep.subr.mxu0 0.0
    %5441 = vmatpush1.msra.mxu0 0.0
    %5442 = vmatprep.subr.mxu0 0.0
    %5443 = vmatpush1.msra.mxu0 0.0
    %5444 = vmatprep.subr.mxu0 0.0
    %5445 = vmatpush1.msra.mxu0 0.0
    %5446 = vmatprep.subr.mxu0 0.0
    %5447 = vmatpush1.msra.mxu0 0.0
    %5448 = vmatprep.subr.mxu0 0.0
    %5449 = vmatpush1.msra.mxu0 0.0
    %5450 = vmatprep.subr.mxu0 0.0
    %5451 = vmatpush1.msra.mxu0 0.0
    %5452 = vmatprep.subr.mxu0 0.0
    %5453 = vmatpush1.msra.mxu0 0.0
    %5454 = vmatprep.subr.mxu0 0.0
    %5455 = vmatpush1.msra.mxu0 0.0
    %5456 = vmatprep.subr.mxu0 0.0
    %5457 = vmatpush1.msra.mxu0 0.0
    %5458 = vmatprep.subr.mxu0 0.0
    %5459 = vmatpush1.msra.mxu0 0.0
    %5460 = vmatprep.subr.mxu0 0.0
    %5461 = vmatpush1.msra.mxu0 0.0
    %5462 = vmatprep.subr.mxu0 0.0
    %5463 = vmatpush1.msra.mxu0 0.0
    %5464 = vmatprep.subr.mxu0 0.0
    %5465 = vmatpush1.msra.mxu0 0.0
    %5466 = vmatprep.subr.mxu0 0.0
    %5467 = vmatpush1.msra.mxu0 0.0
    %5468 = vmatprep.subr.mxu0 0.0
    %5469 = vmatpush1.msra.mxu0 0.0
    %5470 = vmatprep.mubr.f32.mxu0 0.0
    %v5471 = vand.u32 %v4972, 4294901760
    %5472 = vmatmul.mubr.f32.gmra.mrb[0].mxu0 %v5471
    %v5473 = vpop.f32.mrb[0].mxu0
    %v5474 = vadd.f32 %v5395, %v5473
    %v5475 = vpop.f32.mrb[0].mxu0
    %5476 = vmatprep.mubr.f32.mxu0 0.0
    %v5477 = vand.u32 %v4975, 4294901760
    %5478 = vmatmul.mubr.f32.gmra.mrb[0].mxu0 %v5477
    %v5479 = vpop.f32.mrb[0].mxu0
    %v5480 = vadd.f32 %v5401, %v5479
    %v5481 = vpop.f32.mrb[0].mxu0
    %5482 = vdwg.mxu0
    %v5484 = vsel %vm514, %v5474, 0
    %v5487 = vsel %vm514, %v5480, 0
    %5489 = vmatprep.subr.mxu0 0.0
    %5490 = vmatpush1.msra.mxu0 1.0
    %5491 = vmatprep.subr.mxu0 0.0
    %5492 = vmatpush1.msra.mxu0 1.0
    %5493 = vmatprep.subr.mxu0 0.0
    %5494 = vmatpush1.msra.mxu0 0.0
    %5495 = vmatprep.subr.mxu0 0.0
    %5496 = vmatpush1.msra.mxu0 0.0
    %5497 = vmatprep.subr.mxu0 0.0
    %5498 = vmatpush1.msra.mxu0 0.0
    %5499 = vmatprep.subr.mxu0 0.0
    %5500 = vmatpush1.msra.mxu0 0.0
    %5501 = vmatprep.subr.mxu0 0.0
    %5502 = vmatpush1.msra.mxu0 0.0
    %5503 = vmatprep.subr.mxu0 0.0
    %5504 = vmatpush1.msra.mxu0 0.0
    %5505 = vmatprep.subr.mxu0 0.0
    %5506 = vmatpush1.msra.mxu0 0.0
    %5507 = vmatprep.subr.mxu0 0.0
    %5508 = vmatpush1.msra.mxu0 0.0
    %5509 = vmatprep.subr.mxu0 0.0
    %5510 = vmatpush1.msra.mxu0 0.0
    %5511 = vmatprep.subr.mxu0 0.0
    %5512 = vmatpush1.msra.mxu0 0.0
    %5513 = vmatprep.subr.mxu0 0.0
    %5514 = vmatpush1.msra.mxu0 0.0
    %5515 = vmatprep.subr.mxu0 0.0
    %5516 = vmatpush1.msra.mxu0 0.0
    %5517 = vmatprep.subr.mxu0 0.0
    %5518 = vmatpush1.msra.mxu0 0.0
    %5519 = vmatprep.subr.mxu0 0.0
    %5520 = vmatpush1.msra.mxu0 0.0
    %5521 = vmatprep.subr.mxu0 0.0
    %5522 = vmatpush1.msra.mxu0 0.0
    %5523 = vmatprep.subr.mxu0 0.0
    %5524 = vmatpush1.msra.mxu0 0.0
    %5525 = vmatprep.subr.mxu0 0.0
    %5526 = vmatpush1.msra.mxu0 0.0
    %5527 = vmatprep.subr.mxu0 0.0
    %5528 = vmatpush1.msra.mxu0 0.0
    %5529 = vmatprep.subr.mxu0 0.0
    %5530 = vmatpush1.msra.mxu0 0.0
    %5531 = vmatprep.subr.mxu0 0.0
    %5532 = vmatpush1.msra.mxu0 0.0
    %5533 = vmatprep.subr.mxu0 0.0
    %5534 = vmatpush1.msra.mxu0 0.0
    %5535 = vmatprep.subr.mxu0 0.0
    %5536 = vmatpush1.msra.mxu0 0.0
    %5537 = vmatprep.subr.mxu0 0.0
    %5538 = vmatpush1.msra.mxu0 0.0
    %5539 = vmatprep.subr.mxu0 0.0
    %5540 = vmatpush1.msra.mxu0 0.0
    %5541 = vmatprep.subr.mxu0 0.0
    %5542 = vmatpush1.msra.mxu0 0.0
    %5543 = vmatprep.subr.mxu0 0.0
    %5544 = vmatpush1.msra.mxu0 0.0
    %5545 = vmatprep.subr.mxu0 0.0
    %5546 = vmatpush1.msra.mxu0 0.0
    %5547 = vmatprep.subr.mxu0 0.0
    %5548 = vmatpush1.msra.mxu0 0.0
    %5549 = vmatprep.subr.mxu0 0.0
    %5550 = vmatpush1.msra.mxu0 0.0
    %5551 = vmatprep.subr.mxu0 0.0
    %5552 = vmatpush1.msra.mxu0 0.0
    %5553 = vmatprep.mubr.f32.mxu0 0.0
    %v5554 = vand.u32 %v5484, 4294901760
    %v5555 = vsub.f32 %v5484, %v5554
    %v5556 = vand.u32 %v5555, 4294901760
    %v5557 = vsub.f32 %v5555, %v5556
    %v5558 = vand.u32 %v5557, 4294901760
    %5559 = vmatmul.mubr.f32.gmra.mrb[0].mxu0 %v5558
    %v5560 = vpop.f32.mrb[0].mxu0
    %v5561 = vadd.f32 0.0, %v5560
    %v5562 = vpop.f32.mrb[0].mxu0
    %5563 = vmatprep.mubr.f32.mxu0 0.0
    %v5564 = vand.u32 %v5487, 4294901760
    %v5565 = vsub.f32 %v5487, %v5564
    %v5566 = vand.u32 %v5565, 4294901760
    %v5567 = vsub.f32 %v5565, %v5566
    %v5568 = vand.u32 %v5567, 4294901760
    %5569 = vmatmul.mubr.f32.gmra.mrb[0].mxu0 %v5568
    %v5570 = vpop.f32.mrb[0].mxu0
    %v5571 = vadd.f32 0.0, %v5570
    %v5572 = vpop.f32.mrb[0].mxu0
    %5573 = vdwg.mxu0
    %5574 = vmatprep.subr.mxu0 0.0
    %5575 = vmatpush1.msra.mxu0 0.0
    %5576 = vmatprep.subr.mxu0 0.0
    %5577 = vmatpush1.msra.mxu0 0.0
    %5578 = vmatprep.subr.mxu0 0.0
    %5579 = vmatpush1.msra.mxu0 0.0
    %5580 = vmatprep.subr.mxu0 0.0
    %5581 = vmatpush1.msra.mxu0 0.0
    %5582 = vmatprep.subr.mxu0 0.0
    %5583 = vmatpush1.msra.mxu0 0.0
    %5584 = vmatprep.subr.mxu0 0.0
    %5585 = vmatpush1.msra.mxu0 0.0
    %5586 = vmatprep.subr.mxu0 0.0
    %5587 = vmatpush1.msra.mxu0 0.0
    %5588 = vmatprep.subr.mxu0 0.0
    %5589 = vmatpush1.msra.mxu0 0.0
    %5590 = vmatprep.subr.mxu0 0.0
    %5591 = vmatpush1.msra.mxu0 0.0
    %5592 = vmatprep.subr.mxu0 0.0
    %5593 = vmatpush1.msra.mxu0 0.0
    %5594 = vmatprep.subr.mxu0 0.0
    %5595 = vmatpush1.msra.mxu0 0.0
    %5596 = vmatprep.subr.mxu0 0.0
    %5597 = vmatpush1.msra.mxu0 0.0
    %5598 = vmatprep.subr.mxu0 0.0
    %5599 = vmatpush1.msra.mxu0 0.0
    %5600 = vmatprep.subr.mxu0 0.0
    %5601 = vmatpush1.msra.mxu0 0.0
    %5602 = vmatprep.subr.mxu0 0.0
    %5603 = vmatpush1.msra.mxu0 0.0
    %5604 = vmatprep.subr.mxu0 0.0
    %5605 = vmatpush1.msra.mxu0 0.0
    %5606 = vmatprep.subr.mxu0 0.0
    %5607 = vmatpush1.msra.mxu0 0.0
    %5608 = vmatprep.subr.mxu0 0.0
    %5609 = vmatpush1.msra.mxu0 0.0
    %5610 = vmatprep.subr.mxu0 0.0
    %5611 = vmatpush1.msra.mxu0 0.0
    %5612 = vmatprep.subr.mxu0 0.0
    %5613 = vmatpush1.msra.mxu0 0.0
    %5614 = vmatprep.subr.mxu0 0.0
    %5615 = vmatpush1.msra.mxu0 0.0
    %5616 = vmatprep.subr.mxu0 0.0
    %5617 = vmatpush1.msra.mxu0 0.0
    %5618 = vmatprep.subr.mxu0 0.0
    %5619 = vmatpush1.msra.mxu0 0.0
    %5620 = vmatprep.subr.mxu0 0.0
    %5621 = vmatpush1.msra.mxu0 0.0
    %5622 = vmatprep.subr.mxu0 0.0
    %5623 = vmatpush1.msra.mxu0 0.0
    %5624 = vmatprep.subr.mxu0 0.0
    %5625 = vmatpush1.msra.mxu0 0.0
    %5626 = vmatprep.subr.mxu0 0.0
    %5627 = vmatpush1.msra.mxu0 0.0
    %5628 = vmatprep.subr.mxu0 0.0
    %5629 = vmatpush1.msra.mxu0 0.0
    %5630 = vmatprep.subr.mxu0 0.0
    %5631 = vmatpush1.msra.mxu0 0.0
    %5632 = vmatprep.subr.mxu0 0.0
    %5633 = vmatpush1.msra.mxu0 0.0
    %5634 = vmatprep.subr.mxu0 0.0
    %5635 = vmatpush1.msra.mxu0 0.0
    %5636 = vmatprep.subr.mxu0 0.0
    %5637 = vmatpush1.msra.mxu0 0.0
    %5638 = vmatprep.mubr.f32.mxu0 0.0
    %v5639 = vand.u32 %v5484, 4294901760
    %5640 = vmatmul.mubr.f32.gmra.mrb[0].mxu0 %v5639
    %v5641 = vpop.f32.mrb[0].mxu0
    %v5642 = vadd.f32 %v5561, %v5641
    %v5643 = vpop.f32.mrb[0].mxu0
    %5644 = vmatprep.mubr.f32.mxu0 0.0
    %v5645 = vand.u32 %v5487, 4294901760
    %5646 = vmatmul.mubr.f32.gmra.mrb[0].mxu0 %v5645
    %v5647 = vpop.f32.mrb[0].mxu0
    %v5648 = vadd.f32 %v5571, %v5647
    %v5649 = vpop.f32.mrb[0].mxu0
    %5650 = vdwg.mxu0
    %5651 = vmatprep.subr.mxu0 0.0
    %5652 = vmatpush1.msra.mxu0 0.0
    %5653 = vmatprep.subr.mxu0 0.0
    %5654 = vmatpush1.msra.mxu0 0.0
    %5655 = vmatprep.subr.mxu0 0.0
    %5656 = vmatpush1.msra.mxu0 0.0
    %5657 = vmatprep.subr.mxu0 0.0
    %5658 = vmatpush1.msra.mxu0 0.0
    %5659 = vmatprep.subr.mxu0 0.0
    %5660 = vmatpush1.msra.mxu0 0.0
    %5661 = vmatprep.subr.mxu0 0.0
    %5662 = vmatpush1.msra.mxu0 0.0
    %5663 = vmatprep.subr.mxu0 0.0
    %5664 = vmatpush1.msra.mxu0 0.0
    %5665 = vmatprep.subr.mxu0 0.0
    %5666 = vmatpush1.msra.mxu0 0.0
    %5667 = vmatprep.subr.mxu0 0.0
    %5668 = vmatpush1.msra.mxu0 0.0
    %5669 = vmatprep.subr.mxu0 0.0
    %5670 = vmatpush1.msra.mxu0 0.0
    %5671 = vmatprep.subr.mxu0 0.0
    %5672 = vmatpush1.msra.mxu0 0.0
    %5673 = vmatprep.subr.mxu0 0.0
    %5674 = vmatpush1.msra.mxu0 0.0
    %5675 = vmatprep.subr.mxu0 0.0
    %5676 = vmatpush1.msra.mxu0 0.0
    %5677 = vmatprep.subr.mxu0 0.0
    %5678 = vmatpush1.msra.mxu0 0.0
    %5679 = vmatprep.subr.mxu0 0.0
    %5680 = vmatpush1.msra.mxu0 0.0
    %5681 = vmatprep.subr.mxu0 0.0
    %5682 = vmatpush1.msra.mxu0 0.0
    %5683 = vmatprep.subr.mxu0 0.0
    %5684 = vmatpush1.msra.mxu0 0.0
    %5685 = vmatprep.subr.mxu0 0.0
    %5686 = vmatpush1.msra.mxu0 0.0
    %5687 = vmatprep.subr.mxu0 0.0
    %5688 = vmatpush1.msra.mxu0 0.0
    %5689 = vmatprep.subr.mxu0 0.0
    %5690 = vmatpush1.msra.mxu0 0.0
    %5691 = vmatprep.subr.mxu0 0.0
    %5692 = vmatpush1.msra.mxu0 0.0
    %5693 = vmatprep.subr.mxu0 0.0
    %5694 = vmatpush1.msra.mxu0 0.0
    %5695 = vmatprep.subr.mxu0 0.0
    %5696 = vmatpush1.msra.mxu0 0.0
    %5697 = vmatprep.subr.mxu0 0.0
    %5698 = vmatpush1.msra.mxu0 0.0
    %5699 = vmatprep.subr.mxu0 0.0
    %5700 = vmatpush1.msra.mxu0 0.0
    %5701 = vmatprep.subr.mxu0 0.0
    %5702 = vmatpush1.msra.mxu0 0.0
    %5703 = vmatprep.subr.mxu0 0.0
    %5704 = vmatpush1.msra.mxu0 0.0
    %5705 = vmatprep.subr.mxu0 0.0
    %5706 = vmatpush1.msra.mxu0 0.0
    %5707 = vmatprep.subr.mxu0 0.0
    %5708 = vmatpush1.msra.mxu0 0.0
    %5709 = vmatprep.subr.mxu0 0.0
    %5710 = vmatpush1.msra.mxu0 0.0
    %5711 = vmatprep.subr.mxu0 0.0
    %5712 = vmatpush1.msra.mxu0 0.0
    %5713 = vmatprep.subr.mxu0 0.0
    %5714 = vmatpush1.msra.mxu0 0.0
    %5715 = vmatprep.mubr.f32.mxu0 0.0
    %v5716 = vand.u32 %v5484, 4294901760
    %v5717 = vsub.f32 %v5484, %v5716
    %5718 = vmatmul.mubr.f32.gmra.mrb[0].mxu0 %v5717
    %v5719 = vpop.f32.mrb[0].mxu0
    %v5720 = vadd.f32 %v5642, %v5719
    %v5721 = vpop.f32.mrb[0].mxu0
    %5722 = vmatprep.mubr.f32.mxu0 0.0
    %v5723 = vand.u32 %v5487, 4294901760
    %v5724 = vsub.f32 %v5487, %v5723
    %5725 = vmatmul.mubr.f32.gmra.mrb[0].mxu0 %v5724
    %v5726 = vpop.f32.mrb[0].mxu0
    %v5727 = vadd.f32 %v5648, %v5726
    %v5728 = vpop.f32.mrb[0].mxu0
    %5729 = vdwg.mxu0
    %5730 = vmatprep.subr.mxu0 0.0
    %5731 = vmatpush1.msra.mxu0 1.0
    %5732 = vmatprep.subr.mxu0 0.0
    %5733 = vmatpush1.msra.mxu0 1.0
    %5734 = vmatprep.subr.mxu0 0.0
    %5735 = vmatpush1.msra.mxu0 0.0
    %5736 = vmatprep.subr.mxu0 0.0
    %5737 = vmatpush1.msra.mxu0 0.0
    %5738 = vmatprep.subr.mxu0 0.0
    %5739 = vmatpush1.msra.mxu0 0.0
    %5740 = vmatprep.subr.mxu0 0.0
    %5741 = vmatpush1.msra.mxu0 0.0
    %5742 = vmatprep.subr.mxu0 0.0
    %5743 = vmatpush1.msra.mxu0 0.0
    %5744 = vmatprep.subr.mxu0 0.0
    %5745 = vmatpush1.msra.mxu0 0.0
    %5746 = vmatprep.subr.mxu0 0.0
    %5747 = vmatpush1.msra.mxu0 0.0
    %5748 = vmatprep.subr.mxu0 0.0
    %5749 = vmatpush1.msra.mxu0 0.0
    %5750 = vmatprep.subr.mxu0 0.0
    %5751 = vmatpush1.msra.mxu0 0.0
    %5752 = vmatprep.subr.mxu0 0.0
    %5753 = vmatpush1.msra.mxu0 0.0
    %5754 = vmatprep.subr.mxu0 0.0
    %5755 = vmatpush1.msra.mxu0 0.0
    %5756 = vmatprep.subr.mxu0 0.0
    %5757 = vmatpush1.msra.mxu0 0.0
    %5758 = vmatprep.subr.mxu0 0.0
    %5759 = vmatpush1.msra.mxu0 0.0
    %5760 = vmatprep.subr.mxu0 0.0
    %5761 = vmatpush1.msra.mxu0 0.0
    %5762 = vmatprep.subr.mxu0 0.0
    %5763 = vmatpush1.msra.mxu0 0.0
    %5764 = vmatprep.subr.mxu0 0.0
    %5765 = vmatpush1.msra.mxu0 0.0
    %5766 = vmatprep.subr.mxu0 0.0
    %5767 = vmatpush1.msra.mxu0 0.0
    %5768 = vmatprep.subr.mxu0 0.0
    %5769 = vmatpush1.msra.mxu0 0.0
    %5770 = vmatprep.subr.mxu0 0.0
    %5771 = vmatpush1.msra.mxu0 0.0
    %5772 = vmatprep.subr.mxu0 0.0
    %5773 = vmatpush1.msra.mxu0 0.0
    %5774 = vmatprep.subr.mxu0 0.0
    %5775 = vmatpush1.msra.mxu0 0.0
    %5776 = vmatprep.subr.mxu0 0.0
    %5777 = vmatpush1.msra.mxu0 0.0
    %5778 = vmatprep.subr.mxu0 0.0
    %5779 = vmatpush1.msra.mxu0 0.0
    %5780 = vmatprep.subr.mxu0 0.0
    %5781 = vmatpush1.msra.mxu0 0.0
    %5782 = vmatprep.subr.mxu0 0.0
    %5783 = vmatpush1.msra.mxu0 0.0
    %5784 = vmatprep.subr.mxu0 0.0
    %5785 = vmatpush1.msra.mxu0 0.0
    %5786 = vmatprep.subr.mxu0 0.0
    %5787 = vmatpush1.msra.mxu0 0.0
    %5788 = vmatprep.subr.mxu0 0.0
    %5789 = vmatpush1.msra.mxu0 0.0
    %5790 = vmatprep.subr.mxu0 0.0
    %5791 = vmatpush1.msra.mxu0 0.0
    %5792 = vmatprep.subr.mxu0 0.0
    %5793 = vmatpush1.msra.mxu0 0.0
    %5794 = vmatprep.mubr.f32.mxu0 0.0
    %v5795 = vand.u32 %v5484, 4294901760
    %v5796 = vsub.f32 %v5484, %v5795
    %v5797 = vand.u32 %v5796, 4294901760
    %5798 = vmatmul.mubr.f32.gmra.mrb[0].mxu0 %v5797
    %v5799 = vpop.f32.mrb[0].mxu0
    %v5800 = vadd.f32 %v5720, %v5799
    %v5801 = vpop.f32.mrb[0].mxu0
    %5802 = vmatprep.mubr.f32.mxu0 0.0
    %v5803 = vand.u32 %v5487, 4294901760
    %v5804 = vsub.f32 %v5487, %v5803
    %v5805 = vand.u32 %v5804, 4294901760
    %5806 = vmatmul.mubr.f32.gmra.mrb[0].mxu0 %v5805
    %v5807 = vpop.f32.mrb[0].mxu0
    %v5808 = vadd.f32 %v5727, %v5807
    %v5809 = vpop.f32.mrb[0].mxu0
    %5810 = vdwg.mxu0
    %5811 = vmatprep.subr.mxu0 0.0
    %5812 = vmatpush1.msra.mxu0 0.0
    %5813 = vmatprep.subr.mxu0 0.0
    %5814 = vmatpush1.msra.mxu0 0.0
    %5815 = vmatprep.subr.mxu0 0.0
    %5816 = vmatpush1.msra.mxu0 0.0
    %5817 = vmatprep.subr.mxu0 0.0
    %5818 = vmatpush1.msra.mxu0 0.0
    %5819 = vmatprep.subr.mxu0 0.0
    %5820 = vmatpush1.msra.mxu0 0.0
    %5821 = vmatprep.subr.mxu0 0.0
    %5822 = vmatpush1.msra.mxu0 0.0
    %5823 = vmatprep.subr.mxu0 0.0
    %5824 = vmatpush1.msra.mxu0 0.0
    %5825 = vmatprep.subr.mxu0 0.0
    %5826 = vmatpush1.msra.mxu0 0.0
    %5827 = vmatprep.subr.mxu0 0.0
    %5828 = vmatpush1.msra.mxu0 0.0
    %5829 = vmatprep.subr.mxu0 0.0
    %5830 = vmatpush1.msra.mxu0 0.0
    %5831 = vmatprep.subr.mxu0 0.0
    %5832 = vmatpush1.msra.mxu0 0.0
    %5833 = vmatprep.subr.mxu0 0.0
    %5834 = vmatpush1.msra.mxu0 0.0
    %5835 = vmatprep.subr.mxu0 0.0
    %5836 = vmatpush1.msra.mxu0 0.0
    %5837 = vmatprep.subr.mxu0 0.0
    %5838 = vmatpush1.msra.mxu0 0.0
    %5839 = vmatprep.subr.mxu0 0.0
    %5840 = vmatpush1.msra.mxu0 0.0
    %5841 = vmatprep.subr.mxu0 0.0
    %5842 = vmatpush1.msra.mxu0 0.0
    %5843 = vmatprep.subr.mxu0 0.0
    %5844 = vmatpush1.msra.mxu0 0.0
    %5845 = vmatprep.subr.mxu0 0.0
    %5846 = vmatpush1.msra.mxu0 0.0
    %5847 = vmatprep.subr.mxu0 0.0
    %5848 = vmatpush1.msra.mxu0 0.0
    %5849 = vmatprep.subr.mxu0 0.0
    %5850 = vmatpush1.msra.mxu0 0.0
    %5851 = vmatprep.subr.mxu0 0.0
    %5852 = vmatpush1.msra.mxu0 0.0
    %5853 = vmatprep.subr.mxu0 0.0
    %5854 = vmatpush1.msra.mxu0 0.0
    %5855 = vmatprep.subr.mxu0 0.0
    %5856 = vmatpush1.msra.mxu0 0.0
    %5857 = vmatprep.subr.mxu0 0.0
    %5858 = vmatpush1.msra.mxu0 0.0
    %5859 = vmatprep.subr.mxu0 0.0
    %5860 = vmatpush1.msra.mxu0 0.0
    %5861 = vmatprep.subr.mxu0 0.0
    %5862 = vmatpush1.msra.mxu0 0.0
    %5863 = vmatprep.subr.mxu0 0.0
    %5864 = vmatpush1.msra.mxu0 0.0
    %5865 = vmatprep.subr.mxu0 0.0
    %5866 = vmatpush1.msra.mxu0 0.0
    %5867 = vmatprep.subr.mxu0 0.0
    %5868 = vmatpush1.msra.mxu0 0.0
    %5869 = vmatprep.subr.mxu0 0.0
    %5870 = vmatpush1.msra.mxu0 0.0
    %5871 = vmatprep.subr.mxu0 0.0
    %5872 = vmatpush1.msra.mxu0 0.0
    %5873 = vmatprep.subr.mxu0 0.0
    %5874 = vmatpush1.msra.mxu0 0.0
    %5875 = vmatprep.mubr.f32.mxu0 0.0
    %v5876 = vand.u32 %v5484, 4294901760
    %5877 = vmatmul.mubr.f32.gmra.mrb[0].mxu0 %v5876
    %v5878 = vpop.f32.mrb[0].mxu0
    %v5879 = vadd.f32 %v5800, %v5878
    %v5880 = vpop.f32.mrb[0].mxu0
    %5881 = vmatprep.mubr.f32.mxu0 0.0
    %v5882 = vand.u32 %v5487, 4294901760
    %5883 = vmatmul.mubr.f32.gmra.mrb[0].mxu0 %v5882
    %v5884 = vpop.f32.mrb[0].mxu0
    %v5885 = vadd.f32 %v5808, %v5884
    %v5886 = vpop.f32.mrb[0].mxu0
    %5887 = vdwg.mxu0
    %5888 = vmatprep.subr.mxu0 0.0
    %5889 = vmatpush1.msra.mxu0 1.0
    %5890 = vmatprep.subr.mxu0 0.0
    %5891 = vmatpush1.msra.mxu0 1.0
    %5892 = vmatprep.subr.mxu0 0.0
    %5893 = vmatpush1.msra.mxu0 0.0
    %5894 = vmatprep.subr.mxu0 0.0
    %5895 = vmatpush1.msra.mxu0 0.0
    %5896 = vmatprep.subr.mxu0 0.0
    %5897 = vmatpush1.msra.mxu0 0.0
    %5898 = vmatprep.subr.mxu0 0.0
    %5899 = vmatpush1.msra.mxu0 0.0
    %5900 = vmatprep.subr.mxu0 0.0
    %5901 = vmatpush1.msra.mxu0 0.0
    %5902 = vmatprep.subr.mxu0 0.0
    %5903 = vmatpush1.msra.mxu0 0.0
    %5904 = vmatprep.subr.mxu0 0.0
    %5905 = vmatpush1.msra.mxu0 0.0
    %5906 = vmatprep.subr.mxu0 0.0
    %5907 = vmatpush1.msra.mxu0 0.0
    %5908 = vmatprep.subr.mxu0 0.0
    %5909 = vmatpush1.msra.mxu0 0.0
    %5910 = vmatprep.subr.mxu0 0.0
    %5911 = vmatpush1.msra.mxu0 0.0
    %5912 = vmatprep.subr.mxu0 0.0
    %5913 = vmatpush1.msra.mxu0 0.0
    %5914 = vmatprep.subr.mxu0 0.0
    %5915 = vmatpush1.msra.mxu0 0.0
    %5916 = vmatprep.subr.mxu0 0.0
    %5917 = vmatpush1.msra.mxu0 0.0
    %5918 = vmatprep.subr.mxu0 0.0
    %5919 = vmatpush1.msra.mxu0 0.0
    %5920 = vmatprep.subr.mxu0 0.0
    %5921 = vmatpush1.msra.mxu0 0.0
    %5922 = vmatprep.subr.mxu0 0.0
    %5923 = vmatpush1.msra.mxu0 0.0
    %5924 = vmatprep.subr.mxu0 0.0
    %5925 = vmatpush1.msra.mxu0 0.0
    %5926 = vmatprep.subr.mxu0 0.0
    %5927 = vmatpush1.msra.mxu0 0.0
    %5928 = vmatprep.subr.mxu0 0.0
    %5929 = vmatpush1.msra.mxu0 0.0
    %5930 = vmatprep.subr.mxu0 0.0
    %5931 = vmatpush1.msra.mxu0 0.0
    %5932 = vmatprep.subr.mxu0 0.0
    %5933 = vmatpush1.msra.mxu0 0.0
    %5934 = vmatprep.subr.mxu0 0.0
    %5935 = vmatpush1.msra.mxu0 0.0
    %5936 = vmatprep.subr.mxu0 0.0
    %5937 = vmatpush1.msra.mxu0 0.0
    %5938 = vmatprep.subr.mxu0 0.0
    %5939 = vmatpush1.msra.mxu0 0.0
    %5940 = vmatprep.subr.mxu0 0.0
    %5941 = vmatpush1.msra.mxu0 0.0
    %5942 = vmatprep.subr.mxu0 0.0
    %5943 = vmatpush1.msra.mxu0 0.0
    %5944 = vmatprep.subr.mxu0 0.0
    %5945 = vmatpush1.msra.mxu0 0.0
    %5946 = vmatprep.subr.mxu0 0.0
    %5947 = vmatpush1.msra.mxu0 0.0
    %5948 = vmatprep.subr.mxu0 0.0
    %5949 = vmatpush1.msra.mxu0 0.0
    %5950 = vmatprep.subr.mxu0 0.0
    %5951 = vmatpush1.msra.mxu0 0.0
    %5952 = vmatprep.mubr.f32.mxu0 0.0
    %v5953 = vand.u32 %v5484, 4294901760
    %5954 = vmatmul.mubr.f32.gmra.mrb[0].mxu0 %v5953
    %v5955 = vpop.f32.mrb[0].mxu0
    %v5956 = vadd.f32 %v5879, %v5955
    %v5957 = vpop.f32.mrb[0].mxu0
    %5958 = vmatprep.mubr.f32.mxu0 0.0
    %v5959 = vand.u32 %v5487, 4294901760
    %5960 = vmatmul.mubr.f32.gmra.mrb[0].mxu0 %v5959
    %v5961 = vpop.f32.mrb[0].mxu0
    %v5962 = vadd.f32 %v5885, %v5961
    %v5963 = vpop.f32.mrb[0].mxu0
    %5964 = vdwg.mxu0
    %v5965 = vmul.f32 %v5474, %v5474
    %v5966 = vmul.f32 %v5480, %v5480
    %v5968 = vsel %vm514, %v5965, 0
    %v5971 = vsel %vm514, %v5966, 0
    %5973 = vmatprep.subr.mxu0 0.0
    %5974 = vmatpush1.msra.mxu0 1.0
    %5975 = vmatprep.subr.mxu0 0.0
    %5976 = vmatpush1.msra.mxu0 1.0
    %5977 = vmatprep.subr.mxu0 0.0
    %5978 = vmatpush1.msra.mxu0 0.0
    %5979 = vmatprep.subr.mxu0 0.0
    %5980 = vmatpush1.msra.mxu0 0.0
    %5981 = vmatprep.subr.mxu0 0.0
    %5982 = vmatpush1.msra.mxu0 0.0
    %5983 = vmatprep.subr.mxu0 0.0
    %5984 = vmatpush1.msra.mxu0 0.0
    %5985 = vmatprep.subr.mxu0 0.0
    %5986 = vmatpush1.msra.mxu0 0.0
    %5987 = vmatprep.subr.mxu0 0.0
    %5988 = vmatpush1.msra.mxu0 0.0
    %5989 = vmatprep.subr.mxu0 0.0
    %5990 = vmatpush1.msra.mxu0 0.0
    %5991 = vmatprep.subr.mxu0 0.0
    %5992 = vmatpush1.msra.mxu0 0.0
    %5993 = vmatprep.subr.mxu0 0.0
    %5994 = vmatpush1.msra.mxu0 0.0
    %5995 = vmatprep.subr.mxu0 0.0
    %5996 = vmatpush1.msra.mxu0 0.0
    %5997 = vmatprep.subr.mxu0 0.0
    %5998 = vmatpush1.msra.mxu0 0.0
    %5999 = vmatprep.subr.mxu0 0.0
    %6000 = vmatpush1.msra.mxu0 0.0
    %6001 = vmatprep.subr.mxu0 0.0
    %6002 = vmatpush1.msra.mxu0 0.0
    %6003 = vmatprep.subr.mxu0 0.0
    %6004 = vmatpush1.msra.mxu0 0.0
    %6005 = vmatprep.subr.mxu0 0.0
    %6006 = vmatpush1.msra.mxu0 0.0
    %6007 = vmatprep.subr.mxu0 0.0
    %6008 = vmatpush1.msra.mxu0 0.0
    %6009 = vmatprep.subr.mxu0 0.0
    %6010 = vmatpush1.msra.mxu0 0.0
    %6011 = vmatprep.subr.mxu0 0.0
    %6012 = vmatpush1.msra.mxu0 0.0
    %6013 = vmatprep.subr.mxu0 0.0
    %6014 = vmatpush1.msra.mxu0 0.0
    %6015 = vmatprep.subr.mxu0 0.0
    %6016 = vmatpush1.msra.mxu0 0.0
    %6017 = vmatprep.subr.mxu0 0.0
    %6018 = vmatpush1.msra.mxu0 0.0
    %6019 = vmatprep.subr.mxu0 0.0
    %6020 = vmatpush1.msra.mxu0 0.0
    %6021 = vmatprep.subr.mxu0 0.0
    %6022 = vmatpush1.msra.mxu0 0.0
    %6023 = vmatprep.subr.mxu0 0.0
    %6024 = vmatpush1.msra.mxu0 0.0
    %6025 = vmatprep.subr.mxu0 0.0
    %6026 = vmatpush1.msra.mxu0 0.0
    %6027 = vmatprep.subr.mxu0 0.0
    %6028 = vmatpush1.msra.mxu0 0.0
    %6029 = vmatprep.subr.mxu0 0.0
    %6030 = vmatpush1.msra.mxu0 0.0
    %6031 = vmatprep.subr.mxu0 0.0
    %6032 = vmatpush1.msra.mxu0 0.0
    %6033 = vmatprep.subr.mxu0 0.0
    %6034 = vmatpush1.msra.mxu0 0.0
    %6035 = vmatprep.subr.mxu0 0.0
    %6036 = vmatpush1.msra.mxu0 0.0
    %6037 = vmatprep.mubr.f32.mxu0 0.0
    %v6038 = vand.u32 %v5968, 4294901760
    %v6039 = vsub.f32 %v5968, %v6038
    %v6040 = vand.u32 %v6039, 4294901760
    %v6041 = vsub.f32 %v6039, %v6040
    %v6042 = vand.u32 %v6041, 4294901760
    %6043 = vmatmul.mubr.f32.gmra.mrb[0].mxu0 %v6042
    %v6044 = vpop.f32.mrb[0].mxu0
    %v6045 = vadd.f32 0.0, %v6044
    %v6046 = vpop.f32.mrb[0].mxu0
    %6047 = vmatprep.mubr.f32.mxu0 0.0
    %v6048 = vand.u32 %v5971, 4294901760
    %v6049 = vsub.f32 %v5971, %v6048
    %v6050 = vand.u32 %v6049, 4294901760
    %v6051 = vsub.f32 %v6049, %v6050
    %v6052 = vand.u32 %v6051, 4294901760
    %6053 = vmatmul.mubr.f32.gmra.mrb[0].mxu0 %v6052
    %v6054 = vpop.f32.mrb[0].mxu0
    %v6055 = vadd.f32 0.0, %v6054
    %v6056 = vpop.f32.mrb[0].mxu0
    %6057 = vdwg.mxu0
    %6058 = vmatprep.subr.mxu0 0.0
    %6059 = vmatpush1.msra.mxu0 0.0
    %6060 = vmatprep.subr.mxu0 0.0
    %6061 = vmatpush1.msra.mxu0 0.0
    %6062 = vmatprep.subr.mxu0 0.0
    %6063 = vmatpush1.msra.mxu0 0.0
    %6064 = vmatprep.subr.mxu0 0.0
    %6065 = vmatpush1.msra.mxu0 0.0
    %6066 = vmatprep.subr.mxu0 0.0
    %6067 = vmatpush1.msra.mxu0 0.0
    %6068 = vmatprep.subr.mxu0 0.0
    %6069 = vmatpush1.msra.mxu0 0.0
    %6070 = vmatprep.subr.mxu0 0.0
    %6071 = vmatpush1.msra.mxu0 0.0
    %6072 = vmatprep.subr.mxu0 0.0
    %6073 = vmatpush1.msra.mxu0 0.0
    %6074 = vmatprep.subr.mxu0 0.0
    %6075 = vmatpush1.msra.mxu0 0.0
    %6076 = vmatprep.subr.mxu0 0.0
    %6077 = vmatpush1.msra.mxu0 0.0
    %6078 = vmatprep.subr.mxu0 0.0
    %6079 = vmatpush1.msra.mxu0 0.0
    %6080 = vmatprep.subr.mxu0 0.0
    %6081 = vmatpush1.msra.mxu0 0.0
    %6082 = vmatprep.subr.mxu0 0.0
    %6083 = vmatpush1.msra.mxu0 0.0
    %6084 = vmatprep.subr.mxu0 0.0
    %6085 = vmatpush1.msra.mxu0 0.0
    %6086 = vmatprep.subr.mxu0 0.0
    %6087 = vmatpush1.msra.mxu0 0.0
    %6088 = vmatprep.subr.mxu0 0.0
    %6089 = vmatpush1.msra.mxu0 0.0
    %6090 = vmatprep.subr.mxu0 0.0
    %6091 = vmatpush1.msra.mxu0 0.0
    %6092 = vmatprep.subr.mxu0 0.0
    %6093 = vmatpush1.msra.mxu0 0.0
    %6094 = vmatprep.subr.mxu0 0.0
    %6095 = vmatpush1.msra.mxu0 0.0
    %6096 = vmatprep.subr.mxu0 0.0
    %6097 = vmatpush1.msra.mxu0 0.0
    %6098 = vmatprep.subr.mxu0 0.0
    %6099 = vmatpush1.msra.mxu0 0.0
    %6100 = vmatprep.subr.mxu0 0.0
    %6101 = vmatpush1.msra.mxu0 0.0
    %6102 = vmatprep.subr.mxu0 0.0
    %6103 = vmatpush1.msra.mxu0 0.0
    %6104 = vmatprep.subr.mxu0 0.0
    %6105 = vmatpush1.msra.mxu0 0.0
    %6106 = vmatprep.subr.mxu0 0.0
    %6107 = vmatpush1.msra.mxu0 0.0
    %6108 = vmatprep.subr.mxu0 0.0
    %6109 = vmatpush1.msra.mxu0 0.0
    %6110 = vmatprep.subr.mxu0 0.0
    %6111 = vmatpush1.msra.mxu0 0.0
    %6112 = vmatprep.subr.mxu0 0.0
    %6113 = vmatpush1.msra.mxu0 0.0
    %6114 = vmatprep.subr.mxu0 0.0
    %6115 = vmatpush1.msra.mxu0 0.0
    %6116 = vmatprep.subr.mxu0 0.0
    %6117 = vmatpush1.msra.mxu0 0.0
    %6118 = vmatprep.subr.mxu0 0.0
    %6119 = vmatpush1.msra.mxu0 0.0
    %6120 = vmatprep.subr.mxu0 0.0
    %6121 = vmatpush1.msra.mxu0 0.0
    %6122 = vmatprep.mubr.f32.mxu0 0.0
    %v6123 = vand.u32 %v5968, 4294901760
    %6124 = vmatmul.mubr.f32.gmra.mrb[0].mxu0 %v6123
    %v6125 = vpop.f32.mrb[0].mxu0
    %v6126 = vadd.f32 %v6045, %v6125
    %v6127 = vpop.f32.mrb[0].mxu0
    %6128 = vmatprep.mubr.f32.mxu0 0.0
    %v6129 = vand.u32 %v5971, 4294901760
    %6130 = vmatmul.mubr.f32.gmra.mrb[0].mxu0 %v6129
    %v6131 = vpop.f32.mrb[0].mxu0
    %v6132 = vadd.f32 %v6055, %v6131
    %v6133 = vpop.f32.mrb[0].mxu0
    %6134 = vdwg.mxu0
    %6135 = vmatprep.subr.mxu0 0.0
    %6136 = vmatpush1.msra.mxu0 0.0
    %6137 = vmatprep.subr.mxu0 0.0
    %6138 = vmatpush1.msra.mxu0 0.0
    %6139 = vmatprep.subr.mxu0 0.0
    %6140 = vmatpush1.msra.mxu0 0.0
    %6141 = vmatprep.subr.mxu0 0.0
    %6142 = vmatpush1.msra.mxu0 0.0
    %6143 = vmatprep.subr.mxu0 0.0
    %6144 = vmatpush1.msra.mxu0 0.0
    %6145 = vmatprep.subr.mxu0 0.0
    %6146 = vmatpush1.msra.mxu0 0.0
    %6147 = vmatprep.subr.mxu0 0.0
    %6148 = vmatpush1.msra.mxu0 0.0
    %6149 = vmatprep.subr.mxu0 0.0
    %6150 = vmatpush1.msra.mxu0 0.0
    %6151 = vmatprep.subr.mxu0 0.0
    %6152 = vmatpush1.msra.mxu0 0.0
    %6153 = vmatprep.subr.mxu0 0.0
    %6154 = vmatpush1.msra.mxu0 0.0
    %6155 = vmatprep.subr.mxu0 0.0
    %6156 = vmatpush1.msra.mxu0 0.0
    %6157 = vmatprep.subr.mxu0 0.0
    %6158 = vmatpush1.msra.mxu0 0.0
    %6159 = vmatprep.subr.mxu0 0.0
    %6160 = vmatpush1.msra.mxu0 0.0
    %6161 = vmatprep.subr.mxu0 0.0
    %6162 = vmatpush1.msra.mxu0 0.0
    %6163 = vmatprep.subr.mxu0 0.0
    %6164 = vmatpush1.msra.mxu0 0.0
    %6165 = vmatprep.subr.mxu0 0.0
    %6166 = vmatpush1.msra.mxu0 0.0
    %6167 = vmatprep.subr.mxu0 0.0
    %6168 = vmatpush1.msra.mxu0 0.0
    %6169 = vmatprep.subr.mxu0 0.0
    %6170 = vmatpush1.msra.mxu0 0.0
    %6171 = vmatprep.subr.mxu0 0.0
    %6172 = vmatpush1.msra.mxu0 0.0
    %6173 = vmatprep.subr.mxu0 0.0
    %6174 = vmatpush1.msra.mxu0 0.0
    %6175 = vmatprep.subr.mxu0 0.0
    %6176 = vmatpush1.msra.mxu0 0.0
    %6177 = vmatprep.subr.mxu0 0.0
    %6178 = vmatpush1.msra.mxu0 0.0
    %6179 = vmatprep.subr.mxu0 0.0
    %6180 = vmatpush1.msra.mxu0 0.0
    %6181 = vmatprep.subr.mxu0 0.0
    %6182 = vmatpush1.msra.mxu0 0.0
    %6183 = vmatprep.subr.mxu0 0.0
    %6184 = vmatpush1.msra.mxu0 0.0
    %6185 = vmatprep.subr.mxu0 0.0
    %6186 = vmatpush1.msra.mxu0 0.0
    %6187 = vmatprep.subr.mxu0 0.0
    %6188 = vmatpush1.msra.mxu0 0.0
    %6189 = vmatprep.subr.mxu0 0.0
    %6190 = vmatpush1.msra.mxu0 0.0
    %6191 = vmatprep.subr.mxu0 0.0
    %6192 = vmatpush1.msra.mxu0 0.0
    %6193 = vmatprep.subr.mxu0 0.0
    %6194 = vmatpush1.msra.mxu0 0.0
    %6195 = vmatprep.subr.mxu0 0.0
    %6196 = vmatpush1.msra.mxu0 0.0
    %6197 = vmatprep.subr.mxu0 0.0
    %6198 = vmatpush1.msra.mxu0 0.0
    %6199 = vmatprep.mubr.f32.mxu0 0.0
    %v6200 = vand.u32 %v5968, 4294901760
    %v6201 = vsub.f32 %v5968, %v6200
    %6202 = vmatmul.mubr.f32.gmra.mrb[0].mxu0 %v6201
    %v6203 = vpop.f32.mrb[0].mxu0
    %v6204 = vadd.f32 %v6126, %v6203
    %v6205 = vpop.f32.mrb[0].mxu0
    %6206 = vmatprep.mubr.f32.mxu0 0.0
    %v6207 = vand.u32 %v5971, 4294901760
    %v6208 = vsub.f32 %v5971, %v6207
    %6209 = vmatmul.mubr.f32.gmra.mrb[0].mxu0 %v6208
    %v6210 = vpop.f32.mrb[0].mxu0
    %v6211 = vadd.f32 %v6132, %v6210
    %v6212 = vpop.f32.mrb[0].mxu0
    %6213 = vdwg.mxu0
    %6214 = vmatprep.subr.mxu0 0.0
    %6215 = vmatpush1.msra.mxu0 1.0
    %6216 = vmatprep.subr.mxu0 0.0
    %6217 = vmatpush1.msra.mxu0 1.0
    %6218 = vmatprep.subr.mxu0 0.0
    %6219 = vmatpush1.msra.mxu0 0.0
    %6220 = vmatprep.subr.mxu0 0.0
    %6221 = vmatpush1.msra.mxu0 0.0
    %6222 = vmatprep.subr.mxu0 0.0
    %6223 = vmatpush1.msra.mxu0 0.0
    %6224 = vmatprep.subr.mxu0 0.0
    %6225 = vmatpush1.msra.mxu0 0.0
    %6226 = vmatprep.subr.mxu0 0.0
    %6227 = vmatpush1.msra.mxu0 0.0
    %6228 = vmatprep.subr.mxu0 0.0
    %6229 = vmatpush1.msra.mxu0 0.0
    %6230 = vmatprep.subr.mxu0 0.0
    %6231 = vmatpush1.msra.mxu0 0.0
    %6232 = vmatprep.subr.mxu0 0.0
    %6233 = vmatpush1.msra.mxu0 0.0
    %6234 = vmatprep.subr.mxu0 0.0
    %6235 = vmatpush1.msra.mxu0 0.0
    %6236 = vmatprep.subr.mxu0 0.0
    %6237 = vmatpush1.msra.mxu0 0.0
    %6238 = vmatprep.subr.mxu0 0.0
    %6239 = vmatpush1.msra.mxu0 0.0
    %6240 = vmatprep.subr.mxu0 0.0
    %6241 = vmatpush1.msra.mxu0 0.0
    %6242 = vmatprep.subr.mxu0 0.0
    %6243 = vmatpush1.msra.mxu0 0.0
    %6244 = vmatprep.subr.mxu0 0.0
    %6245 = vmatpush1.msra.mxu0 0.0
    %6246 = vmatprep.subr.mxu0 0.0
    %6247 = vmatpush1.msra.mxu0 0.0
    %6248 = vmatprep.subr.mxu0 0.0
    %6249 = vmatpush1.msra.mxu0 0.0
    %6250 = vmatprep.subr.mxu0 0.0
    %6251 = vmatpush1.msra.mxu0 0.0
    %6252 = vmatprep.subr.mxu0 0.0
    %6253 = vmatpush1.msra.mxu0 0.0
    %6254 = vmatprep.subr.mxu0 0.0
    %6255 = vmatpush1.msra.mxu0 0.0
    %6256 = vmatprep.subr.mxu0 0.0
    %6257 = vmatpush1.msra.mxu0 0.0
    %6258 = vmatprep.subr.mxu0 0.0
    %6259 = vmatpush1.msra.mxu0 0.0
    %6260 = vmatprep.subr.mxu0 0.0
    %6261 = vmatpush1.msra.mxu0 0.0
    %6262 = vmatprep.subr.mxu0 0.0
    %6263 = vmatpush1.msra.mxu0 0.0
    %6264 = vmatprep.subr.mxu0 0.0
    %6265 = vmatpush1.msra.mxu0 0.0
    %6266 = vmatprep.subr.mxu0 0.0
    %6267 = vmatpush1.msra.mxu0 0.0
    %6268 = vmatprep.subr.mxu0 0.0
    %6269 = vmatpush1.msra.mxu0 0.0
    %6270 = vmatprep.subr.mxu0 0.0
    %6271 = vmatpush1.msra.mxu0 0.0
    %6272 = vmatprep.subr.mxu0 0.0
    %6273 = vmatpush1.msra.mxu0 0.0
    %6274 = vmatprep.subr.mxu0 0.0
    %6275 = vmatpush1.msra.mxu0 0.0
    %6276 = vmatprep.subr.mxu0 0.0
    %6277 = vmatpush1.msra.mxu0 0.0
    %6278 = vmatprep.mubr.f32.mxu0 0.0
    %v6279 = vand.u32 %v5968, 4294901760
    %v6280 = vsub.f32 %v5968, %v6279
    %v6281 = vand.u32 %v6280, 4294901760
    %6282 = vmatmul.mubr.f32.gmra.mrb[0].mxu0 %v6281
    %v6283 = vpop.f32.mrb[0].mxu0
    %v6284 = vadd.f32 %v6204, %v6283
    %v6285 = vpop.f32.mrb[0].mxu0
    %6286 = vmatprep.mubr.f32.mxu0 0.0
    %v6287 = vand.u32 %v5971, 4294901760
    %v6288 = vsub.f32 %v5971, %v6287
    %v6289 = vand.u32 %v6288, 4294901760
    %6290 = vmatmul.mubr.f32.gmra.mrb[0].mxu0 %v6289
    %v6291 = vpop.f32.mrb[0].mxu0
    %v6292 = vadd.f32 %v6211, %v6291
    %v6293 = vpop.f32.mrb[0].mxu0
    %6294 = vdwg.mxu0
    %6295 = vmatprep.subr.mxu0 0.0
    %6296 = vmatpush1.msra.mxu0 0.0
    %6297 = vmatprep.subr.mxu0 0.0
    %6298 = vmatpush1.msra.mxu0 0.0
    %6299 = vmatprep.subr.mxu0 0.0
    %6300 = vmatpush1.msra.mxu0 0.0
    %6301 = vmatprep.subr.mxu0 0.0
    %6302 = vmatpush1.msra.mxu0 0.0
    %6303 = vmatprep.subr.mxu0 0.0
    %6304 = vmatpush1.msra.mxu0 0.0
    %6305 = vmatprep.subr.mxu0 0.0
    %6306 = vmatpush1.msra.mxu0 0.0
    %6307 = vmatprep.subr.mxu0 0.0
    %6308 = vmatpush1.msra.mxu0 0.0
    %6309 = vmatprep.subr.mxu0 0.0
    %6310 = vmatpush1.msra.mxu0 0.0
    %6311 = vmatprep.subr.mxu0 0.0
    %6312 = vmatpush1.msra.mxu0 0.0
    %6313 = vmatprep.subr.mxu0 0.0
    %6314 = vmatpush1.msra.mxu0 0.0
    %6315 = vmatprep.subr.mxu0 0.0
    %6316 = vmatpush1.msra.mxu0 0.0
    %6317 = vmatprep.subr.mxu0 0.0
    %6318 = vmatpush1.msra.mxu0 0.0
    %6319 = vmatprep.subr.mxu0 0.0
    %6320 = vmatpush1.msra.mxu0 0.0
    %6321 = vmatprep.subr.mxu0 0.0
    %6322 = vmatpush1.msra.mxu0 0.0
    %6323 = vmatprep.subr.mxu0 0.0
    %6324 = vmatpush1.msra.mxu0 0.0
    %6325 = vmatprep.subr.mxu0 0.0
    %6326 = vmatpush1.msra.mxu0 0.0
    %6327 = vmatprep.subr.mxu0 0.0
    %6328 = vmatpush1.msra.mxu0 0.0
    %6329 = vmatprep.subr.mxu0 0.0
    %6330 = vmatpush1.msra.mxu0 0.0
    %6331 = vmatprep.subr.mxu0 0.0
    %6332 = vmatpush1.msra.mxu0 0.0
    %6333 = vmatprep.subr.mxu0 0.0
    %6334 = vmatpush1.msra.mxu0 0.0
    %6335 = vmatprep.subr.mxu0 0.0
    %6336 = vmatpush1.msra.mxu0 0.0
    %6337 = vmatprep.subr.mxu0 0.0
    %6338 = vmatpush1.msra.mxu0 0.0
    %6339 = vmatprep.subr.mxu0 0.0
    %6340 = vmatpush1.msra.mxu0 0.0
    %6341 = vmatprep.subr.mxu0 0.0
    %6342 = vmatpush1.msra.mxu0 0.0
    %6343 = vmatprep.subr.mxu0 0.0
    %6344 = vmatpush1.msra.mxu0 0.0
    %6345 = vmatprep.subr.mxu0 0.0
    %6346 = vmatpush1.msra.mxu0 0.0
    %6347 = vmatprep.subr.mxu0 0.0
    %6348 = vmatpush1.msra.mxu0 0.0
    %6349 = vmatprep.subr.mxu0 0.0
    %6350 = vmatpush1.msra.mxu0 0.0
    %6351 = vmatprep.subr.mxu0 0.0
    %6352 = vmatpush1.msra.mxu0 0.0
    %6353 = vmatprep.subr.mxu0 0.0
    %6354 = vmatpush1.msra.mxu0 0.0
    %6355 = vmatprep.subr.mxu0 0.0
    %6356 = vmatpush1.msra.mxu0 0.0
    %6357 = vmatprep.subr.mxu0 0.0
    %6358 = vmatpush1.msra.mxu0 0.0
    %6359 = vmatprep.mubr.f32.mxu0 0.0
    %v6360 = vand.u32 %v5968, 4294901760
    %6361 = vmatmul.mubr.f32.gmra.mrb[0].mxu0 %v6360
    %v6362 = vpop.f32.mrb[0].mxu0
    %v6363 = vadd.f32 %v6284, %v6362
    %v6364 = vpop.f32.mrb[0].mxu0
    %6365 = vmatprep.mubr.f32.mxu0 0.0
    %v6366 = vand.u32 %v5971, 4294901760
    %6367 = vmatmul.mubr.f32.gmra.mrb[0].mxu0 %v6366
    %v6368 = vpop.f32.mrb[0].mxu0
    %v6369 = vadd.f32 %v6292, %v6368
    %v6370 = vpop.f32.mrb[0].mxu0
    %6371 = vdwg.mxu0
    %6372 = vmatprep.subr.mxu0 0.0
    %6373 = vmatpush1.msra.mxu0 1.0
    %6374 = vmatprep.subr.mxu0 0.0
    %6375 = vmatpush1.msra.mxu0 1.0
    %6376 = vmatprep.subr.mxu0 0.0
    %6377 = vmatpush1.msra.mxu0 0.0
    %6378 = vmatprep.subr.mxu0 0.0
    %6379 = vmatpush1.msra.mxu0 0.0
    %6380 = vmatprep.subr.mxu0 0.0
    %6381 = vmatpush1.msra.mxu0 0.0
    %6382 = vmatprep.subr.mxu0 0.0
    %6383 = vmatpush1.msra.mxu0 0.0
    %6384 = vmatprep.subr.mxu0 0.0
    %6385 = vmatpush1.msra.mxu0 0.0
    %6386 = vmatprep.subr.mxu0 0.0
    %6387 = vmatpush1.msra.mxu0 0.0
    %6388 = vmatprep.subr.mxu0 0.0
    %6389 = vmatpush1.msra.mxu0 0.0
    %6390 = vmatprep.subr.mxu0 0.0
    %6391 = vmatpush1.msra.mxu0 0.0
    %6392 = vmatprep.subr.mxu0 0.0
    %6393 = vmatpush1.msra.mxu0 0.0
    %6394 = vmatprep.subr.mxu0 0.0
    %6395 = vmatpush1.msra.mxu0 0.0
    %6396 = vmatprep.subr.mxu0 0.0
    %6397 = vmatpush1.msra.mxu0 0.0
    %6398 = vmatprep.subr.mxu0 0.0
    %6399 = vmatpush1.msra.mxu0 0.0
    %6400 = vmatprep.subr.mxu0 0.0
    %6401 = vmatpush1.msra.mxu0 0.0
    %6402 = vmatprep.subr.mxu0 0.0
    %6403 = vmatpush1.msra.mxu0 0.0
    %6404 = vmatprep.subr.mxu0 0.0
    %6405 = vmatpush1.msra.mxu0 0.0
    %6406 = vmatprep.subr.mxu0 0.0
    %6407 = vmatpush1.msra.mxu0 0.0
    %6408 = vmatprep.subr.mxu0 0.0
    %6409 = vmatpush1.msra.mxu0 0.0
    %6410 = vmatprep.subr.mxu0 0.0
    %6411 = vmatpush1.msra.mxu0 0.0
    %6412 = vmatprep.subr.mxu0 0.0
    %6413 = vmatpush1.msra.mxu0 0.0
    %6414 = vmatprep.subr.mxu0 0.0
    %6415 = vmatpush1.msra.mxu0 0.0
    %6416 = vmatprep.subr.mxu0 0.0
    %6417 = vmatpush1.msra.mxu0 0.0
    %6418 = vmatprep.subr.mxu0 0.0
    %6419 = vmatpush1.msra.mxu0 0.0
    %6420 = vmatprep.subr.mxu0 0.0
    %6421 = vmatpush1.msra.mxu0 0.0
    %6422 = vmatprep.subr.mxu0 0.0
    %6423 = vmatpush1.msra.mxu0 0.0
    %6424 = vmatprep.subr.mxu0 0.0
    %6425 = vmatpush1.msra.mxu0 0.0
    %6426 = vmatprep.subr.mxu0 0.0
    %6427 = vmatpush1.msra.mxu0 0.0
    %6428 = vmatprep.subr.mxu0 0.0
    %6429 = vmatpush1.msra.mxu0 0.0
    %6430 = vmatprep.subr.mxu0 0.0
    %6431 = vmatpush1.msra.mxu0 0.0
    %6432 = vmatprep.subr.mxu0 0.0
    %6433 = vmatpush1.msra.mxu0 0.0
    %6434 = vmatprep.subr.mxu0 0.0
    %6435 = vmatpush1.msra.mxu0 0.0
    %6436 = vmatprep.mubr.f32.mxu0 0.0
    %v6437 = vand.u32 %v5968, 4294901760
    %6438 = vmatmul.mubr.f32.gmra.mrb[0].mxu0 %v6437
    %v6439 = vpop.f32.mrb[0].mxu0
    %v6440 = vadd.f32 %v6363, %v6439
    %v6441 = vpop.f32.mrb[0].mxu0
    %6442 = vmatprep.mubr.f32.mxu0 0.0
    %v6443 = vand.u32 %v5971, 4294901760
    %6444 = vmatmul.mubr.f32.gmra.mrb[0].mxu0 %v6443
    %v6445 = vpop.f32.mrb[0].mxu0
    %v6446 = vadd.f32 %v6369, %v6445
    %v6447 = vpop.f32.mrb[0].mxu0
    %6448 = vdwg.mxu0
    %v6449 = vmul.f32 %v5956, 0.0625
    %v6450 = vmul.f32 %v5962, 0.0625
    %v6451 = vmul.f32 %v6440, 0.0625
    %v6452 = vmul.f32 %v6446, 0.0625
    %v6453 = vmul.f32 %v6449, %v6449
    %v6454 = vmul.f32 %v6450, %v6450
    %v6455 = vsub.f32 %v6451, %v6453
    %v6456 = vsub.f32 %v6452, %v6454
    %v6457 = vmax.f32 %v6455, 0.0
    %v6458 = vmax.f32 %v6456, 0.0
    %v6459 = vld [vmem:[%s2 + $0x40] sm:$0xff]
    %v6460 = vld [vmem:[%s2 + $0x48] sm:$0x1f]
    %v6461 = vadd.f32 %v6457, 1e-05
    %v6462 = vadd.f32 %v6458, 1e-05
    %v6463 = vrsqrt.pop %v6461
    %v6464 = vrsqrt.pop %v6462
    %v6465 = vmul.f32 %v6459, %v6463
    %v6466 = vmul.f32 %v6460, %v6464
    %v6467 = vmul.f32 %v6449, %v6465
    %v6468 = vmul.f32 %v6450, %v6466
    %6471 = vrot.lane.b32.xlu0 %v6467, 1
    %v6472 = vpop.permute.xlu0 %6471
    %6473 = vrot.lane.b32.xlu0 %v6468, 1
    %v6474 = vpop.permute.xlu0 %6473
    %v6477 = vsub.f32 %v6459, %v6472
    %v6478 = vsub.f32 %v6460, %v6474
    %6480 = vset.pattern.permute.xlu0 0
    %6481 = vperm.xlu0 %6480, %v6465
    %v6482 = vpop.permute.xlu0 %6481
    %6485 = vset.pattern.permute.xlu0 0
    %6486 = vperm.xlu0 %6485, %v6466
    %v6487 = vpop.permute.xlu0 %6486
    %v6489 = vmul.f32 %v5474, %v6482
    %v6490 = vmul.f32 %v5480, %v6487
    %6492 = vset.pattern.permute.xlu0 1
    %6493 = vperm.xlu0 %6492, %v6477
    %v6494 = vpop.permute.xlu0 %6493
    %6497 = vset.pattern.permute.xlu0 1
    %6498 = vperm.xlu0 %6497, %v6478
    %v6499 = vpop.permute.xlu0 %6498
    %v6501 = vadd.f32 %v6489, %v6494
    %v6502 = vadd.f32 %v6490, %v6499
    %v6503 = vmax.f32 %v6501, 0.0
    %v6504 = vmax.f32 %v6502, 0.0
    %v6505 = vld [vmem:[%s1 + $0x50] sm:$0xff]
    %v6506 = vld [vmem:[%s1 + $0x58] sm:$0x3]
    %vm6507 = vcmask 105472
    %v6509 = vsel %vm6507, %v6505, 0
    %v6512 = vsel %vm6507, %v6506, 0
    %vm6514 = vcmask 1044480
    %v6516 = vsel %vm6514, %v6504, 0
    %6518 = vmatprep.subr.mxu0 0.0
    %v6519 = vand.u32 %v6503, 4294901760
    %6520 = vmatpush1.msra.mxu0 %v6519
    %6521 = vmatprep.subr.mxu0 0.0
    %v6522 = vand.u32 %v6516, 4294901760
    %6523 = vmatpush1.msra.mxu0 %v6522
    %6524 = vmatprep.subr.mxu0 0.0
    %6525 = vmatpush1.msra.mxu0 0.0
    %6526 = vmatprep.subr.mxu0 0.0
    %6527 = vmatpush1.msra.mxu0 0.0
    %6528 = vmatprep.subr.mxu0 0.0
    %6529 = vmatpush1.msra.mxu0 0.0
    %6530 = vmatprep.subr.mxu0 0.0
    %6531 = vmatpush1.msra.mxu0 0.0
    %6532 = vmatprep.subr.mxu0 0.0
    %6533 = vmatpush1.msra.mxu0 0.0
    %6534 = vmatprep.subr.mxu0 0.0
    %6535 = vmatpush1.msra.mxu0 0.0
    %6536 = vmatprep.subr.mxu0 0.0
    %6537 = vmatpush1.msra.mxu0 0.0
    %6538 = vmatprep.subr.mxu0 0.0
    %6539 = vmatpush1.msra.mxu0 0.0
    %6540 = vmatprep.subr.mxu0 0.0
    %6541 = vmatpush1.msra.mxu0 0.0
    %6542 = vmatprep.subr.mxu0 0.0
    %6543 = vmatpush1.msra.mxu0 0.0
    %6544 = vmatprep.subr.mxu0 0.0
    %6545 = vmatpush1.msra.mxu0 0.0
    %6546 = vmatprep.subr.mxu0 0.0
    %6547 = vmatpush1.msra.mxu0 0.0
    %6548 = vmatprep.subr.mxu0 0.0
    %6549 = vmatpush1.msra.mxu0 0.0
    %6550 = vmatprep.subr.mxu0 0.0
    %6551 = vmatpush1.msra.mxu0 0.0
    %6552 = vmatprep.subr.mxu0 0.0
    %6553 = vmatpush1.msra.mxu0 0.0
    %6554 = vmatprep.subr.mxu0 0.0
    %6555 = vmatpush1.msra.mxu0 0.0
    %6556 = vmatprep.subr.mxu0 0.0
    %6557 = vmatpush1.msra.mxu0 0.0
    %6558 = vmatprep.subr.mxu0 0.0
    %6559 = vmatpush1.msra.mxu0 0.0
    %6560 = vmatprep.subr.mxu0 0.0
    %6561 = vmatpush1.msra.mxu0 0.0
    %6562 = vmatprep.subr.mxu0 0.0
    %6563 = vmatpush1.msra.mxu0 0.0
    %6564 = vmatprep.subr.mxu0 0.0
    %6565 = vmatpush1.msra.mxu0 0.0
    %6566 = vmatprep.subr.mxu0 0.0
    %6567 = vmatpush1.msra.mxu0 0.0
    %6568 = vmatprep.subr.mxu0 0.0
    %6569 = vmatpush1.msra.mxu0 0.0
    %6570 = vmatprep.subr.mxu0 0.0
    %6571 = vmatpush1.msra.mxu0 0.0
    %6572 = vmatprep.subr.mxu0 0.0
    %6573 = vmatpush1.msra.mxu0 0.0
    %6574 = vmatprep.subr.mxu0 0.0
    %6575 = vmatpush1.msra.mxu0 0.0
    %6576 = vmatprep.subr.mxu0 0.0
    %6577 = vmatpush1.msra.mxu0 0.0
    %6578 = vmatprep.subr.mxu0 0.0
    %6579 = vmatpush1.msra.mxu0 0.0
    %6580 = vmatprep.subr.mxu0 0.0
    %6581 = vmatpush1.msra.mxu0 0.0
    %6582 = vmatprep.subr.mxu0 0.0
    %6583 = vmatpush1.msra.mxu0 0.0
    %6584 = vmatprep.mubr.f32.mxu0 0.0
    %v6585 = vand.u32 %v6509, 4294901760
    %v6586 = vsub.f32 %v6509, %v6585
    %v6587 = vand.u32 %v6586, 4294901760
    %v6588 = vsub.f32 %v6586, %v6587
    %v6589 = vand.u32 %v6588, 4294901760
    %6590 = vmatmul.mubr.f32.gmra.mrb[0].mxu0 %v6589
    %v6591 = vpop.f32.mrb[0].mxu0
    %v6592 = vadd.f32 0.0, %v6591
    %v6593 = vpop.f32.mrb[0].mxu0
    %6594 = vmatprep.mubr.f32.mxu0 0.0
    %v6595 = vand.u32 %v6512, 4294901760
    %v6596 = vsub.f32 %v6512, %v6595
    %v6597 = vand.u32 %v6596, 4294901760
    %v6598 = vsub.f32 %v6596, %v6597
    %v6599 = vand.u32 %v6598, 4294901760
    %6600 = vmatmul.mubr.f32.gmra.mrb[0].mxu0 %v6599
    %v6601 = vpop.f32.mrb[0].mxu0
    %v6602 = vadd.f32 0.0, %v6601
    %v6603 = vpop.f32.mrb[0].mxu0
    %6604 = vdwg.mxu0
    %6605 = vmatprep.subr.mxu0 0.0
    %v6606 = vand.u32 %v6503, 4294901760
    %v6607 = vsub.f32 %v6503, %v6606
    %v6608 = vand.u32 %v6607, 4294901760
    %v6609 = vsub.f32 %v6607, %v6608
    %v6610 = vand.u32 %v6609, 4294901760
    %6611 = vmatpush1.msra.mxu0 %v6610
    %6612 = vmatprep.subr.mxu0 0.0
    %v6613 = vand.u32 %v6516, 4294901760
    %v6614 = vsub.f32 %v6516, %v6613
    %v6615 = vand.u32 %v6614, 4294901760
    %v6616 = vsub.f32 %v6614, %v6615
    %v6617 = vand.u32 %v6616, 4294901760
    %6618 = vmatpush1.msra.mxu0 %v6617
    %6619 = vmatprep.subr.mxu0 0.0
    %6620 = vmatpush1.msra.mxu0 0.0
    %6621 = vmatprep.subr.mxu0 0.0
    %6622 = vmatpush1.msra.mxu0 0.0
    %6623 = vmatprep.subr.mxu0 0.0
    %6624 = vmatpush1.msra.mxu0 0.0
    %6625 = vmatprep.subr.mxu0 0.0
    %6626 = vmatpush1.msra.mxu0 0.0
    %6627 = vmatprep.subr.mxu0 0.0
    %6628 = vmatpush1.msra.mxu0 0.0
    %6629 = vmatprep.subr.mxu0 0.0
    %6630 = vmatpush1.msra.mxu0 0.0
    %6631 = vmatprep.subr.mxu0 0.0
    %6632 = vmatpush1.msra.mxu0 0.0
    %6633 = vmatprep.subr.mxu0 0.0
    %6634 = vmatpush1.msra.mxu0 0.0
    %6635 = vmatprep.subr.mxu0 0.0
    %6636 = vmatpush1.msra.mxu0 0.0
    %6637 = vmatprep.subr.mxu0 0.0
    %6638 = vmatpush1.msra.mxu0 0.0
    %6639 = vmatprep.subr.mxu0 0.0
    %6640 = vmatpush1.msra.mxu0 0.0
    %6641 = vmatprep.subr.mxu0 0.0
    %6642 = vmatpush1.msra.mxu0 0.0
    %6643 = vmatprep.subr.mxu0 0.0
    %6644 = vmatpush1.msra.mxu0 0.0
    %6645 = vmatprep.subr.mxu0 0.0
    %6646 = vmatpush1.msra.mxu0 0.0
    %6647 = vmatprep.subr.mxu0 0.0
    %6648 = vmatpush1.msra.mxu0 0.0
    %6649 = vmatprep.subr.mxu0 0.0
    %6650 = vmatpush1.msra.mxu0 0.0
    %6651 = vmatprep.subr.mxu0 0.0
    %6652 = vmatpush1.msra.mxu0 0.0
    %6653 = vmatprep.subr.mxu0 0.0
    %6654 = vmatpush1.msra.mxu0 0.0
    %6655 = vmatprep.subr.mxu0 0.0
    %6656 = vmatpush1.msra.mxu0 0.0
    %6657 = vmatprep.subr.mxu0 0.0
    %6658 = vmatpush1.msra.mxu0 0.0
    %6659 = vmatprep.subr.mxu0 0.0
    %6660 = vmatpush1.msra.mxu0 0.0
    %6661 = vmatprep.subr.mxu0 0.0
    %6662 = vmatpush1.msra.mxu0 0.0
    %6663 = vmatprep.subr.mxu0 0.0
    %6664 = vmatpush1.msra.mxu0 0.0
    %6665 = vmatprep.subr.mxu0 0.0
    %6666 = vmatpush1.msra.mxu0 0.0
    %6667 = vmatprep.subr.mxu0 0.0
    %6668 = vmatpush1.msra.mxu0 0.0
    %6669 = vmatprep.subr.mxu0 0.0
    %6670 = vmatpush1.msra.mxu0 0.0
    %6671 = vmatprep.subr.mxu0 0.0
    %6672 = vmatpush1.msra.mxu0 0.0
    %6673 = vmatprep.subr.mxu0 0.0
    %6674 = vmatpush1.msra.mxu0 0.0
    %6675 = vmatprep.subr.mxu0 0.0
    %6676 = vmatpush1.msra.mxu0 0.0
    %6677 = vmatprep.subr.mxu0 0.0
    %6678 = vmatpush1.msra.mxu0 0.0
    %6679 = vmatprep.mubr.f32.mxu0 0.0
    %v6680 = vand.u32 %v6509, 4294901760
    %6681 = vmatmul.mubr.f32.gmra.mrb[0].mxu0 %v6680
    %v6682 = vpop.f32.mrb[0].mxu0
    %v6683 = vadd.f32 %v6592, %v6682
    %v6684 = vpop.f32.mrb[0].mxu0
    %6685 = vmatprep.mubr.f32.mxu0 0.0
    %v6686 = vand.u32 %v6512, 4294901760
    %6687 = vmatmul.mubr.f32.gmra.mrb[0].mxu0 %v6686
    %v6688 = vpop.f32.mrb[0].mxu0
    %v6689 = vadd.f32 %v6602, %v6688
    %v6690 = vpop.f32.mrb[0].mxu0
    %6691 = vdwg.mxu0
    %6692 = vmatprep.subr.mxu0 0.0
    %v6693 = vand.u32 %v6503, 4294901760
    %v6694 = vsub.f32 %v6503, %v6693
    %6695 = vmatpush1.msra.mxu0 %v6694
    %6696 = vmatprep.subr.mxu0 0.0
    %v6697 = vand.u32 %v6516, 4294901760
    %v6698 = vsub.f32 %v6516, %v6697
    %6699 = vmatpush1.msra.mxu0 %v6698
    %6700 = vmatprep.subr.mxu0 0.0
    %6701 = vmatpush1.msra.mxu0 0.0
    %6702 = vmatprep.subr.mxu0 0.0
    %6703 = vmatpush1.msra.mxu0 0.0
    %6704 = vmatprep.subr.mxu0 0.0
    %6705 = vmatpush1.msra.mxu0 0.0
    %6706 = vmatprep.subr.mxu0 0.0
    %6707 = vmatpush1.msra.mxu0 0.0
    %6708 = vmatprep.subr.mxu0 0.0
    %6709 = vmatpush1.msra.mxu0 0.0
    %6710 = vmatprep.subr.mxu0 0.0
    %6711 = vmatpush1.msra.mxu0 0.0
    %6712 = vmatprep.subr.mxu0 0.0
    %6713 = vmatpush1.msra.mxu0 0.0
    %6714 = vmatprep.subr.mxu0 0.0
    %6715 = vmatpush1.msra.mxu0 0.0
    %6716 = vmatprep.subr.mxu0 0.0
    %6717 = vmatpush1.msra.mxu0 0.0
    %6718 = vmatprep.subr.mxu0 0.0
    %6719 = vmatpush1.msra.mxu0 0.0
    %6720 = vmatprep.subr.mxu0 0.0
    %6721 = vmatpush1.msra.mxu0 0.0
    %6722 = vmatprep.subr.mxu0 0.0
    %6723 = vmatpush1.msra.mxu0 0.0
    %6724 = vmatprep.subr.mxu0 0.0
    %6725 = vmatpush1.msra.mxu0 0.0
    %6726 = vmatprep.subr.mxu0 0.0
    %6727 = vmatpush1.msra.mxu0 0.0
    %6728 = vmatprep.subr.mxu0 0.0
    %6729 = vmatpush1.msra.mxu0 0.0
    %6730 = vmatprep.subr.mxu0 0.0
    %6731 = vmatpush1.msra.mxu0 0.0
    %6732 = vmatprep.subr.mxu0 0.0
    %6733 = vmatpush1.msra.mxu0 0.0
    %6734 = vmatprep.subr.mxu0 0.0
    %6735 = vmatpush1.msra.mxu0 0.0
    %6736 = vmatprep.subr.mxu0 0.0
    %6737 = vmatpush1.msra.mxu0 0.0
    %6738 = vmatprep.subr.mxu0 0.0
    %6739 = vmatpush1.msra.mxu0 0.0
    %6740 = vmatprep.subr.mxu0 0.0
    %6741 = vmatpush1.msra.mxu0 0.0
    %6742 = vmatprep.subr.mxu0 0.0
    %6743 = vmatpush1.msra.mxu0 0.0
    %6744 = vmatprep.subr.mxu0 0.0
    %6745 = vmatpush1.msra.mxu0 0.0
    %6746 = vmatprep.subr.mxu0 0.0
    %6747 = vmatpush1.msra.mxu0 0.0
    %6748 = vmatprep.subr.mxu0 0.0
    %6749 = vmatpush1.msra.mxu0 0.0
    %6750 = vmatprep.subr.mxu0 0.0
    %6751 = vmatpush1.msra.mxu0 0.0
    %6752 = vmatprep.subr.mxu0 0.0
    %6753 = vmatpush1.msra.mxu0 0.0
    %6754 = vmatprep.subr.mxu0 0.0
    %6755 = vmatpush1.msra.mxu0 0.0
    %6756 = vmatprep.subr.mxu0 0.0
    %6757 = vmatpush1.msra.mxu0 0.0
    %6758 = vmatprep.subr.mxu0 0.0
    %6759 = vmatpush1.msra.mxu0 0.0
    %6760 = vmatprep.mubr.f32.mxu0 0.0
    %v6761 = vand.u32 %v6509, 4294901760
    %v6762 = vsub.f32 %v6509, %v6761
    %6763 = vmatmul.mubr.f32.gmra.mrb[0].mxu0 %v6762
    %v6764 = vpop.f32.mrb[0].mxu0
    %v6765 = vadd.f32 %v6683, %v6764
    %v6766 = vpop.f32.mrb[0].mxu0
    %6767 = vmatprep.mubr.f32.mxu0 0.0
    %v6768 = vand.u32 %v6512, 4294901760
    %v6769 = vsub.f32 %v6512, %v6768
    %6770 = vmatmul.mubr.f32.gmra.mrb[0].mxu0 %v6769
    %v6771 = vpop.f32.mrb[0].mxu0
    %v6772 = vadd.f32 %v6689, %v6771
    %v6773 = vpop.f32.mrb[0].mxu0
    %6774 = vdwg.mxu0
    %6775 = vmatprep.subr.mxu0 0.0
    %v6776 = vand.u32 %v6503, 4294901760
    %6777 = vmatpush1.msra.mxu0 %v6776
    %6778 = vmatprep.subr.mxu0 0.0
    %v6779 = vand.u32 %v6516, 4294901760
    %6780 = vmatpush1.msra.mxu0 %v6779
    %6781 = vmatprep.subr.mxu0 0.0
    %6782 = vmatpush1.msra.mxu0 0.0
    %6783 = vmatprep.subr.mxu0 0.0
    %6784 = vmatpush1.msra.mxu0 0.0
    %6785 = vmatprep.subr.mxu0 0.0
    %6786 = vmatpush1.msra.mxu0 0.0
    %6787 = vmatprep.subr.mxu0 0.0
    %6788 = vmatpush1.msra.mxu0 0.0
    %6789 = vmatprep.subr.mxu0 0.0
    %6790 = vmatpush1.msra.mxu0 0.0
    %6791 = vmatprep.subr.mxu0 0.0
    %6792 = vmatpush1.msra.mxu0 0.0
    %6793 = vmatprep.subr.mxu0 0.0
    %6794 = vmatpush1.msra.mxu0 0.0
    %6795 = vmatprep.subr.mxu0 0.0
    %6796 = vmatpush1.msra.mxu0 0.0
    %6797 = vmatprep.subr.mxu0 0.0
    %6798 = vmatpush1.msra.mxu0 0.0
    %6799 = vmatprep.subr.mxu0 0.0
    %6800 = vmatpush1.msra.mxu0 0.0
    %6801 = vmatprep.subr.mxu0 0.0
    %6802 = vmatpush1.msra.mxu0 0.0
    %6803 = vmatprep.subr.mxu0 0.0
    %6804 = vmatpush1.msra.mxu0 0.0
    %6805 = vmatprep.subr.mxu0 0.0
    %6806 = vmatpush1.msra.mxu0 0.0
    %6807 = vmatprep.subr.mxu0 0.0
    %6808 = vmatpush1.msra.mxu0 0.0
    %6809 = vmatprep.subr.mxu0 0.0
    %6810 = vmatpush1.msra.mxu0 0.0
    %6811 = vmatprep.subr.mxu0 0.0
    %6812 = vmatpush1.msra.mxu0 0.0
    %6813 = vmatprep.subr.mxu0 0.0
    %6814 = vmatpush1.msra.mxu0 0.0
    %6815 = vmatprep.subr.mxu0 0.0
    %6816 = vmatpush1.msra.mxu0 0.0
    %6817 = vmatprep.subr.mxu0 0.0
    %6818 = vmatpush1.msra.mxu0 0.0
    %6819 = vmatprep.subr.mxu0 0.0
    %6820 = vmatpush1.msra.mxu0 0.0
    %6821 = vmatprep.subr.mxu0 0.0
    %6822 = vmatpush1.msra.mxu0 0.0
    %6823 = vmatprep.subr.mxu0 0.0
    %6824 = vmatpush1.msra.mxu0 0.0
    %6825 = vmatprep.subr.mxu0 0.0
    %6826 = vmatpush1.msra.mxu0 0.0
    %6827 = vmatprep.subr.mxu0 0.0
    %6828 = vmatpush1.msra.mxu0 0.0
    %6829 = vmatprep.subr.mxu0 0.0
    %6830 = vmatpush1.msra.mxu0 0.0
    %6831 = vmatprep.subr.mxu0 0.0
    %6832 = vmatpush1.msra.mxu0 0.0
    %6833 = vmatprep.subr.mxu0 0.0
    %6834 = vmatpush1.msra.mxu0 0.0
    %6835 = vmatprep.subr.mxu0 0.0
    %6836 = vmatpush1.msra.mxu0 0.0
    %6837 = vmatprep.subr.mxu0 0.0
    %6838 = vmatpush1.msra.mxu0 0.0
    %6839 = vmatprep.subr.mxu0 0.0
    %6840 = vmatpush1.msra.mxu0 0.0
    %6841 = vmatprep.mubr.f32.mxu0 0.0
    %v6842 = vand.u32 %v6509, 4294901760
    %v6843 = vsub.f32 %v6509, %v6842
    %v6844 = vand.u32 %v6843, 4294901760
    %6845 = vmatmul.mubr.f32.gmra.mrb[0].mxu0 %v6844
    %v6846 = vpop.f32.mrb[0].mxu0
    %v6847 = vadd.f32 %v6765, %v6846
    %v6848 = vpop.f32.mrb[0].mxu0
    %6849 = vmatprep.mubr.f32.mxu0 0.0
    %v6850 = vand.u32 %v6512, 4294901760
    %v6851 = vsub.f32 %v6512, %v6850
    %v6852 = vand.u32 %v6851, 4294901760
    %6853 = vmatmul.mubr.f32.gmra.mrb[0].mxu0 %v6852
    %v6854 = vpop.f32.mrb[0].mxu0
    %v6855 = vadd.f32 %v6772, %v6854
    %v6856 = vpop.f32.mrb[0].mxu0
    %6857 = vdwg.mxu0
    %6858 = vmatprep.subr.mxu0 0.0
    %v6859 = vand.u32 %v6503, 4294901760
    %v6860 = vsub.f32 %v6503, %v6859
    %v6861 = vand.u32 %v6860, 4294901760
    %6862 = vmatpush1.msra.mxu0 %v6861
    %6863 = vmatprep.subr.mxu0 0.0
    %v6864 = vand.u32 %v6516, 4294901760
    %v6865 = vsub.f32 %v6516, %v6864
    %v6866 = vand.u32 %v6865, 4294901760
    %6867 = vmatpush1.msra.mxu0 %v6866
    %6868 = vmatprep.subr.mxu0 0.0
    %6869 = vmatpush1.msra.mxu0 0.0
    %6870 = vmatprep.subr.mxu0 0.0
    %6871 = vmatpush1.msra.mxu0 0.0
    %6872 = vmatprep.subr.mxu0 0.0
    %6873 = vmatpush1.msra.mxu0 0.0
    %6874 = vmatprep.subr.mxu0 0.0
    %6875 = vmatpush1.msra.mxu0 0.0
    %6876 = vmatprep.subr.mxu0 0.0
    %6877 = vmatpush1.msra.mxu0 0.0
    %6878 = vmatprep.subr.mxu0 0.0
    %6879 = vmatpush1.msra.mxu0 0.0
    %6880 = vmatprep.subr.mxu0 0.0
    %6881 = vmatpush1.msra.mxu0 0.0
    %6882 = vmatprep.subr.mxu0 0.0
    %6883 = vmatpush1.msra.mxu0 0.0
    %6884 = vmatprep.subr.mxu0 0.0
    %6885 = vmatpush1.msra.mxu0 0.0
    %6886 = vmatprep.subr.mxu0 0.0
    %6887 = vmatpush1.msra.mxu0 0.0
    %6888 = vmatprep.subr.mxu0 0.0
    %6889 = vmatpush1.msra.mxu0 0.0
    %6890 = vmatprep.subr.mxu0 0.0
    %6891 = vmatpush1.msra.mxu0 0.0
    %6892 = vmatprep.subr.mxu0 0.0
    %6893 = vmatpush1.msra.mxu0 0.0
    %6894 = vmatprep.subr.mxu0 0.0
    %6895 = vmatpush1.msra.mxu0 0.0
    %6896 = vmatprep.subr.mxu0 0.0
    %6897 = vmatpush1.msra.mxu0 0.0
    %6898 = vmatprep.subr.mxu0 0.0
    %6899 = vmatpush1.msra.mxu0 0.0
    %6900 = vmatprep.subr.mxu0 0.0
    %6901 = vmatpush1.msra.mxu0 0.0
    %6902 = vmatprep.subr.mxu0 0.0
    %6903 = vmatpush1.msra.mxu0 0.0
    %6904 = vmatprep.subr.mxu0 0.0
    %6905 = vmatpush1.msra.mxu0 0.0
    %6906 = vmatprep.subr.mxu0 0.0
    %6907 = vmatpush1.msra.mxu0 0.0
    %6908 = vmatprep.subr.mxu0 0.0
    %6909 = vmatpush1.msra.mxu0 0.0
    %6910 = vmatprep.subr.mxu0 0.0
    %6911 = vmatpush1.msra.mxu0 0.0
    %6912 = vmatprep.subr.mxu0 0.0
    %6913 = vmatpush1.msra.mxu0 0.0
    %6914 = vmatprep.subr.mxu0 0.0
    %6915 = vmatpush1.msra.mxu0 0.0
    %6916 = vmatprep.subr.mxu0 0.0
    %6917 = vmatpush1.msra.mxu0 0.0
    %6918 = vmatprep.subr.mxu0 0.0
    %6919 = vmatpush1.msra.mxu0 0.0
    %6920 = vmatprep.subr.mxu0 0.0
    %6921 = vmatpush1.msra.mxu0 0.0
    %6922 = vmatprep.subr.mxu0 0.0
    %6923 = vmatpush1.msra.mxu0 0.0
    %6924 = vmatprep.subr.mxu0 0.0
    %6925 = vmatpush1.msra.mxu0 0.0
    %6926 = vmatprep.subr.mxu0 0.0
    %6927 = vmatpush1.msra.mxu0 0.0
    %6928 = vmatprep.mubr.f32.mxu0 0.0
    %v6929 = vand.u32 %v6509, 4294901760
    %6930 = vmatmul.mubr.f32.gmra.mrb[0].mxu0 %v6929
    %v6931 = vpop.f32.mrb[0].mxu0
    %v6932 = vadd.f32 %v6847, %v6931
    %v6933 = vpop.f32.mrb[0].mxu0
    %6934 = vmatprep.mubr.f32.mxu0 0.0
    %v6935 = vand.u32 %v6512, 4294901760
    %6936 = vmatmul.mubr.f32.gmra.mrb[0].mxu0 %v6935
    %v6937 = vpop.f32.mrb[0].mxu0
    %v6938 = vadd.f32 %v6855, %v6937
    %v6939 = vpop.f32.mrb[0].mxu0
    %6940 = vdwg.mxu0
    %6941 = vmatprep.subr.mxu0 0.0
    %v6942 = vand.u32 %v6503, 4294901760
    %6943 = vmatpush1.msra.mxu0 %v6942
    %6944 = vmatprep.subr.mxu0 0.0
    %v6945 = vand.u32 %v6516, 4294901760
    %6946 = vmatpush1.msra.mxu0 %v6945
    %6947 = vmatprep.subr.mxu0 0.0
    %6948 = vmatpush1.msra.mxu0 0.0
    %6949 = vmatprep.subr.mxu0 0.0
    %6950 = vmatpush1.msra.mxu0 0.0
    %6951 = vmatprep.subr.mxu0 0.0
    %6952 = vmatpush1.msra.mxu0 0.0
    %6953 = vmatprep.subr.mxu0 0.0
    %6954 = vmatpush1.msra.mxu0 0.0
    %6955 = vmatprep.subr.mxu0 0.0
    %6956 = vmatpush1.msra.mxu0 0.0
    %6957 = vmatprep.subr.mxu0 0.0
    %6958 = vmatpush1.msra.mxu0 0.0
    %6959 = vmatprep.subr.mxu0 0.0
    %6960 = vmatpush1.msra.mxu0 0.0
    %6961 = vmatprep.subr.mxu0 0.0
    %6962 = vmatpush1.msra.mxu0 0.0
    %6963 = vmatprep.subr.mxu0 0.0
    %6964 = vmatpush1.msra.mxu0 0.0
    %6965 = vmatprep.subr.mxu0 0.0
    %6966 = vmatpush1.msra.mxu0 0.0
    %6967 = vmatprep.subr.mxu0 0.0
    %6968 = vmatpush1.msra.mxu0 0.0
    %6969 = vmatprep.subr.mxu0 0.0
    %6970 = vmatpush1.msra.mxu0 0.0
    %6971 = vmatprep.subr.mxu0 0.0
    %6972 = vmatpush1.msra.mxu0 0.0
    %6973 = vmatprep.subr.mxu0 0.0
    %6974 = vmatpush1.msra.mxu0 0.0
    %6975 = vmatprep.subr.mxu0 0.0
    %6976 = vmatpush1.msra.mxu0 0.0
    %6977 = vmatprep.subr.mxu0 0.0
    %6978 = vmatpush1.msra.mxu0 0.0
    %6979 = vmatprep.subr.mxu0 0.0
    %6980 = vmatpush1.msra.mxu0 0.0
    %6981 = vmatprep.subr.mxu0 0.0
    %6982 = vmatpush1.msra.mxu0 0.0
    %6983 = vmatprep.subr.mxu0 0.0
    %6984 = vmatpush1.msra.mxu0 0.0
    %6985 = vmatprep.subr.mxu0 0.0
    %6986 = vmatpush1.msra.mxu0 0.0
    %6987 = vmatprep.subr.mxu0 0.0
    %6988 = vmatpush1.msra.mxu0 0.0
    %6989 = vmatprep.subr.mxu0 0.0
    %6990 = vmatpush1.msra.mxu0 0.0
    %6991 = vmatprep.subr.mxu0 0.0
    %6992 = vmatpush1.msra.mxu0 0.0
    %6993 = vmatprep.subr.mxu0 0.0
    %6994 = vmatpush1.msra.mxu0 0.0
    %6995 = vmatprep.subr.mxu0 0.0
    %6996 = vmatpush1.msra.mxu0 0.0
    %6997 = vmatprep.subr.mxu0 0.0
    %6998 = vmatpush1.msra.mxu0 0.0
    %6999 = vmatprep.subr.mxu0 0.0
    %7000 = vmatpush1.msra.mxu0 0.0
    %7001 = vmatprep.subr.mxu0 0.0
    %7002 = vmatpush1.msra.mxu0 0.0
    %7003 = vmatprep.subr.mxu0 0.0
    %7004 = vmatpush1.msra.mxu0 0.0
    %7005 = vmatprep.subr.mxu0 0.0
    %7006 = vmatpush1.msra.mxu0 0.0
    %7007 = vmatprep.mubr.f32.mxu0 0.0
    %v7008 = vand.u32 %v6509, 4294901760
    %7009 = vmatmul.mubr.f32.gmra.mrb[0].mxu0 %v7008
    %v7010 = vpop.f32.mrb[0].mxu0
    %v7011 = vadd.f32 %v6932, %v7010
    %v7012 = vpop.f32.mrb[0].mxu0
    %7013 = vmatprep.mubr.f32.mxu0 0.0
    %v7014 = vand.u32 %v6512, 4294901760
    %7015 = vmatmul.mubr.f32.gmra.mrb[0].mxu0 %v7014
    %v7016 = vpop.f32.mrb[0].mxu0
    %v7017 = vadd.f32 %v6938, %v7016
    %v7018 = vpop.f32.mrb[0].mxu0
    %7019 = vdwg.mxu0
    %v7021 = vsel %vm514, %v7011, 0
    %v7024 = vsel %vm514, %v7017, 0
    %7026 = vmatprep.subr.mxu0 0.0
    %7027 = vmatpush1.msra.mxu0 1.0
    %7028 = vmatprep.subr.mxu0 0.0
    %7029 = vmatpush1.msra.mxu0 1.0
    %7030 = vmatprep.subr.mxu0 0.0
    %7031 = vmatpush1.msra.mxu0 0.0
    %7032 = vmatprep.subr.mxu0 0.0
    %7033 = vmatpush1.msra.mxu0 0.0
    %7034 = vmatprep.subr.mxu0 0.0
    %7035 = vmatpush1.msra.mxu0 0.0
    %7036 = vmatprep.subr.mxu0 0.0
    %7037 = vmatpush1.msra.mxu0 0.0
    %7038 = vmatprep.subr.mxu0 0.0
    %7039 = vmatpush1.msra.mxu0 0.0
    %7040 = vmatprep.subr.mxu0 0.0
    %7041 = vmatpush1.msra.mxu0 0.0
    %7042 = vmatprep.subr.mxu0 0.0
    %7043 = vmatpush1.msra.mxu0 0.0
    %7044 = vmatprep.subr.mxu0 0.0
    %7045 = vmatpush1.msra.mxu0 0.0
    %7046 = vmatprep.subr.mxu0 0.0
    %7047 = vmatpush1.msra.mxu0 0.0
    %7048 = vmatprep.subr.mxu0 0.0
    %7049 = vmatpush1.msra.mxu0 0.0
    %7050 = vmatprep.subr.mxu0 0.0
    %7051 = vmatpush1.msra.mxu0 0.0
    %7052 = vmatprep.subr.mxu0 0.0
    %7053 = vmatpush1.msra.mxu0 0.0
    %7054 = vmatprep.subr.mxu0 0.0
    %7055 = vmatpush1.msra.mxu0 0.0
    %7056 = vmatprep.subr.mxu0 0.0
    %7057 = vmatpush1.msra.mxu0 0.0
    %7058 = vmatprep.subr.mxu0 0.0
    %7059 = vmatpush1.msra.mxu0 0.0
    %7060 = vmatprep.subr.mxu0 0.0
    %7061 = vmatpush1.msra.mxu0 0.0
    %7062 = vmatprep.subr.mxu0 0.0
    %7063 = vmatpush1.msra.mxu0 0.0
    %7064 = vmatprep.subr.mxu0 0.0
    %7065 = vmatpush1.msra.mxu0 0.0
    %7066 = vmatprep.subr.mxu0 0.0
    %7067 = vmatpush1.msra.mxu0 0.0
    %7068 = vmatprep.subr.mxu0 0.0
    %7069 = vmatpush1.msra.mxu0 0.0
    %7070 = vmatprep.subr.mxu0 0.0
    %7071 = vmatpush1.msra.mxu0 0.0
    %7072 = vmatprep.subr.mxu0 0.0
    %7073 = vmatpush1.msra.mxu0 0.0
    %7074 = vmatprep.subr.mxu0 0.0
    %7075 = vmatpush1.msra.mxu0 0.0
    %7076 = vmatprep.subr.mxu0 0.0
    %7077 = vmatpush1.msra.mxu0 0.0
    %7078 = vmatprep.subr.mxu0 0.0
    %7079 = vmatpush1.msra.mxu0 0.0
    %7080 = vmatprep.subr.mxu0 0.0
    %7081 = vmatpush1.msra.mxu0 0.0
    %7082 = vmatprep.subr.mxu0 0.0
    %7083 = vmatpush1.msra.mxu0 0.0
    %7084 = vmatprep.subr.mxu0 0.0
    %7085 = vmatpush1.msra.mxu0 0.0
    %7086 = vmatprep.subr.mxu0 0.0
    %7087 = vmatpush1.msra.mxu0 0.0
    %7088 = vmatprep.subr.mxu0 0.0
    %7089 = vmatpush1.msra.mxu0 0.0
    %7090 = vmatprep.mubr.f32.mxu0 0.0
    %v7091 = vand.u32 %v7021, 4294901760
    %v7092 = vsub.f32 %v7021, %v7091
    %v7093 = vand.u32 %v7092, 4294901760
    %v7094 = vsub.f32 %v7092, %v7093
    %v7095 = vand.u32 %v7094, 4294901760
    %7096 = vmatmul.mubr.f32.gmra.mrb[0].mxu0 %v7095
    %v7097 = vpop.f32.mrb[0].mxu0
    %v7098 = vadd.f32 0.0, %v7097
    %v7099 = vpop.f32.mrb[0].mxu0
    %7100 = vmatprep.mubr.f32.mxu0 0.0
    %v7101 = vand.u32 %v7024, 4294901760
    %v7102 = vsub.f32 %v7024, %v7101
    %v7103 = vand.u32 %v7102, 4294901760
    %v7104 = vsub.f32 %v7102, %v7103
    %v7105 = vand.u32 %v7104, 4294901760
    %7106 = vmatmul.mubr.f32.gmra.mrb[0].mxu0 %v7105
    %v7107 = vpop.f32.mrb[0].mxu0
    %v7108 = vadd.f32 0.0, %v7107
    %v7109 = vpop.f32.mrb[0].mxu0
    %7110 = vdwg.mxu0
    %7111 = vmatprep.subr.mxu0 0.0
    %7112 = vmatpush1.msra.mxu0 0.0
    %7113 = vmatprep.subr.mxu0 0.0
    %7114 = vmatpush1.msra.mxu0 0.0
    %7115 = vmatprep.subr.mxu0 0.0
    %7116 = vmatpush1.msra.mxu0 0.0
    %7117 = vmatprep.subr.mxu0 0.0
    %7118 = vmatpush1.msra.mxu0 0.0
    %7119 = vmatprep.subr.mxu0 0.0
    %7120 = vmatpush1.msra.mxu0 0.0
    %7121 = vmatprep.subr.mxu0 0.0
    %7122 = vmatpush1.msra.mxu0 0.0
    %7123 = vmatprep.subr.mxu0 0.0
    %7124 = vmatpush1.msra.mxu0 0.0
    %7125 = vmatprep.subr.mxu0 0.0
    %7126 = vmatpush1.msra.mxu0 0.0
    %7127 = vmatprep.subr.mxu0 0.0
    %7128 = vmatpush1.msra.mxu0 0.0
    %7129 = vmatprep.subr.mxu0 0.0
    %7130 = vmatpush1.msra.mxu0 0.0
    %7131 = vmatprep.subr.mxu0 0.0
    %7132 = vmatpush1.msra.mxu0 0.0
    %7133 = vmatprep.subr.mxu0 0.0
    %7134 = vmatpush1.msra.mxu0 0.0
    %7135 = vmatprep.subr.mxu0 0.0
    %7136 = vmatpush1.msra.mxu0 0.0
    %7137 = vmatprep.subr.mxu0 0.0
    %7138 = vmatpush1.msra.mxu0 0.0
    %7139 = vmatprep.subr.mxu0 0.0
    %7140 = vmatpush1.msra.mxu0 0.0
    %7141 = vmatprep.subr.mxu0 0.0
    %7142 = vmatpush1.msra.mxu0 0.0
    %7143 = vmatprep.subr.mxu0 0.0
    %7144 = vmatpush1.msra.mxu0 0.0
    %7145 = vmatprep.subr.mxu0 0.0
    %7146 = vmatpush1.msra.mxu0 0.0
    %7147 = vmatprep.subr.mxu0 0.0
    %7148 = vmatpush1.msra.mxu0 0.0
    %7149 = vmatprep.subr.mxu0 0.0
    %7150 = vmatpush1.msra.mxu0 0.0
    %7151 = vmatprep.subr.mxu0 0.0
    %7152 = vmatpush1.msra.mxu0 0.0
    %7153 = vmatprep.subr.mxu0 0.0
    %7154 = vmatpush1.msra.mxu0 0.0
    %7155 = vmatprep.subr.mxu0 0.0
    %7156 = vmatpush1.msra.mxu0 0.0
    %7157 = vmatprep.subr.mxu0 0.0
    %7158 = vmatpush1.msra.mxu0 0.0
    %7159 = vmatprep.subr.mxu0 0.0
    %7160 = vmatpush1.msra.mxu0 0.0
    %7161 = vmatprep.subr.mxu0 0.0
    %7162 = vmatpush1.msra.mxu0 0.0
    %7163 = vmatprep.subr.mxu0 0.0
    %7164 = vmatpush1.msra.mxu0 0.0
    %7165 = vmatprep.subr.mxu0 0.0
    %7166 = vmatpush1.msra.mxu0 0.0
    %7167 = vmatprep.subr.mxu0 0.0
    %7168 = vmatpush1.msra.mxu0 0.0
    %7169 = vmatprep.subr.mxu0 0.0
    %7170 = vmatpush1.msra.mxu0 0.0
    %7171 = vmatprep.subr.mxu0 0.0
    %7172 = vmatpush1.msra.mxu0 0.0
    %7173 = vmatprep.subr.mxu0 0.0
    %7174 = vmatpush1.msra.mxu0 0.0
    %7175 = vmatprep.mubr.f32.mxu0 0.0
    %v7176 = vand.u32 %v7021, 4294901760
    %7177 = vmatmul.mubr.f32.gmra.mrb[0].mxu0 %v7176
    %v7178 = vpop.f32.mrb[0].mxu0
    %v7179 = vadd.f32 %v7098, %v7178
    %v7180 = vpop.f32.mrb[0].mxu0
    %7181 = vmatprep.mubr.f32.mxu0 0.0
    %v7182 = vand.u32 %v7024, 4294901760
    %7183 = vmatmul.mubr.f32.gmra.mrb[0].mxu0 %v7182
    %v7184 = vpop.f32.mrb[0].mxu0
    %v7185 = vadd.f32 %v7108, %v7184
    %v7186 = vpop.f32.mrb[0].mxu0
    %7187 = vdwg.mxu0
    %7188 = vmatprep.subr.mxu0 0.0
    %7189 = vmatpush1.msra.mxu0 0.0
    %7190 = vmatprep.subr.mxu0 0.0
    %7191 = vmatpush1.msra.mxu0 0.0
    %7192 = vmatprep.subr.mxu0 0.0
    %7193 = vmatpush1.msra.mxu0 0.0
    %7194 = vmatprep.subr.mxu0 0.0
    %7195 = vmatpush1.msra.mxu0 0.0
    %7196 = vmatprep.subr.mxu0 0.0
    %7197 = vmatpush1.msra.mxu0 0.0
    %7198 = vmatprep.subr.mxu0 0.0
    %7199 = vmatpush1.msra.mxu0 0.0
    %7200 = vmatprep.subr.mxu0 0.0
    %7201 = vmatpush1.msra.mxu0 0.0
    %7202 = vmatprep.subr.mxu0 0.0
    %7203 = vmatpush1.msra.mxu0 0.0
    %7204 = vmatprep.subr.mxu0 0.0
    %7205 = vmatpush1.msra.mxu0 0.0
    %7206 = vmatprep.subr.mxu0 0.0
    %7207 = vmatpush1.msra.mxu0 0.0
    %7208 = vmatprep.subr.mxu0 0.0
    %7209 = vmatpush1.msra.mxu0 0.0
    %7210 = vmatprep.subr.mxu0 0.0
    %7211 = vmatpush1.msra.mxu0 0.0
    %7212 = vmatprep.subr.mxu0 0.0
    %7213 = vmatpush1.msra.mxu0 0.0
    %7214 = vmatprep.subr.mxu0 0.0
    %7215 = vmatpush1.msra.mxu0 0.0
    %7216 = vmatprep.subr.mxu0 0.0
    %7217 = vmatpush1.msra.mxu0 0.0
    %7218 = vmatprep.subr.mxu0 0.0
    %7219 = vmatpush1.msra.mxu0 0.0
    %7220 = vmatprep.subr.mxu0 0.0
    %7221 = vmatpush1.msra.mxu0 0.0
    %7222 = vmatprep.subr.mxu0 0.0
    %7223 = vmatpush1.msra.mxu0 0.0
    %7224 = vmatprep.subr.mxu0 0.0
    %7225 = vmatpush1.msra.mxu0 0.0
    %7226 = vmatprep.subr.mxu0 0.0
    %7227 = vmatpush1.msra.mxu0 0.0
    %7228 = vmatprep.subr.mxu0 0.0
    %7229 = vmatpush1.msra.mxu0 0.0
    %7230 = vmatprep.subr.mxu0 0.0
    %7231 = vmatpush1.msra.mxu0 0.0
    %7232 = vmatprep.subr.mxu0 0.0
    %7233 = vmatpush1.msra.mxu0 0.0
    %7234 = vmatprep.subr.mxu0 0.0
    %7235 = vmatpush1.msra.mxu0 0.0
    %7236 = vmatprep.subr.mxu0 0.0
    %7237 = vmatpush1.msra.mxu0 0.0
    %7238 = vmatprep.subr.mxu0 0.0
    %7239 = vmatpush1.msra.mxu0 0.0
    %7240 = vmatprep.subr.mxu0 0.0
    %7241 = vmatpush1.msra.mxu0 0.0
    %7242 = vmatprep.subr.mxu0 0.0
    %7243 = vmatpush1.msra.mxu0 0.0
    %7244 = vmatprep.subr.mxu0 0.0
    %7245 = vmatpush1.msra.mxu0 0.0
    %7246 = vmatprep.subr.mxu0 0.0
    %7247 = vmatpush1.msra.mxu0 0.0
    %7248 = vmatprep.subr.mxu0 0.0
    %7249 = vmatpush1.msra.mxu0 0.0
    %7250 = vmatprep.subr.mxu0 0.0
    %7251 = vmatpush1.msra.mxu0 0.0
    %7252 = vmatprep.mubr.f32.mxu0 0.0
    %v7253 = vand.u32 %v7021, 4294901760
    %v7254 = vsub.f32 %v7021, %v7253
    %7255 = vmatmul.mubr.f32.gmra.mrb[0].mxu0 %v7254
    %v7256 = vpop.f32.mrb[0].mxu0
    %v7257 = vadd.f32 %v7179, %v7256
    %v7258 = vpop.f32.mrb[0].mxu0
    %7259 = vmatprep.mubr.f32.mxu0 0.0
    %v7260 = vand.u32 %v7024, 4294901760
    %v7261 = vsub.f32 %v7024, %v7260
    %7262 = vmatmul.mubr.f32.gmra.mrb[0].mxu0 %v7261
    %v7263 = vpop.f32.mrb[0].mxu0
    %v7264 = vadd.f32 %v7185, %v7263
    %v7265 = vpop.f32.mrb[0].mxu0
    %7266 = vdwg.mxu0
    %7267 = vmatprep.subr.mxu0 0.0
    %7268 = vmatpush1.msra.mxu0 1.0
    %7269 = vmatprep.subr.mxu0 0.0
    %7270 = vmatpush1.msra.mxu0 1.0
    %7271 = vmatprep.subr.mxu0 0.0
    %7272 = vmatpush1.msra.mxu0 0.0
    %7273 = vmatprep.subr.mxu0 0.0
    %7274 = vmatpush1.msra.mxu0 0.0
    %7275 = vmatprep.subr.mxu0 0.0
    %7276 = vmatpush1.msra.mxu0 0.0
    %7277 = vmatprep.subr.mxu0 0.0
    %7278 = vmatpush1.msra.mxu0 0.0
    %7279 = vmatprep.subr.mxu0 0.0
    %7280 = vmatpush1.msra.mxu0 0.0
    %7281 = vmatprep.subr.mxu0 0.0
    %7282 = vmatpush1.msra.mxu0 0.0
    %7283 = vmatprep.subr.mxu0 0.0
    %7284 = vmatpush1.msra.mxu0 0.0
    %7285 = vmatprep.subr.mxu0 0.0
    %7286 = vmatpush1.msra.mxu0 0.0
    %7287 = vmatprep.subr.mxu0 0.0
    %7288 = vmatpush1.msra.mxu0 0.0
    %7289 = vmatprep.subr.mxu0 0.0
    %7290 = vmatpush1.msra.mxu0 0.0
    %7291 = vmatprep.subr.mxu0 0.0
    %7292 = vmatpush1.msra.mxu0 0.0
    %7293 = vmatprep.subr.mxu0 0.0
    %7294 = vmatpush1.msra.mxu0 0.0
    %7295 = vmatprep.subr.mxu0 0.0
    %7296 = vmatpush1.msra.mxu0 0.0
    %7297 = vmatprep.subr.mxu0 0.0
    %7298 = vmatpush1.msra.mxu0 0.0
    %7299 = vmatprep.subr.mxu0 0.0
    %7300 = vmatpush1.msra.mxu0 0.0
    %7301 = vmatprep.subr.mxu0 0.0
    %7302 = vmatpush1.msra.mxu0 0.0
    %7303 = vmatprep.subr.mxu0 0.0
    %7304 = vmatpush1.msra.mxu0 0.0
    %7305 = vmatprep.subr.mxu0 0.0
    %7306 = vmatpush1.msra.mxu0 0.0
    %7307 = vmatprep.subr.mxu0 0.0
    %7308 = vmatpush1.msra.mxu0 0.0
    %7309 = vmatprep.subr.mxu0 0.0
    %7310 = vmatpush1.msra.mxu0 0.0
    %7311 = vmatprep.subr.mxu0 0.0
    %7312 = vmatpush1.msra.mxu0 0.0
    %7313 = vmatprep.subr.mxu0 0.0
    %7314 = vmatpush1.msra.mxu0 0.0
    %7315 = vmatprep.subr.mxu0 0.0
    %7316 = vmatpush1.msra.mxu0 0.0
    %7317 = vmatprep.subr.mxu0 0.0
    %7318 = vmatpush1.msra.mxu0 0.0
    %7319 = vmatprep.subr.mxu0 0.0
    %7320 = vmatpush1.msra.mxu0 0.0
    %7321 = vmatprep.subr.mxu0 0.0
    %7322 = vmatpush1.msra.mxu0 0.0
    %7323 = vmatprep.subr.mxu0 0.0
    %7324 = vmatpush1.msra.mxu0 0.0
    %7325 = vmatprep.subr.mxu0 0.0
    %7326 = vmatpush1.msra.mxu0 0.0
    %7327 = vmatprep.subr.mxu0 0.0
    %7328 = vmatpush1.msra.mxu0 0.0
    %7329 = vmatprep.subr.mxu0 0.0
    %7330 = vmatpush1.msra.mxu0 0.0
    %7331 = vmatprep.mubr.f32.mxu0 0.0
    %v7332 = vand.u32 %v7021, 4294901760
    %v7333 = vsub.f32 %v7021, %v7332
    %v7334 = vand.u32 %v7333, 4294901760
    %7335 = vmatmul.mubr.f32.gmra.mrb[0].mxu0 %v7334
    %v7336 = vpop.f32.mrb[0].mxu0
    %v7337 = vadd.f32 %v7257, %v7336
    %v7338 = vpop.f32.mrb[0].mxu0
    %7339 = vmatprep.mubr.f32.mxu0 0.0
    %v7340 = vand.u32 %v7024, 4294901760
    %v7341 = vsub.f32 %v7024, %v7340
    %v7342 = vand.u32 %v7341, 4294901760
    %7343 = vmatmul.mubr.f32.gmra.mrb[0].mxu0 %v7342
    %v7344 = vpop.f32.mrb[0].mxu0
    %v7345 = vadd.f32 %v7264, %v7344
    %v7346 = vpop.f32.mrb[0].mxu0
    %7347 = vdwg.mxu0
    %7348 = vmatprep.subr.mxu0 0.0
    %7349 = vmatpush1.msra.mxu0 0.0
    %7350 = vmatprep.subr.mxu0 0.0
    %7351 = vmatpush1.msra.mxu0 0.0
    %7352 = vmatprep.subr.mxu0 0.0
    %7353 = vmatpush1.msra.mxu0 0.0
    %7354 = vmatprep.subr.mxu0 0.0
    %7355 = vmatpush1.msra.mxu0 0.0
    %7356 = vmatprep.subr.mxu0 0.0
    %7357 = vmatpush1.msra.mxu0 0.0
    %7358 = vmatprep.subr.mxu0 0.0
    %7359 = vmatpush1.msra.mxu0 0.0
    %7360 = vmatprep.subr.mxu0 0.0
    %7361 = vmatpush1.msra.mxu0 0.0
    %7362 = vmatprep.subr.mxu0 0.0
    %7363 = vmatpush1.msra.mxu0 0.0
    %7364 = vmatprep.subr.mxu0 0.0
    %7365 = vmatpush1.msra.mxu0 0.0
    %7366 = vmatprep.subr.mxu0 0.0
    %7367 = vmatpush1.msra.mxu0 0.0
    %7368 = vmatprep.subr.mxu0 0.0
    %7369 = vmatpush1.msra.mxu0 0.0
    %7370 = vmatprep.subr.mxu0 0.0
    %7371 = vmatpush1.msra.mxu0 0.0
    %7372 = vmatprep.subr.mxu0 0.0
    %7373 = vmatpush1.msra.mxu0 0.0
    %7374 = vmatprep.subr.mxu0 0.0
    %7375 = vmatpush1.msra.mxu0 0.0
    %7376 = vmatprep.subr.mxu0 0.0
    %7377 = vmatpush1.msra.mxu0 0.0
    %7378 = vmatprep.subr.mxu0 0.0
    %7379 = vmatpush1.msra.mxu0 0.0
    %7380 = vmatprep.subr.mxu0 0.0
    %7381 = vmatpush1.msra.mxu0 0.0
    %7382 = vmatprep.subr.mxu0 0.0
    %7383 = vmatpush1.msra.mxu0 0.0
    %7384 = vmatprep.subr.mxu0 0.0
    %7385 = vmatpush1.msra.mxu0 0.0
    %7386 = vmatprep.subr.mxu0 0.0
    %7387 = vmatpush1.msra.mxu0 0.0
    %7388 = vmatprep.subr.mxu0 0.0
    %7389 = vmatpush1.msra.mxu0 0.0
    %7390 = vmatprep.subr.mxu0 0.0
    %7391 = vmatpush1.msra.mxu0 0.0
    %7392 = vmatprep.subr.mxu0 0.0
    %7393 = vmatpush1.msra.mxu0 0.0
    %7394 = vmatprep.subr.mxu0 0.0
    %7395 = vmatpush1.msra.mxu0 0.0
    %7396 = vmatprep.subr.mxu0 0.0
    %7397 = vmatpush1.msra.mxu0 0.0
    %7398 = vmatprep.subr.mxu0 0.0
    %7399 = vmatpush1.msra.mxu0 0.0
    %7400 = vmatprep.subr.mxu0 0.0
    %7401 = vmatpush1.msra.mxu0 0.0
    %7402 = vmatprep.subr.mxu0 0.0
    %7403 = vmatpush1.msra.mxu0 0.0
    %7404 = vmatprep.subr.mxu0 0.0
    %7405 = vmatpush1.msra.mxu0 0.0
    %7406 = vmatprep.subr.mxu0 0.0
    %7407 = vmatpush1.msra.mxu0 0.0
    %7408 = vmatprep.subr.mxu0 0.0
    %7409 = vmatpush1.msra.mxu0 0.0
    %7410 = vmatprep.subr.mxu0 0.0
    %7411 = vmatpush1.msra.mxu0 0.0
    %7412 = vmatprep.mubr.f32.mxu0 0.0
    %v7413 = vand.u32 %v7021, 4294901760
    %7414 = vmatmul.mubr.f32.gmra.mrb[0].mxu0 %v7413
    %v7415 = vpop.f32.mrb[0].mxu0
    %v7416 = vadd.f32 %v7337, %v7415
    %v7417 = vpop.f32.mrb[0].mxu0
    %7418 = vmatprep.mubr.f32.mxu0 0.0
    %v7419 = vand.u32 %v7024, 4294901760
    %7420 = vmatmul.mubr.f32.gmra.mrb[0].mxu0 %v7419
    %v7421 = vpop.f32.mrb[0].mxu0
    %v7422 = vadd.f32 %v7345, %v7421
    %v7423 = vpop.f32.mrb[0].mxu0
    %7424 = vdwg.mxu0
    %7425 = vmatprep.subr.mxu0 0.0
    %7426 = vmatpush1.msra.mxu0 1.0
    %7427 = vmatprep.subr.mxu0 0.0
    %7428 = vmatpush1.msra.mxu0 1.0
    %7429 = vmatprep.subr.mxu0 0.0
    %7430 = vmatpush1.msra.mxu0 0.0
    %7431 = vmatprep.subr.mxu0 0.0
    %7432 = vmatpush1.msra.mxu0 0.0
    %7433 = vmatprep.subr.mxu0 0.0
    %7434 = vmatpush1.msra.mxu0 0.0
    %7435 = vmatprep.subr.mxu0 0.0
    %7436 = vmatpush1.msra.mxu0 0.0
    %7437 = vmatprep.subr.mxu0 0.0
    %7438 = vmatpush1.msra.mxu0 0.0
    %7439 = vmatprep.subr.mxu0 0.0
    %7440 = vmatpush1.msra.mxu0 0.0
    %7441 = vmatprep.subr.mxu0 0.0
    %7442 = vmatpush1.msra.mxu0 0.0
    %7443 = vmatprep.subr.mxu0 0.0
    %7444 = vmatpush1.msra.mxu0 0.0
    %7445 = vmatprep.subr.mxu0 0.0
    %7446 = vmatpush1.msra.mxu0 0.0
    %7447 = vmatprep.subr.mxu0 0.0
    %7448 = vmatpush1.msra.mxu0 0.0
    %7449 = vmatprep.subr.mxu0 0.0
    %7450 = vmatpush1.msra.mxu0 0.0
    %7451 = vmatprep.subr.mxu0 0.0
    %7452 = vmatpush1.msra.mxu0 0.0
    %7453 = vmatprep.subr.mxu0 0.0
    %7454 = vmatpush1.msra.mxu0 0.0
    %7455 = vmatprep.subr.mxu0 0.0
    %7456 = vmatpush1.msra.mxu0 0.0
    %7457 = vmatprep.subr.mxu0 0.0
    %7458 = vmatpush1.msra.mxu0 0.0
    %7459 = vmatprep.subr.mxu0 0.0
    %7460 = vmatpush1.msra.mxu0 0.0
    %7461 = vmatprep.subr.mxu0 0.0
    %7462 = vmatpush1.msra.mxu0 0.0
    %7463 = vmatprep.subr.mxu0 0.0
    %7464 = vmatpush1.msra.mxu0 0.0
    %7465 = vmatprep.subr.mxu0 0.0
    %7466 = vmatpush1.msra.mxu0 0.0
    %7467 = vmatprep.subr.mxu0 0.0
    %7468 = vmatpush1.msra.mxu0 0.0
    %7469 = vmatprep.subr.mxu0 0.0
    %7470 = vmatpush1.msra.mxu0 0.0
    %7471 = vmatprep.subr.mxu0 0.0
    %7472 = vmatpush1.msra.mxu0 0.0
    %7473 = vmatprep.subr.mxu0 0.0
    %7474 = vmatpush1.msra.mxu0 0.0
    %7475 = vmatprep.subr.mxu0 0.0
    %7476 = vmatpush1.msra.mxu0 0.0
    %7477 = vmatprep.subr.mxu0 0.0
    %7478 = vmatpush1.msra.mxu0 0.0
    %7479 = vmatprep.subr.mxu0 0.0
    %7480 = vmatpush1.msra.mxu0 0.0
    %7481 = vmatprep.subr.mxu0 0.0
    %7482 = vmatpush1.msra.mxu0 0.0
    %7483 = vmatprep.subr.mxu0 0.0
    %7484 = vmatpush1.msra.mxu0 0.0
    %7485 = vmatprep.subr.mxu0 0.0
    %7486 = vmatpush1.msra.mxu0 0.0
    %7487 = vmatprep.subr.mxu0 0.0
    %7488 = vmatpush1.msra.mxu0 0.0
    %7489 = vmatprep.mubr.f32.mxu0 0.0
    %v7490 = vand.u32 %v7021, 4294901760
    %7491 = vmatmul.mubr.f32.gmra.mrb[0].mxu0 %v7490
    %v7492 = vpop.f32.mrb[0].mxu0
    %v7493 = vadd.f32 %v7416, %v7492
    %v7494 = vpop.f32.mrb[0].mxu0
    %7495 = vmatprep.mubr.f32.mxu0 0.0
    %v7496 = vand.u32 %v7024, 4294901760
    %7497 = vmatmul.mubr.f32.gmra.mrb[0].mxu0 %v7496
    %v7498 = vpop.f32.mrb[0].mxu0
    %v7499 = vadd.f32 %v7422, %v7498
    %v7500 = vpop.f32.mrb[0].mxu0
    %7501 = vdwg.mxu0
    %v7502 = vmul.f32 %v7011, %v7011
    %v7503 = vmul.f32 %v7017, %v7017
    %v7505 = vsel %vm514, %v7502, 0
    %v7508 = vsel %vm514, %v7503, 0
    %7510 = vmatprep.subr.mxu0 0.0
    %7511 = vmatpush1.msra.mxu0 1.0
    %7512 = vmatprep.subr.mxu0 0.0
    %7513 = vmatpush1.msra.mxu0 1.0
    %7514 = vmatprep.subr.mxu0 0.0
    %7515 = vmatpush1.msra.mxu0 0.0
    %7516 = vmatprep.subr.mxu0 0.0
    %7517 = vmatpush1.msra.mxu0 0.0
    %7518 = vmatprep.subr.mxu0 0.0
    %7519 = vmatpush1.msra.mxu0 0.0
    %7520 = vmatprep.subr.mxu0 0.0
    %7521 = vmatpush1.msra.mxu0 0.0
    %7522 = vmatprep.subr.mxu0 0.0
    %7523 = vmatpush1.msra.mxu0 0.0
    %7524 = vmatprep.subr.mxu0 0.0
    %7525 = vmatpush1.msra.mxu0 0.0
    %7526 = vmatprep.subr.mxu0 0.0
    %7527 = vmatpush1.msra.mxu0 0.0
    %7528 = vmatprep.subr.mxu0 0.0
    %7529 = vmatpush1.msra.mxu0 0.0
    %7530 = vmatprep.subr.mxu0 0.0
    %7531 = vmatpush1.msra.mxu0 0.0
    %7532 = vmatprep.subr.mxu0 0.0
    %7533 = vmatpush1.msra.mxu0 0.0
    %7534 = vmatprep.subr.mxu0 0.0
    %7535 = vmatpush1.msra.mxu0 0.0
    %7536 = vmatprep.subr.mxu0 0.0
    %7537 = vmatpush1.msra.mxu0 0.0
    %7538 = vmatprep.subr.mxu0 0.0
    %7539 = vmatpush1.msra.mxu0 0.0
    %7540 = vmatprep.subr.mxu0 0.0
    %7541 = vmatpush1.msra.mxu0 0.0
    %7542 = vmatprep.subr.mxu0 0.0
    %7543 = vmatpush1.msra.mxu0 0.0
    %7544 = vmatprep.subr.mxu0 0.0
    %7545 = vmatpush1.msra.mxu0 0.0
    %7546 = vmatprep.subr.mxu0 0.0
    %7547 = vmatpush1.msra.mxu0 0.0
    %7548 = vmatprep.subr.mxu0 0.0
    %7549 = vmatpush1.msra.mxu0 0.0
    %7550 = vmatprep.subr.mxu0 0.0
    %7551 = vmatpush1.msra.mxu0 0.0
    %7552 = vmatprep.subr.mxu0 0.0
    %7553 = vmatpush1.msra.mxu0 0.0
    %7554 = vmatprep.subr.mxu0 0.0
    %7555 = vmatpush1.msra.mxu0 0.0
    %7556 = vmatprep.subr.mxu0 0.0
    %7557 = vmatpush1.msra.mxu0 0.0
    %7558 = vmatprep.subr.mxu0 0.0
    %7559 = vmatpush1.msra.mxu0 0.0
    %7560 = vmatprep.subr.mxu0 0.0
    %7561 = vmatpush1.msra.mxu0 0.0
    %7562 = vmatprep.subr.mxu0 0.0
    %7563 = vmatpush1.msra.mxu0 0.0
    %7564 = vmatprep.subr.mxu0 0.0
    %7565 = vmatpush1.msra.mxu0 0.0
    %7566 = vmatprep.subr.mxu0 0.0
    %7567 = vmatpush1.msra.mxu0 0.0
    %7568 = vmatprep.subr.mxu0 0.0
    %7569 = vmatpush1.msra.mxu0 0.0
    %7570 = vmatprep.subr.mxu0 0.0
    %7571 = vmatpush1.msra.mxu0 0.0
    %7572 = vmatprep.subr.mxu0 0.0
    %7573 = vmatpush1.msra.mxu0 0.0
    %7574 = vmatprep.mubr.f32.mxu0 0.0
    %v7575 = vand.u32 %v7505, 4294901760
    %v7576 = vsub.f32 %v7505, %v7575
    %v7577 = vand.u32 %v7576, 4294901760
    %v7578 = vsub.f32 %v7576, %v7577
    %v7579 = vand.u32 %v7578, 4294901760
    %7580 = vmatmul.mubr.f32.gmra.mrb[0].mxu0 %v7579
    %v7581 = vpop.f32.mrb[0].mxu0
    %v7582 = vadd.f32 0.0, %v7581
    %v7583 = vpop.f32.mrb[0].mxu0
    %7584 = vmatprep.mubr.f32.mxu0 0.0
    %v7585 = vand.u32 %v7508, 4294901760
    %v7586 = vsub.f32 %v7508, %v7585
    %v7587 = vand.u32 %v7586, 4294901760
    %v7588 = vsub.f32 %v7586, %v7587
    %v7589 = vand.u32 %v7588, 4294901760
    %7590 = vmatmul.mubr.f32.gmra.mrb[0].mxu0 %v7589
    %v7591 = vpop.f32.mrb[0].mxu0
    %v7592 = vadd.f32 0.0, %v7591
    %v7593 = vpop.f32.mrb[0].mxu0
    %7594 = vdwg.mxu0
    %7595 = vmatprep.subr.mxu0 0.0
    %7596 = vmatpush1.msra.mxu0 0.0
    %7597 = vmatprep.subr.mxu0 0.0
    %7598 = vmatpush1.msra.mxu0 0.0
    %7599 = vmatprep.subr.mxu0 0.0
    %7600 = vmatpush1.msra.mxu0 0.0
    %7601 = vmatprep.subr.mxu0 0.0
    %7602 = vmatpush1.msra.mxu0 0.0
    %7603 = vmatprep.subr.mxu0 0.0
    %7604 = vmatpush1.msra.mxu0 0.0
    %7605 = vmatprep.subr.mxu0 0.0
    %7606 = vmatpush1.msra.mxu0 0.0
    %7607 = vmatprep.subr.mxu0 0.0
    %7608 = vmatpush1.msra.mxu0 0.0
    %7609 = vmatprep.subr.mxu0 0.0
    %7610 = vmatpush1.msra.mxu0 0.0
    %7611 = vmatprep.subr.mxu0 0.0
    %7612 = vmatpush1.msra.mxu0 0.0
    %7613 = vmatprep.subr.mxu0 0.0
    %7614 = vmatpush1.msra.mxu0 0.0
    %7615 = vmatprep.subr.mxu0 0.0
    %7616 = vmatpush1.msra.mxu0 0.0
    %7617 = vmatprep.subr.mxu0 0.0
    %7618 = vmatpush1.msra.mxu0 0.0
    %7619 = vmatprep.subr.mxu0 0.0
    %7620 = vmatpush1.msra.mxu0 0.0
    %7621 = vmatprep.subr.mxu0 0.0
    %7622 = vmatpush1.msra.mxu0 0.0
    %7623 = vmatprep.subr.mxu0 0.0
    %7624 = vmatpush1.msra.mxu0 0.0
    %7625 = vmatprep.subr.mxu0 0.0
    %7626 = vmatpush1.msra.mxu0 0.0
    %7627 = vmatprep.subr.mxu0 0.0
    %7628 = vmatpush1.msra.mxu0 0.0
    %7629 = vmatprep.subr.mxu0 0.0
    %7630 = vmatpush1.msra.mxu0 0.0
    %7631 = vmatprep.subr.mxu0 0.0
    %7632 = vmatpush1.msra.mxu0 0.0
    %7633 = vmatprep.subr.mxu0 0.0
    %7634 = vmatpush1.msra.mxu0 0.0
    %7635 = vmatprep.subr.mxu0 0.0
    %7636 = vmatpush1.msra.mxu0 0.0
    %7637 = vmatprep.subr.mxu0 0.0
    %7638 = vmatpush1.msra.mxu0 0.0
    %7639 = vmatprep.subr.mxu0 0.0
    %7640 = vmatpush1.msra.mxu0 0.0
    %7641 = vmatprep.subr.mxu0 0.0
    %7642 = vmatpush1.msra.mxu0 0.0
    %7643 = vmatprep.subr.mxu0 0.0
    %7644 = vmatpush1.msra.mxu0 0.0
    %7645 = vmatprep.subr.mxu0 0.0
    %7646 = vmatpush1.msra.mxu0 0.0
    %7647 = vmatprep.subr.mxu0 0.0
    %7648 = vmatpush1.msra.mxu0 0.0
    %7649 = vmatprep.subr.mxu0 0.0
    %7650 = vmatpush1.msra.mxu0 0.0
    %7651 = vmatprep.subr.mxu0 0.0
    %7652 = vmatpush1.msra.mxu0 0.0
    %7653 = vmatprep.subr.mxu0 0.0
    %7654 = vmatpush1.msra.mxu0 0.0
    %7655 = vmatprep.subr.mxu0 0.0
    %7656 = vmatpush1.msra.mxu0 0.0
    %7657 = vmatprep.subr.mxu0 0.0
    %7658 = vmatpush1.msra.mxu0 0.0
    %7659 = vmatprep.mubr.f32.mxu0 0.0
    %v7660 = vand.u32 %v7505, 4294901760
    %7661 = vmatmul.mubr.f32.gmra.mrb[0].mxu0 %v7660
    %v7662 = vpop.f32.mrb[0].mxu0
    %v7663 = vadd.f32 %v7582, %v7662
    %v7664 = vpop.f32.mrb[0].mxu0
    %7665 = vmatprep.mubr.f32.mxu0 0.0
    %v7666 = vand.u32 %v7508, 4294901760
    %7667 = vmatmul.mubr.f32.gmra.mrb[0].mxu0 %v7666
    %v7668 = vpop.f32.mrb[0].mxu0
    %v7669 = vadd.f32 %v7592, %v7668
    %v7670 = vpop.f32.mrb[0].mxu0
    %7671 = vdwg.mxu0
    %7672 = vmatprep.subr.mxu0 0.0
    %7673 = vmatpush1.msra.mxu0 0.0
    %7674 = vmatprep.subr.mxu0 0.0
    %7675 = vmatpush1.msra.mxu0 0.0
    %7676 = vmatprep.subr.mxu0 0.0
    %7677 = vmatpush1.msra.mxu0 0.0
    %7678 = vmatprep.subr.mxu0 0.0
    %7679 = vmatpush1.msra.mxu0 0.0
    %7680 = vmatprep.subr.mxu0 0.0
    %7681 = vmatpush1.msra.mxu0 0.0
    %7682 = vmatprep.subr.mxu0 0.0
    %7683 = vmatpush1.msra.mxu0 0.0
    %7684 = vmatprep.subr.mxu0 0.0
    %7685 = vmatpush1.msra.mxu0 0.0
    %7686 = vmatprep.subr.mxu0 0.0
    %7687 = vmatpush1.msra.mxu0 0.0
    %7688 = vmatprep.subr.mxu0 0.0
    %7689 = vmatpush1.msra.mxu0 0.0
    %7690 = vmatprep.subr.mxu0 0.0
    %7691 = vmatpush1.msra.mxu0 0.0
    %7692 = vmatprep.subr.mxu0 0.0
    %7693 = vmatpush1.msra.mxu0 0.0
    %7694 = vmatprep.subr.mxu0 0.0
    %7695 = vmatpush1.msra.mxu0 0.0
    %7696 = vmatprep.subr.mxu0 0.0
    %7697 = vmatpush1.msra.mxu0 0.0
    %7698 = vmatprep.subr.mxu0 0.0
    %7699 = vmatpush1.msra.mxu0 0.0
    %7700 = vmatprep.subr.mxu0 0.0
    %7701 = vmatpush1.msra.mxu0 0.0
    %7702 = vmatprep.subr.mxu0 0.0
    %7703 = vmatpush1.msra.mxu0 0.0
    %7704 = vmatprep.subr.mxu0 0.0
    %7705 = vmatpush1.msra.mxu0 0.0
    %7706 = vmatprep.subr.mxu0 0.0
    %7707 = vmatpush1.msra.mxu0 0.0
    %7708 = vmatprep.subr.mxu0 0.0
    %7709 = vmatpush1.msra.mxu0 0.0
    %7710 = vmatprep.subr.mxu0 0.0
    %7711 = vmatpush1.msra.mxu0 0.0
    %7712 = vmatprep.subr.mxu0 0.0
    %7713 = vmatpush1.msra.mxu0 0.0
    %7714 = vmatprep.subr.mxu0 0.0
    %7715 = vmatpush1.msra.mxu0 0.0
    %7716 = vmatprep.subr.mxu0 0.0
    %7717 = vmatpush1.msra.mxu0 0.0
    %7718 = vmatprep.subr.mxu0 0.0
    %7719 = vmatpush1.msra.mxu0 0.0
    %7720 = vmatprep.subr.mxu0 0.0
    %7721 = vmatpush1.msra.mxu0 0.0
    %7722 = vmatprep.subr.mxu0 0.0
    %7723 = vmatpush1.msra.mxu0 0.0
    %7724 = vmatprep.subr.mxu0 0.0
    %7725 = vmatpush1.msra.mxu0 0.0
    %7726 = vmatprep.subr.mxu0 0.0
    %7727 = vmatpush1.msra.mxu0 0.0
    %7728 = vmatprep.subr.mxu0 0.0
    %7729 = vmatpush1.msra.mxu0 0.0
    %7730 = vmatprep.subr.mxu0 0.0
    %7731 = vmatpush1.msra.mxu0 0.0
    %7732 = vmatprep.subr.mxu0 0.0
    %7733 = vmatpush1.msra.mxu0 0.0
    %7734 = vmatprep.subr.mxu0 0.0
    %7735 = vmatpush1.msra.mxu0 0.0
    %7736 = vmatprep.mubr.f32.mxu0 0.0
    %v7737 = vand.u32 %v7505, 4294901760
    %v7738 = vsub.f32 %v7505, %v7737
    %7739 = vmatmul.mubr.f32.gmra.mrb[0].mxu0 %v7738
    %v7740 = vpop.f32.mrb[0].mxu0
    %v7741 = vadd.f32 %v7663, %v7740
    %v7742 = vpop.f32.mrb[0].mxu0
    %7743 = vmatprep.mubr.f32.mxu0 0.0
    %v7744 = vand.u32 %v7508, 4294901760
    %v7745 = vsub.f32 %v7508, %v7744
    %7746 = vmatmul.mubr.f32.gmra.mrb[0].mxu0 %v7745
    %v7747 = vpop.f32.mrb[0].mxu0
    %v7748 = vadd.f32 %v7669, %v7747
    %v7749 = vpop.f32.mrb[0].mxu0
    %7750 = vdwg.mxu0
    %7751 = vmatprep.subr.mxu0 0.0
    %7752 = vmatpush1.msra.mxu0 1.0
    %7753 = vmatprep.subr.mxu0 0.0
    %7754 = vmatpush1.msra.mxu0 1.0
    %7755 = vmatprep.subr.mxu0 0.0
    %7756 = vmatpush1.msra.mxu0 0.0
    %7757 = vmatprep.subr.mxu0 0.0
    %7758 = vmatpush1.msra.mxu0 0.0
    %7759 = vmatprep.subr.mxu0 0.0
    %7760 = vmatpush1.msra.mxu0 0.0
    %7761 = vmatprep.subr.mxu0 0.0
    %7762 = vmatpush1.msra.mxu0 0.0
    %7763 = vmatprep.subr.mxu0 0.0
    %7764 = vmatpush1.msra.mxu0 0.0
    %7765 = vmatprep.subr.mxu0 0.0
    %7766 = vmatpush1.msra.mxu0 0.0
    %7767 = vmatprep.subr.mxu0 0.0
    %7768 = vmatpush1.msra.mxu0 0.0
    %7769 = vmatprep.subr.mxu0 0.0
    %7770 = vmatpush1.msra.mxu0 0.0
    %7771 = vmatprep.subr.mxu0 0.0
    %7772 = vmatpush1.msra.mxu0 0.0
    %7773 = vmatprep.subr.mxu0 0.0
    %7774 = vmatpush1.msra.mxu0 0.0
    %7775 = vmatprep.subr.mxu0 0.0
    %7776 = vmatpush1.msra.mxu0 0.0
    %7777 = vmatprep.subr.mxu0 0.0
    %7778 = vmatpush1.msra.mxu0 0.0
    %7779 = vmatprep.subr.mxu0 0.0
    %7780 = vmatpush1.msra.mxu0 0.0
    %7781 = vmatprep.subr.mxu0 0.0
    %7782 = vmatpush1.msra.mxu0 0.0
    %7783 = vmatprep.subr.mxu0 0.0
    %7784 = vmatpush1.msra.mxu0 0.0
    %7785 = vmatprep.subr.mxu0 0.0
    %7786 = vmatpush1.msra.mxu0 0.0
    %7787 = vmatprep.subr.mxu0 0.0
    %7788 = vmatpush1.msra.mxu0 0.0
    %7789 = vmatprep.subr.mxu0 0.0
    %7790 = vmatpush1.msra.mxu0 0.0
    %7791 = vmatprep.subr.mxu0 0.0
    %7792 = vmatpush1.msra.mxu0 0.0
    %7793 = vmatprep.subr.mxu0 0.0
    %7794 = vmatpush1.msra.mxu0 0.0
    %7795 = vmatprep.subr.mxu0 0.0
    %7796 = vmatpush1.msra.mxu0 0.0
    %7797 = vmatprep.subr.mxu0 0.0
    %7798 = vmatpush1.msra.mxu0 0.0
    %7799 = vmatprep.subr.mxu0 0.0
    %7800 = vmatpush1.msra.mxu0 0.0
    %7801 = vmatprep.subr.mxu0 0.0
    %7802 = vmatpush1.msra.mxu0 0.0
    %7803 = vmatprep.subr.mxu0 0.0
    %7804 = vmatpush1.msra.mxu0 0.0
    %7805 = vmatprep.subr.mxu0 0.0
    %7806 = vmatpush1.msra.mxu0 0.0
    %7807 = vmatprep.subr.mxu0 0.0
    %7808 = vmatpush1.msra.mxu0 0.0
    %7809 = vmatprep.subr.mxu0 0.0
    %7810 = vmatpush1.msra.mxu0 0.0
    %7811 = vmatprep.subr.mxu0 0.0
    %7812 = vmatpush1.msra.mxu0 0.0
    %7813 = vmatprep.subr.mxu0 0.0
    %7814 = vmatpush1.msra.mxu0 0.0
    %7815 = vmatprep.mubr.f32.mxu0 0.0
    %v7816 = vand.u32 %v7505, 4294901760
    %v7817 = vsub.f32 %v7505, %v7816
    %v7818 = vand.u32 %v7817, 4294901760
    %7819 = vmatmul.mubr.f32.gmra.mrb[0].mxu0 %v7818
    %v7820 = vpop.f32.mrb[0].mxu0
    %v7821 = vadd.f32 %v7741, %v7820
    %v7822 = vpop.f32.mrb[0].mxu0
    %7823 = vmatprep.mubr.f32.mxu0 0.0
    %v7824 = vand.u32 %v7508, 4294901760
    %v7825 = vsub.f32 %v7508, %v7824
    %v7826 = vand.u32 %v7825, 4294901760
    %7827 = vmatmul.mubr.f32.gmra.mrb[0].mxu0 %v7826
    %v7828 = vpop.f32.mrb[0].mxu0
    %v7829 = vadd.f32 %v7748, %v7828
    %v7830 = vpop.f32.mrb[0].mxu0
    %7831 = vdwg.mxu0
    %7832 = vmatprep.subr.mxu0 0.0
    %7833 = vmatpush1.msra.mxu0 0.0
    %7834 = vmatprep.subr.mxu0 0.0
    %7835 = vmatpush1.msra.mxu0 0.0
    %7836 = vmatprep.subr.mxu0 0.0
    %7837 = vmatpush1.msra.mxu0 0.0
    %7838 = vmatprep.subr.mxu0 0.0
    %7839 = vmatpush1.msra.mxu0 0.0
    %7840 = vmatprep.subr.mxu0 0.0
    %7841 = vmatpush1.msra.mxu0 0.0
    %7842 = vmatprep.subr.mxu0 0.0
    %7843 = vmatpush1.msra.mxu0 0.0
    %7844 = vmatprep.subr.mxu0 0.0
    %7845 = vmatpush1.msra.mxu0 0.0
    %7846 = vmatprep.subr.mxu0 0.0
    %7847 = vmatpush1.msra.mxu0 0.0
    %7848 = vmatprep.subr.mxu0 0.0
    %7849 = vmatpush1.msra.mxu0 0.0
    %7850 = vmatprep.subr.mxu0 0.0
    %7851 = vmatpush1.msra.mxu0 0.0
    %7852 = vmatprep.subr.mxu0 0.0
    %7853 = vmatpush1.msra.mxu0 0.0
    %7854 = vmatprep.subr.mxu0 0.0
    %7855 = vmatpush1.msra.mxu0 0.0
    %7856 = vmatprep.subr.mxu0 0.0
    %7857 = vmatpush1.msra.mxu0 0.0
    %7858 = vmatprep.subr.mxu0 0.0
    %7859 = vmatpush1.msra.mxu0 0.0
    %7860 = vmatprep.subr.mxu0 0.0
    %7861 = vmatpush1.msra.mxu0 0.0
    %7862 = vmatprep.subr.mxu0 0.0
    %7863 = vmatpush1.msra.mxu0 0.0
    %7864 = vmatprep.subr.mxu0 0.0
    %7865 = vmatpush1.msra.mxu0 0.0
    %7866 = vmatprep.subr.mxu0 0.0
    %7867 = vmatpush1.msra.mxu0 0.0
    %7868 = vmatprep.subr.mxu0 0.0
    %7869 = vmatpush1.msra.mxu0 0.0
    %7870 = vmatprep.subr.mxu0 0.0
    %7871 = vmatpush1.msra.mxu0 0.0
    %7872 = vmatprep.subr.mxu0 0.0
    %7873 = vmatpush1.msra.mxu0 0.0
    %7874 = vmatprep.subr.mxu0 0.0
    %7875 = vmatpush1.msra.mxu0 0.0
    %7876 = vmatprep.subr.mxu0 0.0
    %7877 = vmatpush1.msra.mxu0 0.0
    %7878 = vmatprep.subr.mxu0 0.0
    %7879 = vmatpush1.msra.mxu0 0.0
    %7880 = vmatprep.subr.mxu0 0.0
    %7881 = vmatpush1.msra.mxu0 0.0
    %7882 = vmatprep.subr.mxu0 0.0
    %7883 = vmatpush1.msra.mxu0 0.0
    %7884 = vmatprep.subr.mxu0 0.0
    %7885 = vmatpush1.msra.mxu0 0.0
    %7886 = vmatprep.subr.mxu0 0.0
    %7887 = vmatpush1.msra.mxu0 0.0
    %7888 = vmatprep.subr.mxu0 0.0
    %7889 = vmatpush1.msra.mxu0 0.0
    %7890 = vmatprep.subr.mxu0 0.0
    %7891 = vmatpush1.msra.mxu0 0.0
    %7892 = vmatprep.subr.mxu0 0.0
    %7893 = vmatpush1.msra.mxu0 0.0
    %7894 = vmatprep.subr.mxu0 0.0
    %7895 = vmatpush1.msra.mxu0 0.0
    %7896 = vmatprep.mubr.f32.mxu0 0.0
    %v7897 = vand.u32 %v7505, 4294901760
    %7898 = vmatmul.mubr.f32.gmra.mrb[0].mxu0 %v7897
    %v7899 = vpop.f32.mrb[0].mxu0
    %v7900 = vadd.f32 %v7821, %v7899
    %v7901 = vpop.f32.mrb[0].mxu0
    %7902 = vmatprep.mubr.f32.mxu0 0.0
    %v7903 = vand.u32 %v7508, 4294901760
    %7904 = vmatmul.mubr.f32.gmra.mrb[0].mxu0 %v7903
    %v7905 = vpop.f32.mrb[0].mxu0
    %v7906 = vadd.f32 %v7829, %v7905
    %v7907 = vpop.f32.mrb[0].mxu0
    %7908 = vdwg.mxu0
    %7909 = vmatprep.subr.mxu0 0.0
    %7910 = vmatpush1.msra.mxu0 1.0
    %7911 = vmatprep.subr.mxu0 0.0
    %7912 = vmatpush1.msra.mxu0 1.0
    %7913 = vmatprep.subr.mxu0 0.0
    %7914 = vmatpush1.msra.mxu0 0.0
    %7915 = vmatprep.subr.mxu0 0.0
    %7916 = vmatpush1.msra.mxu0 0.0
    %7917 = vmatprep.subr.mxu0 0.0
    %7918 = vmatpush1.msra.mxu0 0.0
    %7919 = vmatprep.subr.mxu0 0.0
    %7920 = vmatpush1.msra.mxu0 0.0
    %7921 = vmatprep.subr.mxu0 0.0
    %7922 = vmatpush1.msra.mxu0 0.0
    %7923 = vmatprep.subr.mxu0 0.0
    %7924 = vmatpush1.msra.mxu0 0.0
    %7925 = vmatprep.subr.mxu0 0.0
    %7926 = vmatpush1.msra.mxu0 0.0
    %7927 = vmatprep.subr.mxu0 0.0
    %7928 = vmatpush1.msra.mxu0 0.0
    %7929 = vmatprep.subr.mxu0 0.0
    %7930 = vmatpush1.msra.mxu0 0.0
    %7931 = vmatprep.subr.mxu0 0.0
    %7932 = vmatpush1.msra.mxu0 0.0
    %7933 = vmatprep.subr.mxu0 0.0
    %7934 = vmatpush1.msra.mxu0 0.0
    %7935 = vmatprep.subr.mxu0 0.0
    %7936 = vmatpush1.msra.mxu0 0.0
    %7937 = vmatprep.subr.mxu0 0.0
    %7938 = vmatpush1.msra.mxu0 0.0
    %7939 = vmatprep.subr.mxu0 0.0
    %7940 = vmatpush1.msra.mxu0 0.0
    %7941 = vmatprep.subr.mxu0 0.0
    %7942 = vmatpush1.msra.mxu0 0.0
    %7943 = vmatprep.subr.mxu0 0.0
    %7944 = vmatpush1.msra.mxu0 0.0
    %7945 = vmatprep.subr.mxu0 0.0
    %7946 = vmatpush1.msra.mxu0 0.0
    %7947 = vmatprep.subr.mxu0 0.0
    %7948 = vmatpush1.msra.mxu0 0.0
    %7949 = vmatprep.subr.mxu0 0.0
    %7950 = vmatpush1.msra.mxu0 0.0
    %7951 = vmatprep.subr.mxu0 0.0
    %7952 = vmatpush1.msra.mxu0 0.0
    %7953 = vmatprep.subr.mxu0 0.0
    %7954 = vmatpush1.msra.mxu0 0.0
    %7955 = vmatprep.subr.mxu0 0.0
    %7956 = vmatpush1.msra.mxu0 0.0
    %7957 = vmatprep.subr.mxu0 0.0
    %7958 = vmatpush1.msra.mxu0 0.0
    %7959 = vmatprep.subr.mxu0 0.0
    %7960 = vmatpush1.msra.mxu0 0.0
    %7961 = vmatprep.subr.mxu0 0.0
    %7962 = vmatpush1.msra.mxu0 0.0
    %7963 = vmatprep.subr.mxu0 0.0
    %7964 = vmatpush1.msra.mxu0 0.0
    %7965 = vmatprep.subr.mxu0 0.0
    %7966 = vmatpush1.msra.mxu0 0.0
    %7967 = vmatprep.subr.mxu0 0.0
    %7968 = vmatpush1.msra.mxu0 0.0
    %7969 = vmatprep.subr.mxu0 0.0
    %7970 = vmatpush1.msra.mxu0 0.0
    %7971 = vmatprep.subr.mxu0 0.0
    %7972 = vmatpush1.msra.mxu0 0.0
    %7973 = vmatprep.mubr.f32.mxu0 0.0
    %v7974 = vand.u32 %v7505, 4294901760
    %7975 = vmatmul.mubr.f32.gmra.mrb[0].mxu0 %v7974
    %v7976 = vpop.f32.mrb[0].mxu0
    %v7977 = vadd.f32 %v7900, %v7976
    %v7978 = vpop.f32.mrb[0].mxu0
    %7979 = vmatprep.mubr.f32.mxu0 0.0
    %v7980 = vand.u32 %v7508, 4294901760
    %7981 = vmatmul.mubr.f32.gmra.mrb[0].mxu0 %v7980
    %v7982 = vpop.f32.mrb[0].mxu0
    %v7983 = vadd.f32 %v7906, %v7982
    %v7984 = vpop.f32.mrb[0].mxu0
    %7985 = vdwg.mxu0
    %v7986 = vmul.f32 %v7493, 0.0625
    %v7987 = vmul.f32 %v7499, 0.0625
    %v7988 = vmul.f32 %v7977, 0.0625
    %v7989 = vmul.f32 %v7983, 0.0625
    %v7990 = vmul.f32 %v7986, %v7986
    %v7991 = vmul.f32 %v7987, %v7987
    %v7992 = vsub.f32 %v7988, %v7990
    %v7993 = vsub.f32 %v7989, %v7991
    %v7994 = vmax.f32 %v7992, 0.0
    %v7995 = vmax.f32 %v7993, 0.0
    %v7996 = vld [vmem:[%s2 + $0x50] sm:$0xff]
    %v7997 = vld [vmem:[%s2 + $0x58] sm:$0x3]
    %v7998 = vadd.f32 %v7994, 1e-05
    %v7999 = vadd.f32 %v7995, 1e-05
    %v8000 = vrsqrt.pop %v7998
    %v8001 = vrsqrt.pop %v7999
    %v8002 = vmul.f32 %v7996, %v8000
    %v8003 = vmul.f32 %v7997, %v8001
    %v8004 = vmul.f32 %v7986, %v8002
    %v8005 = vmul.f32 %v7987, %v8003
    %8008 = vrot.lane.b32.xlu0 %v8004, 1
    %v8009 = vpop.permute.xlu0 %8008
    %8010 = vrot.lane.b32.xlu0 %v8005, 1
    %v8011 = vpop.permute.xlu0 %8010
    %v8014 = vsub.f32 %v7996, %v8009
    %v8015 = vsub.f32 %v7997, %v8011
    %8017 = vset.pattern.permute.xlu0 0
    %8018 = vperm.xlu0 %8017, %v8002
    %v8019 = vpop.permute.xlu0 %8018
    %8022 = vset.pattern.permute.xlu0 0
    %8023 = vperm.xlu0 %8022, %v8003
    %v8024 = vpop.permute.xlu0 %8023
    %v8026 = vmul.f32 %v7011, %v8019
    %v8027 = vmul.f32 %v7017, %v8024
    %8029 = vset.pattern.permute.xlu0 1
    %8030 = vperm.xlu0 %8029, %v8014
    %v8031 = vpop.permute.xlu0 %8030
    %8034 = vset.pattern.permute.xlu0 1
    %8035 = vperm.xlu0 %8034, %v8015
    %v8036 = vpop.permute.xlu0 %8035
    %v8038 = vadd.f32 %v8026, %v8031
    %v8039 = vadd.f32 %v8027, %v8036
    %v8040 = vmax.f32 %v8038, 0.0
    %v8041 = vmax.f32 %v8039, 0.0
    %v8042 = vld [vmem:[%s1 + $0x60] sm:$0x1]
    %v8043 = vld [vmem:[%s2 + $0x60] sm:$0x1]
    %8045 = vset.pattern.permute.xlu0 0
    %8046 = vperm.xlu0 %8045, %v8043
    %v8047 = vpop.permute.xlu0 %8046
    %vm8049 = vcmask 80896
    %v8051 = vsel %vm8049, %v8042, 0
    %vm8053 = vcmask 1041408
    %v8055 = vsel %vm8053, %v8041, 0
    %8057 = vmatprep.subr.mxu0 0.0
    %v8058 = vand.u32 %v8040, 4294901760
    %8059 = vmatpush1.msra.mxu0 %v8058
    %8060 = vmatprep.subr.mxu0 0.0
    %v8061 = vand.u32 %v8055, 4294901760
    %8062 = vmatpush1.msra.mxu0 %v8061
    %8063 = vmatprep.subr.mxu0 0.0
    %8064 = vmatpush1.msra.mxu0 0.0
    %8065 = vmatprep.subr.mxu0 0.0
    %8066 = vmatpush1.msra.mxu0 0.0
    %8067 = vmatprep.subr.mxu0 0.0
    %8068 = vmatpush1.msra.mxu0 0.0
    %8069 = vmatprep.subr.mxu0 0.0
    %8070 = vmatpush1.msra.mxu0 0.0
    %8071 = vmatprep.subr.mxu0 0.0
    %8072 = vmatpush1.msra.mxu0 0.0
    %8073 = vmatprep.subr.mxu0 0.0
    %8074 = vmatpush1.msra.mxu0 0.0
    %8075 = vmatprep.subr.mxu0 0.0
    %8076 = vmatpush1.msra.mxu0 0.0
    %8077 = vmatprep.subr.mxu0 0.0
    %8078 = vmatpush1.msra.mxu0 0.0
    %8079 = vmatprep.subr.mxu0 0.0
    %8080 = vmatpush1.msra.mxu0 0.0
    %8081 = vmatprep.subr.mxu0 0.0
    %8082 = vmatpush1.msra.mxu0 0.0
    %8083 = vmatprep.subr.mxu0 0.0
    %8084 = vmatpush1.msra.mxu0 0.0
    %8085 = vmatprep.subr.mxu0 0.0
    %8086 = vmatpush1.msra.mxu0 0.0
    %8087 = vmatprep.subr.mxu0 0.0
    %8088 = vmatpush1.msra.mxu0 0.0
    %8089 = vmatprep.subr.mxu0 0.0
    %8090 = vmatpush1.msra.mxu0 0.0
    %8091 = vmatprep.subr.mxu0 0.0
    %8092 = vmatpush1.msra.mxu0 0.0
    %8093 = vmatprep.subr.mxu0 0.0
    %8094 = vmatpush1.msra.mxu0 0.0
    %8095 = vmatprep.subr.mxu0 0.0
    %8096 = vmatpush1.msra.mxu0 0.0
    %8097 = vmatprep.subr.mxu0 0.0
    %8098 = vmatpush1.msra.mxu0 0.0
    %8099 = vmatprep.subr.mxu0 0.0
    %8100 = vmatpush1.msra.mxu0 0.0
    %8101 = vmatprep.subr.mxu0 0.0
    %8102 = vmatpush1.msra.mxu0 0.0
    %8103 = vmatprep.subr.mxu0 0.0
    %8104 = vmatpush1.msra.mxu0 0.0
    %8105 = vmatprep.subr.mxu0 0.0
    %8106 = vmatpush1.msra.mxu0 0.0
    %8107 = vmatprep.subr.mxu0 0.0
    %8108 = vmatpush1.msra.mxu0 0.0
    %8109 = vmatprep.subr.mxu0 0.0
    %8110 = vmatpush1.msra.mxu0 0.0
    %8111 = vmatprep.subr.mxu0 0.0
    %8112 = vmatpush1.msra.mxu0 0.0
    %8113 = vmatprep.subr.mxu0 0.0
    %8114 = vmatpush1.msra.mxu0 0.0
    %8115 = vmatprep.subr.mxu0 0.0
    %8116 = vmatpush1.msra.mxu0 0.0
    %8117 = vmatprep.subr.mxu0 0.0
    %8118 = vmatpush1.msra.mxu0 0.0
    %8119 = vmatprep.subr.mxu0 0.0
    %8120 = vmatpush1.msra.mxu0 0.0
    %8121 = vmatprep.subr.mxu0 0.0
    %8122 = vmatpush1.msra.mxu0 0.0
    %8123 = vmatprep.mubr.f32.mxu0 0.0
    %v8124 = vand.u32 %v8051, 4294901760
    %v8125 = vsub.f32 %v8051, %v8124
    %v8126 = vand.u32 %v8125, 4294901760
    %v8127 = vsub.f32 %v8125, %v8126
    %v8128 = vand.u32 %v8127, 4294901760
    %8129 = vmatmul.mubr.f32.gmra.mrb[0].mxu0 %v8128
    %v8130 = vpop.f32.mrb[0].mxu0
    %v8131 = vadd.f32 %v8047, %v8130
    %v8132 = vpop.f32.mrb[0].mxu0
    %8133 = vdwg.mxu0
    %8134 = vmatprep.subr.mxu0 0.0
    %v8135 = vand.u32 %v8040, 4294901760
    %v8136 = vsub.f32 %v8040, %v8135
    %v8137 = vand.u32 %v8136, 4294901760
    %v8138 = vsub.f32 %v8136, %v8137
    %v8139 = vand.u32 %v8138, 4294901760
    %8140 = vmatpush1.msra.mxu0 %v8139
    %8141 = vmatprep.subr.mxu0 0.0
    %v8142 = vand.u32 %v8055, 4294901760
    %v8143 = vsub.f32 %v8055, %v8142
    %v8144 = vand.u32 %v8143, 4294901760
    %v8145 = vsub.f32 %v8143, %v8144
    %v8146 = vand.u32 %v8145, 4294901760
    %8147 = vmatpush1.msra.mxu0 %v8146
    %8148 = vmatprep.subr.mxu0 0.0
    %8149 = vmatpush1.msra.mxu0 0.0
    %8150 = vmatprep.subr.mxu0 0.0
    %8151 = vmatpush1.msra.mxu0 0.0
    %8152 = vmatprep.subr.mxu0 0.0
    %8153 = vmatpush1.msra.mxu0 0.0
    %8154 = vmatprep.subr.mxu0 0.0
    %8155 = vmatpush1.msra.mxu0 0.0
    %8156 = vmatprep.subr.mxu0 0.0
    %8157 = vmatpush1.msra.mxu0 0.0
    %8158 = vmatprep.subr.mxu0 0.0
    %8159 = vmatpush1.msra.mxu0 0.0
    %8160 = vmatprep.subr.mxu0 0.0
    %8161 = vmatpush1.msra.mxu0 0.0
    %8162 = vmatprep.subr.mxu0 0.0
    %8163 = vmatpush1.msra.mxu0 0.0
    %8164 = vmatprep.subr.mxu0 0.0
    %8165 = vmatpush1.msra.mxu0 0.0
    %8166 = vmatprep.subr.mxu0 0.0
    %8167 = vmatpush1.msra.mxu0 0.0
    %8168 = vmatprep.subr.mxu0 0.0
    %8169 = vmatpush1.msra.mxu0 0.0
    %8170 = vmatprep.subr.mxu0 0.0
    %8171 = vmatpush1.msra.mxu0 0.0
    %8172 = vmatprep.subr.mxu0 0.0
    %8173 = vmatpush1.msra.mxu0 0.0
    %8174 = vmatprep.subr.mxu0 0.0
    %8175 = vmatpush1.msra.mxu0 0.0
    %8176 = vmatprep.subr.mxu0 0.0
    %8177 = vmatpush1.msra.mxu0 0.0
    %8178 = vmatprep.subr.mxu0 0.0
    %8179 = vmatpush1.msra.mxu0 0.0
    %8180 = vmatprep.subr.mxu0 0.0
    %8181 = vmatpush1.msra.mxu0 0.0
    %8182 = vmatprep.subr.mxu0 0.0
    %8183 = vmatpush1.msra.mxu0 0.0
    %8184 = vmatprep.subr.mxu0 0.0
    %8185 = vmatpush1.msra.mxu0 0.0
    %8186 = vmatprep.subr.mxu0 0.0
    %8187 = vmatpush1.msra.mxu0 0.0
    %8188 = vmatprep.subr.mxu0 0.0
    %8189 = vmatpush1.msra.mxu0 0.0
    %8190 = vmatprep.subr.mxu0 0.0
    %8191 = vmatpush1.msra.mxu0 0.0
    %8192 = vmatprep.subr.mxu0 0.0
    %8193 = vmatpush1.msra.mxu0 0.0
    %8194 = vmatprep.subr.mxu0 0.0
    %8195 = vmatpush1.msra.mxu0 0.0
    %8196 = vmatprep.subr.mxu0 0.0
    %8197 = vmatpush1.msra.mxu0 0.0
    %8198 = vmatprep.subr.mxu0 0.0
    %8199 = vmatpush1.msra.mxu0 0.0
    %8200 = vmatprep.subr.mxu0 0.0
    %8201 = vmatpush1.msra.mxu0 0.0
    %8202 = vmatprep.subr.mxu0 0.0
    %8203 = vmatpush1.msra.mxu0 0.0
    %8204 = vmatprep.subr.mxu0 0.0
    %8205 = vmatpush1.msra.mxu0 0.0
    %8206 = vmatprep.subr.mxu0 0.0
    %8207 = vmatpush1.msra.mxu0 0.0
    %8208 = vmatprep.mubr.f32.mxu0 0.0
    %v8209 = vand.u32 %v8051, 4294901760
    %8210 = vmatmul.mubr.f32.gmra.mrb[0].mxu0 %v8209
    %v8211 = vpop.f32.mrb[0].mxu0
    %v8212 = vadd.f32 %v8131, %v8211
    %v8213 = vpop.f32.mrb[0].mxu0
    %8214 = vdwg.mxu0
    %8215 = vmatprep.subr.mxu0 0.0
    %v8216 = vand.u32 %v8040, 4294901760
    %v8217 = vsub.f32 %v8040, %v8216
    %8218 = vmatpush1.msra.mxu0 %v8217
    %8219 = vmatprep.subr.mxu0 0.0
    %v8220 = vand.u32 %v8055, 4294901760
    %v8221 = vsub.f32 %v8055, %v8220
    %8222 = vmatpush1.msra.mxu0 %v8221
    %8223 = vmatprep.subr.mxu0 0.0
    %8224 = vmatpush1.msra.mxu0 0.0
    %8225 = vmatprep.subr.mxu0 0.0
    %8226 = vmatpush1.msra.mxu0 0.0
    %8227 = vmatprep.subr.mxu0 0.0
    %8228 = vmatpush1.msra.mxu0 0.0
    %8229 = vmatprep.subr.mxu0 0.0
    %8230 = vmatpush1.msra.mxu0 0.0
    %8231 = vmatprep.subr.mxu0 0.0
    %8232 = vmatpush1.msra.mxu0 0.0
    %8233 = vmatprep.subr.mxu0 0.0
    %8234 = vmatpush1.msra.mxu0 0.0
    %8235 = vmatprep.subr.mxu0 0.0
    %8236 = vmatpush1.msra.mxu0 0.0
    %8237 = vmatprep.subr.mxu0 0.0
    %8238 = vmatpush1.msra.mxu0 0.0
    %8239 = vmatprep.subr.mxu0 0.0
    %8240 = vmatpush1.msra.mxu0 0.0
    %8241 = vmatprep.subr.mxu0 0.0
    %8242 = vmatpush1.msra.mxu0 0.0
    %8243 = vmatprep.subr.mxu0 0.0
    %8244 = vmatpush1.msra.mxu0 0.0
    %8245 = vmatprep.subr.mxu0 0.0
    %8246 = vmatpush1.msra.mxu0 0.0
    %8247 = vmatprep.subr.mxu0 0.0
    %8248 = vmatpush1.msra.mxu0 0.0
    %8249 = vmatprep.subr.mxu0 0.0
    %8250 = vmatpush1.msra.mxu0 0.0
    %8251 = vmatprep.subr.mxu0 0.0
    %8252 = vmatpush1.msra.mxu0 0.0
    %8253 = vmatprep.subr.mxu0 0.0
    %8254 = vmatpush1.msra.mxu0 0.0
    %8255 = vmatprep.subr.mxu0 0.0
    %8256 = vmatpush1.msra.mxu0 0.0
    %8257 = vmatprep.subr.mxu0 0.0
    %8258 = vmatpush1.msra.mxu0 0.0
    %8259 = vmatprep.subr.mxu0 0.0
    %8260 = vmatpush1.msra.mxu0 0.0
    %8261 = vmatprep.subr.mxu0 0.0
    %8262 = vmatpush1.msra.mxu0 0.0
    %8263 = vmatprep.subr.mxu0 0.0
    %8264 = vmatpush1.msra.mxu0 0.0
    %8265 = vmatprep.subr.mxu0 0.0
    %8266 = vmatpush1.msra.mxu0 0.0
    %8267 = vmatprep.subr.mxu0 0.0
    %8268 = vmatpush1.msra.mxu0 0.0
    %8269 = vmatprep.subr.mxu0 0.0
    %8270 = vmatpush1.msra.mxu0 0.0
    %8271 = vmatprep.subr.mxu0 0.0
    %8272 = vmatpush1.msra.mxu0 0.0
    %8273 = vmatprep.subr.mxu0 0.0
    %8274 = vmatpush1.msra.mxu0 0.0
    %8275 = vmatprep.subr.mxu0 0.0
    %8276 = vmatpush1.msra.mxu0 0.0
    %8277 = vmatprep.subr.mxu0 0.0
    %8278 = vmatpush1.msra.mxu0 0.0
    %8279 = vmatprep.subr.mxu0 0.0
    %8280 = vmatpush1.msra.mxu0 0.0
    %8281 = vmatprep.subr.mxu0 0.0
    %8282 = vmatpush1.msra.mxu0 0.0
    %8283 = vmatprep.mubr.f32.mxu0 0.0
    %v8284 = vand.u32 %v8051, 4294901760
    %v8285 = vsub.f32 %v8051, %v8284
    %8286 = vmatmul.mubr.f32.gmra.mrb[0].mxu0 %v8285
    %v8287 = vpop.f32.mrb[0].mxu0
    %v8288 = vadd.f32 %v8212, %v8287
    %v8289 = vpop.f32.mrb[0].mxu0
    %8290 = vdwg.mxu0
    %8291 = vmatprep.subr.mxu0 0.0
    %v8292 = vand.u32 %v8040, 4294901760
    %8293 = vmatpush1.msra.mxu0 %v8292
    %8294 = vmatprep.subr.mxu0 0.0
    %v8295 = vand.u32 %v8055, 4294901760
    %8296 = vmatpush1.msra.mxu0 %v8295
    %8297 = vmatprep.subr.mxu0 0.0
    %8298 = vmatpush1.msra.mxu0 0.0
    %8299 = vmatprep.subr.mxu0 0.0
    %8300 = vmatpush1.msra.mxu0 0.0
    %8301 = vmatprep.subr.mxu0 0.0
    %8302 = vmatpush1.msra.mxu0 0.0
    %8303 = vmatprep.subr.mxu0 0.0
    %8304 = vmatpush1.msra.mxu0 0.0
    %8305 = vmatprep.subr.mxu0 0.0
    %8306 = vmatpush1.msra.mxu0 0.0
    %8307 = vmatprep.subr.mxu0 0.0
    %8308 = vmatpush1.msra.mxu0 0.0
    %8309 = vmatprep.subr.mxu0 0.0
    %8310 = vmatpush1.msra.mxu0 0.0
    %8311 = vmatprep.subr.mxu0 0.0
    %8312 = vmatpush1.msra.mxu0 0.0
    %8313 = vmatprep.subr.mxu0 0.0
    %8314 = vmatpush1.msra.mxu0 0.0
    %8315 = vmatprep.subr.mxu0 0.0
    %8316 = vmatpush1.msra.mxu0 0.0
    %8317 = vmatprep.subr.mxu0 0.0
    %8318 = vmatpush1.msra.mxu0 0.0
    %8319 = vmatprep.subr.mxu0 0.0
    %8320 = vmatpush1.msra.mxu0 0.0
    %8321 = vmatprep.subr.mxu0 0.0
    %8322 = vmatpush1.msra.mxu0 0.0
    %8323 = vmatprep.subr.mxu0 0.0
    %8324 = vmatpush1.msra.mxu0 0.0
    %8325 = vmatprep.subr.mxu0 0.0
    %8326 = vmatpush1.msra.mxu0 0.0
    %8327 = vmatprep.subr.mxu0 0.0
    %8328 = vmatpush1.msra.mxu0 0.0
    %8329 = vmatprep.subr.mxu0 0.0
    %8330 = vmatpush1.msra.mxu0 0.0
    %8331 = vmatprep.subr.mxu0 0.0
    %8332 = vmatpush1.msra.mxu0 0.0
    %8333 = vmatprep.subr.mxu0 0.0
    %8334 = vmatpush1.msra.mxu0 0.0
    %8335 = vmatprep.subr.mxu0 0.0
    %8336 = vmatpush1.msra.mxu0 0.0
    %8337 = vmatprep.subr.mxu0 0.0
    %8338 = vmatpush1.msra.mxu0 0.0
    %8339 = vmatprep.subr.mxu0 0.0
    %8340 = vmatpush1.msra.mxu0 0.0
    %8341 = vmatprep.subr.mxu0 0.0
    %8342 = vmatpush1.msra.mxu0 0.0
    %8343 = vmatprep.subr.mxu0 0.0
    %8344 = vmatpush1.msra.mxu0 0.0
    %8345 = vmatprep.subr.mxu0 0.0
    %8346 = vmatpush1.msra.mxu0 0.0
    %8347 = vmatprep.subr.mxu0 0.0
    %8348 = vmatpush1.msra.mxu0 0.0
    %8349 = vmatprep.subr.mxu0 0.0
    %8350 = vmatpush1.msra.mxu0 0.0
    %8351 = vmatprep.subr.mxu0 0.0
    %8352 = vmatpush1.msra.mxu0 0.0
    %8353 = vmatprep.subr.mxu0 0.0
    %8354 = vmatpush1.msra.mxu0 0.0
    %8355 = vmatprep.subr.mxu0 0.0
    %8356 = vmatpush1.msra.mxu0 0.0
    %8357 = vmatprep.mubr.f32.mxu0 0.0
    %v8358 = vand.u32 %v8051, 4294901760
    %v8359 = vsub.f32 %v8051, %v8358
    %v8360 = vand.u32 %v8359, 4294901760
    %8361 = vmatmul.mubr.f32.gmra.mrb[0].mxu0 %v8360
    %v8362 = vpop.f32.mrb[0].mxu0
    %v8363 = vadd.f32 %v8288, %v8362
    %v8364 = vpop.f32.mrb[0].mxu0
    %8365 = vdwg.mxu0
    %8366 = vmatprep.subr.mxu0 0.0
    %v8367 = vand.u32 %v8040, 4294901760
    %v8368 = vsub.f32 %v8040, %v8367
    %v8369 = vand.u32 %v8368, 4294901760
    %8370 = vmatpush1.msra.mxu0 %v8369
    %8371 = vmatprep.subr.mxu0 0.0
    %v8372 = vand.u32 %v8055, 4294901760
    %v8373 = vsub.f32 %v8055, %v8372
    %v8374 = vand.u32 %v8373, 4294901760
    %8375 = vmatpush1.msra.mxu0 %v8374
    %8376 = vmatprep.subr.mxu0 0.0
    %8377 = vmatpush1.msra.mxu0 0.0
    %8378 = vmatprep.subr.mxu0 0.0
    %8379 = vmatpush1.msra.mxu0 0.0
    %8380 = vmatprep.subr.mxu0 0.0
    %8381 = vmatpush1.msra.mxu0 0.0
    %8382 = vmatprep.subr.mxu0 0.0
    %8383 = vmatpush1.msra.mxu0 0.0
    %8384 = vmatprep.subr.mxu0 0.0
    %8385 = vmatpush1.msra.mxu0 0.0
    %8386 = vmatprep.subr.mxu0 0.0
    %8387 = vmatpush1.msra.mxu0 0.0
    %8388 = vmatprep.subr.mxu0 0.0
    %8389 = vmatpush1.msra.mxu0 0.0
    %8390 = vmatprep.subr.mxu0 0.0
    %8391 = vmatpush1.msra.mxu0 0.0
    %8392 = vmatprep.subr.mxu0 0.0
    %8393 = vmatpush1.msra.mxu0 0.0
    %8394 = vmatprep.subr.mxu0 0.0
    %8395 = vmatpush1.msra.mxu0 0.0
    %8396 = vmatprep.subr.mxu0 0.0
    %8397 = vmatpush1.msra.mxu0 0.0
    %8398 = vmatprep.subr.mxu0 0.0
    %8399 = vmatpush1.msra.mxu0 0.0
    %8400 = vmatprep.subr.mxu0 0.0
    %8401 = vmatpush1.msra.mxu0 0.0
    %8402 = vmatprep.subr.mxu0 0.0
    %8403 = vmatpush1.msra.mxu0 0.0
    %8404 = vmatprep.subr.mxu0 0.0
    %8405 = vmatpush1.msra.mxu0 0.0
    %8406 = vmatprep.subr.mxu0 0.0
    %8407 = vmatpush1.msra.mxu0 0.0
    %8408 = vmatprep.subr.mxu0 0.0
    %8409 = vmatpush1.msra.mxu0 0.0
    %8410 = vmatprep.subr.mxu0 0.0
    %8411 = vmatpush1.msra.mxu0 0.0
    %8412 = vmatprep.subr.mxu0 0.0
    %8413 = vmatpush1.msra.mxu0 0.0
    %8414 = vmatprep.subr.mxu0 0.0
    %8415 = vmatpush1.msra.mxu0 0.0
    %8416 = vmatprep.subr.mxu0 0.0
    %8417 = vmatpush1.msra.mxu0 0.0
    %8418 = vmatprep.subr.mxu0 0.0
    %8419 = vmatpush1.msra.mxu0 0.0
    %8420 = vmatprep.subr.mxu0 0.0
    %8421 = vmatpush1.msra.mxu0 0.0
    %8422 = vmatprep.subr.mxu0 0.0
    %8423 = vmatpush1.msra.mxu0 0.0
    %8424 = vmatprep.subr.mxu0 0.0
    %8425 = vmatpush1.msra.mxu0 0.0
    %8426 = vmatprep.subr.mxu0 0.0
    %8427 = vmatpush1.msra.mxu0 0.0
    %8428 = vmatprep.subr.mxu0 0.0
    %8429 = vmatpush1.msra.mxu0 0.0
    %8430 = vmatprep.subr.mxu0 0.0
    %8431 = vmatpush1.msra.mxu0 0.0
    %8432 = vmatprep.subr.mxu0 0.0
    %8433 = vmatpush1.msra.mxu0 0.0
    %8434 = vmatprep.subr.mxu0 0.0
    %8435 = vmatpush1.msra.mxu0 0.0
    %8436 = vmatprep.mubr.f32.mxu0 0.0
    %v8437 = vand.u32 %v8051, 4294901760
    %8438 = vmatmul.mubr.f32.gmra.mrb[0].mxu0 %v8437
    %v8439 = vpop.f32.mrb[0].mxu0
    %v8440 = vadd.f32 %v8363, %v8439
    %v8441 = vpop.f32.mrb[0].mxu0
    %8442 = vdwg.mxu0
    %8443 = vmatprep.subr.mxu0 0.0
    %v8444 = vand.u32 %v8040, 4294901760
    %8445 = vmatpush1.msra.mxu0 %v8444
    %8446 = vmatprep.subr.mxu0 0.0
    %v8447 = vand.u32 %v8055, 4294901760
    %8448 = vmatpush1.msra.mxu0 %v8447
    %8449 = vmatprep.subr.mxu0 0.0
    %8450 = vmatpush1.msra.mxu0 0.0
    %8451 = vmatprep.subr.mxu0 0.0
    %8452 = vmatpush1.msra.mxu0 0.0
    %8453 = vmatprep.subr.mxu0 0.0
    %8454 = vmatpush1.msra.mxu0 0.0
    %8455 = vmatprep.subr.mxu0 0.0
    %8456 = vmatpush1.msra.mxu0 0.0
    %8457 = vmatprep.subr.mxu0 0.0
    %8458 = vmatpush1.msra.mxu0 0.0
    %8459 = vmatprep.subr.mxu0 0.0
    %8460 = vmatpush1.msra.mxu0 0.0
    %8461 = vmatprep.subr.mxu0 0.0
    %8462 = vmatpush1.msra.mxu0 0.0
    %8463 = vmatprep.subr.mxu0 0.0
    %8464 = vmatpush1.msra.mxu0 0.0
    %8465 = vmatprep.subr.mxu0 0.0
    %8466 = vmatpush1.msra.mxu0 0.0
    %8467 = vmatprep.subr.mxu0 0.0
    %8468 = vmatpush1.msra.mxu0 0.0
    %8469 = vmatprep.subr.mxu0 0.0
    %8470 = vmatpush1.msra.mxu0 0.0
    %8471 = vmatprep.subr.mxu0 0.0
    %8472 = vmatpush1.msra.mxu0 0.0
    %8473 = vmatprep.subr.mxu0 0.0
    %8474 = vmatpush1.msra.mxu0 0.0
    %8475 = vmatprep.subr.mxu0 0.0
    %8476 = vmatpush1.msra.mxu0 0.0
    %8477 = vmatprep.subr.mxu0 0.0
    %8478 = vmatpush1.msra.mxu0 0.0
    %8479 = vmatprep.subr.mxu0 0.0
    %8480 = vmatpush1.msra.mxu0 0.0
    %8481 = vmatprep.subr.mxu0 0.0
    %8482 = vmatpush1.msra.mxu0 0.0
    %8483 = vmatprep.subr.mxu0 0.0
    %8484 = vmatpush1.msra.mxu0 0.0
    %8485 = vmatprep.subr.mxu0 0.0
    %8486 = vmatpush1.msra.mxu0 0.0
    %8487 = vmatprep.subr.mxu0 0.0
    %8488 = vmatpush1.msra.mxu0 0.0
    %8489 = vmatprep.subr.mxu0 0.0
    %8490 = vmatpush1.msra.mxu0 0.0
    %8491 = vmatprep.subr.mxu0 0.0
    %8492 = vmatpush1.msra.mxu0 0.0
    %8493 = vmatprep.subr.mxu0 0.0
    %8494 = vmatpush1.msra.mxu0 0.0
    %8495 = vmatprep.subr.mxu0 0.0
    %8496 = vmatpush1.msra.mxu0 0.0
    %8497 = vmatprep.subr.mxu0 0.0
    %8498 = vmatpush1.msra.mxu0 0.0
    %8499 = vmatprep.subr.mxu0 0.0
    %8500 = vmatpush1.msra.mxu0 0.0
    %8501 = vmatprep.subr.mxu0 0.0
    %8502 = vmatpush1.msra.mxu0 0.0
    %8503 = vmatprep.subr.mxu0 0.0
    %8504 = vmatpush1.msra.mxu0 0.0
    %8505 = vmatprep.subr.mxu0 0.0
    %8506 = vmatpush1.msra.mxu0 0.0
    %8507 = vmatprep.subr.mxu0 0.0
    %8508 = vmatpush1.msra.mxu0 0.0
    %8509 = vmatprep.mubr.f32.mxu0 0.0
    %v8510 = vand.u32 %v8051, 4294901760
    %8511 = vmatmul.mubr.f32.gmra.mrb[0].mxu0 %v8510
    %v8512 = vpop.f32.mrb[0].mxu0
    %v8513 = vadd.f32 %v8440, %v8512
    %v8514 = vpop.f32.mrb[0].mxu0
    %8515 = vdwg.mxu0
    %vm8516 = vcmask 122880
    %8517 = vst.msk [vmem:[#allocation2] sm:$0x1] %vm8516, %v8513
    // Predicated region
    $region14: #{_forward_jit.1} parent=1 // pred_check
      _
    $region15: #{_forward_jit.1} parent=1 // pred_check_branch
      %8519 = sbr.rel (0) target = $region17
    $region16: #{_forward_jit.1} parent=1 // pred_region
      %s8521 = ssub.s32 16, 16
      %8522 = vsyncadd [#allocation3], %s8521
      %s8524 = sshll.u32 [#allocation2], 4
      %s8525 = int_to_ptr.vmem [resolvable:$true] %s8524
      %8527 = dma.vmem_to_hbm [thread:$0]  %s8525, 16, %s3, [#allocation3]
    $region17: #{_forward_jit.1} parent=1 // pred_fallthru
      _
    // Predicated region
    $region18: #{_forward_jit.1} parent=1 // pred_check
      _
    $region19: #{_forward_jit.1} parent=1 // pred_check_branch
      %8529 = sbr.rel (0) target = $region21
    $region20: #{_forward_jit.1} parent=1 // pred_region
      %8530 = dma.done [#allocation3], 16
    $region21: #{_forward_jit.1} parent=1 // pred_fallthru
      _
    %8531 = vsyncpa [#allocation3], 1

</llo_original>
